<compile_context>
chip_gen: v7x
topology: tpu7x:2x2x1
jax: 0.10.0
libtpu: 0.0.40
codegen_flags: <defaults>
</compile_context>

<pallas_src>
import math
from functools import partial

import numpy as np
import jax
import jax.numpy as jnp
from jax import lax
from jax.experimental import pallas as pl
from jax.experimental.pallas import tpu as pltpu

COMPUTE_DTYPE = jnp.bfloat16          # MXU operand dtype (accumulation is f32)
VMEM_LIMIT = 32 * 1024 * 1024         # safe scoped-VMEM budget on v5e/v6e/v7x
LN_EPS = 1e-5


# ----------------------------- helpers ---------------------------------------
def _round_up(a, b):
    return (a + b - 1) // b * b


def _pad_to(x, shape):
    pads = [(0, t - s) for s, t in zip(x.shape, shape)]
    if all(p == (0, 0) for p in pads):
        return x
    return jnp.pad(x, pads)


def _pick_group(n, cap=8):
    """Largest divisor of n that is <= cap (heads packed per attention grid step)."""
    g = 1
    for d in range(1, min(cap, n) + 1):
        if n % d == 0:
            g = d
    return g


def _gelu_exact(x):
    # matches torch.nn.GELU() default (erf form)
    return 0.5 * x * (1.0 + lax.erf(x / jnp.sqrt(jnp.float32(2.0))))


# ----------------------------- tiled matmul (+ fused epilogue) ----------------
def _make_mm_kernel(act, has_res):
    def kernel(*refs):
        if has_res:
            x_ref, w_ref, r_ref, o_ref, acc_ref = refs
        else:
            x_ref, w_ref, o_ref, acc_ref = refs
            r_ref = None
        k = pl.program_id(2)

        @pl.when(k == 0)
        def _():
            acc_ref[...] = jnp.zeros_like(acc_ref)

        acc_ref[...] += jnp.dot(
            x_ref[...].astype(COMPUTE_DTYPE),
            w_ref[...].astype(COMPUTE_DTYPE),
            preferred_element_type=jnp.float32)

        @pl.when(k == pl.num_programs(2) - 1)
        def _():
            y = acc_ref[...]
            if act is not None:
                y = act(y)
            if has_res:
                y = y + r_ref[...]
            o_ref[...] = y.astype(o_ref.dtype)

    return kernel


def fused_matmul(x, w, *, act=None, residual=None, tm=128, tk=256, tn=128):
    """y = act(x @ w) [+ residual]; tiled, bf16 MXU operands, f32 accumulator."""
    M, K = x.shape
    Kw, N = w.shape
    assert K == Kw
    tm = min(tm, _round_up(M, 8))
    tk = min(tk, _round_up(K, 128))
    tn = min(tn, _round_up(N, 128))
    Mp, Kp, Np = _round_up(M, tm), _round_up(K, tk), _round_up(N, tn)

    args = [_pad_to(x, (Mp, Kp)), _pad_to(w, (Kp, Np))]
    in_specs = [pl.BlockSpec((tm, tk), lambda i, j, k: (i, k)),
                pl.BlockSpec((tk, tn), lambda i, j, k: (k, j))]
    if residual is not None:
        args.append(_pad_to(residual, (Mp, Np)))
        in_specs.append(pl.BlockSpec((tm, tn), lambda i, j, k: (i, j)))

    out = pl.pallas_call(
        _make_mm_kernel(act, residual is not None),
        out_shape=jax.ShapeDtypeStruct((Mp, Np), jnp.float32),
        grid_spec=pltpu.PrefetchScalarGridSpec(
            num_scalar_prefetch=0,
            grid=(Mp // tm, Np // tn, Kp // tk),
            in_specs=in_specs,
            out_specs=pl.BlockSpec((tm, tn), lambda i, j, k: (i, j)),
            scratch_shapes=[pltpu.VMEM((tm, tn), jnp.float32)]),
        compiler_params=pltpu.CompilerParams(
            dimension_semantics=("parallel", "parallel", "arbitrary"),
            vmem_limit_bytes=VMEM_LIMIT),
    )(*args)
    return out[:M, :N]


# --------------- fused gate-blend + output projection + residual --------------
def _blend_proj_kernel(g_ref, a_ref, b_ref, w_ref, r_ref, o_ref, acc_ref):
    k = pl.program_id(2)

    @pl.when(k == 0)
    def _():
        acc_ref[...] = jnp.zeros_like(acc_ref)

    g = g_ref[...]
    y = g * a_ref[...] + (1.0 - g) * b_ref[...]
    acc_ref[...] += jnp.dot(y.astype(COMPUTE_DTYPE),
                            w_ref[...].astype(COMPUTE_DTYPE),
                            preferred_element_type=jnp.float32)

    @pl.when(k == pl.num_programs(2) - 1)
    def _():
        o_ref[...] = acc_ref[...] + r_ref[...]


def blend_proj_residual(g, ya, yb, w, residual, *, tm=128, tk=256, tn=128):
    """out = (g*ya + (1-g)*yb) @ w + residual, fused into one tiled kernel."""
    M, K = g.shape
    Kw, N = w.shape
    assert K == Kw
    tm = min(tm, _round_up(M, 8))
    tk = min(tk, _round_up(K, 128))
    tn = min(tn, _round_up(N, 128))
    Mp, Kp, Np = _round_up(M, tm), _round_up(K, tk), _round_up(N, tn)
    args = [_pad_to(g, (Mp, Kp)), _pad_to(ya, (Mp, Kp)), _pad_to(yb, (Mp, Kp)),
            _pad_to(w, (Kp, Np)), _pad_to(residual, (Mp, Np))]
    out = pl.pallas_call(
        _blend_proj_kernel,
        out_shape=jax.ShapeDtypeStruct((Mp, Np), jnp.float32),
        grid_spec=pltpu.PrefetchScalarGridSpec(
            num_scalar_prefetch=0,
            grid=(Mp // tm, Np // tn, Kp // tk),
            in_specs=[pl.BlockSpec((tm, tk), lambda i, j, k: (i, k)),
                      pl.BlockSpec((tm, tk), lambda i, j, k: (i, k)),
                      pl.BlockSpec((tm, tk), lambda i, j, k: (i, k)),
                      pl.BlockSpec((tk, tn), lambda i, j, k: (k, j)),
                      pl.BlockSpec((tm, tn), lambda i, j, k: (i, j))],
            out_specs=pl.BlockSpec((tm, tn), lambda i, j, k: (i, j)),
            scratch_shapes=[pltpu.VMEM((tm, tn), jnp.float32)]),
        compiler_params=pltpu.CompilerParams(
            dimension_semantics=("parallel", "parallel", "arbitrary"),
            vmem_limit_bytes=VMEM_LIMIT),
    )(*args)
    return out[:M, :N]


# ----------------------------- LayerNorm (bias=False) -------------------------
def _ln_kernel(x_ref, w_ref, o_ref):
    x = x_ref[...]
    mu = jnp.mean(x, axis=-1, keepdims=True)
    xc = x - mu
    var = jnp.mean(xc * xc, axis=-1, keepdims=True)
    o_ref[...] = xc * lax.rsqrt(var + LN_EPS) * w_ref[...]


def layernorm(x2d, w, *, tm=256):
    M, C = x2d.shape
    tm = min(tm, _round_up(M, 8))
    Mp = _round_up(M, tm)
    out = pl.pallas_call(
        _ln_kernel,
        out_shape=jax.ShapeDtypeStruct((Mp, C), jnp.float32),
        grid_spec=pltpu.PrefetchScalarGridSpec(
            num_scalar_prefetch=0,
            grid=(Mp // tm,),
            in_specs=[pl.BlockSpec((tm, C), lambda i: (i, 0)),
                      pl.BlockSpec((1, C), lambda i: (0, 0))],
            out_specs=pl.BlockSpec((tm, C), lambda i: (i, 0))),
        compiler_params=pltpu.CompilerParams(
            dimension_semantics=("parallel",), vmem_limit_bytes=VMEM_LIMIT),
    )(_pad_to(x2d, (Mp, C)), w.reshape(1, C))
    return out[:M]


# ----------------------------- compression MLP --------------------------------
def _comp_mlp_kernel(xg_ref, wpe_ref, w1_ref, w2_ref, wr_ref, o_ref):
    xg = xg_ref[...]                                   # (tr, bl, hs)
    xpe = xg + wpe_ref[...][None, :, :]                # + block positional emb
    w1 = w1_ref[...]                                   # (bl, 4bl)
    tr, bl, hs = xg.shape
    nhid = w1.shape[1]
    # z[r, j, d] = sum_t xpe[r, t, d] * w1[t, j]   (bl is tiny & static; keep it
    # on the VPU with hs lane-dense rather than a <=32-wide MXU contraction)
    z = jnp.zeros((tr, nhid, hs), jnp.float32)
    for t in range(bl):
        z = z + xpe[:, t, :][:, None, :] * w1[t, :][None, :, None]
    h = _gelu_exact(z)
    y = jnp.sum(h * w2_ref[0, :][None, :, None], axis=1)          # fc2
    y = y + jnp.sum(xg * wr_ref[0, :][None, :, None], axis=1)     # residual proj
    o_ref[...] = jnp.clip(y, -3.0, 3.0)


def compression_mlp(xh, p, bl, stride):
    """xh: (BH, T, hs) -> (BH, nb, hs) compressed blocks (lane-dense output)."""
    BH, T, hs = xh.shape
    assert T >= bl, "compressed branch requires T >= block_length"
    nb = (T - bl) // stride + 1
    idx = jnp.arange(nb)[:, None] * stride + jnp.arange(bl)[None, :]   # (nb, bl)
    # TODO(synk): overlapping-window gather still duplicates ~bl/stride x data in
    # HBM; an in-kernel strided-window read would remove that traffic.
    xg = xh[:, idx, :].reshape(BH * nb, bl, hs)                        # (R, bl, hs)
    R = BH * nb
    tr = min(256, _round_up(R, 8))
    Rp = _round_up(R, tr)
    xg = _pad_to(xg, (Rp, bl, hs))
    nhid = p["w1"].shape[1]
    out = pl.pallas_call(
        _comp_mlp_kernel,
        out_shape=jax.ShapeDtypeStruct((Rp, hs), jnp.float32),
        grid_spec=pltpu.PrefetchScalarGridSpec(
            num_scalar_prefetch=0,
            grid=(Rp // tr,),
            in_specs=[pl.BlockSpec((tr, bl, hs), lambda i: (i, 0, 0)),
                      pl.BlockSpec((bl, hs), lambda i: (0, 0)),
                      pl.BlockSpec((bl, nhid), lambda i: (0, 0)),
                      pl.BlockSpec((1, nhid), lambda i: (0, 0)),
                      pl.BlockSpec((1, bl), lambda i: (0, 0))],
            out_specs=pl.BlockSpec((tr, hs), lambda i: (i, 0))),
        compiler_params=pltpu.CompilerParams(
            dimension_semantics=("parallel",), vmem_limit_bytes=VMEM_LIMIT),
    )(xg, p["wpe"], p["w1"], p["w2r"], p["wrr"])
    return out[:R].reshape(BH, nb, hs)


# ----------------------------- flash local (sliding-window) attention ---------
def _local_flash_kernel(q_ref, k_ref, v_ref, o_ref, m_sc, l_sc, acc_sc,
                        *, scale, window, tq, tk, nkv):
    qi = pl.program_id(1)
    j = pl.program_id(2)

    @pl.when(j == 0)
    def _():
        m_sc[...] = jnp.full(m_sc.shape, -jnp.inf, m_sc.dtype)
        l_sc[...] = jnp.zeros_like(l_sc)
        acc_sc[...] = jnp.zeros_like(acc_sc)

    kv_t = qi - (nkv - 1) + j          # intended kv tile index (< 0 -> skip)

    @pl.when(kv_t >= 0)
    def _():
        q = q_ref[...].astype(COMPUTE_DTYPE)           # (G, tq, hs)
        k = k_ref[...].astype(COMPUTE_DTYPE)           # (G, tk, hs)
        s = jnp.einsum('gqd,gkd->gqk', q, k,
                       preferred_element_type=jnp.float32) * scale
        row = qi * tq + lax.broadcasted_iota(jnp.int32, (tq, tk), 0)
        col = kv_t * tk + lax.broadcasted_iota(jnp.int32, (tq, tk), 1)
        allow = (col > row - window) & (col <= row)
        s = jnp.where(allow[None, :, :], s, -jnp.inf)
        m_prev = m_sc[...]
        m_new = jnp.maximum(m_prev, jnp.max(s, axis=-1, keepdims=True))
        m_b = jnp.where(m_new == -jnp.inf, 0.0, m_new)
        alpha = jnp.exp(m_prev - m_b)
        p = jnp.where(allow[None, :, :], jnp.exp(s - m_b), 0.0)
        l_sc[...] = alpha * l_sc[...] + jnp.sum(p, axis=-1, keepdims=True)
        acc_sc[...] = alpha * acc_sc[...] + jnp.einsum(
            'gqk,gkd->gqd', p.astype(COMPUTE_DTYPE),
            v_ref[...].astype(COMPUTE_DTYPE), preferred_element_type=jnp.float32)
        m_sc[...] = m_new

    @pl.when(j == nkv - 1)
    def _():
        l = l_sc[...]
        safe = jnp.where(l > 0.0, l, 1.0)
        inv = jnp.where(l > 0.0, pl.reciprocal(safe, approx=True), 0.0)
        o_ref[...] = (acc_sc[...] * inv).astype(o_ref.dtype)


def local_attention(q, k, v, window):
    BH, T, hs = q.shape
    G = _pick_group(BH)
    tq = min(128, _round_up(T, 8))
    Tp = _round_up(T, tq)
    nq = Tp // tq
    nkv = min(pl.cdiv(max(window - 1, 0), tq) + 1, nq)   # kv tiles per q tile
    qp, kp, vp = (_pad_to(a, (BH, Tp, hs)) for a in (q, k, v))
    scale = 1.0 / math.sqrt(hs)

    kv_map = lambda b, i, j: (b, jnp.maximum(i - (nkv - 1) + j, 0), 0)
    out = pl.pallas_call(
        partial(_local_flash_kernel, scale=scale, window=window,
                tq=tq, tk=tq, nkv=nkv),
        out_shape=jax.ShapeDtypeStruct((BH, Tp, hs), jnp.float32),
        grid_spec=pltpu.PrefetchScalarGridSpec(
            num_scalar_prefetch=0,
            grid=(BH // G, nq, nkv),
            in_specs=[pl.BlockSpec((G, tq, hs), lambda b, i, j: (b, i, 0)),
                      pl.BlockSpec((G, tq, hs), kv_map),
                      pl.BlockSpec((G, tq, hs), kv_map)],
            out_specs=pl.BlockSpec((G, tq, hs), lambda b, i, j: (b, i, 0)),
            scratch_shapes=[pltpu.VMEM((G, tq, 1), jnp.float32),
                            pltpu.VMEM((G, tq, 1), jnp.float32),
                            pltpu.VMEM((G, tq, hs), jnp.float32)]),
        compiler_params=pltpu.CompilerParams(
            dimension_semantics=("parallel", "parallel", "arbitrary"),
            vmem_limit_bytes=VMEM_LIMIT),
    )(qp, kp, vp)
    return out[:, :T, :]


# ----------------------------- flash compressed-block attention ---------------
def _comp_flash_kernel(q_ref, k_ref, v_ref, o_ref, m_sc, l_sc, acc_sc,
                       *, scale, stride, nb, tq, tk):
    qi = pl.program_id(1)
    j = pl.program_id(2)

    @pl.when(j == 0)
    def _():
        m_sc[...] = jnp.full(m_sc.shape, -jnp.inf, m_sc.dtype)
        l_sc[...] = jnp.zeros_like(l_sc)
        acc_sc[...] = jnp.zeros_like(acc_sc)

    q_hi = qi * tq + tq - 1
    live = jnp.logical_and(j * tk * stride < q_hi, j * tk < nb)   # causal/pad skip

    @pl.when(live)
    def _():
        q = q_ref[...].astype(COMPUTE_DTYPE)
        k = k_ref[...].astype(COMPUTE_DTYPE)
        s = jnp.einsum('gqd,gkd->gqk', q, k,
                       preferred_element_type=jnp.float32) * scale
        row = qi * tq + lax.broadcasted_iota(jnp.int32, (tq, tk), 0)
        blk = j * tk + lax.broadcasted_iota(jnp.int32, (tq, tk), 1)
        allow = (blk * stride < row) & (blk < nb)
        s = jnp.where(allow[None, :, :], s, -jnp.inf)
        m_prev = m_sc[...]
        m_new = jnp.maximum(m_prev, jnp.max(s, axis=-1, keepdims=True))
        m_b = jnp.where(m_new == -jnp.inf, 0.0, m_new)
        alpha = jnp.exp(m_prev - m_b)
        p = jnp.where(allow[None, :, :], jnp.exp(s - m_b), 0.0)
        l_sc[...] = alpha * l_sc[...] + jnp.sum(p, axis=-1, keepdims=True)
        acc_sc[...] = alpha * acc_sc[...] + jnp.einsum(
            'gqk,gkd->gqd', p.astype(COMPUTE_DTYPE),
            v_ref[...].astype(COMPUTE_DTYPE), preferred_element_type=jnp.float32)
        m_sc[...] = m_new

    @pl.when(j == pl.num_programs(2) - 1)
    def _():
        l = l_sc[...]
        safe = jnp.where(l > 0.0, l, 1.0)
        inv = jnp.where(l > 0.0, pl.reciprocal(safe, approx=True), 0.0)
        # fully-masked rows (query 0, T-padding) -> 0, matching torch nan_to_num
        o_ref[...] = (acc_sc[...] * inv).astype(o_ref.dtype)


def comp_attention(q, kc, vc, stride):
    BH, T, hs = q.shape
    nb = kc.shape[1]
    G = _pick_group(BH)
    tq = min(128, _round_up(T, 8))
    Tp = _round_up(T, tq)
    nq = Tp // tq
    tk = min(128, _round_up(nb, 8))
    nbp = _round_up(nb, tk)
    qp = _pad_to(q, (BH, Tp, hs))
    kcp = _pad_to(kc, (BH, nbp, hs))
    vcp = _pad_to(vc, (BH, nbp, hs))
    scale = 1.0 / math.sqrt(hs)
    out = pl.pallas_call(
        partial(_comp_flash_kernel, scale=scale, stride=stride, nb=nb, tq=tq, tk=tk),
        out_shape=jax.ShapeDtypeStruct((BH, Tp, hs), jnp.float32),
        grid_spec=pltpu.PrefetchScalarGridSpec(
            num_scalar_prefetch=0,
            grid=(BH // G, nq, nbp // tk),
            in_specs=[pl.BlockSpec((G, tq, hs), lambda b, i, j: (b, i, 0)),
                      pl.BlockSpec((G, tk, hs), lambda b, i, j: (b, j, 0)),
                      pl.BlockSpec((G, tk, hs), lambda b, i, j: (b, j, 0))],
            out_specs=pl.BlockSpec((G, tq, hs), lambda b, i, j: (b, i, 0)),
            scratch_shapes=[pltpu.VMEM((G, tq, 1), jnp.float32),
                            pltpu.VMEM((G, tq, 1), jnp.float32),
                            pltpu.VMEM((G, tq, hs), jnp.float32)]),
        compiler_params=pltpu.CompilerParams(
            dimension_semantics=("parallel", "parallel", "arbitrary"),
            vmem_limit_bytes=VMEM_LIMIT),
    )(qp, kcp, vcp)
    return out[:, :T, :]


# ----------------------------- NSA attention module ---------------------------
def nsa_forward(x_ln, x_resid, p, cfg):
    B, T, C = x_ln.shape
    nh = cfg["n_head"]
    hs = C // nh
    bl, stride, window = cfg["block_length"], cfg["stride_length"], cfg["local_window_size"]
    assert T >= bl, "compressed branch requires T >= block_length"

    xf = x_ln.reshape(B * T, C)
    # fused q/k_local/v_local/k_comp/v_comp projection: one (C, 5C) matmul
    qkv = fused_matmul(xf, p["W_qkv"])
    q, k_l, v_l, k_c, v_c = jnp.split(qkv, 5, axis=-1)

    # TODO(synk): head split/merge transposes still go through XLA/HBM; they could
    # be folded into the attention BlockSpec index_maps for extra DMA savings.
    def to_heads(a):
        return a.reshape(B, T, nh, hs).transpose(0, 2, 1, 3).reshape(B * nh, T, hs)

    qh, klh, vlh, kch, vch = map(to_heads, (q, k_l, v_l, k_c, v_c))

    k_comp = compression_mlp(kch, p["comp_k"], bl, stride)     # (BH, nb, hs)
    v_comp = compression_mlp(vch, p["comp_v"], bl, stride)

    y_local = local_attention(qh, klh, vlh, window)            # (BH, T, hs)
    y_comp = comp_attention(qh, k_comp, v_comp, stride)        # (BH, T, hs)

    def from_heads(a):
        return a.reshape(B, nh, T, hs).transpose(0, 2, 1, 3).reshape(B * T, C)

    yl = from_heads(y_local)
    yc = from_heads(y_comp)

    # gate MLP (tiled matmuls with fused GELU / sigmoid epilogues)
    gh = fused_matmul(xf, p["gate_W1"], act=_gelu_exact)
    gate = fused_matmul(gh, p["gate_W2"], act=jax.nn.sigmoid)

    # fused: blend(gate, y_local, y_comp) @ W_proj + residual(x)
    y = blend_proj_residual(gate, yl, yc, p["W_proj"], x_resid.reshape(B * T, C))
    # TODO(synk): attn_dropout / resid_dropout / comp-MLP dropout are eval-mode no-ops.
    return y.reshape(B, T, C)


# ----------------------------- full Block -------------------------------------
def block_forward(x, params, cfg):
    B, T, C = x.shape
    xf = x.reshape(B * T, C)
    h1 = layernorm(xf, params["ln1_w"]).reshape(B, T, C)
    y1 = nsa_forward(h1, x, params["attn"], cfg)               # includes +x residual
    y1f = y1.reshape(B * T, C)
    h2 = layernorm(y1f, params["ln2_w"])
    m = fused_matmul(h2, params["mlp_W_fc"], act=_gelu_exact)
    y2 = fused_matmul(m, params["mlp_W_proj"], residual=y1f)   # +y1 residual fused
    return y2.reshape(B, T, C)


# ----------------------------- pure-JAX (f32) reference -----------------------
def reference_block(x, params, cfg):
    B, T, C = x.shape
    nh = cfg["n_head"]
    hs = C // nh
    bl, stride, window = cfg["block_length"], cfg["stride_length"], cfg["local_window_size"]

    def ln(v, w):
        mu = v.mean(-1, keepdims=True)
        var = ((v - mu) ** 2).mean(-1, keepdims=True)
        return (v - mu) / jnp.sqrt(var + LN_EPS) * w

    h1 = ln(x, params["ln1_w"])
    ap = params["attn"]
    qkv = h1.reshape(B * T, C) @ ap["W_qkv"]
    q, k_l, v_l, k_c, v_c = jnp.split(qkv, 5, -1)
    heads = lambda a: a.reshape(B, T, nh, hs).transpose(0, 2, 1, 3)
    q, k_l, v_l, k_c, v_c = map(heads, (q, k_l, v_l, k_c, v_c))

    def comp(xh, p):
        nb = (T - bl) // stride + 1
        idx = jnp.arange(nb)[:, None] * stride + jnp.arange(bl)[None, :]
        xw = xh[:, :, idx, :]                                  # (B,nh,nb,bl,hs)
        xpe = xw + p["wpe"][None, None, None, :, :]
        h = _gelu_exact(jnp.einsum('bhntd,tj->bhnjd', xpe, p["w1"]))
        y = jnp.einsum('bhnjd,j->bhnd', h, p["w2r"][0])
        y = y + jnp.einsum('bhntd,t->bhnd', xw, p["wrr"][0])
        return jnp.clip(y, -3.0, 3.0)

    k_comp, v_comp = comp(k_c, ap["comp_k"]), comp(v_c, ap["comp_v"])
    scale = 1.0 / math.sqrt(hs)

    att = (q @ jnp.swapaxes(k_l, -1, -2)) * scale
    row, col = jnp.arange(T)[:, None], jnp.arange(T)[None, :]
    allow = (col > row - window) & (col <= row)
    att = jax.nn.softmax(jnp.where(allow, att, -jnp.inf), -1)
    y_local = att @ v_l

    nb = k_comp.shape[2]
    attc = (q @ jnp.swapaxes(k_comp, -1, -2)) * scale
    maskc = (jnp.arange(nb)[None, :] * stride) >= jnp.arange(T)[:, None]
    attc = jnp.nan_to_num(jax.nn.softmax(jnp.where(maskc, -jnp.inf, attc), -1))
    y_comp = attc @ v_comp

    yl = y_local.transpose(0, 2, 1, 3).reshape(B, T, C)
    yc = y_comp.transpose(0, 2, 1, 3).reshape(B, T, C)
    gate = jax.nn.sigmoid(_gelu_exact(h1 @ ap["gate_W1"]) @ ap["gate_W2"])
    y1 = x + (gate * yl + (1.0 - gate) * yc) @ ap["W_proj"]

    h2 = ln(y1, params["ln2_w"])
    y2 = y1 + _gelu_exact(h2 @ params["mlp_W_fc"]) @ params["mlp_W_proj"]
    return y2


# ----------------------------- params ----------------------------------------
def init_params(key, cfg):
    C = cfg["n_embd"]
    nh = cfg["n_head"]
    hs = C // nh
    bl = cfg["block_length"]
    ks = jax.random.split(key, 8)
    s = 0.05

    def comp_params(k):
        k1, k2, k3, k4 = jax.random.split(k, 4)
        return {
            "w1": s * jax.random.normal(k1, (bl, 4 * bl), jnp.float32),
            "w2r": s * jax.random.normal(k2, (1, 4 * bl), jnp.float32),
            "wrr": s * jax.random.normal(k3, (1, bl), jnp.float32),
            "wpe": s * jax.random.normal(k4, (bl, hs), jnp.float32),
        }

    attn = {
        "W_qkv": s * jax.random.normal(ks[0], (C, 5 * C), jnp.float32),
        "W_proj": s * jax.random.normal(ks[1], (C, C), jnp.float32),
        "gate_W1": s * jax.random.normal(ks[2], (C, 4 * C), jnp.float32),
        "gate_W2": s * jax.random.normal(ks[3], (4 * C, C), jnp.float32),
        "comp_k": comp_params(ks[4]),
        "comp_v": comp_params(ks[5]),
    }
    return {
        "ln1_w": jnp.ones((C,), jnp.float32),
        "ln2_w": jnp.ones((C,), jnp.float32),
        "attn": attn,
        "mlp_W_fc": s * jax.random.normal(ks[6], (C, 4 * C), jnp.float32),
        "mlp_W_proj": s * jax.random.normal(ks[7], (4 * C, C), jnp.float32),
    }


# ----------------------------- main -------------------------------------------
if __name__ == "__main__":
    cfg = dict(
        n_embd=32, n_head=2, block_size=16,
        local_window_size=4, block_length=8, stride_length=4,
        bias=False, dropout=0.0,
    )
    B, T, C = 2, 16, cfg["n_embd"]

    key = jax.random.PRNGKey(0)
    kx, kp = jax.random.split(key)
    x = jax.random.normal(kx, (B, T, C), jnp.float32)
    params = init_params(kp, cfg)

    fwd = jax.jit(lambda x_, p_: block_forward(x_, p_, cfg))
    out = jax.block_until_ready(fwd(x, params))

    ref = jax.block_until_ready(reference_block(x, params, cfg))
    # bf16 MXU operands (f32 accumulation) -> slightly looser tolerance than pure f32
    np.testing.assert_allclose(np.asarray(out), np.asarray(ref), rtol=1e-2, atol=1e-2)

    print("KERNEL_OK")
</pallas_src>

<mosaic_0001>
module attributes {stable_mosaic.version = 11 : i64} {
  func.func @_ln_kernel(%arg0: i32, %arg1: memref<32x32xf32, #tpu.memory_space<vmem>>, %arg2: memref<1x32xf32, #tpu.memory_space<vmem>>, %arg3: memref<32x32xf32, #tpu.memory_space<vmem>>) attributes {dimension_semantics = [#tpu.dimension_semantics<parallel>], iteration_bounds = array<i64: 1>, scalar_prefetch = 0 : i64, scratch_operands = 0 : i64, tpu.core_type = #tpu.core_type<tc>, window_params = [{transform_indices = @transform_0, window_bounds = array<i64: 32, 32>}, {pipeline_mode = #tpu.pipeline_mode<synchronous>, transform_indices = @transform_1, window_bounds = array<i64: 1, 32>}, {transform_indices = @transform_2, window_bounds = array<i64: 32, 32>}]} {
    %c0 = arith.constant 0 : index
    %c0_0 = arith.constant 0 : index
    %0 = vector.load %arg1[%c0, %c0_0] : memref<32x32xf32, #tpu.memory_space<vmem>>, vector<32x32xf32>
    %cst = arith.constant dense<0.000000e+00> : vector<32xf32>
    %1 = vector.multi_reduction <add>, %0, %cst [1] : vector<32x32xf32> to vector<32xf32>
    %2 = vector.shape_cast %1 : vector<32xf32> to vector<32x1xf32>
    %cst_1 = arith.constant 3.200000e+01 : f32
    %3 = vector.broadcast %cst_1 : f32 to vector<32x1xf32>
    %4 = arith.divf %2, %3 : vector<32x1xf32>
    %5 = vector.broadcast %4 : vector<32x1xf32> to vector<32x32xf32>
    %6 = arith.subf %0, %5 : vector<32x32xf32>
    %7 = arith.mulf %6, %6 : vector<32x32xf32>
    %cst_2 = arith.constant dense<0.000000e+00> : vector<32xf32>
    %8 = vector.multi_reduction <add>, %7, %cst_2 [1] : vector<32x32xf32> to vector<32xf32>
    %9 = vector.shape_cast %8 : vector<32xf32> to vector<32x1xf32>
    %cst_3 = arith.constant 3.200000e+01 : f32
    %10 = vector.broadcast %cst_3 : f32 to vector<32x1xf32>
    %11 = arith.divf %9, %10 : vector<32x1xf32>
    %cst_4 = arith.constant 9.99999974E-6 : f32
    %12 = vector.broadcast %cst_4 : f32 to vector<32x1xf32>
    %13 = arith.addf %11, %12 : vector<32x1xf32>
    %14 = math.rsqrt %13 : vector<32x1xf32>
    %15 = vector.broadcast %14 : vector<32x1xf32> to vector<32x32xf32>
    %16 = arith.mulf %6, %15 : vector<32x32xf32>
    %c0_5 = arith.constant 0 : index
    %c0_6 = arith.constant 0 : index
    %17 = vector.load %arg2[%c0_5, %c0_6] : memref<1x32xf32, #tpu.memory_space<vmem>>, vector<1x32xf32>
    %18 = vector.broadcast %17 : vector<1x32xf32> to vector<32x32xf32>
    %19 = arith.mulf %16, %18 : vector<32x32xf32>
    %c0_7 = arith.constant 0 : index
    %c0_8 = arith.constant 0 : index
    %20 = vector.load %arg3[%c0_7, %c0_8] : memref<32x32xf32, #tpu.memory_space<vmem>>, vector<32x32xf32>
    tpu.vector_store %arg3[%c0_7, %c0_8], %19 {strides = array<i32>} : memref<32x32xf32, #tpu.memory_space<vmem>>, vector<32x32xf32>,
    return
  }
  func.func @transform_0(%arg0: i32) -> (i32, i32) {
    %c0_i32 = arith.constant 0 : i32
    %c0_i32_0 = arith.constant 0 : i32
    return %arg0, %c0_i32 : i32, i32
  }
  func.func @transform_1(%arg0: i32) -> (i32, i32) {
    %c0_i32 = arith.constant 0 : i32
    %c0_i32_0 = arith.constant 0 : i32
    %c0_i32_1 = arith.constant 0 : i32
    return %c0_i32, %c0_i32_0 : i32, i32
  }
  func.func @transform_2(%arg0: i32) -> (i32, i32) {
    %c0_i32 = arith.constant 0 : i32
    %c0_i32_0 = arith.constant 0 : i32
    return %arg0, %c0_i32 : i32, i32
  }
}

module attributes {stable_mosaic.version = 11 : i64} {
  func.func @kernel(%arg0: i32, %arg1: i32, %arg2: i32, %arg3: memref<32x128xf32, #tpu.memory_space<vmem>>, %arg4: memref<128x128xf32, #tpu.memory_space<vmem>>, %arg5: memref<32x128xf32, #tpu.memory_space<vmem>>, %arg6: memref<32x128xf32, #tpu.memory_space<vmem>>) attributes {dimension_semantics = [#tpu.dimension_semantics<parallel>, #tpu.dimension_semantics<parallel>, #tpu.dimension_semantics<arbitrary>], iteration_bounds = array<i64: 1, 2, 1>, scalar_prefetch = 0 : i64, scratch_operands = 1 : i64, tpu.core_type = #tpu.core_type<tc>, window_params = [{transform_indices = @transform_0, window_bounds = array<i64: 32, 128>}, {transform_indices = @transform_1, window_bounds = array<i64: 128, 128>}, {transform_indices = @transform_2, window_bounds = array<i64: 32, 128>}]} {
    %c0_i32 = arith.constant 0 : i32
    %0 = arith.cmpi eq, %arg2, %c0_i32 : i32
    %1 = arith.extui %0 : i1 to i32
    %c0_i32_0 = arith.constant 0 : i32
    %2 = arith.cmpi ne, %1, %c0_i32_0 : i32
    scf.if %2 {
      %cst_10 = arith.constant 0.000000e+00 : f32
      %14 = vector.broadcast %cst_10 : f32 to vector<32x128xf32>
      %c0_11 = arith.constant 0 : index
      %c0_12 = arith.constant 0 : index
      %15 = vector.load %arg6[%c0_11, %c0_12] : memref<32x128xf32, #tpu.memory_space<vmem>>, vector<32x128xf32>
      tpu.vector_store %arg6[%c0_11, %c0_12], %14 {strides = array<i32>} : memref<32x128xf32, #tpu.memory_space<vmem>>, vector<32x128xf32>,
    } else {
    }
    %c0 = arith.constant 0 : index
    %c0_1 = arith.constant 0 : index
    %3 = vector.load %arg6[%c0, %c0_1] : memref<32x128xf32, #tpu.memory_space<vmem>>, vector<32x128xf32>
    %c0_2 = arith.constant 0 : index
    %c0_3 = arith.constant 0 : index
    %4 = vector.load %arg3[%c0_2, %c0_3] : memref<32x128xf32, #tpu.memory_space<vmem>>, vector<32x128xf32>
    %5 = arith.truncf %4 : vector<32x128xf32> to vector<32x128xbf16>
    %c0_4 = arith.constant 0 : index
    %c0_5 = arith.constant 0 : index
    %6 = vector.load %arg4[%c0_4, %c0_5] : memref<128x128xf32, #tpu.memory_space<vmem>>, vector<128x128xf32>
    %7 = arith.truncf %6 : vector<128x128xf32> to vector<128x128xbf16>
    %cst = arith.constant dense<0.000000e+00> : vector<32x128xf32>
    %8 = tpu.matmul %5, %7, %cst {dimension_numbers = #tpu.dot_dimension_numbers<[1], [0], [0], [1], [0, 0, 1, 1], [], []>} : vector<32x128xbf16>, vector<128x128xbf16>, vector<32x128xf32> -> vector<32x128xf32>
    %9 = arith.addf %3, %8 : vector<32x128xf32>
    %c0_6 = arith.constant 0 : index
    %c0_7 = arith.constant 0 : index
    %10 = vector.load %arg6[%c0_6, %c0_7] : memref<32x128xf32, #tpu.memory_space<vmem>>, vector<32x128xf32>
    tpu.vector_store %arg6[%c0_6, %c0_7], %9 {strides = array<i32>} : memref<32x128xf32, #tpu.memory_space<vmem>>, vector<32x128xf32>,
    %c0_i32_8 = arith.constant 0 : i32
    %11 = arith.cmpi eq, %arg2, %c0_i32_8 : i32
    %12 = arith.extui %11 : i1 to i32
    %c0_i32_9 = arith.constant 0 : i32
    %13 = arith.cmpi ne, %12, %c0_i32_9 : i32
    scf.if %13 {
      %c0_10 = arith.constant 0 : index
      %c0_11 = arith.constant 0 : index
      %14 = vector.load %arg6[%c0_10, %c0_11] : memref<32x128xf32, #tpu.memory_space<vmem>>, vector<32x128xf32>
      %c0_12 = arith.constant 0 : index
      %c0_13 = arith.constant 0 : index
      %15 = vector.load %arg5[%c0_12, %c0_13] : memref<32x128xf32, #tpu.memory_space<vmem>>, vector<32x128xf32>
      tpu.vector_store %arg5[%c0_12, %c0_13], %14 {strides = array<i32>} : memref<32x128xf32, #tpu.memory_space<vmem>>, vector<32x128xf32>,
    } else {
    }
    return
  }
  func.func @transform_0(%arg0: i32, %arg1: i32, %arg2: i32) -> (i32, i32) {
    %c0_i32 = arith.constant 0 : i32
    return %arg0, %arg2 : i32, i32
  }
  func.func @transform_1(%arg0: i32, %arg1: i32, %arg2: i32) -> (i32, i32) {
    %c0_i32 = arith.constant 0 : i32
    return %arg2, %arg1 : i32, i32
  }
  func.func @transform_2(%arg0: i32, %arg1: i32, %arg2: i32) -> (i32, i32) {
    %c0_i32 = arith.constant 0 : i32
    return %arg0, %arg1 : i32, i32
  }
}

module attributes {stable_mosaic.version = 11 : i64} {
  func.func @_comp_mlp_kernel(%arg0: i32, %arg1: memref<16x8x16xf32, #tpu.memory_space<vmem>>, %arg2: memref<8x16xf32, #tpu.memory_space<vmem>>, %arg3: memref<8x32xf32, #tpu.memory_space<vmem>>, %arg4: memref<1x32xf32, #tpu.memory_space<vmem>>, %arg5: memref<1x8xf32, #tpu.memory_space<vmem>>, %arg6: memref<16x16xf32, #tpu.memory_space<vmem>>) attributes {dimension_semantics = [#tpu.dimension_semantics<parallel>], iteration_bounds = array<i64: 1>, scalar_prefetch = 0 : i64, scratch_operands = 0 : i64, tpu.core_type = #tpu.core_type<tc>, window_params = [{transform_indices = @transform_0, window_bounds = array<i64: 16, 8, 16>}, {pipeline_mode = #tpu.pipeline_mode<synchronous>, transform_indices = @transform_1, window_bounds = array<i64: 8, 16>}, {pipeline_mode = #tpu.pipeline_mode<synchronous>, transform_indices = @transform_2, window_bounds = array<i64: 8, 32>}, {pipeline_mode = #tpu.pipeline_mode<synchronous>, transform_indices = @transform_3, window_bounds = array<i64: 1, 32>}, {pipeline_mode = #tpu.pipeline_mode<synchronous>, transform_indices = @transform_4, window_bounds = array<i64: 1, 8>}, {transform_indices = @transform_5, window_bounds = array<i64: 16, 16>}]} {
    %c0 = arith.constant 0 : index
    %c0_0 = arith.constant 0 : index
    %c0_1 = arith.constant 0 : index
    %0 = vector.load %arg1[%c0, %c0_0, %c0_1] : memref<16x8x16xf32, #tpu.memory_space<vmem>>, vector<16x8x16xf32>
    %c0_2 = arith.constant 0 : index
    %c0_3 = arith.constant 0 : index
    %1 = vector.load %arg2[%c0_2, %c0_3] : memref<8x16xf32, #tpu.memory_space<vmem>>, vector<8x16xf32>
    %2 = vector.shape_cast %1 : vector<8x16xf32> to vector<1x8x16xf32>
    %3 = vector.broadcast %2 : vector<1x8x16xf32> to vector<16x8x16xf32>
    %4 = arith.addf %0, %3 : vector<16x8x16xf32>
    %c0_4 = arith.constant 0 : index
    %c0_5 = arith.constant 0 : index
    %5 = vector.load %arg3[%c0_4, %c0_5] : memref<8x32xf32, #tpu.memory_space<vmem>>, vector<8x32xf32>
    %cst = arith.constant 0.000000e+00 : f32
    %6 = vector.broadcast %cst : f32 to vector<16x32x16xf32>
    %7 = vector.extract_strided_slice %4 {offsets = [0, 0, 0], sizes = [16, 1, 16], strides = [1, 1, 1]} : vector<16x8x16xf32> to vector<16x1x16xf32>
    %8 = vector.shape_cast %7 : vector<16x1x16xf32> to vector<16x16xf32>
    %9 = vector.shape_cast %8 : vector<16x16xf32> to vector<16x1x16xf32>
    %10 = vector.extract_strided_slice %5 {offsets = [0, 0], sizes = [1, 32], strides = [1, 1]} : vector<8x32xf32> to vector<1x32xf32>
    %11 = vector.shape_cast %10 : vector<1x32xf32> to vector<32xf32>
    %12 = vector.shape_cast %11 : vector<32xf32> to vector<1x32x1xf32>
    %13 = vector.broadcast %9 : vector<16x1x16xf32> to vector<16x32x16xf32>
    %14 = vector.broadcast %12 : vector<1x32x1xf32> to vector<16x32x16xf32>
    %15 = arith.mulf %13, %14 : vector<16x32x16xf32>
    %16 = arith.addf %6, %15 : vector<16x32x16xf32>
    %17 = vector.extract_strided_slice %4 {offsets = [0, 1, 0], sizes = [16, 1, 16], strides = [1, 1, 1]} : vector<16x8x16xf32> to vector<16x1x16xf32>
    %18 = vector.shape_cast %17 : vector<16x1x16xf32> to vector<16x16xf32>
    %19 = vector.shape_cast %18 : vector<16x16xf32> to vector<16x1x16xf32>
    %20 = vector.extract_strided_slice %5 {offsets = [1, 0], sizes = [1, 32], strides = [1, 1]} : vector<8x32xf32> to vector<1x32xf32>
    %21 = vector.shape_cast %20 : vector<1x32xf32> to vector<32xf32>
    %22 = vector.shape_cast %21 : vector<32xf32> to vector<1x32x1xf32>
    %23 = vector.broadcast %19 : vector<16x1x16xf32> to vector<16x32x16xf32>
    %24 = vector.broadcast %22 : vector<1x32x1xf32> to vector<16x32x16xf32>
    %25 = arith.mulf %23, %24 : vector<16x32x16xf32>
    %26 = arith.addf %16, %25 : vector<16x32x16xf32>
    %27 = vector.extract_strided_slice %4 {offsets = [0, 2, 0], sizes = [16, 1, 16], strides = [1, 1, 1]} : vector<16x8x16xf32> to vector<16x1x16xf32>
    %28 = vector.shape_cast %27 : vector<16x1x16xf32> to vector<16x16xf32>
    %29 = vector.shape_cast %28 : vector<16x16xf32> to vector<16x1x16xf32>
    %30 = vector.extract_strided_slice %5 {offsets = [2, 0], sizes = [1, 32], strides = [1, 1]} : vector<8x32xf32> to vector<1x32xf32>
    %31 = vector.shape_cast %30 : vector<1x32xf32> to vector<32xf32>
    %32 = vector.shape_cast %31 : vector<32xf32> to vector<1x32x1xf32>
    %33 = vector.broadcast %29 : vector<16x1x16xf32> to vector<16x32x16xf32>
    %34 = vector.broadcast %32 : vector<1x32x1xf32> to vector<16x32x16xf32>
    %35 = arith.mulf %33, %34 : vector<16x32x16xf32>
    %36 = arith.addf %26, %35 : vector<16x32x16xf32>
    %37 = vector.extract_strided_slice %4 {offsets = [0, 3, 0], sizes = [16, 1, 16], strides = [1, 1, 1]} : vector<16x8x16xf32> to vector<16x1x16xf32>
    %38 = vector.shape_cast %37 : vector<16x1x16xf32> to vector<16x16xf32>
    %39 = vector.shape_cast %38 : vector<16x16xf32> to vector<16x1x16xf32>
    %40 = vector.extract_strided_slice %5 {offsets = [3, 0], sizes = [1, 32], strides = [1, 1]} : vector<8x32xf32> to vector<1x32xf32>
    %41 = vector.shape_cast %40 : vector<1x32xf32> to vector<32xf32>
    %42 = vector.shape_cast %41 : vector<32xf32> to vector<1x32x1xf32>
    %43 = vector.broadcast %39 : vector<16x1x16xf32> to vector<16x32x16xf32>
    %44 = vector.broadcast %42 : vector<1x32x1xf32> to vector<16x32x16xf32>
    %45 = arith.mulf %43, %44 : vector<16x32x16xf32>
    %46 = arith.addf %36, %45 : vector<16x32x16xf32>
    %47 = vector.extract_strided_slice %4 {offsets = [0, 4, 0], sizes = [16, 1, 16], strides = [1, 1, 1]} : vector<16x8x16xf32> to vector<16x1x16xf32>
    %48 = vector.shape_cast %47 : vector<16x1x16xf32> to vector<16x16xf32>
    %49 = vector.shape_cast %48 : vector<16x16xf32> to vector<16x1x16xf32>
    %50 = vector.extract_strided_slice %5 {offsets = [4, 0], sizes = [1, 32], strides = [1, 1]} : vector<8x32xf32> to vector<1x32xf32>
    %51 = vector.shape_cast %50 : vector<1x32xf32> to vector<32xf32>
    %52 = vector.shape_cast %51 : vector<32xf32> to vector<1x32x1xf32>
    %53 = vector.broadcast %49 : vector<16x1x16xf32> to vector<16x32x16xf32>
    %54 = vector.broadcast %52 : vector<1x32x1xf32> to vector<16x32x16xf32>
    %55 = arith.mulf %53, %54 : vector<16x32x16xf32>
    %56 = arith.addf %46, %55 : vector<16x32x16xf32>
    %57 = vector.extract_strided_slice %4 {offsets = [0, 5, 0], sizes = [16, 1, 16], strides = [1, 1, 1]} : vector<16x8x16xf32> to vector<16x1x16xf32>
    %58 = vector.shape_cast %57 : vector<16x1x16xf32> to vector<16x16xf32>
    %59 = vector.shape_cast %58 : vector<16x16xf32> to vector<16x1x16xf32>
    %60 = vector.extract_strided_slice %5 {offsets = [5, 0], sizes = [1, 32], strides = [1, 1]} : vector<8x32xf32> to vector<1x32xf32>
    %61 = vector.shape_cast %60 : vector<1x32xf32> to vector<32xf32>
    %62 = vector.shape_cast %61 : vector<32xf32> to vector<1x32x1xf32>
    %63 = vector.broadcast %59 : vector<16x1x16xf32> to vector<16x32x16xf32>
    %64 = vector.broadcast %62 : vector<1x32x1xf32> to vector<16x32x16xf32>
    %65 = arith.mulf %63, %64 : vector<16x32x16xf32>
    %66 = arith.addf %56, %65 : vector<16x32x16xf32>
    %67 = vector.extract_strided_slice %4 {offsets = [0, 6, 0], sizes = [16, 1, 16], strides = [1, 1, 1]} : vector<16x8x16xf32> to vector<16x1x16xf32>
    %68 = vector.shape_cast %67 : vector<16x1x16xf32> to vector<16x16xf32>
    %69 = vector.shape_cast %68 : vector<16x16xf32> to vector<16x1x16xf32>
    %70 = vector.extract_strided_slice %5 {offsets = [6, 0], sizes = [1, 32], strides = [1, 1]} : vector<8x32xf32> to vector<1x32xf32>
    %71 = vector.shape_cast %70 : vector<1x32xf32> to vector<32xf32>
    %72 = vector.shape_cast %71 : vector<32xf32> to vector<1x32x1xf32>
    %73 = vector.broadcast %69 : vector<16x1x16xf32> to vector<16x32x16xf32>
    %74 = vector.broadcast %72 : vector<1x32x1xf32> to vector<16x32x16xf32>
    %75 = arith.mulf %73, %74 : vector<16x32x16xf32>
    %76 = arith.addf %66, %75 : vector<16x32x16xf32>
    %77 = vector.extract_strided_slice %4 {offsets = [0, 7, 0], sizes = [16, 1, 16], strides = [1, 1, 1]} : vector<16x8x16xf32> to vector<16x1x16xf32>
    %78 = vector.shape_cast %77 : vector<16x1x16xf32> to vector<16x16xf32>
    %79 = vector.shape_cast %78 : vector<16x16xf32> to vector<16x1x16xf32>
    %80 = vector.extract_strided_slice %5 {offsets = [7, 0], sizes = [1, 32], strides = [1, 1]} : vector<8x32xf32> to vector<1x32xf32>
    %81 = vector.shape_cast %80 : vector<1x32xf32> to vector<32xf32>
    %82 = vector.shape_cast %81 : vector<32xf32> to vector<1x32x1xf32>
    %83 = vector.broadcast %79 : vector<16x1x16xf32> to vector<16x32x16xf32>
    %84 = vector.broadcast %82 : vector<1x32x1xf32> to vector<16x32x16xf32>
    %85 = arith.mulf %83, %84 : vector<16x32x16xf32>
    %86 = arith.addf %76, %85 : vector<16x32x16xf32>
    %cst_6 = arith.constant 5.000000e-01 : f32
    %87 = vector.broadcast %cst_6 : f32 to vector<16x32x16xf32>
    %88 = arith.mulf %87, %86 : vector<16x32x16xf32>
    %cst_7 = arith.constant 2.000000e+00 : f32
    %89 = math.sqrt %cst_7 : f32
    %90 = vector.broadcast %89 : f32 to vector<16x32x16xf32>
    %91 = arith.divf %86, %90 : vector<16x32x16xf32>
    %92 = math.erf %91 : vector<16x32x16xf32>
    %cst_8 = arith.constant 1.000000e+00 : f32
    %93 = vector.broadcast %cst_8 : f32 to vector<16x32x16xf32>
    %94 = arith.addf %93, %92 : vector<16x32x16xf32>
    %95 = arith.mulf %88, %94 : vector<16x32x16xf32>
    %c0_9 = arith.constant 0 : index
    %c0_10 = arith.constant 0 : index
    %96 = vector.load %arg4[%c0_9, %c0_10] : memref<1x32xf32, #tpu.memory_space<vmem>>, vector<1x32xf32>
    %97 = vector.shape_cast %96 : vector<1x32xf32> to vector<32xf32>
    %98 = vector.shape_cast %97 : vector<32xf32> to vector<1x32x1xf32>
    %99 = vector.broadcast %98 : vector<1x32x1xf32> to vector<16x32x16xf32>
    %100 = arith.mulf %95, %99 : vector<16x32x16xf32>
    %cst_11 = arith.constant dense<0.000000e+00> : vector<16x16xf32>
    %101 = vector.multi_reduction <add>, %100, %cst_11 [1] : vector<16x32x16xf32> to vector<16x16xf32>
    %c0_12 = arith.constant 0 : index
    %c0_13 = arith.constant 0 : index
    %102 = vector.load %arg5[%c0_12, %c0_13] : memref<1x8xf32, #tpu.memory_space<vmem>>, vector<1x8xf32>
    %103 = vector.shape_cast %102 : vector<1x8xf32> to vector<8xf32>
    %104 = vector.shape_cast %103 : vector<8xf32> to vector<1x8x1xf32>
    %105 = vector.broadcast %104 : vector<1x8x1xf32> to vector<16x8x16xf32>
    %106 = arith.mulf %0, %105 : vector<16x8x16xf32>
    %cst_14 = arith.constant dense<0.000000e+00> : vector<16x16xf32>
    %107 = vector.multi_reduction <add>, %106, %cst_14 [1] : vector<16x8x16xf32> to vector<16x16xf32>
    %108 = arith.addf %101, %107 : vector<16x16xf32>
    %cst_15 = arith.constant -3.000000e+00 : f32
    %cst_16 = arith.constant 3.000000e+00 : f32
    %109 = vector.broadcast %cst_15 : f32 to vector<16x16xf32>
    %110 = arith.maximumf %109, %108 : vector<16x16xf32>
    %111 = vector.broadcast %cst_16 : f32 to vector<16x16xf32>
    %112 = arith.minimumf %111, %110 : vector<16x16xf32>
    %c0_17 = arith.constant 0 : index
    %c0_18 = arith.constant 0 : index
    %113 = vector.load %arg6[%c0_17, %c0_18] : memref<16x16xf32, #tpu.memory_space<vmem>>, vector<16x16xf32>
    tpu.vector_store %arg6[%c0_17, %c0_18], %112 {strides = array<i32>} : memref<16x16xf32, #tpu.memory_space<vmem>>, vector<16x16xf32>,
    return
  }
  func.func @transform_0(%arg0: i32) -> (i32, i32, i32) {
    %c0_i32 = arith.constant 0 : i32
    %c0_i32_0 = arith.constant 0 : i32
    %c0_i32_1 = arith.constant 0 : i32
    return %arg0, %c0_i32, %c0_i32_0 : i32, i32, i32
  }
  func.func @transform_1(%arg0: i32) -> (i32, i32) {
    %c0_i32 = arith.constant 0 : i32
    %c0_i32_0 = arith.constant 0 : i32
    %c0_i32_1 = arith.constant 0 : i32
    return %c0_i32, %c0_i32_0 : i32, i32
  }
  func.func @transform_2(%arg0: i32) -> (i32, i32) {
    %c0_i32 = arith.constant 0 : i32
    %c0_i32_0 = arith.constant 0 : i32
    %c0_i32_1 = arith.constant 0 : i32
    return %c0_i32, %c0_i32_0 : i32, i32
  }
  func.func @transform_3(%arg0: i32) -> (i32, i32) {
    %c0_i32 = arith.constant 0 : i32
    %c0_i32_0 = arith.constant 0 : i32
    %c0_i32_1 = arith.constant 0 : i32
    return %c0_i32, %c0_i32_0 : i32, i32
  }
  func.func @transform_4(%arg0: i32) -> (i32, i32) {
    %c0_i32 = arith.constant 0 : i32
    %c0_i32_0 = arith.constant 0 : i32
    %c0_i32_1 = arith.constant 0 : i32
    return %c0_i32, %c0_i32_0 : i32, i32
  }
  func.func @transform_5(%arg0: i32) -> (i32, i32) {
    %c0_i32 = arith.constant 0 : i32
    %c0_i32_0 = arith.constant 0 : i32
    return %arg0, %c0_i32 : i32, i32
  }
}

module attributes {stable_mosaic.version = 11 : i64} {
  func.func @_comp_flash_kernel(%arg0: i32, %arg1: i32, %arg2: i32, %arg3: memref<4x16x16xf32, #tpu.memory_space<vmem>>, %arg4: memref<4x8x16xf32, #tpu.memory_space<vmem>>, %arg5: memref<4x8x16xf32, #tpu.memory_space<vmem>>, %arg6: memref<4x16x16xf32, #tpu.memory_space<vmem>>, %arg7: memref<4x16x1xf32, #tpu.memory_space<vmem>>, %arg8: memref<4x16x1xf32, #tpu.memory_space<vmem>>, %arg9: memref<4x16x16xf32, #tpu.memory_space<vmem>>) attributes {dimension_semantics = [#tpu.dimension_semantics<parallel>, #tpu.dimension_semantics<parallel>, #tpu.dimension_semantics<arbitrary>], iteration_bounds = array<i64: 1, 1, 1>, scalar_prefetch = 0 : i64, scratch_operands = 3 : i64, tpu.core_type = #tpu.core_type<tc>, window_params = [{transform_indices = @transform_0, window_bounds = array<i64: 4, 16, 16>}, {transform_indices = @transform_1, window_bounds = array<i64: 4, 8, 16>}, {transform_indices = @transform_2, window_bounds = array<i64: 4, 8, 16>}, {transform_indices = @transform_3, window_bounds = array<i64: 4, 16, 16>}]} {
    %c0_i32 = arith.constant 0 : i32
    %0 = arith.cmpi eq, %arg2, %c0_i32 : i32
    %1 = arith.extui %0 : i1 to i32
    %c0_i32_0 = arith.constant 0 : i32
    %2 = arith.cmpi ne, %1, %c0_i32_0 : i32
    scf.if %2 {
      %cst = arith.constant 0xFF800000 : f32
      %17 = vector.broadcast %cst : f32 to vector<4x16x1xf32>
      %c0 = arith.constant 0 : index
      %c0_6 = arith.constant 0 : index
      %c0_7 = arith.constant 0 : index
      %18 = vector.load %arg7[%c0, %c0_6, %c0_7] : memref<4x16x1xf32, #tpu.memory_space<vmem>>, vector<4x16x1xf32>
      tpu.vector_store %arg7[%c0, %c0_6, %c0_7], %17 {strides = array<i32>} : memref<4x16x1xf32, #tpu.memory_space<vmem>>, vector<4x16x1xf32>,
      %cst_8 = arith.constant 0.000000e+00 : f32
      %19 = vector.broadcast %cst_8 : f32 to vector<4x16x1xf32>
      %c0_9 = arith.constant 0 : index
      %c0_10 = arith.constant 0 : index
      %c0_11 = arith.constant 0 : index
      %20 = vector.load %arg8[%c0_9, %c0_10, %c0_11] : memref<4x16x1xf32, #tpu.memory_space<vmem>>, vector<4x16x1xf32>
      tpu.vector_store %arg8[%c0_9, %c0_10, %c0_11], %19 {strides = array<i32>} : memref<4x16x1xf32, #tpu.memory_space<vmem>>, vector<4x16x1xf32>,
      %cst_12 = arith.constant 0.000000e+00 : f32
      %21 = vector.broadcast %cst_12 : f32 to vector<4x16x16xf32>
      %c0_13 = arith.constant 0 : index
      %c0_14 = arith.constant 0 : index
      %c0_15 = arith.constant 0 : index
      %22 = vector.load %arg9[%c0_13, %c0_14, %c0_15] : memref<4x16x16xf32, #tpu.memory_space<vmem>>, vector<4x16x16xf32>
      tpu.vector_store %arg9[%c0_13, %c0_14, %c0_15], %21 {strides = array<i32>} : memref<4x16x16xf32, #tpu.memory_space<vmem>>, vector<4x16x16xf32>,
    } else {
    }
    %c16_i32 = arith.constant 16 : i32
    %3 = arith.muli %arg1, %c16_i32 : i32
    %c16_i32_1 = arith.constant 16 : i32
    %4 = arith.addi %3, %c16_i32_1 : i32
    %c1_i32 = arith.constant 1 : i32
    %5 = arith.subi %4, %c1_i32 : i32
    %c8_i32 = arith.constant 8 : i32
    %6 = arith.muli %arg2, %c8_i32 : i32
    %c4_i32 = arith.constant 4 : i32
    %7 = arith.muli %6, %c4_i32 : i32
    %8 = arith.cmpi slt, %7, %5 : i32
    %c8_i32_2 = arith.constant 8 : i32
    %9 = arith.muli %arg2, %c8_i32_2 : i32
    %c3_i32 = arith.constant 3 : i32
    %10 = arith.cmpi slt, %9, %c3_i32 : i32
    %11 = arith.andi %8, %10 : i1
    %12 = arith.extui %11 : i1 to i32
    %c0_i32_3 = arith.constant 0 : i32
    %13 = arith.cmpi ne, %12, %c0_i32_3 : i32
    scf.if %13 {
      %c0 = arith.constant 0 : index
      %c0_6 = arith.constant 0 : index
      %c0_7 = arith.constant 0 : index
      %17 = vector.load %arg3[%c0, %c0_6, %c0_7] : memref<4x16x16xf32, #tpu.memory_space<vmem>>, vector<4x16x16xf32>
      %18 = arith.truncf %17 : vector<4x16x16xf32> to vector<4x16x16xbf16>
      %c0_8 = arith.constant 0 : index
      %c0_9 = arith.constant 0 : index
      %c0_10 = arith.constant 0 : index
      %19 = vector.load %arg4[%c0_8, %c0_9, %c0_10] : memref<4x8x16xf32, #tpu.memory_space<vmem>>, vector<4x8x16xf32>
      %20 = arith.truncf %19 : vector<4x8x16xf32> to vector<4x8x16xbf16>
      "tpu.trace_start"() <{level = 10 : i32, message = "gqd,gkd->gqk"}> : () -> ()
      %cst = arith.constant dense<0.000000e+00> : vector<4x16x8xf32>
      %21 = tpu.matmul %18, %20, %cst {dimension_numbers = #tpu.dot_dimension_numbers<[2], [2], [1], [1], [0, 0, 0, 1, 1, 1], [0], [0]>} : vector<4x16x16xbf16>, vector<4x8x16xbf16>, vector<4x16x8xf32> -> vector<4x16x8xf32>
      "tpu.trace_stop"() : () -> ()
      %cst_11 = arith.constant 2.500000e-01 : f32
      %22 = vector.broadcast %cst_11 : f32 to vector<4x16x8xf32>
      %23 = arith.mulf %21, %22 : vector<4x16x8xf32>
      %c16_i32_12 = arith.constant 16 : i32
      %24 = arith.muli %arg1, %c16_i32_12 : i32
      %25 = tpu.iota {dimensions = array<i32: 0>} : vector<16x8xi32>
      %26 = vector.broadcast %24 : i32 to vector<16x8xi32>
      %27 = arith.addi %26, %25 : vector<16x8xi32>
      %c8_i32_13 = arith.constant 8 : i32
      %28 = arith.muli %arg2, %c8_i32_13 : i32
      %29 = tpu.iota {dimensions = array<i32: 1>} : vector<16x8xi32>
      %30 = vector.broadcast %28 : i32 to vector<16x8xi32>
      %31 = arith.addi %30, %29 : vector<16x8xi32>
      %c4_i32_14 = arith.constant 4 : i32
      %32 = vector.broadcast %c4_i32_14 : i32 to vector<16x8xi32>
      %33 = arith.muli %31, %32 : vector<16x8xi32>
      %34 = arith.cmpi slt, %33, %27 : vector<16x8xi32>
      %c3_i32_15 = arith.constant 3 : i32
      %35 = vector.broadcast %c3_i32_15 : i32 to vector<16x8xi32>
      %36 = arith.cmpi slt, %31, %35 : vector<16x8xi32>
      %37 = arith.andi %34, %36 : vector<16x8xi1>
      %38 = vector.shape_cast %37 : vector<16x8xi1> to vector<1x16x8xi1>
      %cst_16 = arith.constant 0xFF800000 : f32
      %39 = vector.shape_cast %38 : vector<1x16x8xi1> to vector<1x16x8xi1>
      %40 = vector.broadcast %39 : vector<1x16x8xi1> to vector<4x16x8xi1>
      %41 = vector.broadcast %cst_16 : f32 to vector<4x16x8xf32>
      %42 = arith.select %40, %23, %41 : vector<4x16x8xi1>, vector<4x16x8xf32>
      %c0_17 = arith.constant 0 : index
      %c0_18 = arith.constant 0 : index
      %c0_19 = arith.constant 0 : index
      %43 = vector.load %arg7[%c0_17, %c0_18, %c0_19] : memref<4x16x1xf32, #tpu.memory_space<vmem>>, vector<4x16x1xf32>
      %cst_20 = arith.constant dense<0xFF800000> : vector<4x16xf32>
      %44 = vector.multi_reduction <maximumf>, %42, %cst_20 [2] : vector<4x16x8xf32> to vector<4x16xf32>
      %45 = vector.shape_cast %44 : vector<4x16xf32> to vector<4x16x1xf32>
      %46 = arith.maximumf %43, %45 : vector<4x16x1xf32>
      %cst_21 = arith.constant 0xFF800000 : f32
      %47 = vector.broadcast %cst_21 : f32 to vector<4x16x1xf32>
      %48 = arith.cmpf oeq, %46, %47 : vector<4x16x1xf32>
      %cst_22 = arith.constant 0.000000e+00 : f32
      %49 = vector.broadcast %cst_22 : f32 to vector<4x16x1xf32>
      %50 = arith.select %48, %49, %46 : vector<4x16x1xi1>, vector<4x16x1xf32>
      %51 = arith.subf %43, %50 : vector<4x16x1xf32>
      %52 = math.exp %51 : vector<4x16x1xf32>
      %53 = vector.shape_cast %37 : vector<16x8xi1> to vector<1x16x8xi1>
      %54 = vector.broadcast %50 : vector<4x16x1xf32> to vector<4x16x8xf32>
      %55 = arith.subf %42, %54 : vector<4x16x8xf32>
      %56 = math.exp %55 : vector<4x16x8xf32>
      %cst_23 = arith.constant 0.000000e+00 : f32
      %57 = vector.shape_cast %53 : vector<1x16x8xi1> to vector<1x16x8xi1>
      %58 = vector.broadcast %57 : vector<1x16x8xi1> to vector<4x16x8xi1>
      %59 = vector.broadcast %cst_23 : f32 to vector<4x16x8xf32>
      %60 = arith.select %58, %56, %59 : vector<4x16x8xi1>, vector<4x16x8xf32>
      %c0_24 = arith.constant 0 : index
      %c0_25 = arith.constant 0 : index
      %c0_26 = arith.constant 0 : index
      %61 = vector.load %arg8[%c0_24, %c0_25, %c0_26] : memref<4x16x1xf32, #tpu.memory_space<vmem>>, vector<4x16x1xf32>
      %62 = arith.mulf %52, %61 : vector<4x16x1xf32>
      %cst_27 = arith.constant dense<0.000000e+00> : vector<4x16xf32>
      %63 = vector.multi_reduction <add>, %60, %cst_27 [2] : vector<4x16x8xf32> to vector<4x16xf32>
      %64 = vector.shape_cast %63 : vector<4x16xf32> to vector<4x16x1xf32>
      %65 = arith.addf %62, %64 : vector<4x16x1xf32>
      %c0_28 = arith.constant 0 : index
      %c0_29 = arith.constant 0 : index
      %c0_30 = arith.constant 0 : index
      %66 = vector.load %arg8[%c0_28, %c0_29, %c0_30] : memref<4x16x1xf32, #tpu.memory_space<vmem>>, vector<4x16x1xf32>
      tpu.vector_store %arg8[%c0_28, %c0_29, %c0_30], %65 {strides = array<i32>} : memref<4x16x1xf32, #tpu.memory_space<vmem>>, vector<4x16x1xf32>,
      %c0_31 = arith.constant 0 : index
      %c0_32 = arith.constant 0 : index
      %c0_33 = arith.constant 0 : index
      %67 = vector.load %arg9[%c0_31, %c0_32, %c0_33] : memref<4x16x16xf32, #tpu.memory_space<vmem>>, vector<4x16x16xf32>
      %68 = vector.broadcast %52 : vector<4x16x1xf32> to vector<4x16x16xf32>
      %69 = arith.mulf %68, %67 : vector<4x16x16xf32>
      %70 = arith.truncf %60 : vector<4x16x8xf32> to vector<4x16x8xbf16>
      %c0_34 = arith.constant 0 : index
      %c0_35 = arith.constant 0 : index
      %c0_36 = arith.constant 0 : index
      %71 = vector.load %arg5[%c0_34, %c0_35, %c0_36] : memref<4x8x16xf32, #tpu.memory_space<vmem>>, vector<4x8x16xf32>
      %72 = arith.truncf %71 : vector<4x8x16xf32> to vector<4x8x16xbf16>
      "tpu.trace_start"() <{level = 10 : i32, message = "gqk,gkd->gqd"}> : () -> ()
      %cst_37 = arith.constant dense<0.000000e+00> : vector<4x16x16xf32>
      %73 = tpu.matmul %70, %72, %cst_37 {dimension_numbers = #tpu.dot_dimension_numbers<[2], [1], [1], [2], [0, 0, 0, 1, 1, 2], [0], [0]>} : vector<4x16x8xbf16>, vector<4x8x16xbf16>, vector<4x16x16xf32> -> vector<4x16x16xf32>
      "tpu.trace_stop"() : () -> ()
      %74 = arith.addf %69, %73 : vector<4x16x16xf32>
      %c0_38 = arith.constant 0 : index
      %c0_39 = arith.constant 0 : index
      %c0_40 = arith.constant 0 : index
      %75 = vector.load %arg9[%c0_38, %c0_39, %c0_40] : memref<4x16x16xf32, #tpu.memory_space<vmem>>, vector<4x16x16xf32>
      tpu.vector_store %arg9[%c0_38, %c0_39, %c0_40], %74 {strides = array<i32>} : memref<4x16x16xf32, #tpu.memory_space<vmem>>, vector<4x16x16xf32>,
      %c0_41 = arith.constant 0 : index
      %c0_42 = arith.constant 0 : index
      %c0_43 = arith.constant 0 : index
      %76 = vector.load %arg7[%c0_41, %c0_42, %c0_43] : memref<4x16x1xf32, #tpu.memory_space<vmem>>, vector<4x16x1xf32>
      tpu.vector_store %arg7[%c0_41, %c0_42, %c0_43], %46 {strides = array<i32>} : memref<4x16x1xf32, #tpu.memory_space<vmem>>, vector<4x16x1xf32>,
    } else {
    }
    %c0_i32_4 = arith.constant 0 : i32
    %14 = arith.cmpi eq, %arg2, %c0_i32_4 : i32
    %15 = arith.extui %14 : i1 to i32
    %c0_i32_5 = arith.constant 0 : i32
    %16 = arith.cmpi ne, %15, %c0_i32_5 : i32
    scf.if %16 {
      %c0 = arith.constant 0 : index
      %c0_6 = arith.constant 0 : index
      %c0_7 = arith.constant 0 : index
      %17 = vector.load %arg8[%c0, %c0_6, %c0_7] : memref<4x16x1xf32, #tpu.memory_space<vmem>>, vector<4x16x1xf32>
      %cst = arith.constant 0.000000e+00 : f32
      %18 = vector.broadcast %cst : f32 to vector<4x16x1xf32>
      %19 = arith.cmpf ogt, %17, %18 : vector<4x16x1xf32>
      %cst_8 = arith.constant 1.000000e+00 : f32
      %20 = vector.broadcast %cst_8 : f32 to vector<4x16x1xf32>
      %21 = arith.select %19, %17, %20 : vector<4x16x1xi1>, vector<4x16x1xf32>
      %cst_9 = arith.constant 0.000000e+00 : f32
      %22 = vector.broadcast %cst_9 : f32 to vector<4x16x1xf32>
      %23 = arith.cmpf ogt, %17, %22 : vector<4x16x1xf32>
      %24 = tpu.reciprocal %21 {approx = true} : vector<4x16x1xf32> -> vector<4x16x1xf32>
      %cst_10 = arith.constant 0.000000e+00 : f32
      %25 = vector.broadcast %cst_10 : f32 to vector<4x16x1xf32>
      %26 = arith.select %23, %24, %25 : vector<4x16x1xi1>, vector<4x16x1xf32>
      %c0_11 = arith.constant 0 : index
      %c0_12 = arith.constant 0 : index
      %c0_13 = arith.constant 0 : index
      %27 = vector.load %arg9[%c0_11, %c0_12, %c0_13] : memref<4x16x16xf32, #tpu.memory_space<vmem>>, vector<4x16x16xf32>
      %28 = vector.broadcast %26 : vector<4x16x1xf32> to vector<4x16x16xf32>
      %29 = arith.mulf %27, %28 : vector<4x16x16xf32>
      %c0_14 = arith.constant 0 : index
      %c0_15 = arith.constant 0 : index
      %c0_16 = arith.constant 0 : index
      %30 = vector.load %arg6[%c0_14, %c0_15, %c0_16] : memref<4x16x16xf32, #tpu.memory_space<vmem>>, vector<4x16x16xf32>
      tpu.vector_store %arg6[%c0_14, %c0_15, %c0_16], %29 {strides = array<i32>} : memref<4x16x16xf32, #tpu.memory_space<vmem>>, vector<4x16x16xf32>,
    } else {
    }
    return
  }
  func.func @transform_0(%arg0: i32, %arg1: i32, %arg2: i32) -> (i32, i32, i32) {
    %c0_i32 = arith.constant 0 : i32
    %c0_i32_0 = arith.constant 0 : i32
    return %arg0, %arg1, %c0_i32 : i32, i32, i32
  }
  func.func @transform_1(%arg0: i32, %arg1: i32, %arg2: i32) -> (i32, i32, i32) {
    %c0_i32 = arith.constant 0 : i32
    %c0_i32_0 = arith.constant 0 : i32
    return %arg0, %arg2, %c0_i32 : i32, i32, i32
  }
  func.func @transform_2(%arg0: i32, %arg1: i32, %arg2: i32) -> (i32, i32, i32) {
    %c0_i32 = arith.constant 0 : i32
    %c0_i32_0 = arith.constant 0 : i32
    return %arg0, %arg2, %c0_i32 : i32, i32, i32
  }
  func.func @transform_3(%arg0: i32, %arg1: i32, %arg2: i32) -> (i32, i32, i32) {
    %c0_i32 = arith.constant 0 : i32
    %c0_i32_0 = arith.constant 0 : i32
    return %arg0, %arg1, %c0_i32 : i32, i32, i32
  }
}

module attributes {stable_mosaic.version = 11 : i64} {
  func.func @kernel(%arg0: i32, %arg1: i32, %arg2: i32, %arg3: memref<32x128xf32, #tpu.memory_space<vmem>>, %arg4: memref<128x128xf32, #tpu.memory_space<vmem>>, %arg5: memref<32x128xf32, #tpu.memory_space<vmem>>, %arg6: memref<32x128xf32, #tpu.memory_space<vmem>>) attributes {dimension_semantics = [#tpu.dimension_semantics<parallel>, #tpu.dimension_semantics<parallel>, #tpu.dimension_semantics<arbitrary>], iteration_bounds = array<i64: 1, 1, 1>, scalar_prefetch = 0 : i64, scratch_operands = 1 : i64, tpu.core_type = #tpu.core_type<tc>, window_params = [{transform_indices = @transform_0, window_bounds = array<i64: 32, 128>}, {transform_indices = @transform_1, window_bounds = array<i64: 128, 128>}, {transform_indices = @transform_2, window_bounds = array<i64: 32, 128>}]} {
    %c0_i32 = arith.constant 0 : i32
    %0 = arith.cmpi eq, %arg2, %c0_i32 : i32
    %1 = arith.extui %0 : i1 to i32
    %c0_i32_0 = arith.constant 0 : i32
    %2 = arith.cmpi ne, %1, %c0_i32_0 : i32
    scf.if %2 {
      %cst_10 = arith.constant 0.000000e+00 : f32
      %14 = vector.broadcast %cst_10 : f32 to vector<32x128xf32>
      %c0_11 = arith.constant 0 : index
      %c0_12 = arith.constant 0 : index
      %15 = vector.load %arg6[%c0_11, %c0_12] : memref<32x128xf32, #tpu.memory_space<vmem>>, vector<32x128xf32>
      tpu.vector_store %arg6[%c0_11, %c0_12], %14 {strides = array<i32>} : memref<32x128xf32, #tpu.memory_space<vmem>>, vector<32x128xf32>,
    } else {
    }
    %c0 = arith.constant 0 : index
    %c0_1 = arith.constant 0 : index
    %3 = vector.load %arg6[%c0, %c0_1] : memref<32x128xf32, #tpu.memory_space<vmem>>, vector<32x128xf32>
    %c0_2 = arith.constant 0 : index
    %c0_3 = arith.constant 0 : index
    %4 = vector.load %arg3[%c0_2, %c0_3] : memref<32x128xf32, #tpu.memory_space<vmem>>, vector<32x128xf32>
    %5 = arith.truncf %4 : vector<32x128xf32> to vector<32x128xbf16>
    %c0_4 = arith.constant 0 : index
    %c0_5 = arith.constant 0 : index
    %6 = vector.load %arg4[%c0_4, %c0_5] : memref<128x128xf32, #tpu.memory_space<vmem>>, vector<128x128xf32>
    %7 = arith.truncf %6 : vector<128x128xf32> to vector<128x128xbf16>
    %cst = arith.constant dense<0.000000e+00> : vector<32x128xf32>
    %8 = tpu.matmul %5, %7, %cst {dimension_numbers = #tpu.dot_dimension_numbers<[1], [0], [0], [1], [0, 0, 1, 1], [], []>} : vector<32x128xbf16>, vector<128x128xbf16>, vector<32x128xf32> -> vector<32x128xf32>
    %9 = arith.addf %3, %8 : vector<32x128xf32>
    %c0_6 = arith.constant 0 : index
    %c0_7 = arith.constant 0 : index
    %10 = vector.load %arg6[%c0_6, %c0_7] : memref<32x128xf32, #tpu.memory_space<vmem>>, vector<32x128xf32>
    tpu.vector_store %arg6[%c0_6, %c0_7], %9 {strides = array<i32>} : memref<32x128xf32, #tpu.memory_space<vmem>>, vector<32x128xf32>,
    %c0_i32_8 = arith.constant 0 : i32
    %11 = arith.cmpi eq, %arg2, %c0_i32_8 : i32
    %12 = arith.extui %11 : i1 to i32
    %c0_i32_9 = arith.constant 0 : i32
    %13 = arith.cmpi ne, %12, %c0_i32_9 : i32
    scf.if %13 {
      %c0_10 = arith.constant 0 : index
      %c0_11 = arith.constant 0 : index
      %14 = vector.load %arg6[%c0_10, %c0_11] : memref<32x128xf32, #tpu.memory_space<vmem>>, vector<32x128xf32>
      %cst_12 = arith.constant 5.000000e-01 : f32
      %15 = vector.broadcast %cst_12 : f32 to vector<32x128xf32>
      %16 = arith.mulf %15, %14 : vector<32x128xf32>
      %cst_13 = arith.constant 2.000000e+00 : f32
      %17 = math.sqrt %cst_13 : f32
      %18 = vector.broadcast %17 : f32 to vector<32x128xf32>
      %19 = arith.divf %14, %18 : vector<32x128xf32>
      %20 = math.erf %19 : vector<32x128xf32>
      %cst_14 = arith.constant 1.000000e+00 : f32
      %21 = vector.broadcast %cst_14 : f32 to vector<32x128xf32>
      %22 = arith.addf %21, %20 : vector<32x128xf32>
      %23 = arith.mulf %16, %22 : vector<32x128xf32>
      %c0_15 = arith.constant 0 : index
      %c0_16 = arith.constant 0 : index
      %24 = vector.load %arg5[%c0_15, %c0_16] : memref<32x128xf32, #tpu.memory_space<vmem>>, vector<32x128xf32>
      tpu.vector_store %arg5[%c0_15, %c0_16], %23 {strides = array<i32>} : memref<32x128xf32, #tpu.memory_space<vmem>>, vector<32x128xf32>,
    } else {
    }
    return
  }
  func.func @transform_0(%arg0: i32, %arg1: i32, %arg2: i32) -> (i32, i32) {
    %c0_i32 = arith.constant 0 : i32
    return %arg0, %arg2 : i32, i32
  }
  func.func @transform_1(%arg0: i32, %arg1: i32, %arg2: i32) -> (i32, i32) {
    %c0_i32 = arith.constant 0 : i32
    return %arg2, %arg1 : i32, i32
  }
  func.func @transform_2(%arg0: i32, %arg1: i32, %arg2: i32) -> (i32, i32) {
    %c0_i32 = arith.constant 0 : i32
    return %arg0, %arg1 : i32, i32
  }
}

module attributes {stable_mosaic.version = 11 : i64} {
  func.func @_local_flash_kernel(%arg0: i32, %arg1: i32, %arg2: i32, %arg3: memref<4x16x16xf32, #tpu.memory_space<vmem>>, %arg4: memref<4x16x16xf32, #tpu.memory_space<vmem>>, %arg5: memref<4x16x16xf32, #tpu.memory_space<vmem>>, %arg6: memref<4x16x16xf32, #tpu.memory_space<vmem>>, %arg7: memref<4x16x1xf32, #tpu.memory_space<vmem>>, %arg8: memref<4x16x1xf32, #tpu.memory_space<vmem>>, %arg9: memref<4x16x16xf32, #tpu.memory_space<vmem>>) attributes {dimension_semantics = [#tpu.dimension_semantics<parallel>, #tpu.dimension_semantics<parallel>, #tpu.dimension_semantics<arbitrary>], iteration_bounds = array<i64: 1, 1, 1>, scalar_prefetch = 0 : i64, scratch_operands = 3 : i64, tpu.core_type = #tpu.core_type<tc>, window_params = [{transform_indices = @transform_0, window_bounds = array<i64: 4, 16, 16>}, {transform_indices = @transform_1, window_bounds = array<i64: 4, 16, 16>}, {transform_indices = @transform_2, window_bounds = array<i64: 4, 16, 16>}, {transform_indices = @transform_3, window_bounds = array<i64: 4, 16, 16>}]} {
    %c0_i32 = arith.constant 0 : i32
    %0 = arith.cmpi eq, %arg2, %c0_i32 : i32
    %1 = arith.extui %0 : i1 to i32
    %c0_i32_0 = arith.constant 0 : i32
    %2 = arith.cmpi ne, %1, %c0_i32_0 : i32
    scf.if %2 {
      %cst = arith.constant 0xFF800000 : f32
      %11 = vector.broadcast %cst : f32 to vector<4x16x1xf32>
      %c0 = arith.constant 0 : index
      %c0_6 = arith.constant 0 : index
      %c0_7 = arith.constant 0 : index
      %12 = vector.load %arg7[%c0, %c0_6, %c0_7] : memref<4x16x1xf32, #tpu.memory_space<vmem>>, vector<4x16x1xf32>
      tpu.vector_store %arg7[%c0, %c0_6, %c0_7], %11 {strides = array<i32>} : memref<4x16x1xf32, #tpu.memory_space<vmem>>, vector<4x16x1xf32>,
      %cst_8 = arith.constant 0.000000e+00 : f32
      %13 = vector.broadcast %cst_8 : f32 to vector<4x16x1xf32>
      %c0_9 = arith.constant 0 : index
      %c0_10 = arith.constant 0 : index
      %c0_11 = arith.constant 0 : index
      %14 = vector.load %arg8[%c0_9, %c0_10, %c0_11] : memref<4x16x1xf32, #tpu.memory_space<vmem>>, vector<4x16x1xf32>
      tpu.vector_store %arg8[%c0_9, %c0_10, %c0_11], %13 {strides = array<i32>} : memref<4x16x1xf32, #tpu.memory_space<vmem>>, vector<4x16x1xf32>,
      %cst_12 = arith.constant 0.000000e+00 : f32
      %15 = vector.broadcast %cst_12 : f32 to vector<4x16x16xf32>
      %c0_13 = arith.constant 0 : index
      %c0_14 = arith.constant 0 : index
      %c0_15 = arith.constant 0 : index
      %16 = vector.load %arg9[%c0_13, %c0_14, %c0_15] : memref<4x16x16xf32, #tpu.memory_space<vmem>>, vector<4x16x16xf32>
      tpu.vector_store %arg9[%c0_13, %c0_14, %c0_15], %15 {strides = array<i32>} : memref<4x16x16xf32, #tpu.memory_space<vmem>>, vector<4x16x16xf32>,
    } else {
    }
    %c0_i32_1 = arith.constant 0 : i32
    %3 = arith.subi %arg1, %c0_i32_1 : i32
    %4 = arith.addi %3, %arg2 : i32
    %c0_i32_2 = arith.constant 0 : i32
    %5 = arith.cmpi sge, %4, %c0_i32_2 : i32
    %6 = arith.extui %5 : i1 to i32
    %c0_i32_3 = arith.constant 0 : i32
    %7 = arith.cmpi ne, %6, %c0_i32_3 : i32
    scf.if %7 {
      %c0 = arith.constant 0 : index
      %c0_6 = arith.constant 0 : index
      %c0_7 = arith.constant 0 : index
      %11 = vector.load %arg3[%c0, %c0_6, %c0_7] : memref<4x16x16xf32, #tpu.memory_space<vmem>>, vector<4x16x16xf32>
      %12 = arith.truncf %11 : vector<4x16x16xf32> to vector<4x16x16xbf16>
      %c0_8 = arith.constant 0 : index
      %c0_9 = arith.constant 0 : index
      %c0_10 = arith.constant 0 : index
      %13 = vector.load %arg4[%c0_8, %c0_9, %c0_10] : memref<4x16x16xf32, #tpu.memory_space<vmem>>, vector<4x16x16xf32>
      %14 = arith.truncf %13 : vector<4x16x16xf32> to vector<4x16x16xbf16>
      "tpu.trace_start"() <{level = 10 : i32, message = "gqd,gkd->gqk"}> : () -> ()
      %cst = arith.constant dense<0.000000e+00> : vector<4x16x16xf32>
      %15 = tpu.matmul %12, %14, %cst {dimension_numbers = #tpu.dot_dimension_numbers<[2], [2], [1], [1], [0, 0, 0, 1, 1, 1], [0], [0]>} : vector<4x16x16xbf16>, vector<4x16x16xbf16>, vector<4x16x16xf32> -> vector<4x16x16xf32>
      "tpu.trace_stop"() : () -> ()
      %cst_11 = arith.constant 2.500000e-01 : f32
      %16 = vector.broadcast %cst_11 : f32 to vector<4x16x16xf32>
      %17 = arith.mulf %15, %16 : vector<4x16x16xf32>
      %c16_i32 = arith.constant 16 : i32
      %18 = arith.muli %arg1, %c16_i32 : i32
      %19 = tpu.iota {dimensions = array<i32: 0>} : vector<16x16xi32>
      %20 = vector.broadcast %18 : i32 to vector<16x16xi32>
      %21 = arith.addi %20, %19 : vector<16x16xi32>
      %c16_i32_12 = arith.constant 16 : i32
      %22 = arith.muli %4, %c16_i32_12 : i32
      %23 = tpu.iota {dimensions = array<i32: 1>} : vector<16x16xi32>
      %24 = vector.broadcast %22 : i32 to vector<16x16xi32>
      %25 = arith.addi %24, %23 : vector<16x16xi32>
      %c4_i32 = arith.constant 4 : i32
      %26 = vector.broadcast %c4_i32 : i32 to vector<16x16xi32>
      %27 = arith.subi %21, %26 : vector<16x16xi32>
      %28 = arith.cmpi sgt, %25, %27 : vector<16x16xi32>
      %29 = arith.cmpi sle, %25, %21 : vector<16x16xi32>
      %30 = arith.andi %28, %29 : vector<16x16xi1>
      %31 = vector.shape_cast %30 : vector<16x16xi1> to vector<1x16x16xi1>
      %cst_13 = arith.constant 0xFF800000 : f32
      %32 = vector.shape_cast %31 : vector<1x16x16xi1> to vector<1x16x16xi1>
      %33 = vector.broadcast %32 : vector<1x16x16xi1> to vector<4x16x16xi1>
      %34 = vector.broadcast %cst_13 : f32 to vector<4x16x16xf32>
      %35 = arith.select %33, %17, %34 : vector<4x16x16xi1>, vector<4x16x16xf32>
      %c0_14 = arith.constant 0 : index
      %c0_15 = arith.constant 0 : index
      %c0_16 = arith.constant 0 : index
      %36 = vector.load %arg7[%c0_14, %c0_15, %c0_16] : memref<4x16x1xf32, #tpu.memory_space<vmem>>, vector<4x16x1xf32>
      %cst_17 = arith.constant dense<0xFF800000> : vector<4x16xf32>
      %37 = vector.multi_reduction <maximumf>, %35, %cst_17 [2] : vector<4x16x16xf32> to vector<4x16xf32>
      %38 = vector.shape_cast %37 : vector<4x16xf32> to vector<4x16x1xf32>
      %39 = arith.maximumf %36, %38 : vector<4x16x1xf32>
      %cst_18 = arith.constant 0xFF800000 : f32
      %40 = vector.broadcast %cst_18 : f32 to vector<4x16x1xf32>
      %41 = arith.cmpf oeq, %39, %40 : vector<4x16x1xf32>
      %cst_19 = arith.constant 0.000000e+00 : f32
      %42 = vector.broadcast %cst_19 : f32 to vector<4x16x1xf32>
      %43 = arith.select %41, %42, %39 : vector<4x16x1xi1>, vector<4x16x1xf32>
      %44 = arith.subf %36, %43 : vector<4x16x1xf32>
      %45 = math.exp %44 : vector<4x16x1xf32>
      %46 = vector.shape_cast %30 : vector<16x16xi1> to vector<1x16x16xi1>
      %47 = vector.broadcast %43 : vector<4x16x1xf32> to vector<4x16x16xf32>
      %48 = arith.subf %35, %47 : vector<4x16x16xf32>
      %49 = math.exp %48 : vector<4x16x16xf32>
      %cst_20 = arith.constant 0.000000e+00 : f32
      %50 = vector.shape_cast %46 : vector<1x16x16xi1> to vector<1x16x16xi1>
      %51 = vector.broadcast %50 : vector<1x16x16xi1> to vector<4x16x16xi1>
      %52 = vector.broadcast %cst_20 : f32 to vector<4x16x16xf32>
      %53 = arith.select %51, %49, %52 : vector<4x16x16xi1>, vector<4x16x16xf32>
      %c0_21 = arith.constant 0 : index
      %c0_22 = arith.constant 0 : index
      %c0_23 = arith.constant 0 : index
      %54 = vector.load %arg8[%c0_21, %c0_22, %c0_23] : memref<4x16x1xf32, #tpu.memory_space<vmem>>, vector<4x16x1xf32>
      %55 = arith.mulf %45, %54 : vector<4x16x1xf32>
      %cst_24 = arith.constant dense<0.000000e+00> : vector<4x16xf32>
      %56 = vector.multi_reduction <add>, %53, %cst_24 [2] : vector<4x16x16xf32> to vector<4x16xf32>
      %57 = vector.shape_cast %56 : vector<4x16xf32> to vector<4x16x1xf32>
      %58 = arith.addf %55, %57 : vector<4x16x1xf32>
      %c0_25 = arith.constant 0 : index
      %c0_26 = arith.constant 0 : index
      %c0_27 = arith.constant 0 : index
      %59 = vector.load %arg8[%c0_25, %c0_26, %c0_27] : memref<4x16x1xf32, #tpu.memory_space<vmem>>, vector<4x16x1xf32>
      tpu.vector_store %arg8[%c0_25, %c0_26, %c0_27], %58 {strides = array<i32>} : memref<4x16x1xf32, #tpu.memory_space<vmem>>, vector<4x16x1xf32>,
      %c0_28 = arith.constant 0 : index
      %c0_29 = arith.constant 0 : index
      %c0_30 = arith.constant 0 : index
      %60 = vector.load %arg9[%c0_28, %c0_29, %c0_30] : memref<4x16x16xf32, #tpu.memory_space<vmem>>, vector<4x16x16xf32>
      %61 = vector.broadcast %45 : vector<4x16x1xf32> to vector<4x16x16xf32>
      %62 = arith.mulf %61, %60 : vector<4x16x16xf32>
      %63 = arith.truncf %53 : vector<4x16x16xf32> to vector<4x16x16xbf16>
      %c0_31 = arith.constant 0 : index
      %c0_32 = arith.constant 0 : index
      %c0_33 = arith.constant 0 : index
      %64 = vector.load %arg5[%c0_31, %c0_32, %c0_33] : memref<4x16x16xf32, #tpu.memory_space<vmem>>, vector<4x16x16xf32>
      %65 = arith.truncf %64 : vector<4x16x16xf32> to vector<4x16x16xbf16>
      "tpu.trace_start"() <{level = 10 : i32, message = "gqk,gkd->gqd"}> : () -> ()
      %cst_34 = arith.constant dense<0.000000e+00> : vector<4x16x16xf32>
      %66 = tpu.matmul %63, %65, %cst_34 {dimension_numbers = #tpu.dot_dimension_numbers<[2], [1], [1], [2], [0, 0, 0, 1, 1, 2], [0], [0]>} : vector<4x16x16xbf16>, vector<4x16x16xbf16>, vector<4x16x16xf32> -> vector<4x16x16xf32>
      "tpu.trace_stop"() : () -> ()
      %67 = arith.addf %62, %66 : vector<4x16x16xf32>
      %c0_35 = arith.constant 0 : index
      %c0_36 = arith.constant 0 : index
      %c0_37 = arith.constant 0 : index
      %68 = vector.load %arg9[%c0_35, %c0_36, %c0_37] : memref<4x16x16xf32, #tpu.memory_space<vmem>>, vector<4x16x16xf32>
      tpu.vector_store %arg9[%c0_35, %c0_36, %c0_37], %67 {strides = array<i32>} : memref<4x16x16xf32, #tpu.memory_space<vmem>>, vector<4x16x16xf32>,
      %c0_38 = arith.constant 0 : index
      %c0_39 = arith.constant 0 : index
      %c0_40 = arith.constant 0 : index
      %69 = vector.load %arg7[%c0_38, %c0_39, %c0_40] : memref<4x16x1xf32, #tpu.memory_space<vmem>>, vector<4x16x1xf32>
      tpu.vector_store %arg7[%c0_38, %c0_39, %c0_40], %39 {strides = array<i32>} : memref<4x16x1xf32, #tpu.memory_space<vmem>>, vector<4x16x1xf32>,
    } else {
    }
    %c0_i32_4 = arith.constant 0 : i32
    %8 = arith.cmpi eq, %arg2, %c0_i32_4 : i32
    %9 = arith.extui %8 : i1 to i32
    %c0_i32_5 = arith.constant 0 : i32
    %10 = arith.cmpi ne, %9, %c0_i32_5 : i32
    scf.if %10 {
      %c0 = arith.constant 0 : index
      %c0_6 = arith.constant 0 : index
      %c0_7 = arith.constant 0 : index
      %11 = vector.load %arg8[%c0, %c0_6, %c0_7] : memref<4x16x1xf32, #tpu.memory_space<vmem>>, vector<4x16x1xf32>
      %cst = arith.constant 0.000000e+00 : f32
      %12 = vector.broadcast %cst : f32 to vector<4x16x1xf32>
      %13 = arith.cmpf ogt, %11, %12 : vector<4x16x1xf32>
      %cst_8 = arith.constant 1.000000e+00 : f32
      %14 = vector.broadcast %cst_8 : f32 to vector<4x16x1xf32>
      %15 = arith.select %13, %11, %14 : vector<4x16x1xi1>, vector<4x16x1xf32>
      %cst_9 = arith.constant 0.000000e+00 : f32
      %16 = vector.broadcast %cst_9 : f32 to vector<4x16x1xf32>
      %17 = arith.cmpf ogt, %11, %16 : vector<4x16x1xf32>
      %18 = tpu.reciprocal %15 {approx = true} : vector<4x16x1xf32> -> vector<4x16x1xf32>
      %cst_10 = arith.constant 0.000000e+00 : f32
      %19 = vector.broadcast %cst_10 : f32 to vector<4x16x1xf32>
      %20 = arith.select %17, %18, %19 : vector<4x16x1xi1>, vector<4x16x1xf32>
      %c0_11 = arith.constant 0 : index
      %c0_12 = arith.constant 0 : index
      %c0_13 = arith.constant 0 : index
      %21 = vector.load %arg9[%c0_11, %c0_12, %c0_13] : memref<4x16x16xf32, #tpu.memory_space<vmem>>, vector<4x16x16xf32>
      %22 = vector.broadcast %20 : vector<4x16x1xf32> to vector<4x16x16xf32>
      %23 = arith.mulf %21, %22 : vector<4x16x16xf32>
      %c0_14 = arith.constant 0 : index
      %c0_15 = arith.constant 0 : index
      %c0_16 = arith.constant 0 : index
      %24 = vector.load %arg6[%c0_14, %c0_15, %c0_16] : memref<4x16x16xf32, #tpu.memory_space<vmem>>, vector<4x16x16xf32>
      tpu.vector_store %arg6[%c0_14, %c0_15, %c0_16], %23 {strides = array<i32>} : memref<4x16x16xf32, #tpu.memory_space<vmem>>, vector<4x16x16xf32>,
    } else {
    }
    return
  }
  func.func @transform_0(%arg0: i32, %arg1: i32, %arg2: i32) -> (i32, i32, i32) {
    %c0_i32 = arith.constant 0 : i32
    %c0_i32_0 = arith.constant 0 : i32
    return %arg0, %arg1, %c0_i32 : i32, i32, i32
  }
  func.func @transform_1(%arg0: i32, %arg1: i32, %arg2: i32) -> (i32, i32, i32) {
    %c0_i32 = arith.constant 0 : i32
    %0 = arith.subi %arg1, %c0_i32 : i32
    %1 = arith.addi %0, %arg2 : i32
    %c0_i32_0 = arith.constant 0 : i32
    %2 = arith.maxsi %1, %c0_i32_0 : i32
    %c0_i32_1 = arith.constant 0 : i32
    %c0_i32_2 = arith.constant 0 : i32
    return %arg0, %2, %c0_i32_1 : i32, i32, i32
  }
  func.func @transform_2(%arg0: i32, %arg1: i32, %arg2: i32) -> (i32, i32, i32) {
    %c0_i32 = arith.constant 0 : i32
    %0 = arith.subi %arg1, %c0_i32 : i32
    %1 = arith.addi %0, %arg2 : i32
    %c0_i32_0 = arith.constant 0 : i32
    %2 = arith.maxsi %1, %c0_i32_0 : i32
    %c0_i32_1 = arith.constant 0 : i32
    %c0_i32_2 = arith.constant 0 : i32
    return %arg0, %2, %c0_i32_1 : i32, i32, i32
  }
  func.func @transform_3(%arg0: i32, %arg1: i32, %arg2: i32) -> (i32, i32, i32) {
    %c0_i32 = arith.constant 0 : i32
    %c0_i32_0 = arith.constant 0 : i32
    return %arg0, %arg1, %c0_i32 : i32, i32, i32
  }
}

module attributes {stable_mosaic.version = 11 : i64} {
  func.func @kernel(%arg0: i32, %arg1: i32, %arg2: i32, %arg3: memref<32x128xf32, #tpu.memory_space<vmem>>, %arg4: memref<128x128xf32, #tpu.memory_space<vmem>>, %arg5: memref<32x128xf32, #tpu.memory_space<vmem>>, %arg6: memref<32x128xf32, #tpu.memory_space<vmem>>) attributes {dimension_semantics = [#tpu.dimension_semantics<parallel>, #tpu.dimension_semantics<parallel>, #tpu.dimension_semantics<arbitrary>], iteration_bounds = array<i64: 1, 1, 1>, scalar_prefetch = 0 : i64, scratch_operands = 1 : i64, tpu.core_type = #tpu.core_type<tc>, window_params = [{transform_indices = @transform_0, window_bounds = array<i64: 32, 128>}, {transform_indices = @transform_1, window_bounds = array<i64: 128, 128>}, {transform_indices = @transform_2, window_bounds = array<i64: 32, 128>}]} {
    %c0_i32 = arith.constant 0 : i32
    %0 = arith.cmpi eq, %arg2, %c0_i32 : i32
    %1 = arith.extui %0 : i1 to i32
    %c0_i32_0 = arith.constant 0 : i32
    %2 = arith.cmpi ne, %1, %c0_i32_0 : i32
    scf.if %2 {
      %cst_10 = arith.constant 0.000000e+00 : f32
      %14 = vector.broadcast %cst_10 : f32 to vector<32x128xf32>
      %c0_11 = arith.constant 0 : index
      %c0_12 = arith.constant 0 : index
      %15 = vector.load %arg6[%c0_11, %c0_12] : memref<32x128xf32, #tpu.memory_space<vmem>>, vector<32x128xf32>
      tpu.vector_store %arg6[%c0_11, %c0_12], %14 {strides = array<i32>} : memref<32x128xf32, #tpu.memory_space<vmem>>, vector<32x128xf32>,
    } else {
    }
    %c0 = arith.constant 0 : index
    %c0_1 = arith.constant 0 : index
    %3 = vector.load %arg6[%c0, %c0_1] : memref<32x128xf32, #tpu.memory_space<vmem>>, vector<32x128xf32>
    %c0_2 = arith.constant 0 : index
    %c0_3 = arith.constant 0 : index
    %4 = vector.load %arg3[%c0_2, %c0_3] : memref<32x128xf32, #tpu.memory_space<vmem>>, vector<32x128xf32>
    %5 = arith.truncf %4 : vector<32x128xf32> to vector<32x128xbf16>
    %c0_4 = arith.constant 0 : index
    %c0_5 = arith.constant 0 : index
    %6 = vector.load %arg4[%c0_4, %c0_5] : memref<128x128xf32, #tpu.memory_space<vmem>>, vector<128x128xf32>
    %7 = arith.truncf %6 : vector<128x128xf32> to vector<128x128xbf16>
    %cst = arith.constant dense<0.000000e+00> : vector<32x128xf32>
    %8 = tpu.matmul %5, %7, %cst {dimension_numbers = #tpu.dot_dimension_numbers<[1], [0], [0], [1], [0, 0, 1, 1], [], []>} : vector<32x128xbf16>, vector<128x128xbf16>, vector<32x128xf32> -> vector<32x128xf32>
    %9 = arith.addf %3, %8 : vector<32x128xf32>
    %c0_6 = arith.constant 0 : index
    %c0_7 = arith.constant 0 : index
    %10 = vector.load %arg6[%c0_6, %c0_7] : memref<32x128xf32, #tpu.memory_space<vmem>>, vector<32x128xf32>
    tpu.vector_store %arg6[%c0_6, %c0_7], %9 {strides = array<i32>} : memref<32x128xf32, #tpu.memory_space<vmem>>, vector<32x128xf32>,
    %c0_i32_8 = arith.constant 0 : i32
    %11 = arith.cmpi eq, %arg2, %c0_i32_8 : i32
    %12 = arith.extui %11 : i1 to i32
    %c0_i32_9 = arith.constant 0 : i32
    %13 = arith.cmpi ne, %12, %c0_i32_9 : i32
    scf.if %13 {
      %c0_10 = arith.constant 0 : index
      %c0_11 = arith.constant 0 : index
      %14 = vector.load %arg6[%c0_10, %c0_11] : memref<32x128xf32, #tpu.memory_space<vmem>>, vector<32x128xf32>
      %15 = arith.negf %14 : vector<32x128xf32>
      %16 = math.exp %15 : vector<32x128xf32>
      %cst_12 = arith.constant 1.000000e+00 : f32
      %17 = vector.broadcast %cst_12 : f32 to vector<32x128xf32>
      %18 = arith.addf %17, %16 : vector<32x128xf32>
      %19 = arith.divf %17, %18 : vector<32x128xf32>
      %c0_13 = arith.constant 0 : index
      %c0_14 = arith.constant 0 : index
      %20 = vector.load %arg5[%c0_13, %c0_14] : memref<32x128xf32, #tpu.memory_space<vmem>>, vector<32x128xf32>
      tpu.vector_store %arg5[%c0_13, %c0_14], %19 {strides = array<i32>} : memref<32x128xf32, #tpu.memory_space<vmem>>, vector<32x128xf32>,
    } else {
    }
    return
  }
  func.func @transform_0(%arg0: i32, %arg1: i32, %arg2: i32) -> (i32, i32) {
    %c0_i32 = arith.constant 0 : i32
    return %arg0, %arg2 : i32, i32
  }
  func.func @transform_1(%arg0: i32, %arg1: i32, %arg2: i32) -> (i32, i32) {
    %c0_i32 = arith.constant 0 : i32
    return %arg2, %arg1 : i32, i32
  }
  func.func @transform_2(%arg0: i32, %arg1: i32, %arg2: i32) -> (i32, i32) {
    %c0_i32 = arith.constant 0 : i32
    return %arg0, %arg1 : i32, i32
  }
}

module attributes {stable_mosaic.version = 11 : i64} {
  func.func @_blend_proj_kernel(%arg0: i32, %arg1: i32, %arg2: i32, %arg3: memref<32x128xf32, #tpu.memory_space<vmem>>, %arg4: memref<32x128xf32, #tpu.memory_space<vmem>>, %arg5: memref<32x128xf32, #tpu.memory_space<vmem>>, %arg6: memref<128x128xf32, #tpu.memory_space<vmem>>, %arg7: memref<32x128xf32, #tpu.memory_space<vmem>>, %arg8: memref<32x128xf32, #tpu.memory_space<vmem>>, %arg9: memref<32x128xf32, #tpu.memory_space<vmem>>) attributes {dimension_semantics = [#tpu.dimension_semantics<parallel>, #tpu.dimension_semantics<parallel>, #tpu.dimension_semantics<arbitrary>], iteration_bounds = array<i64: 1, 1, 1>, scalar_prefetch = 0 : i64, scratch_operands = 1 : i64, tpu.core_type = #tpu.core_type<tc>, window_params = [{transform_indices = @transform_0, window_bounds = array<i64: 32, 128>}, {transform_indices = @transform_1, window_bounds = array<i64: 32, 128>}, {transform_indices = @transform_2, window_bounds = array<i64: 32, 128>}, {transform_indices = @transform_3, window_bounds = array<i64: 128, 128>}, {transform_indices = @transform_4, window_bounds = array<i64: 32, 128>}, {transform_indices = @transform_5, window_bounds = array<i64: 32, 128>}]} {
    %c0_i32 = arith.constant 0 : i32
    %0 = arith.cmpi eq, %arg2, %c0_i32 : i32
    %1 = arith.extui %0 : i1 to i32
    %c0_i32_0 = arith.constant 0 : i32
    %2 = arith.cmpi ne, %1, %c0_i32_0 : i32
    scf.if %2 {
      %cst_15 = arith.constant 0.000000e+00 : f32
      %21 = vector.broadcast %cst_15 : f32 to vector<32x128xf32>
      %c0_16 = arith.constant 0 : index
      %c0_17 = arith.constant 0 : index
      %22 = vector.load %arg9[%c0_16, %c0_17] : memref<32x128xf32, #tpu.memory_space<vmem>>, vector<32x128xf32>
      tpu.vector_store %arg9[%c0_16, %c0_17], %21 {strides = array<i32>} : memref<32x128xf32, #tpu.memory_space<vmem>>, vector<32x128xf32>,
    } else {
    }
    %c0 = arith.constant 0 : index
    %c0_1 = arith.constant 0 : index
    %3 = vector.load %arg3[%c0, %c0_1] : memref<32x128xf32, #tpu.memory_space<vmem>>, vector<32x128xf32>
    %c0_2 = arith.constant 0 : index
    %c0_3 = arith.constant 0 : index
    %4 = vector.load %arg4[%c0_2, %c0_3] : memref<32x128xf32, #tpu.memory_space<vmem>>, vector<32x128xf32>
    %5 = arith.mulf %3, %4 : vector<32x128xf32>
    %cst = arith.constant 1.000000e+00 : f32
    %6 = vector.broadcast %cst : f32 to vector<32x128xf32>
    %7 = arith.subf %6, %3 : vector<32x128xf32>
    %c0_4 = arith.constant 0 : index
    %c0_5 = arith.constant 0 : index
    %8 = vector.load %arg5[%c0_4, %c0_5] : memref<32x128xf32, #tpu.memory_space<vmem>>, vector<32x128xf32>
    %9 = arith.mulf %7, %8 : vector<32x128xf32>
    %10 = arith.addf %5, %9 : vector<32x128xf32>
    %c0_6 = arith.constant 0 : index
    %c0_7 = arith.constant 0 : index
    %11 = vector.load %arg9[%c0_6, %c0_7] : memref<32x128xf32, #tpu.memory_space<vmem>>, vector<32x128xf32>
    %12 = arith.truncf %10 : vector<32x128xf32> to vector<32x128xbf16>
    %c0_8 = arith.constant 0 : index
    %c0_9 = arith.constant 0 : index
    %13 = vector.load %arg6[%c0_8, %c0_9] : memref<128x128xf32, #tpu.memory_space<vmem>>, vector<128x128xf32>
    %14 = arith.truncf %13 : vector<128x128xf32> to vector<128x128xbf16>
    %cst_10 = arith.constant dense<0.000000e+00> : vector<32x128xf32>
    %15 = tpu.matmul %12, %14, %cst_10 {dimension_numbers = #tpu.dot_dimension_numbers<[1], [0], [0], [1], [0, 0, 1, 1], [], []>} : vector<32x128xbf16>, vector<128x128xbf16>, vector<32x128xf32> -> vector<32x128xf32>
    %16 = arith.addf %11, %15 : vector<32x128xf32>
    %c0_11 = arith.constant 0 : index
    %c0_12 = arith.constant 0 : index
    %17 = vector.load %arg9[%c0_11, %c0_12] : memref<32x128xf32, #tpu.memory_space<vmem>>, vector<32x128xf32>
    tpu.vector_store %arg9[%c0_11, %c0_12], %16 {strides = array<i32>} : memref<32x128xf32, #tpu.memory_space<vmem>>, vector<32x128xf32>,
    %c0_i32_13 = arith.constant 0 : i32
    %18 = arith.cmpi eq, %arg2, %c0_i32_13 : i32
    %19 = arith.extui %18 : i1 to i32
    %c0_i32_14 = arith.constant 0 : i32
    %20 = arith.cmpi ne, %19, %c0_i32_14 : i32
    scf.if %20 {
      %c0_15 = arith.constant 0 : index
      %c0_16 = arith.constant 0 : index
      %21 = vector.load %arg9[%c0_15, %c0_16] : memref<32x128xf32, #tpu.memory_space<vmem>>, vector<32x128xf32>
      %c0_17 = arith.constant 0 : index
      %c0_18 = arith.constant 0 : index
      %22 = vector.load %arg7[%c0_17, %c0_18] : memref<32x128xf32, #tpu.memory_space<vmem>>, vector<32x128xf32>
      %23 = arith.addf %21, %22 : vector<32x128xf32>
      %c0_19 = arith.constant 0 : index
      %c0_20 = arith.constant 0 : index
      %24 = vector.load %arg8[%c0_19, %c0_20] : memref<32x128xf32, #tpu.memory_space<vmem>>, vector<32x128xf32>
      tpu.vector_store %arg8[%c0_19, %c0_20], %23 {strides = array<i32>} : memref<32x128xf32, #tpu.memory_space<vmem>>, vector<32x128xf32>,
    } else {
    }
    return
  }
  func.func @transform_0(%arg0: i32, %arg1: i32, %arg2: i32) -> (i32, i32) {
    %c0_i32 = arith.constant 0 : i32
    return %arg0, %arg2 : i32, i32
  }
  func.func @transform_1(%arg0: i32, %arg1: i32, %arg2: i32) -> (i32, i32) {
    %c0_i32 = arith.constant 0 : i32
    return %arg0, %arg2 : i32, i32
  }
  func.func @transform_2(%arg0: i32, %arg1: i32, %arg2: i32) -> (i32, i32) {
    %c0_i32 = arith.constant 0 : i32
    return %arg0, %arg2 : i32, i32
  }
  func.func @transform_3(%arg0: i32, %arg1: i32, %arg2: i32) -> (i32, i32) {
    %c0_i32 = arith.constant 0 : i32
    return %arg2, %arg1 : i32, i32
  }
  func.func @transform_4(%arg0: i32, %arg1: i32, %arg2: i32) -> (i32, i32) {
    %c0_i32 = arith.constant 0 : i32
    return %arg0, %arg1 : i32, i32
  }
  func.func @transform_5(%arg0: i32, %arg1: i32, %arg2: i32) -> (i32, i32) {
    %c0_i32 = arith.constant 0 : i32
    return %arg0, %arg1 : i32, i32
  }
}

module attributes {stable_mosaic.version = 11 : i64} {
  func.func @kernel(%arg0: i32, %arg1: i32, %arg2: i32, %arg3: memref<32x128xf32, #tpu.memory_space<vmem>>, %arg4: memref<128x128xf32, #tpu.memory_space<vmem>>, %arg5: memref<32x128xf32, #tpu.memory_space<vmem>>, %arg6: memref<32x128xf32, #tpu.memory_space<vmem>>, %arg7: memref<32x128xf32, #tpu.memory_space<vmem>>) attributes {dimension_semantics = [#tpu.dimension_semantics<parallel>, #tpu.dimension_semantics<parallel>, #tpu.dimension_semantics<arbitrary>], iteration_bounds = array<i64: 1, 1, 1>, scalar_prefetch = 0 : i64, scratch_operands = 1 : i64, tpu.core_type = #tpu.core_type<tc>, window_params = [{transform_indices = @transform_0, window_bounds = array<i64: 32, 128>}, {transform_indices = @transform_1, window_bounds = array<i64: 128, 128>}, {transform_indices = @transform_2, window_bounds = array<i64: 32, 128>}, {transform_indices = @transform_3, window_bounds = array<i64: 32, 128>}]} {
    %c0_i32 = arith.constant 0 : i32
    %0 = arith.cmpi eq, %arg2, %c0_i32 : i32
    %1 = arith.extui %0 : i1 to i32
    %c0_i32_0 = arith.constant 0 : i32
    %2 = arith.cmpi ne, %1, %c0_i32_0 : i32
    scf.if %2 {
      %cst_10 = arith.constant 0.000000e+00 : f32
      %14 = vector.broadcast %cst_10 : f32 to vector<32x128xf32>
      %c0_11 = arith.constant 0 : index
      %c0_12 = arith.constant 0 : index
      %15 = vector.load %arg7[%c0_11, %c0_12] : memref<32x128xf32, #tpu.memory_space<vmem>>, vector<32x128xf32>
      tpu.vector_store %arg7[%c0_11, %c0_12], %14 {strides = array<i32>} : memref<32x128xf32, #tpu.memory_space<vmem>>, vector<32x128xf32>,
    } else {
    }
    %c0 = arith.constant 0 : index
    %c0_1 = arith.constant 0 : index
    %3 = vector.load %arg7[%c0, %c0_1] : memref<32x128xf32, #tpu.memory_space<vmem>>, vector<32x128xf32>
    %c0_2 = arith.constant 0 : index
    %c0_3 = arith.constant 0 : index
    %4 = vector.load %arg3[%c0_2, %c0_3] : memref<32x128xf32, #tpu.memory_space<vmem>>, vector<32x128xf32>
    %5 = arith.truncf %4 : vector<32x128xf32> to vector<32x128xbf16>
    %c0_4 = arith.constant 0 : index
    %c0_5 = arith.constant 0 : index
    %6 = vector.load %arg4[%c0_4, %c0_5] : memref<128x128xf32, #tpu.memory_space<vmem>>, vector<128x128xf32>
    %7 = arith.truncf %6 : vector<128x128xf32> to vector<128x128xbf16>
    %cst = arith.constant dense<0.000000e+00> : vector<32x128xf32>
    %8 = tpu.matmul %5, %7, %cst {dimension_numbers = #tpu.dot_dimension_numbers<[1], [0], [0], [1], [0, 0, 1, 1], [], []>} : vector<32x128xbf16>, vector<128x128xbf16>, vector<32x128xf32> -> vector<32x128xf32>
    %9 = arith.addf %3, %8 : vector<32x128xf32>
    %c0_6 = arith.constant 0 : index
    %c0_7 = arith.constant 0 : index
    %10 = vector.load %arg7[%c0_6, %c0_7] : memref<32x128xf32, #tpu.memory_space<vmem>>, vector<32x128xf32>
    tpu.vector_store %arg7[%c0_6, %c0_7], %9 {strides = array<i32>} : memref<32x128xf32, #tpu.memory_space<vmem>>, vector<32x128xf32>,
    %c0_i32_8 = arith.constant 0 : i32
    %11 = arith.cmpi eq, %arg2, %c0_i32_8 : i32
    %12 = arith.extui %11 : i1 to i32
    %c0_i32_9 = arith.constant 0 : i32
    %13 = arith.cmpi ne, %12, %c0_i32_9 : i32
    scf.if %13 {
      %c0_10 = arith.constant 0 : index
      %c0_11 = arith.constant 0 : index
      %14 = vector.load %arg7[%c0_10, %c0_11] : memref<32x128xf32, #tpu.memory_space<vmem>>, vector<32x128xf32>
      %c0_12 = arith.constant 0 : index
      %c0_13 = arith.constant 0 : index
      %15 = vector.load %arg5[%c0_12, %c0_13] : memref<32x128xf32, #tpu.memory_space<vmem>>, vector<32x128xf32>
      %16 = arith.addf %14, %15 : vector<32x128xf32>
      %c0_14 = arith.constant 0 : index
      %c0_15 = arith.constant 0 : index
      %17 = vector.load %arg6[%c0_14, %c0_15] : memref<32x128xf32, #tpu.memory_space<vmem>>, vector<32x128xf32>
      tpu.vector_store %arg6[%c0_14, %c0_15], %16 {strides = array<i32>} : memref<32x128xf32, #tpu.memory_space<vmem>>, vector<32x128xf32>,
    } else {
    }
    return
  }
  func.func @transform_0(%arg0: i32, %arg1: i32, %arg2: i32) -> (i32, i32) {
    %c0_i32 = arith.constant 0 : i32
    return %arg0, %arg2 : i32, i32
  }
  func.func @transform_1(%arg0: i32, %arg1: i32, %arg2: i32) -> (i32, i32) {
    %c0_i32 = arith.constant 0 : i32
    return %arg2, %arg1 : i32, i32
  }
  func.func @transform_2(%arg0: i32, %arg1: i32, %arg2: i32) -> (i32, i32) {
    %c0_i32 = arith.constant 0 : i32
    return %arg0, %arg1 : i32, i32
  }
  func.func @transform_3(%arg0: i32, %arg1: i32, %arg2: i32) -> (i32, i32) {
    %c0_i32 = arith.constant 0 : i32
    return %arg0, %arg1 : i32, i32
  }
}

</mosaic_0001>

<llo_original>
// kernel: _lambda_.13
$region0: #{_lambda_.13}
  #allocation0 [shape = 'u32[]', space=smem, size = 0x4, offset = 0x4, fixed_abs, tag = 'smem constant byte address 0x4 - core index']
  #allocation1 [shape = 'u32[144,128]{1,0:T(1,128)}', space=vmem, size = 0x12000, scoped, tag = 'internal scratch']
  #allocation2 [shape = 'f32[32,128]{1,0:T(8,128)}', space=vmem, size = 0x4000, scoped, tag = 'scratch operand']
  %s0 = inlined_call_operand.vmem [shape: f32[32,128], index: 0, kind: input, shape index: {}]
  %s1 = inlined_call_operand.vmem [shape: f32[128,256], index: 1, kind: input, shape index: {}]
  %s2 = inlined_call_operand.vmem [shape: f32[32,256], index: 2, kind: output, shape index: {}]
  %s3 = sld [smem:[#allocation0]]
  $region121: #{_lambda_.13} parent=0
    _
  %s5 = ssub.s32 1, %s3
  %s6 = scalar_select 0, %s5, %s3
  $region1: #{_lambda_.13} parent=0
    #allocation3 [shape = 'u8[131072]{0}', space=vmem, size = 0x20000, scoped, tag = 'input window, operand 1']
    #allocation4 [shape = 'u8[32768]{0}', space=vmem, size = 0x8000, scoped, tag = 'output window, operand 0']
    loop: start=0, step=1, limit=4
    $region2: #{_lambda_.13} parent=1 // loop_pre_header
      _
    $region3: #{_lambda_.13} parent=1 // loop_header
      %s8 = sphi 0, %s12
      %p9 = scmp.ge.s32.totalorder %s8, 4
      %s15 = sphi 0, %s34
      %s16 = sphi 0, %s30
      %s17 = sphi 0, %s26
      %s18 = sphi 0, %s15
      %s19 = sphi 0, %s16
      %s20 = sphi 0, %s17
      %s21 = sphi 0, %s18
      %s22 = sphi 0, %s19
      %s23 = sphi 0, %s20
      %s39 = sphi 0, %s41
      %s42 = sphi 0, %s39
      %s43 = sphi 0, %s42
      %s59 = sphi 0, %s43
      %s67 = sphi 0, %s69
      %s70 = sphi 0, %s67
      %s71 = sphi 0, %s70
      %s87 = sphi 0, %s71
      %s95 = sphi 0, %s97
      %s98 = sphi 0, %s95
      %s99 = sphi 0, %s98
      %s115 = sphi 0, %s99
    $region4: #{_lambda_.13} parent=1 // loop_header_branch
      %11 = sbr.rel (%p9) target = $region8
    $region5: #{_lambda_.13} parent=1 // loop_body
      %s13 = ssub.s32 %s8, 1
      %s14 = ssub.s32 %s8, 2
      %s24 = sadd.s32 1, %s17
      %p25 = scmp.ge.s32.totalorder %s24, 1
      %s26 = scalar_select %p25, 0, %s24
      %s27 = sadd.s32 1, %s16
      %s28 = scalar_select %p25, %s27, %s16
      %p29 = scmp.ge.s32.totalorder %s28, 2
      %s30 = scalar_select %p29, 0, %s28
      %s31 = sadd.s32 1, %s15
      %s32 = scalar_select %p29, %s31, %s15
      %p33 = scmp.ge.s32.totalorder %s32, 1
      %s34 = scalar_select %p33, 0, %s32
      %s35 = ssub.s32 %s15, %s34
      %s36 = ssub.s32 %s17, %s26
      %s37 = sor.u32 %s35, %s36
      %p38 = scmp.eq.s32.totalorder %s37, 0
      %s40 = sadd.s32 %s39, 1
      %s41 = scalar_select %p38, %s39, %s40
      %p44 = pneg %p38
      %p45 = scmp.eq.s32.totalorder %s8, 1
      %p46 = por %p44, %p45
      %p47 = scmp.ne.s32.totalorder %s39, %s42
      %p48 = scmp.eq.s32.totalorder %s8, 0
      %p49 = por %p47, %p48
      %p50 = scmp.ne.s32.totalorder %s39, %s42
      %p51 = scmp.eq.s32.totalorder %s13, 1
      %p52 = por %p50, %p51
      %p53 = scmp.ne.s32.totalorder %s42, %s43
      %p54 = scmp.eq.s32.totalorder %s13, 0
      %p55 = por %p53, %p54
      %p56 = scmp.ne.s32.totalorder %s42, %s43
      %p57 = scmp.eq.s32.totalorder %s14, 1
      %p58 = por %p56, %p57
      %p60 = scmp.ne.s32.totalorder %s43, %s59
      %p61 = scmp.eq.s32.totalorder %s14, 0
      %p62 = por %p60, %p61
      %s63 = ssub.s32 %s17, %s26
      %s64 = ssub.s32 %s16, %s30
      %s65 = sor.u32 %s63, %s64
      %p66 = scmp.eq.s32.totalorder %s65, 0
      %s68 = sadd.s32 %s67, 1
      %s69 = scalar_select %p66, %s67, %s68
      %p72 = pneg %p66
      %p73 = scmp.eq.s32.totalorder %s8, 1
      %p74 = por %p72, %p73
      %p75 = scmp.ne.s32.totalorder %s67, %s70
      %p76 = scmp.eq.s32.totalorder %s8, 0
      %p77 = por %p75, %p76
      %p78 = scmp.ne.s32.totalorder %s67, %s70
      %p79 = scmp.eq.s32.totalorder %s13, 1
      %p80 = por %p78, %p79
      %p81 = scmp.ne.s32.totalorder %s70, %s71
      %p82 = scmp.eq.s32.totalorder %s13, 0
      %p83 = por %p81, %p82
      %p84 = scmp.ne.s32.totalorder %s70, %s71
      %p85 = scmp.eq.s32.totalorder %s14, 1
      %p86 = por %p84, %p85
      %p88 = scmp.ne.s32.totalorder %s71, %s87
      %p89 = scmp.eq.s32.totalorder %s14, 0
      %p90 = por %p88, %p89
      %s91 = ssub.s32 %s15, %s34
      %s92 = ssub.s32 %s16, %s30
      %s93 = sor.u32 %s91, %s92
      %p94 = scmp.eq.s32.totalorder %s93, 0
      %s96 = sadd.s32 %s95, 1
      %s97 = scalar_select %p94, %s95, %s96
      %p100 = pneg %p94
      %p101 = scmp.eq.s32.totalorder %s8, 1
      %p102 = por %p100, %p101
      %p103 = scmp.ne.s32.totalorder %s95, %s98
      %p104 = scmp.eq.s32.totalorder %s8, 0
      %p105 = por %p103, %p104
      %p106 = scmp.ne.s32.totalorder %s95, %s98
      %p107 = scmp.eq.s32.totalorder %s13, 1
      %p108 = por %p106, %p107
      %p109 = scmp.ne.s32.totalorder %s98, %s99
      %p110 = scmp.eq.s32.totalorder %s13, 0
      %p111 = por %p109, %p110
      %p112 = scmp.ne.s32.totalorder %s98, %s99
      %p113 = scmp.eq.s32.totalorder %s14, 1
      %p114 = por %p112, %p113
      %p116 = scmp.ne.s32.totalorder %s99, %s115
      %p117 = scmp.eq.s32.totalorder %s14, 0
      %p118 = por %p116, %p117
      %p119 = scmp.le.s32.totalorder 1, %s8
      %p120 = scmp.lt.s32.totalorder %s8, 3
      %p121 = pnand %p119, %p120
      %p122 = pneg %p121
      // Predicated region
      $region9: #{_lambda_.13} parent=5 // pred_check
        _
      $region10: #{_lambda_.13} parent=5 // pred_check_branch
        %124 = sbr.rel (%p121) target = $region12
      $region11: #{_lambda_.13} parent=5 // pred_region
        %s125 = ssub.s32 %s8, 1
        // Predicated region
        $region13: #{_lambda_.13} parent=11 // pred_check
          %p126 = pneg %p55
        $region14: #{_lambda_.13} parent=11 // pred_check_branch
          %128 = sbr.rel (%p126) target = $region16
        $region15: #{_lambda_.13} parent=11 // pred_region
          %s129 = smul.u32 4, %s18
          %p130 = scmp.lt.s32.totalorder %s129, 3
          %s131 = scalar_select %p130, %s129, 3
          %p132 = scmp.lt.s32.totalorder %s20, 0
          %s133 = scalar_select %p132, %s20, 0
          %s134 = sadd.s32 %s133, %s131
          %s135 = smul.addr %s134, 8
          %s136 = scalar_lea.vmem %s0, %s135
          %s137 = smul.u32 4, %s18
        $region16: #{_lambda_.13} parent=11 // pred_fallthru
          _
      $region12: #{_lambda_.13} parent=5 // pred_fallthru
        _
      %p138 = scmp.lt.s32.totalorder %s8, 2
      // Predicated region
      $region17: #{_lambda_.13} parent=5 // pred_check
        %p139 = pneg %p138
      $region18: #{_lambda_.13} parent=5 // pred_check_branch
        %141 = sbr.rel (%p139) target = $region20
      $region19: #{_lambda_.13} parent=5 // pred_region
        // Predicated region
        $region21: #{_lambda_.13} parent=19 // pred_check
          %p142 = pneg %p77
        $region22: #{_lambda_.13} parent=19 // pred_check_branch
          %144 = sbr.rel (%p142) target = $region24
        $region23: #{_lambda_.13} parent=19 // pred_region
          %s145 = sand.u32 %s67, 1
          %s146 = sand.u32 %s67, 1
          %s147 = smul.addr %s146, 128
          %s148 = scalar_lea.vmem [#allocation3], %s147
          %s149 = smul.u32 16, %s17
          %s150 = smul.addr %s149, 2
          %s151 = sadd.s32 %s16, %s150
          %s152 = smul.addr %s151, 8
          %s153 = scalar_lea.vmem %s1, %s152
          // Predicated region
          $region25: #{_lambda_.13} parent=23 // pred_check
            _
          $region26: #{_lambda_.13} parent=23 // pred_check_branch
            %155 = sbr.rel (0) target = $region28
          $region27: #{_lambda_.13} parent=23 // pred_region
            // Predicated region
            $region29: #{_lambda_.13} parent=27 // pred_check
              _
            $region30: #{_lambda_.13} parent=27 // pred_check_branch
              %157 = sbr.rel (0) target = $region32
            $region31: #{_lambda_.13} parent=27 // pred_region
              // Predicated region
              $region44: #{_lambda_.13} parent=31 // pred_check
                _
              $region45: #{_lambda_.13} parent=31 // pred_check_branch
                %202 = sbr.rel (0) target = $region47
              $region46: #{_lambda_.13} parent=31 // pred_region
                loop: start=0, step=1, limit=1
                $region48: #{_lambda_.13} parent=46 // loop_pre_header
                  _
                $region49: #{_lambda_.13} parent=46 // loop_header
                  %s204 = sphi 0, %s208
                  %p205 = scmp.ge.s32.totalorder %s204, 1
                  %s209 = sphi %s153, %s153
                  %s210 = sphi %s148, %s148
                $region50: #{_lambda_.13} parent=46 // loop_header_branch
                  %207 = sbr.rel (%p205) target = $region54
                $region51: #{_lambda_.13} parent=46 // loop_body
                  %v211 = vld [vmem:[%s209] sm:$0xff]
                  %212 = vst [vmem:[%s210] sm:$0xff] %v211
                  %v213 = vld [vmem:[%s209 + $0x10] sm:$0xff]
                  %214 = vst [vmem:[%s210 + $0x8] sm:$0xff] %v213
                  %v215 = vld [vmem:[%s209 + $0x20] sm:$0xff]
                  %216 = vst [vmem:[%s210 + $0x10] sm:$0xff] %v215
                  %v217 = vld [vmem:[%s209 + $0x30] sm:$0xff]
                  %218 = vst [vmem:[%s210 + $0x18] sm:$0xff] %v217
                  %v219 = vld [vmem:[%s209 + $0x40] sm:$0xff]
                  %220 = vst [vmem:[%s210 + $0x20] sm:$0xff] %v219
                  %v221 = vld [vmem:[%s209 + $0x50] sm:$0xff]
                  %222 = vst [vmem:[%s210 + $0x28] sm:$0xff] %v221
                  %v223 = vld [vmem:[%s209 + $0x60] sm:$0xff]
                  %224 = vst [vmem:[%s210 + $0x30] sm:$0xff] %v223
                  %v225 = vld [vmem:[%s209 + $0x70] sm:$0xff]
                  %226 = vst [vmem:[%s210 + $0x38] sm:$0xff] %v225
                  %v227 = vld [vmem:[%s209 + $0x80] sm:$0xff]
                  %228 = vst [vmem:[%s210 + $0x40] sm:$0xff] %v227
                  %v229 = vld [vmem:[%s209 + $0x90] sm:$0xff]
                  %230 = vst [vmem:[%s210 + $0x48] sm:$0xff] %v229
                  %v231 = vld [vmem:[%s209 + $0xa0] sm:$0xff]
                  %232 = vst [vmem:[%s210 + $0x50] sm:$0xff] %v231
                  %v233 = vld [vmem:[%s209 + $0xb0] sm:$0xff]
                  %234 = vst [vmem:[%s210 + $0x58] sm:$0xff] %v233
                  %v235 = vld [vmem:[%s209 + $0xc0] sm:$0xff]
                  %236 = vst [vmem:[%s210 + $0x60] sm:$0xff] %v235
                  %v237 = vld [vmem:[%s209 + $0xd0] sm:$0xff]
                  %238 = vst [vmem:[%s210 + $0x68] sm:$0xff] %v237
                  %v239 = vld [vmem:[%s209 + $0xe0] sm:$0xff]
                  %240 = vst [vmem:[%s210 + $0x70] sm:$0xff] %v239
                  %v241 = vld [vmem:[%s209 + $0xf0] sm:$0xff]
                  %242 = vst [vmem:[%s210 + $0x78] sm:$0xff] %v241
                $region52: #{_lambda_.13} parent=46 // loop_footer
                  %s208 = sadd.s32 1, %s204
                $region53: #{_lambda_.13} parent=46 // loop_footer_branch
                  %203 = sbr.rel target = $region49
                $region54: #{_lambda_.13} parent=46 // loop_exit
                  _
              $region47: #{_lambda_.13} parent=31 // pred_fallthru
                _
              // Predicated region
              $region55: #{_lambda_.13} parent=31 // pred_check
                _
              $region56: #{_lambda_.13} parent=31 // pred_check_branch
                %244 = sbr.rel target = $region58
              $region57: #{_lambda_.13} parent=31 // pred_region
                _
              $region58: #{_lambda_.13} parent=31 // pred_fallthru
                _
            $region32: #{_lambda_.13} parent=27 // pred_fallthru
              _
            // Predicated region
            $region33: #{_lambda_.13} parent=27 // pred_check
              _
            $region34: #{_lambda_.13} parent=27 // pred_check_branch
              %159 = sbr.rel target = $region36
            $region35: #{_lambda_.13} parent=27 // pred_region
              loop: start=0, step=1, limit=1
              $region37: #{_lambda_.13} parent=35 // loop_pre_header
                _
              $region38: #{_lambda_.13} parent=35 // loop_header
                %s162 = sphi 0, %s166
                %p163 = scmp.ge.s32.totalorder %s162, 1
                %s167 = sphi %s153, %s153
                %s168 = sphi %s148, %s148
              $region39: #{_lambda_.13} parent=35 // loop_header_branch
                %165 = sbr.rel (%p163) target = $region43
              $region40: #{_lambda_.13} parent=35 // loop_body
                %v169 = vld [vmem:[%s167] sm:$0xff]
                %170 = vst [vmem:[%s168] sm:$0xff] %v169
                %v171 = vld [vmem:[%s167 + $0x10] sm:$0xff]
                %172 = vst [vmem:[%s168 + $0x8] sm:$0xff] %v171
                %v173 = vld [vmem:[%s167 + $0x20] sm:$0xff]
                %174 = vst [vmem:[%s168 + $0x10] sm:$0xff] %v173
                %v175 = vld [vmem:[%s167 + $0x30] sm:$0xff]
                %176 = vst [vmem:[%s168 + $0x18] sm:$0xff] %v175
                %v177 = vld [vmem:[%s167 + $0x40] sm:$0xff]
                %178 = vst [vmem:[%s168 + $0x20] sm:$0xff] %v177
                %v179 = vld [vmem:[%s167 + $0x50] sm:$0xff]
                %180 = vst [vmem:[%s168 + $0x28] sm:$0xff] %v179
                %v181 = vld [vmem:[%s167 + $0x60] sm:$0xff]
                %182 = vst [vmem:[%s168 + $0x30] sm:$0xff] %v181
                %v183 = vld [vmem:[%s167 + $0x70] sm:$0xff]
                %184 = vst [vmem:[%s168 + $0x38] sm:$0xff] %v183
                %v185 = vld [vmem:[%s167 + $0x80] sm:$0xff]
                %186 = vst [vmem:[%s168 + $0x40] sm:$0xff] %v185
                %v187 = vld [vmem:[%s167 + $0x90] sm:$0xff]
                %188 = vst [vmem:[%s168 + $0x48] sm:$0xff] %v187
                %v189 = vld [vmem:[%s167 + $0xa0] sm:$0xff]
                %190 = vst [vmem:[%s168 + $0x50] sm:$0xff] %v189
                %v191 = vld [vmem:[%s167 + $0xb0] sm:$0xff]
                %192 = vst [vmem:[%s168 + $0x58] sm:$0xff] %v191
                %v193 = vld [vmem:[%s167 + $0xc0] sm:$0xff]
                %194 = vst [vmem:[%s168 + $0x60] sm:$0xff] %v193
                %v195 = vld [vmem:[%s167 + $0xd0] sm:$0xff]
                %196 = vst [vmem:[%s168 + $0x68] sm:$0xff] %v195
                %v197 = vld [vmem:[%s167 + $0xe0] sm:$0xff]
                %198 = vst [vmem:[%s168 + $0x70] sm:$0xff] %v197
                %v199 = vld [vmem:[%s167 + $0xf0] sm:$0xff]
                %200 = vst [vmem:[%s168 + $0x78] sm:$0xff] %v199
              $region41: #{_lambda_.13} parent=35 // loop_footer
                %s166 = sadd.s32 1, %s162
              $region42: #{_lambda_.13} parent=35 // loop_footer_branch
                %161 = sbr.rel target = $region38
              $region43: #{_lambda_.13} parent=35 // loop_exit
                _
            $region36: #{_lambda_.13} parent=27 // pred_fallthru
              _
          $region28: #{_lambda_.13} parent=23 // pred_fallthru
            _
          %245 = vnop
        $region24: #{_lambda_.13} parent=19 // pred_fallthru
          _
      $region20: #{_lambda_.13} parent=5 // pred_fallthru
        _
      %p246 = scmp.le.s32.totalorder 1, %s8
      %p247 = scmp.lt.s32.totalorder %s8, 3
      %p248 = pnand %p246, %p247
      %p249 = pneg %p248
      // Predicated region
      $region59: #{_lambda_.13} parent=5 // pred_check
        _
      $region60: #{_lambda_.13} parent=5 // pred_check_branch
        %251 = sbr.rel (%p248) target = $region62
      $region61: #{_lambda_.13} parent=5 // pred_region
        %s252 = ssub.s32 %s8, 1
        %s253 = sand.u32 %s70, 1
        %s254 = sand.u32 %s70, 1
        %s255 = smul.addr %s254, 128
        %s256 = scalar_lea.vmem [#allocation3], %s255
        // Predicated region
        $region63: #{_lambda_.13} parent=61 // pred_check
          %p257 = pneg %p83
        $region64: #{_lambda_.13} parent=61 // pred_check_branch
          %259 = sbr.rel (%p257) target = $region66
        $region65: #{_lambda_.13} parent=61 // pred_region
          _
        $region66: #{_lambda_.13} parent=61 // pred_fallthru
          _
        %s260 = smul.u32 4, %s18
        %p261 = scmp.lt.s32.totalorder %s260, 3
        %s262 = scalar_select %p261, %s260, 3
        %p263 = scmp.lt.s32.totalorder %s20, 0
        %s264 = scalar_select %p263, %s20, 0
        %s265 = sadd.s32 %s264, %s262
        %s266 = smul.addr %s265, 8
        %s267 = scalar_lea.vmem %s0, %s266
        %p268 = pneg %p55
        %p269 = pneg %p52
        %s270 = sand.u32 %s70, 1
        %s271 = sand.u32 %s70, 1
        %s272 = smul.addr %s271, 128
        %s273 = scalar_lea.vmem [#allocation3], %s272
        %p274 = pneg %p83
        %p275 = pneg %p80
        %p276 = pneg %p111
        %p277 = pneg %p108
        %s278 = sand.u32 %s98, 1
        %s279 = sand.u32 %s98, 1
        %s280 = smul.addr %s279, 32
        %s281 = scalar_lea.vmem [#allocation4], %s280
        %s282 = smul.u32 4, %s18
        %p283 = scmp.lt.s32.totalorder %s282, 3
        %s284 = scalar_select %p283, %s282, 3
        %p285 = scmp.lt.s32.totalorder %s20, 0
        %s286 = scalar_select %p285, %s20, 0
        %s287 = sadd.s32 %s286, %s284
        %s288 = smul.addr %s287, 8
        %s289 = scalar_lea.vmem %s0, %s288
        %s290 = smul.u32 4, %s18
        %s291 = smul.u32 16, %s20
        %s292 = smul.u32 4, %s18
        %p294 = scmp.eq.s32.totalorder %s20, 0
        // Predicated region
        $region67: #{_lambda_.13} parent=61 // pred_check
          %p295 = pneg %p294
        $region68: #{_lambda_.13} parent=61 // pred_check_branch
          %297 = sbr.rel (%p295) target = $region70
        $region69: #{_lambda_.13} parent=61 // pred_region
          %298 = vst [vmem:[#allocation2] sm:$0xff] 0.0
          %299 = vst [vmem:[#allocation2 + $0x8] sm:$0xff] 0.0
          %300 = vst [vmem:[#allocation2 + $0x10] sm:$0xff] 0.0
          %301 = vst [vmem:[#allocation2 + $0x18] sm:$0xff] 0.0
        $region70: #{_lambda_.13} parent=61 // pred_fallthru
          _
        %v302 = vld [vmem:[#allocation2] sm:$0xff]
        %v303 = vld [vmem:[#allocation2 + $0x8] sm:$0xff]
        %v304 = vld [vmem:[#allocation2 + $0x10] sm:$0xff]
        %v305 = vld [vmem:[#allocation2 + $0x18] sm:$0xff]
        %v306 = vld [vmem:[%s289] sm:$0xff]
        %v307 = vld [vmem:[%s289 + $0x8] sm:$0xff]
        %v308 = vld [vmem:[%s289 + $0x10] sm:$0xff]
        %v309 = vld [vmem:[%s289 + $0x18] sm:$0xff]
        %v310 = vpack.c.bf16 %v307, %v306
        %v311 = vpack.c.bf16 %v309, %v308
        %v312 = vld [vmem:[%s256] sm:$0xff]
        %v313 = vld [vmem:[%s256 + $0x8] sm:$0xff]
        %v314 = vld [vmem:[%s256 + $0x10] sm:$0xff]
        %v315 = vld [vmem:[%s256 + $0x18] sm:$0xff]
        %v316 = vld [vmem:[%s256 + $0x20] sm:$0xff]
        %v317 = vld [vmem:[%s256 + $0x28] sm:$0xff]
        %v318 = vld [vmem:[%s256 + $0x30] sm:$0xff]
        %v319 = vld [vmem:[%s256 + $0x38] sm:$0xff]
        %v320 = vld [vmem:[%s256 + $0x40] sm:$0xff]
        %v321 = vld [vmem:[%s256 + $0x48] sm:$0xff]
        %v322 = vld [vmem:[%s256 + $0x50] sm:$0xff]
        %v323 = vld [vmem:[%s256 + $0x58] sm:$0xff]
        %v324 = vld [vmem:[%s256 + $0x60] sm:$0xff]
        %v325 = vld [vmem:[%s256 + $0x68] sm:$0xff]
        %v326 = vld [vmem:[%s256 + $0x70] sm:$0xff]
        %v327 = vld [vmem:[%s256 + $0x78] sm:$0xff]
        %v328 = vpack.c.bf16 %v313, %v312
        %v329 = vpack.c.bf16 %v315, %v314
        %v330 = vpack.c.bf16 %v317, %v316
        %v331 = vpack.c.bf16 %v319, %v318
        %v332 = vpack.c.bf16 %v321, %v320
        %v333 = vpack.c.bf16 %v323, %v322
        %v334 = vpack.c.bf16 %v325, %v324
        %v335 = vpack.c.bf16 %v327, %v326
        %336 = vmatprep.subr.bf16.mxu0 0
        %337 = vmatpush1.bf16.msra.mxu0 %v328
        %338 = vmatprep.subr.bf16.mxu0 0
        %339 = vmatpush1.bf16.msra.mxu0 %v329
        %340 = vmatprep.subr.bf16.mxu0 0
        %341 = vmatpush1.bf16.msra.mxu0 %v330
        %342 = vmatprep.subr.bf16.mxu0 0
        %343 = vmatpush1.bf16.msra.mxu0 %v331
        %344 = vmatprep.subr.bf16.mxu0 0
        %345 = vmatpush1.bf16.msra.mxu0 %v332
        %346 = vmatprep.subr.bf16.mxu0 0
        %347 = vmatpush1.bf16.msra.mxu0 %v333
        %348 = vmatprep.subr.bf16.mxu0 0
        %349 = vmatpush1.bf16.msra.mxu0 %v334
        %350 = vmatprep.subr.bf16.mxu0 0
        %351 = vmatpush1.bf16.msra.mxu0 %v335
        %352 = vmatprep.subr.bf16.mxu0 0
        %353 = vmatpush1.bf16.msra.mxu0 0
        %354 = vmatprep.subr.bf16.mxu0 0
        %355 = vmatpush1.bf16.msra.mxu0 0
        %356 = vmatprep.subr.bf16.mxu0 0
        %357 = vmatpush1.bf16.msra.mxu0 0
        %358 = vmatprep.subr.bf16.mxu0 0
        %359 = vmatpush1.bf16.msra.mxu0 0
        %360 = vmatprep.subr.bf16.mxu0 0
        %361 = vmatpush1.bf16.msra.mxu0 0
        %362 = vmatprep.subr.bf16.mxu0 0
        %363 = vmatpush1.bf16.msra.mxu0 0
        %364 = vmatprep.subr.bf16.mxu0 0
        %365 = vmatpush1.bf16.msra.mxu0 0
        %366 = vmatprep.subr.bf16.mxu0 0
        %367 = vmatpush1.bf16.msra.mxu0 0
        %368 = vmatprep.mubr.bf16.mxu0 0
        %369 = vmatmul.mubr.bf16.gmra.mrb[0].mxu0 %v310
        %v370 = vpop.f32.mrb[0].mxu0
        %v371 = vadd.f32 0.0, %v370
        %v372 = vpop.f32.mrb[0].mxu0
        %v373 = vpop.f32.mrb[0].mxu0
        %v374 = vadd.f32 0.0, %v373
        %v375 = vpop.f32.mrb[0].mxu0
        %376 = vmatprep.mubr.bf16.mxu0 0
        %377 = vmatmul.mubr.bf16.gmra.mrb[0].mxu0 %v311
        %v378 = vpop.f32.mrb[0].mxu0
        %v379 = vadd.f32 0.0, %v378
        %v380 = vpop.f32.mrb[0].mxu0
        %v381 = vpop.f32.mrb[0].mxu0
        %v382 = vadd.f32 0.0, %v381
        %v383 = vpop.f32.mrb[0].mxu0
        %384 = vdwg.mxu0
        %v385 = vadd.f32 %v302, %v371
        %v386 = vadd.f32 %v303, %v374
        %v387 = vadd.f32 %v304, %v379
        %v388 = vadd.f32 %v305, %v382
        %389 = vst [vmem:[#allocation2] sm:$0xff] %v385
        %390 = vst [vmem:[#allocation2 + $0x8] sm:$0xff] %v386
        %391 = vst [vmem:[#allocation2 + $0x10] sm:$0xff] %v387
        %392 = vst [vmem:[#allocation2 + $0x18] sm:$0xff] %v388
        // Predicated region
        $region71: #{_lambda_.13} parent=61 // pred_check
          %p393 = pneg %p294
        $region72: #{_lambda_.13} parent=61 // pred_check_branch
          %395 = sbr.rel (%p393) target = $region74
        $region73: #{_lambda_.13} parent=61 // pred_region
          %v396 = vld [vmem:[#allocation2] sm:$0xff]
          %v397 = vld [vmem:[#allocation2 + $0x8] sm:$0xff]
          %v398 = vld [vmem:[#allocation2 + $0x10] sm:$0xff]
          %v399 = vld [vmem:[#allocation2 + $0x18] sm:$0xff]
          %400 = vst [vmem:[%s281] sm:$0xff] %v396
          %401 = vst [vmem:[%s281 + $0x8] sm:$0xff] %v397
          %402 = vst [vmem:[%s281 + $0x10] sm:$0xff] %v398
          %403 = vst [vmem:[%s281 + $0x18] sm:$0xff] %v399
        $region74: #{_lambda_.13} parent=61 // pred_fallthru
          _
        %s404 = sand.u32 %s98, 1
        %s405 = sand.u32 %s98, 1
        %s406 = smul.addr %s405, 32
        %s407 = scalar_lea.vmem [#allocation4], %s406
        // Predicated region
        $region75: #{_lambda_.13} parent=61 // pred_check
          %p408 = pneg %p108
        $region76: #{_lambda_.13} parent=61 // pred_check_branch
          %410 = sbr.rel (%p408) target = $region78
        $region77: #{_lambda_.13} parent=61 // pred_region
          %s411 = smul.u32 4, %s18
          %s412 = smul.addr %s411, 2
          %s413 = sadd.s32 %s19, %s412
          %s414 = smul.addr %s413, 8
          %s415 = scalar_lea.vmem %s2, %s414
          // Predicated region
          $region79: #{_lambda_.13} parent=77 // pred_check
            _
          $region80: #{_lambda_.13} parent=77 // pred_check_branch
            %417 = sbr.rel (0) target = $region82
          $region81: #{_lambda_.13} parent=77 // pred_region
            // Predicated region
            $region83: #{_lambda_.13} parent=81 // pred_check
              _
            $region84: #{_lambda_.13} parent=81 // pred_check_branch
              %419 = sbr.rel (0) target = $region86
            $region85: #{_lambda_.13} parent=81 // pred_region
              // Predicated region
              $region98: #{_lambda_.13} parent=85 // pred_check
                _
              $region99: #{_lambda_.13} parent=85 // pred_check_branch
                %440 = sbr.rel (0) target = $region101
              $region100: #{_lambda_.13} parent=85 // pred_region
                loop: start=0, step=1, limit=1
                $region102: #{_lambda_.13} parent=100 // loop_pre_header
                  _
                $region103: #{_lambda_.13} parent=100 // loop_header
                  %s442 = sphi 0, %s446
                  %p443 = scmp.ge.s32.totalorder %s442, 1
                  %s447 = sphi %s407, %s407
                  %s448 = sphi %s415, %s415
                $region104: #{_lambda_.13} parent=100 // loop_header_branch
                  %445 = sbr.rel (%p443) target = $region108
                $region105: #{_lambda_.13} parent=100 // loop_body
                  %v449 = vld [vmem:[%s447] sm:$0xff]
                  %450 = vst [vmem:[%s448] sm:$0xff] %v449
                  %v451 = vld [vmem:[%s447 + $0x8] sm:$0xff]
                  %452 = vst [vmem:[%s448 + $0x10] sm:$0xff] %v451
                  %v453 = vld [vmem:[%s447 + $0x10] sm:$0xff]
                  %454 = vst [vmem:[%s448 + $0x20] sm:$0xff] %v453
                  %v455 = vld [vmem:[%s447 + $0x18] sm:$0xff]
                  %456 = vst [vmem:[%s448 + $0x30] sm:$0xff] %v455
                $region106: #{_lambda_.13} parent=100 // loop_footer
                  %s446 = sadd.s32 1, %s442
                $region107: #{_lambda_.13} parent=100 // loop_footer_branch
                  %441 = sbr.rel target = $region103
                $region108: #{_lambda_.13} parent=100 // loop_exit
                  _
              $region101: #{_lambda_.13} parent=85 // pred_fallthru
                _
              // Predicated region
              $region109: #{_lambda_.13} parent=85 // pred_check
                _
              $region110: #{_lambda_.13} parent=85 // pred_check_branch
                %458 = sbr.rel target = $region112
              $region111: #{_lambda_.13} parent=85 // pred_region
                _
              $region112: #{_lambda_.13} parent=85 // pred_fallthru
                _
            $region86: #{_lambda_.13} parent=81 // pred_fallthru
              _
            // Predicated region
            $region87: #{_lambda_.13} parent=81 // pred_check
              _
            $region88: #{_lambda_.13} parent=81 // pred_check_branch
              %421 = sbr.rel target = $region90
            $region89: #{_lambda_.13} parent=81 // pred_region
              loop: start=0, step=1, limit=1
              $region91: #{_lambda_.13} parent=89 // loop_pre_header
                _
              $region92: #{_lambda_.13} parent=89 // loop_header
                %s424 = sphi 0, %s428
                %p425 = scmp.ge.s32.totalorder %s424, 1
                %s429 = sphi %s407, %s407
                %s430 = sphi %s415, %s415
              $region93: #{_lambda_.13} parent=89 // loop_header_branch
                %427 = sbr.rel (%p425) target = $region97
              $region94: #{_lambda_.13} parent=89 // loop_body
                %v431 = vld [vmem:[%s429] sm:$0xff]
                %432 = vst [vmem:[%s430] sm:$0xff] %v431
                %v433 = vld [vmem:[%s429 + $0x8] sm:$0xff]
                %434 = vst [vmem:[%s430 + $0x10] sm:$0xff] %v433
                %v435 = vld [vmem:[%s429 + $0x10] sm:$0xff]
                %436 = vst [vmem:[%s430 + $0x20] sm:$0xff] %v435
                %v437 = vld [vmem:[%s429 + $0x18] sm:$0xff]
                %438 = vst [vmem:[%s430 + $0x30] sm:$0xff] %v437
              $region95: #{_lambda_.13} parent=89 // loop_footer
                %s428 = sadd.s32 1, %s424
              $region96: #{_lambda_.13} parent=89 // loop_footer_branch
                %423 = sbr.rel target = $region92
              $region97: #{_lambda_.13} parent=89 // loop_exit
                _
            $region90: #{_lambda_.13} parent=81 // pred_fallthru
              _
          $region82: #{_lambda_.13} parent=77 // pred_fallthru
            _
          %459 = vnop
        $region78: #{_lambda_.13} parent=61 // pred_fallthru
          _
      $region62: #{_lambda_.13} parent=5 // pred_fallthru
        _
      %p460 = scmp.le.s32.totalorder 2, %s8
      // Predicated region
      $region113: #{_lambda_.13} parent=5 // pred_check
        %p461 = pneg %p460
      $region114: #{_lambda_.13} parent=5 // pred_check_branch
        %463 = sbr.rel (%p461) target = $region116
      $region115: #{_lambda_.13} parent=5 // pred_region
        %s464 = ssub.s32 %s8, 2
        // Predicated region
        $region117: #{_lambda_.13} parent=115 // pred_check
          %p465 = pneg %p114
        $region118: #{_lambda_.13} parent=115 // pred_check_branch
          %467 = sbr.rel (%p465) target = $region120
        $region119: #{_lambda_.13} parent=115 // pred_region
          %s468 = sand.u32 %s99, 1
          %s469 = sand.u32 %s99, 1
          %s470 = smul.addr %s469, 32
          %s471 = scalar_lea.vmem [#allocation4], %s470
        $region120: #{_lambda_.13} parent=115 // pred_fallthru
          _
      $region116: #{_lambda_.13} parent=5 // pred_fallthru
        _
    $region6: #{_lambda_.13} parent=1 // loop_footer
      %s12 = sadd.s32 1, %s8
    $region7: #{_lambda_.13} parent=1 // loop_footer_branch
      %7 = sbr.rel target = $region3
    $region8: #{_lambda_.13} parent=1 // loop_exit
      _

// kernel: _lambda_.12
$region0: #{_lambda_.12}
  #allocation0 [shape = 'u32[]', space=smem, size = 0x4, offset = 0x4, fixed_abs, tag = 'smem constant byte address 0x4 - core index']
  #allocation1 [shape = 'u32[144,128]{1,0:T(1,128)}', space=vmem, size = 0x12000, scoped, tag = 'internal scratch']
  %s0 = inlined_call_operand.vmem [shape: f32[32,32], index: 0, kind: input, shape index: {}]
  %s1 = inlined_call_operand.vmem [shape: f32[1,32], index: 1, kind: input, shape index: {}]
  %s2 = inlined_call_operand.vmem [shape: f32[32,32], index: 2, kind: output, shape index: {}]
  %s3 = sld [smem:[#allocation0]]
  $region18: #{_lambda_.12} parent=0
    _
  %s5 = ssub.s32 1, %s3
  %s6 = scalar_select 0, %s5, %s3
  // Predicated region
  $region2: #{_lambda_.12} parent=0 // pred_check
    _
  $region3: #{_lambda_.12} parent=0 // pred_check_branch
    %8 = sbr.rel (0) target = $region5
  $region4: #{_lambda_.12} parent=0 // pred_region
    _
  $region5: #{_lambda_.12} parent=0 // pred_fallthru
    _
  // Predicated region
  $region6: #{_lambda_.12} parent=0 // pred_check
    _
  $region7: #{_lambda_.12} parent=0 // pred_check_branch
    %10 = sbr.rel (0) target = $region9
  $region8: #{_lambda_.12} parent=0 // pred_region
    _
  $region9: #{_lambda_.12} parent=0 // pred_fallthru
    _
  %v11 = vld [vmem:[%s0] sm:$0xff]
  %v12 = vld [vmem:[%s0 + $0x8] sm:$0xff]
  %v13 = vld [vmem:[%s0 + $0x10] sm:$0xff]
  %v14 = vld [vmem:[%s0 + $0x18] sm:$0xff]
  %vm15 = vcmask 261120
  %v16 = vsel %vm15, %v11, 0.0
  %17 = vadd.xlane.f32.xlu0 %v16
  %v18 = vpop.xlane.xlu0 %17
  %v19 = vsel %vm15, %v12, 0.0
  %20 = vadd.xlane.f32.xlu0 %v19
  %v21 = vpop.xlane.xlu0 %20
  %v22 = vsel %vm15, %v13, 0.0
  %23 = vadd.xlane.f32.xlu0 %v22
  %v24 = vpop.xlane.xlu0 %23
  %v25 = vsel %vm15, %v14, 0.0
  %26 = vadd.xlane.f32.xlu0 %v25
  %v27 = vpop.xlane.xlu0 %26
  %v28 = vrcp.pop 32.0
  %v29 = vmul.f32 %v18, %v28
  %v30 = vmul.f32 %v21, %v28
  %v31 = vmul.f32 %v24, %v28
  %v32 = vmul.f32 %v27, %v28
  %v33 = vsub.f32 %v11, %v29
  %v34 = vsub.f32 %v12, %v30
  %v35 = vsub.f32 %v13, %v31
  %v36 = vsub.f32 %v14, %v32
  %v37 = vmul.f32 %v33, %v33
  %v38 = vmul.f32 %v34, %v34
  %v39 = vmul.f32 %v35, %v35
  %v40 = vmul.f32 %v36, %v36
  %v41 = vsel %vm15, %v37, 0.0
  %42 = vadd.xlane.f32.xlu0 %v41
  %v43 = vpop.xlane.xlu0 %42
  %v44 = vsel %vm15, %v38, 0.0
  %45 = vadd.xlane.f32.xlu0 %v44
  %v46 = vpop.xlane.xlu0 %45
  %v47 = vsel %vm15, %v39, 0.0
  %48 = vadd.xlane.f32.xlu0 %v47
  %v49 = vpop.xlane.xlu0 %48
  %v50 = vsel %vm15, %v40, 0.0
  %51 = vadd.xlane.f32.xlu0 %v50
  %v52 = vpop.xlane.xlu0 %51
  %v53 = vmul.f32 %v43, %v28
  %v54 = vmul.f32 %v46, %v28
  %v55 = vmul.f32 %v49, %v28
  %v56 = vmul.f32 %v52, %v28
  %v57 = vadd.f32 %v53, 1e-05
  %v58 = vadd.f32 %v54, 1e-05
  %v59 = vadd.f32 %v55, 1e-05
  %v60 = vadd.f32 %v56, 1e-05
  %v61 = vrsqrt.pop %v57
  %v62 = vrsqrt.pop %v58
  %v63 = vrsqrt.pop %v59
  %v64 = vrsqrt.pop %v60
  %v65 = vmul.f32 %v33, %v61
  %v66 = vmul.f32 %v34, %v62
  %v67 = vmul.f32 %v35, %v63
  %v68 = vmul.f32 %v36, %v64
  %v69 = vld [vmem:[%s1] sm:$0x1]
  %v71 = vlaneseq
  %v72 = vshrl.u32 %v71, 7
  %v73 = vsub.s32 0, %v72
  %v74 = vrot.slane %v69, %v73
  %v76 = vmul.f32 %v65, %v74
  %v77 = vmul.f32 %v66, %v74
  %v78 = vmul.f32 %v67, %v74
  %v79 = vmul.f32 %v68, %v74
  %80 = vst.msk [vmem:[%s2] sm:$0xff] %vm15, %v76
  %81 = vst.msk [vmem:[%s2 + $0x8] sm:$0xff] %vm15, %v77
  %82 = vst.msk [vmem:[%s2 + $0x10] sm:$0xff] %vm15, %v78
  %83 = vst.msk [vmem:[%s2 + $0x18] sm:$0xff] %vm15, %v79
  // Predicated region
  $region10: #{_lambda_.12} parent=0 // pred_check
    _
  $region11: #{_lambda_.12} parent=0 // pred_check_branch
    %85 = sbr.rel (0) target = $region13
  $region12: #{_lambda_.12} parent=0 // pred_region
    _
  $region13: #{_lambda_.12} parent=0 // pred_fallthru
    _
  // Predicated region
  $region14: #{_lambda_.12} parent=0 // pred_check
    _
  $region15: #{_lambda_.12} parent=0 // pred_check_branch
    %87 = sbr.rel (0) target = $region17
  $region16: #{_lambda_.12} parent=0 // pred_region
    _
  $region17: #{_lambda_.12} parent=0 // pred_fallthru
    _

// kernel: _lambda_.18
$region0: #{_lambda_.18}
  #allocation0 [shape = 'u32[]', space=smem, size = 0x4, offset = 0x4, fixed_abs, tag = 'smem constant byte address 0x4 - core index']
  #allocation1 [shape = 'u32[144,128]{1,0:T(1,128)}', space=vmem, size = 0x12000, scoped, tag = 'internal scratch']
  #allocation2 [shape = 'f32[32,128]{1,0:T(8,128)}', space=vmem, size = 0x4000, scoped, tag = 'scratch operand']
  %s0 = inlined_call_operand.vmem [shape: f32[32,128], index: 0, kind: input, shape index: {}]
  %s1 = inlined_call_operand.vmem [shape: f32[128,128], index: 1, kind: input, shape index: {}]
  %s2 = inlined_call_operand.vmem [shape: f32[32,128], index: 2, kind: output, shape index: {}]
  %s3 = sld [smem:[#allocation0]]
  $region26: #{_lambda_.18} parent=0
    _
  %s5 = ssub.s32 1, %s3
  %s6 = scalar_select 0, %s5, %s3
  // Predicated region
  $region2: #{_lambda_.18} parent=0 // pred_check
    _
  $region3: #{_lambda_.18} parent=0 // pred_check_branch
    %8 = sbr.rel (0) target = $region5
  $region4: #{_lambda_.18} parent=0 // pred_region
    _
  $region5: #{_lambda_.18} parent=0 // pred_fallthru
    _
  // Predicated region
  $region6: #{_lambda_.18} parent=0 // pred_check
    _
  $region7: #{_lambda_.18} parent=0 // pred_check_branch
    %10 = sbr.rel (0) target = $region9
  $region8: #{_lambda_.18} parent=0 // pred_region
    _
  $region9: #{_lambda_.18} parent=0 // pred_fallthru
    _
  %p12 = scmp.eq.s32.totalorder 0, 0
  // Predicated region
  $region10: #{_lambda_.18} parent=0 // pred_check
    %p13 = pneg %p12
  $region11: #{_lambda_.18} parent=0 // pred_check_branch
    %15 = sbr.rel (%p13) target = $region13
  $region12: #{_lambda_.18} parent=0 // pred_region
    %16 = vst [vmem:[#allocation2] sm:$0xff] 0.0
    %17 = vst [vmem:[#allocation2 + $0x8] sm:$0xff] 0.0
    %18 = vst [vmem:[#allocation2 + $0x10] sm:$0xff] 0.0
    %19 = vst [vmem:[#allocation2 + $0x18] sm:$0xff] 0.0
  $region13: #{_lambda_.18} parent=0 // pred_fallthru
    _
  %v20 = vld [vmem:[#allocation2] sm:$0xff]
  %v21 = vld [vmem:[#allocation2 + $0x8] sm:$0xff]
  %v22 = vld [vmem:[#allocation2 + $0x10] sm:$0xff]
  %v23 = vld [vmem:[#allocation2 + $0x18] sm:$0xff]
  %v24 = vld [vmem:[%s0] sm:$0xff]
  %v25 = vld [vmem:[%s0 + $0x8] sm:$0xff]
  %v26 = vld [vmem:[%s0 + $0x10] sm:$0xff]
  %v27 = vld [vmem:[%s0 + $0x18] sm:$0xff]
  %v28 = vpack.c.bf16 %v25, %v24
  %v29 = vpack.c.bf16 %v27, %v26
  %v30 = vld [vmem:[%s1] sm:$0xff]
  %v31 = vld [vmem:[%s1 + $0x8] sm:$0xff]
  %v32 = vld [vmem:[%s1 + $0x10] sm:$0xff]
  %v33 = vld [vmem:[%s1 + $0x18] sm:$0xff]
  %v34 = vld [vmem:[%s1 + $0x20] sm:$0xff]
  %v35 = vld [vmem:[%s1 + $0x28] sm:$0xff]
  %v36 = vld [vmem:[%s1 + $0x30] sm:$0xff]
  %v37 = vld [vmem:[%s1 + $0x38] sm:$0xff]
  %v38 = vld [vmem:[%s1 + $0x40] sm:$0xff]
  %v39 = vld [vmem:[%s1 + $0x48] sm:$0xff]
  %v40 = vld [vmem:[%s1 + $0x50] sm:$0xff]
  %v41 = vld [vmem:[%s1 + $0x58] sm:$0xff]
  %v42 = vld [vmem:[%s1 + $0x60] sm:$0xff]
  %v43 = vld [vmem:[%s1 + $0x68] sm:$0xff]
  %v44 = vld [vmem:[%s1 + $0x70] sm:$0xff]
  %v45 = vld [vmem:[%s1 + $0x78] sm:$0xff]
  %v46 = vpack.c.bf16 %v31, %v30
  %v47 = vpack.c.bf16 %v33, %v32
  %v48 = vpack.c.bf16 %v35, %v34
  %v49 = vpack.c.bf16 %v37, %v36
  %v50 = vpack.c.bf16 %v39, %v38
  %v51 = vpack.c.bf16 %v41, %v40
  %v52 = vpack.c.bf16 %v43, %v42
  %v53 = vpack.c.bf16 %v45, %v44
  %54 = vmatprep.subr.bf16.mxu0 0
  %55 = vmatpush1.bf16.msra.mxu0 %v46
  %56 = vmatprep.subr.bf16.mxu0 0
  %57 = vmatpush1.bf16.msra.mxu0 %v47
  %58 = vmatprep.subr.bf16.mxu0 0
  %59 = vmatpush1.bf16.msra.mxu0 %v48
  %60 = vmatprep.subr.bf16.mxu0 0
  %61 = vmatpush1.bf16.msra.mxu0 %v49
  %62 = vmatprep.subr.bf16.mxu0 0
  %63 = vmatpush1.bf16.msra.mxu0 %v50
  %64 = vmatprep.subr.bf16.mxu0 0
  %65 = vmatpush1.bf16.msra.mxu0 %v51
  %66 = vmatprep.subr.bf16.mxu0 0
  %67 = vmatpush1.bf16.msra.mxu0 %v52
  %68 = vmatprep.subr.bf16.mxu0 0
  %69 = vmatpush1.bf16.msra.mxu0 %v53
  %70 = vmatprep.subr.bf16.mxu0 0
  %71 = vmatpush1.bf16.msra.mxu0 0
  %72 = vmatprep.subr.bf16.mxu0 0
  %73 = vmatpush1.bf16.msra.mxu0 0
  %74 = vmatprep.subr.bf16.mxu0 0
  %75 = vmatpush1.bf16.msra.mxu0 0
  %76 = vmatprep.subr.bf16.mxu0 0
  %77 = vmatpush1.bf16.msra.mxu0 0
  %78 = vmatprep.subr.bf16.mxu0 0
  %79 = vmatpush1.bf16.msra.mxu0 0
  %80 = vmatprep.subr.bf16.mxu0 0
  %81 = vmatpush1.bf16.msra.mxu0 0
  %82 = vmatprep.subr.bf16.mxu0 0
  %83 = vmatpush1.bf16.msra.mxu0 0
  %84 = vmatprep.subr.bf16.mxu0 0
  %85 = vmatpush1.bf16.msra.mxu0 0
  %86 = vmatprep.mubr.bf16.mxu0 0
  %87 = vmatmul.mubr.bf16.gmra.mrb[0].mxu0 %v28
  %v88 = vpop.f32.mrb[0].mxu0
  %v89 = vadd.f32 0.0, %v88
  %v90 = vpop.f32.mrb[0].mxu0
  %v91 = vpop.f32.mrb[0].mxu0
  %v92 = vadd.f32 0.0, %v91
  %v93 = vpop.f32.mrb[0].mxu0
  %94 = vmatprep.mubr.bf16.mxu0 0
  %95 = vmatmul.mubr.bf16.gmra.mrb[0].mxu0 %v29
  %v96 = vpop.f32.mrb[0].mxu0
  %v97 = vadd.f32 0.0, %v96
  %v98 = vpop.f32.mrb[0].mxu0
  %v99 = vpop.f32.mrb[0].mxu0
  %v100 = vadd.f32 0.0, %v99
  %v101 = vpop.f32.mrb[0].mxu0
  %102 = vdwg.mxu0
  %v103 = vadd.f32 %v20, %v89
  %v104 = vadd.f32 %v21, %v92
  %v105 = vadd.f32 %v22, %v97
  %v106 = vadd.f32 %v23, %v100
  %107 = vst [vmem:[#allocation2] sm:$0xff] %v103
  %108 = vst [vmem:[#allocation2 + $0x8] sm:$0xff] %v104
  %109 = vst [vmem:[#allocation2 + $0x10] sm:$0xff] %v105
  %110 = vst [vmem:[#allocation2 + $0x18] sm:$0xff] %v106
  // Predicated region
  $region14: #{_lambda_.18} parent=0 // pred_check
    %p111 = pneg %p12
  $region15: #{_lambda_.18} parent=0 // pred_check_branch
    %113 = sbr.rel (%p111) target = $region17
  $region16: #{_lambda_.18} parent=0 // pred_region
    %v114 = vld [vmem:[#allocation2] sm:$0xff]
    %v115 = vld [vmem:[#allocation2 + $0x8] sm:$0xff]
    %v116 = vld [vmem:[#allocation2 + $0x10] sm:$0xff]
    %v117 = vld [vmem:[#allocation2 + $0x18] sm:$0xff]
    %v118 = vmul.f32 %v114, 0.5
    %v119 = vmul.f32 %v115, 0.5
    %v120 = vmul.f32 %v116, 0.5
    %v121 = vmul.f32 %v117, 0.5
    %v122 = vrcp.pop 1.4142135
    %v123 = vmul.f32 %v114, %v122
    %v124 = vmul.f32 %v115, %v122
    %v125 = vmul.f32 %v116, %v122
    %v126 = vmul.f32 %v117, %v122
    %v127 = verf.f32.pop %v123
    %v128 = verf.f32.pop %v124
    %v129 = verf.f32.pop %v125
    %v130 = verf.f32.pop %v126
    %v131 = vadd.f32 %v127, 1.0
    %v132 = vadd.f32 %v128, 1.0
    %v133 = vadd.f32 %v129, 1.0
    %v134 = vadd.f32 %v130, 1.0
    %v135 = vmul.f32 %v118, %v131
    %v136 = vmul.f32 %v119, %v132
    %v137 = vmul.f32 %v120, %v133
    %v138 = vmul.f32 %v121, %v134
    %139 = vst [vmem:[%s2] sm:$0xff] %v135
    %140 = vst [vmem:[%s2 + $0x8] sm:$0xff] %v136
    %141 = vst [vmem:[%s2 + $0x10] sm:$0xff] %v137
    %142 = vst [vmem:[%s2 + $0x18] sm:$0xff] %v138
  $region17: #{_lambda_.18} parent=0 // pred_fallthru
    _
  // Predicated region
  $region18: #{_lambda_.18} parent=0 // pred_check
    _
  $region19: #{_lambda_.18} parent=0 // pred_check_branch
    %144 = sbr.rel (0) target = $region21
  $region20: #{_lambda_.18} parent=0 // pred_region
    _
  $region21: #{_lambda_.18} parent=0 // pred_fallthru
    _
  // Predicated region
  $region22: #{_lambda_.18} parent=0 // pred_check
    _
  $region23: #{_lambda_.18} parent=0 // pred_check_branch
    %146 = sbr.rel (0) target = $region25
  $region24: #{_lambda_.18} parent=0 // pred_region
    _
  $region25: #{_lambda_.18} parent=0 // pred_fallthru
    _

// kernel: _lambda_.17
$region0: #{_lambda_.17}
  #allocation0 [shape = 'u32[]', space=smem, size = 0x4, offset = 0x4, fixed_abs, tag = 'smem constant byte address 0x4 - core index']
  #allocation1 [shape = 'u32[144,128]{1,0:T(1,128)}', space=vmem, size = 0x12000, scoped, tag = 'internal scratch']
  #allocation2 [shape = 'f32[4,16,1]{2,1,0:T(8,128)}', space=vmem, size = 0x8000, scoped, tag = 'scratch operand']
  #allocation3 [shape = 'f32[4,16,1]{2,1,0:T(8,128)}', space=vmem, size = 0x8000, scoped, tag = 'scratch operand']
  #allocation4 [shape = 'f32[4,16,16]{2,1,0:T(8,128)}', space=vmem, size = 0x8000, scoped, tag = 'scratch operand']
  %s0 = inlined_call_operand.vmem [shape: f32[4,16,16], index: 0, kind: input, shape index: {}]
  %s1 = inlined_call_operand.vmem [shape: f32[4,8,16], index: 1, kind: input, shape index: {}]
  %s2 = inlined_call_operand.vmem [shape: f32[4,8,16], index: 2, kind: input, shape index: {}]
  %s3 = inlined_call_operand.vmem [shape: f32[4,16,16], index: 3, kind: output, shape index: {}]
  %s4 = sld [smem:[#allocation0]]
  $region34: #{_lambda_.17} parent=0
    _
  %s6 = ssub.s32 1, %s4
  %s7 = scalar_select 0, %s6, %s4
  // Predicated region
  $region2: #{_lambda_.17} parent=0 // pred_check
    _
  $region3: #{_lambda_.17} parent=0 // pred_check_branch
    %9 = sbr.rel (0) target = $region5
  $region4: #{_lambda_.17} parent=0 // pred_region
    _
  $region5: #{_lambda_.17} parent=0 // pred_fallthru
    _
  // Predicated region
  $region6: #{_lambda_.17} parent=0 // pred_check
    _
  $region7: #{_lambda_.17} parent=0 // pred_check_branch
    %11 = sbr.rel (0) target = $region9
  $region8: #{_lambda_.17} parent=0 // pred_region
    _
  $region9: #{_lambda_.17} parent=0 // pred_fallthru
    _
  // Predicated region
  $region10: #{_lambda_.17} parent=0 // pred_check
    _
  $region11: #{_lambda_.17} parent=0 // pred_check_branch
    %13 = sbr.rel (0) target = $region13
  $region12: #{_lambda_.17} parent=0 // pred_region
    _
  $region13: #{_lambda_.17} parent=0 // pred_fallthru
    _
  %p15 = scmp.eq.s32.totalorder 0, 0
  // Predicated region
  $region14: #{_lambda_.17} parent=0 // pred_check
    %p16 = pneg %p15
  $region15: #{_lambda_.17} parent=0 // pred_check_branch
    %18 = sbr.rel (%p16) target = $region17
  $region16: #{_lambda_.17} parent=0 // pred_region
    %vm19 = vcmask 7168
    %20 = vst.msk [vmem:[#allocation2] sm:$0xff] %vm19, -inf
    %21 = vst.msk [vmem:[#allocation2 + $0x8] sm:$0xff] %vm19, -inf
    %22 = vst.msk [vmem:[#allocation2 + $0x10] sm:$0xff] %vm19, -inf
    %23 = vst.msk [vmem:[#allocation2 + $0x18] sm:$0xff] %vm19, -inf
    %24 = vst.msk [vmem:[#allocation2 + $0x20] sm:$0xff] %vm19, -inf
    %25 = vst.msk [vmem:[#allocation2 + $0x28] sm:$0xff] %vm19, -inf
    %26 = vst.msk [vmem:[#allocation2 + $0x30] sm:$0xff] %vm19, -inf
    %27 = vst.msk [vmem:[#allocation2 + $0x38] sm:$0xff] %vm19, -inf
    %28 = vst.msk [vmem:[#allocation3] sm:$0xff] %vm19, 0.0
    %29 = vst.msk [vmem:[#allocation3 + $0x8] sm:$0xff] %vm19, 0.0
    %30 = vst.msk [vmem:[#allocation3 + $0x10] sm:$0xff] %vm19, 0.0
    %31 = vst.msk [vmem:[#allocation3 + $0x18] sm:$0xff] %vm19, 0.0
    %32 = vst.msk [vmem:[#allocation3 + $0x20] sm:$0xff] %vm19, 0.0
    %33 = vst.msk [vmem:[#allocation3 + $0x28] sm:$0xff] %vm19, 0.0
    %34 = vst.msk [vmem:[#allocation3 + $0x30] sm:$0xff] %vm19, 0.0
    %35 = vst.msk [vmem:[#allocation3 + $0x38] sm:$0xff] %vm19, 0.0
    %vm36 = vcmask 130048
    %37 = vst.msk [vmem:[#allocation4] sm:$0xff] %vm36, 0.0
    %38 = vst.msk [vmem:[#allocation4 + $0x8] sm:$0xff] %vm36, 0.0
    %39 = vst.msk [vmem:[#allocation4 + $0x10] sm:$0xff] %vm36, 0.0
    %40 = vst.msk [vmem:[#allocation4 + $0x18] sm:$0xff] %vm36, 0.0
    %41 = vst.msk [vmem:[#allocation4 + $0x20] sm:$0xff] %vm36, 0.0
    %42 = vst.msk [vmem:[#allocation4 + $0x28] sm:$0xff] %vm36, 0.0
    %43 = vst.msk [vmem:[#allocation4 + $0x30] sm:$0xff] %vm36, 0.0
    %44 = vst.msk [vmem:[#allocation4 + $0x38] sm:$0xff] %vm36, 0.0
  $region17: #{_lambda_.17} parent=0 // pred_fallthru
    _
  %s45 = smul.u32 0, 16
  %s46 = sadd.s32 %s45, 15
  %s47 = smul.u32 0, 32
  %p48 = scmp.lt.s32.totalorder %s47, %s46
  %s49 = smul.u32 0, 8
  %p50 = scmp.lt.s32.totalorder %s49, 3
  %p51 = pnand %p48, %p50
  %p52 = pneg %p51
  // Predicated region
  $region18: #{_lambda_.17} parent=0 // pred_check
    _
  $region19: #{_lambda_.17} parent=0 // pred_check_branch
    %54 = sbr.rel (%p51) target = $region21
  $region20: #{_lambda_.17} parent=0 // pred_region
    %v55 = vld [vmem:[%s0] sm:$0xff]
    %v56 = vld [vmem:[%s0 + $0x8] sm:$0xff]
    %v57 = vld [vmem:[%s0 + $0x10] sm:$0xff]
    %v58 = vld [vmem:[%s0 + $0x18] sm:$0xff]
    %v59 = vld [vmem:[%s0 + $0x20] sm:$0xff]
    %v60 = vld [vmem:[%s0 + $0x28] sm:$0xff]
    %v61 = vld [vmem:[%s0 + $0x30] sm:$0xff]
    %v62 = vld [vmem:[%s0 + $0x38] sm:$0xff]
    %v63 = vpack.c.bf16 %v56, %v55
    %v64 = vpack.c.bf16 %v58, %v57
    %v65 = vpack.c.bf16 %v60, %v59
    %v66 = vpack.c.bf16 %v62, %v61
    %v67 = vld [vmem:[%s1] sm:$0xff]
    %v68 = vld [vmem:[%s1 + $0x8] sm:$0xff]
    %v69 = vld [vmem:[%s1 + $0x10] sm:$0xff]
    %v70 = vld [vmem:[%s1 + $0x18] sm:$0xff]
    %v71 = vpack.c.bf16 %v67, %v67
    %v72 = vpack.c.bf16 %v68, %v68
    %v73 = vpack.c.bf16 %v69, %v69
    %v74 = vpack.c.bf16 %v70, %v70
    %vm75 = vcmask 130048
    %v77 = vsel %vm75, %v63, 0
    %v80 = vsel %vm75, %v71, 0
    %82 = vmatprep.subr.bf16.mxu0 0
    %83 = vmatpush1.bf16.xpose.msra.mxu0 %v80
    %84 = vmatprep.subr.bf16.mxu0 0
    %85 = vmatpush1.bf16.xpose.msra.mxu0 0
    %86 = vmatprep.subr.bf16.mxu0 0
    %87 = vmatpush1.bf16.xpose.msra.mxu0 0
    %88 = vmatprep.subr.bf16.mxu0 0
    %89 = vmatpush1.bf16.xpose.msra.mxu0 0
    %90 = vmatprep.subr.bf16.mxu0 0
    %91 = vmatpush1.bf16.xpose.msra.mxu0 0
    %92 = vmatprep.subr.bf16.mxu0 0
    %93 = vmatpush1.bf16.xpose.msra.mxu0 0
    %94 = vmatprep.subr.bf16.mxu0 0
    %95 = vmatpush1.bf16.xpose.msra.mxu0 0
    %96 = vmatprep.subr.bf16.mxu0 0
    %97 = vmatpush1.bf16.xpose.msra.mxu0 0
    %98 = vmatprep.subr.bf16.mxu0 0
    %99 = vmatpush1.bf16.xpose.msra.mxu0 0
    %100 = vmatprep.subr.bf16.mxu0 0
    %101 = vmatpush1.bf16.xpose.msra.mxu0 0
    %102 = vmatprep.subr.bf16.mxu0 0
    %103 = vmatpush1.bf16.xpose.msra.mxu0 0
    %104 = vmatprep.subr.bf16.mxu0 0
    %105 = vmatpush1.bf16.xpose.msra.mxu0 0
    %106 = vmatprep.subr.bf16.mxu0 0
    %107 = vmatpush1.bf16.xpose.msra.mxu0 0
    %108 = vmatprep.subr.bf16.mxu0 0
    %109 = vmatpush1.bf16.xpose.msra.mxu0 0
    %110 = vmatprep.subr.bf16.mxu0 0
    %111 = vmatpush1.bf16.xpose.msra.mxu0 0
    %112 = vmatprep.subr.bf16.mxu0 0
    %113 = vmatpush1.bf16.xpose.msra.mxu0 0
    %114 = vmatprep.mubr.bf16.mxu0 0
    %115 = vmatmul.mubr.bf16.gmra.mrb[0].mxu0 %v77
    %v116 = vpop.f32.mrb[0].mxu0
    %v117 = vadd.f32 0.0, %v116
    %v118 = vpop.f32.mrb[0].mxu0
    %v119 = vpop.f32.mrb[0].mxu0
    %v120 = vadd.f32 0.0, %v119
    %v121 = vpop.f32.mrb[0].mxu0
    %122 = vdwg.mxu0
    %v124 = vsel %vm75, %v64, 0
    %v127 = vsel %vm75, %v72, 0
    %129 = vmatprep.subr.bf16.mxu0 0
    %130 = vmatpush1.bf16.xpose.msra.mxu0 %v127
    %131 = vmatprep.subr.bf16.mxu0 0
    %132 = vmatpush1.bf16.xpose.msra.mxu0 0
    %133 = vmatprep.subr.bf16.mxu0 0
    %134 = vmatpush1.bf16.xpose.msra.mxu0 0
    %135 = vmatprep.subr.bf16.mxu0 0
    %136 = vmatpush1.bf16.xpose.msra.mxu0 0
    %137 = vmatprep.subr.bf16.mxu0 0
    %138 = vmatpush1.bf16.xpose.msra.mxu0 0
    %139 = vmatprep.subr.bf16.mxu0 0
    %140 = vmatpush1.bf16.xpose.msra.mxu0 0
    %141 = vmatprep.subr.bf16.mxu0 0
    %142 = vmatpush1.bf16.xpose.msra.mxu0 0
    %143 = vmatprep.subr.bf16.mxu0 0
    %144 = vmatpush1.bf16.xpose.msra.mxu0 0
    %145 = vmatprep.subr.bf16.mxu0 0
    %146 = vmatpush1.bf16.xpose.msra.mxu0 0
    %147 = vmatprep.subr.bf16.mxu0 0
    %148 = vmatpush1.bf16.xpose.msra.mxu0 0
    %149 = vmatprep.subr.bf16.mxu0 0
    %150 = vmatpush1.bf16.xpose.msra.mxu0 0
    %151 = vmatprep.subr.bf16.mxu0 0
    %152 = vmatpush1.bf16.xpose.msra.mxu0 0
    %153 = vmatprep.subr.bf16.mxu0 0
    %154 = vmatpush1.bf16.xpose.msra.mxu0 0
    %155 = vmatprep.subr.bf16.mxu0 0
    %156 = vmatpush1.bf16.xpose.msra.mxu0 0
    %157 = vmatprep.subr.bf16.mxu0 0
    %158 = vmatpush1.bf16.xpose.msra.mxu0 0
    %159 = vmatprep.subr.bf16.mxu0 0
    %160 = vmatpush1.bf16.xpose.msra.mxu0 0
    %161 = vmatprep.mubr.bf16.mxu0 0
    %162 = vmatmul.mubr.bf16.gmra.mrb[0].mxu0 %v124
    %v163 = vpop.f32.mrb[0].mxu0
    %v164 = vadd.f32 0.0, %v163
    %v165 = vpop.f32.mrb[0].mxu0
    %v166 = vpop.f32.mrb[0].mxu0
    %v167 = vadd.f32 0.0, %v166
    %v168 = vpop.f32.mrb[0].mxu0
    %169 = vdwg.mxu0
    %v171 = vsel %vm75, %v65, 0
    %v174 = vsel %vm75, %v73, 0
    %176 = vmatprep.subr.bf16.mxu0 0
    %177 = vmatpush1.bf16.xpose.msra.mxu0 %v174
    %178 = vmatprep.subr.bf16.mxu0 0
    %179 = vmatpush1.bf16.xpose.msra.mxu0 0
    %180 = vmatprep.subr.bf16.mxu0 0
    %181 = vmatpush1.bf16.xpose.msra.mxu0 0
    %182 = vmatprep.subr.bf16.mxu0 0
    %183 = vmatpush1.bf16.xpose.msra.mxu0 0
    %184 = vmatprep.subr.bf16.mxu0 0
    %185 = vmatpush1.bf16.xpose.msra.mxu0 0
    %186 = vmatprep.subr.bf16.mxu0 0
    %187 = vmatpush1.bf16.xpose.msra.mxu0 0
    %188 = vmatprep.subr.bf16.mxu0 0
    %189 = vmatpush1.bf16.xpose.msra.mxu0 0
    %190 = vmatprep.subr.bf16.mxu0 0
    %191 = vmatpush1.bf16.xpose.msra.mxu0 0
    %192 = vmatprep.subr.bf16.mxu0 0
    %193 = vmatpush1.bf16.xpose.msra.mxu0 0
    %194 = vmatprep.subr.bf16.mxu0 0
    %195 = vmatpush1.bf16.xpose.msra.mxu0 0
    %196 = vmatprep.subr.bf16.mxu0 0
    %197 = vmatpush1.bf16.xpose.msra.mxu0 0
    %198 = vmatprep.subr.bf16.mxu0 0
    %199 = vmatpush1.bf16.xpose.msra.mxu0 0
    %200 = vmatprep.subr.bf16.mxu0 0
    %201 = vmatpush1.bf16.xpose.msra.mxu0 0
    %202 = vmatprep.subr.bf16.mxu0 0
    %203 = vmatpush1.bf16.xpose.msra.mxu0 0
    %204 = vmatprep.subr.bf16.mxu0 0
    %205 = vmatpush1.bf16.xpose.msra.mxu0 0
    %206 = vmatprep.subr.bf16.mxu0 0
    %207 = vmatpush1.bf16.xpose.msra.mxu0 0
    %208 = vmatprep.mubr.bf16.mxu0 0
    %209 = vmatmul.mubr.bf16.gmra.mrb[0].mxu0 %v171
    %v210 = vpop.f32.mrb[0].mxu0
    %v211 = vadd.f32 0.0, %v210
    %v212 = vpop.f32.mrb[0].mxu0
    %v213 = vpop.f32.mrb[0].mxu0
    %v214 = vadd.f32 0.0, %v213
    %v215 = vpop.f32.mrb[0].mxu0
    %216 = vdwg.mxu0
    %v218 = vsel %vm75, %v66, 0
    %v221 = vsel %vm75, %v74, 0
    %223 = vmatprep.subr.bf16.mxu0 0
    %224 = vmatpush1.bf16.xpose.msra.mxu0 %v221
    %225 = vmatprep.subr.bf16.mxu0 0
    %226 = vmatpush1.bf16.xpose.msra.mxu0 0
    %227 = vmatprep.subr.bf16.mxu0 0
    %228 = vmatpush1.bf16.xpose.msra.mxu0 0
    %229 = vmatprep.subr.bf16.mxu0 0
    %230 = vmatpush1.bf16.xpose.msra.mxu0 0
    %231 = vmatprep.subr.bf16.mxu0 0
    %232 = vmatpush1.bf16.xpose.msra.mxu0 0
    %233 = vmatprep.subr.bf16.mxu0 0
    %234 = vmatpush1.bf16.xpose.msra.mxu0 0
    %235 = vmatprep.subr.bf16.mxu0 0
    %236 = vmatpush1.bf16.xpose.msra.mxu0 0
    %237 = vmatprep.subr.bf16.mxu0 0
    %238 = vmatpush1.bf16.xpose.msra.mxu0 0
    %239 = vmatprep.subr.bf16.mxu0 0
    %240 = vmatpush1.bf16.xpose.msra.mxu0 0
    %241 = vmatprep.subr.bf16.mxu0 0
    %242 = vmatpush1.bf16.xpose.msra.mxu0 0
    %243 = vmatprep.subr.bf16.mxu0 0
    %244 = vmatpush1.bf16.xpose.msra.mxu0 0
    %245 = vmatprep.subr.bf16.mxu0 0
    %246 = vmatpush1.bf16.xpose.msra.mxu0 0
    %247 = vmatprep.subr.bf16.mxu0 0
    %248 = vmatpush1.bf16.xpose.msra.mxu0 0
    %249 = vmatprep.subr.bf16.mxu0 0
    %250 = vmatpush1.bf16.xpose.msra.mxu0 0
    %251 = vmatprep.subr.bf16.mxu0 0
    %252 = vmatpush1.bf16.xpose.msra.mxu0 0
    %253 = vmatprep.subr.bf16.mxu0 0
    %254 = vmatpush1.bf16.xpose.msra.mxu0 0
    %255 = vmatprep.mubr.bf16.mxu0 0
    %256 = vmatmul.mubr.bf16.gmra.mrb[0].mxu0 %v218
    %v257 = vpop.f32.mrb[0].mxu0
    %v258 = vadd.f32 0.0, %v257
    %v259 = vpop.f32.mrb[0].mxu0
    %v260 = vpop.f32.mrb[0].mxu0
    %v261 = vadd.f32 0.0, %v260
    %v262 = vpop.f32.mrb[0].mxu0
    %263 = vdwg.mxu0
    %v264 = vmul.f32 %v117, 0.25
    %v265 = vmul.f32 %v120, 0.25
    %v266 = vmul.f32 %v164, 0.25
    %v267 = vmul.f32 %v167, 0.25
    %v268 = vmul.f32 %v211, 0.25
    %v269 = vmul.f32 %v214, 0.25
    %v270 = vmul.f32 %v258, 0.25
    %v271 = vmul.f32 %v261, 0.25
    %v272 = vlaneseq
    %v273 = vshrl.u32 %v272, 7
    %v274 = vadd.s32 %v273, 8
    %v275 = vstv %s45
    %v276 = vadd.s32 %v275, %v273
    %v277 = vadd.s32 %v275, %v274
    %v278 = vlaneseq
    %v279 = vand.u32 %v278, 127
    %v280 = vstv %s49
    %v281 = vadd.s32 %v280, %v279
    %v282 = vmul.u32 %v281, 4
    %vm283 = vcmp.lt.s32.totalorder %v282, %v276
    %vm284 = vcmp.lt.s32.totalorder %v282, %v277
    %vm285 = vcmp.lt.s32.totalorder %v281, 3
    %vm286 = vmand %vm283, %vm285
    %vm287 = vmand %vm284, %vm285
    %v288 = vsel %vm286, 1, 0
    %v289 = vsel %vm287, 1, 0
    %vm290 = vcmp.eq.s32.totalorder %v288, 1
    %vm291 = vcmp.eq.s32.totalorder %v289, 1
    %v292 = vsel %vm290, %v264, -inf
    %v293 = vsel %vm291, %v265, -inf
    %v294 = vsel %vm290, %v266, -inf
    %v295 = vsel %vm291, %v267, -inf
    %v296 = vsel %vm290, %v268, -inf
    %v297 = vsel %vm291, %v269, -inf
    %v298 = vsel %vm290, %v270, -inf
    %v299 = vsel %vm291, %v271, -inf
    %v300 = vld [vmem:[#allocation2] sm:$0xff]
    %v301 = vld [vmem:[#allocation2 + $0x8] sm:$0xff]
    %v302 = vld [vmem:[#allocation2 + $0x10] sm:$0xff]
    %v303 = vld [vmem:[#allocation2 + $0x18] sm:$0xff]
    %v304 = vld [vmem:[#allocation2 + $0x20] sm:$0xff]
    %v305 = vld [vmem:[#allocation2 + $0x28] sm:$0xff]
    %v306 = vld [vmem:[#allocation2 + $0x30] sm:$0xff]
    %v307 = vld [vmem:[#allocation2 + $0x38] sm:$0xff]
    %vm308 = vcmask 64512
    %v309 = vsel %vm308, %v292, -inf
    %310 = vmax.xlane.f32.xlu0 %v309
    %v311 = vpop.xlane.xlu0 %310
    %v312 = vsel %vm308, %v293, -inf
    %313 = vmax.xlane.f32.xlu0 %v312
    %v314 = vpop.xlane.xlu0 %313
    %v315 = vsel %vm308, %v294, -inf
    %316 = vmax.xlane.f32.xlu0 %v315
    %v317 = vpop.xlane.xlu0 %316
    %v318 = vsel %vm308, %v295, -inf
    %319 = vmax.xlane.f32.xlu0 %v318
    %v320 = vpop.xlane.xlu0 %319
    %v321 = vsel %vm308, %v296, -inf
    %322 = vmax.xlane.f32.xlu0 %v321
    %v323 = vpop.xlane.xlu0 %322
    %v324 = vsel %vm308, %v297, -inf
    %325 = vmax.xlane.f32.xlu0 %v324
    %v326 = vpop.xlane.xlu0 %325
    %v327 = vsel %vm308, %v298, -inf
    %328 = vmax.xlane.f32.xlu0 %v327
    %v329 = vpop.xlane.xlu0 %328
    %v330 = vsel %vm308, %v299, -inf
    %331 = vmax.xlane.f32.xlu0 %v330
    %v332 = vpop.xlane.xlu0 %331
    %v333 = vmax.f32 %v300, %v311
    %v334 = vmax.f32 %v301, %v314
    %v335 = vmax.f32 %v302, %v317
    %v336 = vmax.f32 %v303, %v320
    %v337 = vmax.f32 %v304, %v323
    %v338 = vmax.f32 %v305, %v326
    %v339 = vmax.f32 %v306, %v329
    %v340 = vmax.f32 %v307, %v332
    %vm341 = vcmp.eq.f32.partialorder %v333, -inf
    %vm342 = vcmp.eq.f32.partialorder %v334, -inf
    %vm343 = vcmp.eq.f32.partialorder %v335, -inf
    %vm344 = vcmp.eq.f32.partialorder %v336, -inf
    %vm345 = vcmp.eq.f32.partialorder %v337, -inf
    %vm346 = vcmp.eq.f32.partialorder %v338, -inf
    %vm347 = vcmp.eq.f32.partialorder %v339, -inf
    %vm348 = vcmp.eq.f32.partialorder %v340, -inf
    %v349 = vsel %vm341, 0.0, %v333
    %v350 = vsel %vm342, 0.0, %v334
    %v351 = vsel %vm343, 0.0, %v335
    %v352 = vsel %vm344, 0.0, %v336
    %v353 = vsel %vm345, 0.0, %v337
    %v354 = vsel %vm346, 0.0, %v338
    %v355 = vsel %vm347, 0.0, %v339
    %v356 = vsel %vm348, 0.0, %v340
    %v357 = vsub.f32 %v300, %v349
    %v358 = vsub.f32 %v301, %v350
    %v359 = vsub.f32 %v302, %v351
    %v360 = vsub.f32 %v303, %v352
    %v361 = vsub.f32 %v304, %v353
    %v362 = vsub.f32 %v305, %v354
    %v363 = vsub.f32 %v306, %v355
    %v364 = vsub.f32 %v307, %v356
    %v365 = vmul.f32 %v357, 1.442695
    %v366 = vpow.pop %v365
    %v367 = vmul.f32 %v358, 1.442695
    %v368 = vpow.pop %v367
    %v369 = vmul.f32 %v359, 1.442695
    %v370 = vpow.pop %v369
    %v371 = vmul.f32 %v360, 1.442695
    %v372 = vpow.pop %v371
    %v373 = vmul.f32 %v361, 1.442695
    %v374 = vpow.pop %v373
    %v375 = vmul.f32 %v362, 1.442695
    %v376 = vpow.pop %v375
    %v377 = vmul.f32 %v363, 1.442695
    %v378 = vpow.pop %v377
    %v379 = vmul.f32 %v364, 1.442695
    %v380 = vpow.pop %v379
    %382 = vset.pattern.permute.xlu0 0
    %383 = vperm.xlu0 %382, %v349
    %v384 = vpop.permute.xlu0 %383
    %387 = vset.pattern.permute.xlu0 0
    %388 = vperm.xlu0 %387, %v350
    %v389 = vpop.permute.xlu0 %388
    %392 = vset.pattern.permute.xlu0 0
    %393 = vperm.xlu0 %392, %v351
    %v394 = vpop.permute.xlu0 %393
    %397 = vset.pattern.permute.xlu0 0
    %398 = vperm.xlu0 %397, %v352
    %v399 = vpop.permute.xlu0 %398
    %402 = vset.pattern.permute.xlu0 0
    %403 = vperm.xlu0 %402, %v353
    %v404 = vpop.permute.xlu0 %403
    %407 = vset.pattern.permute.xlu0 0
    %408 = vperm.xlu0 %407, %v354
    %v409 = vpop.permute.xlu0 %408
    %412 = vset.pattern.permute.xlu0 0
    %413 = vperm.xlu0 %412, %v355
    %v414 = vpop.permute.xlu0 %413
    %417 = vset.pattern.permute.xlu0 0
    %418 = vperm.xlu0 %417, %v356
    %v419 = vpop.permute.xlu0 %418
    %v421 = vsub.f32 %v292, %v384
    %v422 = vsub.f32 %v293, %v389
    %v423 = vsub.f32 %v294, %v394
    %v424 = vsub.f32 %v295, %v399
    %v425 = vsub.f32 %v296, %v404
    %v426 = vsub.f32 %v297, %v409
    %v427 = vsub.f32 %v298, %v414
    %v428 = vsub.f32 %v299, %v419
    %v429 = vmul.f32 %v421, 1.442695
    %v430 = vpow.pop %v429
    %v431 = vmul.f32 %v422, 1.442695
    %v432 = vpow.pop %v431
    %v433 = vmul.f32 %v423, 1.442695
    %v434 = vpow.pop %v433
    %v435 = vmul.f32 %v424, 1.442695
    %v436 = vpow.pop %v435
    %v437 = vmul.f32 %v425, 1.442695
    %v438 = vpow.pop %v437
    %v439 = vmul.f32 %v426, 1.442695
    %v440 = vpow.pop %v439
    %v441 = vmul.f32 %v427, 1.442695
    %v442 = vpow.pop %v441
    %v443 = vmul.f32 %v428, 1.442695
    %v444 = vpow.pop %v443
    %v445 = vsel %vm290, %v430, 0.0
    %v446 = vsel %vm291, %v432, 0.0
    %v447 = vsel %vm290, %v434, 0.0
    %v448 = vsel %vm291, %v436, 0.0
    %v449 = vsel %vm290, %v438, 0.0
    %v450 = vsel %vm291, %v440, 0.0
    %v451 = vsel %vm290, %v442, 0.0
    %v452 = vsel %vm291, %v444, 0.0
    %v453 = vld [vmem:[#allocation3] sm:$0xff]
    %v454 = vld [vmem:[#allocation3 + $0x8] sm:$0xff]
    %v455 = vld [vmem:[#allocation3 + $0x10] sm:$0xff]
    %v456 = vld [vmem:[#allocation3 + $0x18] sm:$0xff]
    %v457 = vld [vmem:[#allocation3 + $0x20] sm:$0xff]
    %v458 = vld [vmem:[#allocation3 + $0x28] sm:$0xff]
    %v459 = vld [vmem:[#allocation3 + $0x30] sm:$0xff]
    %v460 = vld [vmem:[#allocation3 + $0x38] sm:$0xff]
    %v461 = vmul.f32 %v366, %v453
    %v462 = vmul.f32 %v368, %v454
    %v463 = vmul.f32 %v370, %v455
    %v464 = vmul.f32 %v372, %v456
    %v465 = vmul.f32 %v374, %v457
    %v466 = vmul.f32 %v376, %v458
    %v467 = vmul.f32 %v378, %v459
    %v468 = vmul.f32 %v380, %v460
    %v469 = vsel %vm308, %v445, 0.0
    %470 = vadd.xlane.f32.xlu0 %v469
    %v471 = vpop.xlane.xlu0 %470
    %v472 = vsel %vm308, %v446, 0.0
    %473 = vadd.xlane.f32.xlu0 %v472
    %v474 = vpop.xlane.xlu0 %473
    %v475 = vsel %vm308, %v447, 0.0
    %476 = vadd.xlane.f32.xlu0 %v475
    %v477 = vpop.xlane.xlu0 %476
    %v478 = vsel %vm308, %v448, 0.0
    %479 = vadd.xlane.f32.xlu0 %v478
    %v480 = vpop.xlane.xlu0 %479
    %v481 = vsel %vm308, %v449, 0.0
    %482 = vadd.xlane.f32.xlu0 %v481
    %v483 = vpop.xlane.xlu0 %482
    %v484 = vsel %vm308, %v450, 0.0
    %485 = vadd.xlane.f32.xlu0 %v484
    %v486 = vpop.xlane.xlu0 %485
    %v487 = vsel %vm308, %v451, 0.0
    %488 = vadd.xlane.f32.xlu0 %v487
    %v489 = vpop.xlane.xlu0 %488
    %v490 = vsel %vm308, %v452, 0.0
    %491 = vadd.xlane.f32.xlu0 %v490
    %v492 = vpop.xlane.xlu0 %491
    %v493 = vadd.f32 %v461, %v471
    %v494 = vadd.f32 %v462, %v474
    %v495 = vadd.f32 %v463, %v477
    %v496 = vadd.f32 %v464, %v480
    %v497 = vadd.f32 %v465, %v483
    %v498 = vadd.f32 %v466, %v486
    %v499 = vadd.f32 %v467, %v489
    %v500 = vadd.f32 %v468, %v492
    %vm501 = vcmask 7168
    %502 = vst.msk [vmem:[#allocation3] sm:$0xff] %vm501, %v493
    %503 = vst.msk [vmem:[#allocation3 + $0x8] sm:$0xff] %vm501, %v494
    %504 = vst.msk [vmem:[#allocation3 + $0x10] sm:$0xff] %vm501, %v495
    %505 = vst.msk [vmem:[#allocation3 + $0x18] sm:$0xff] %vm501, %v496
    %506 = vst.msk [vmem:[#allocation3 + $0x20] sm:$0xff] %vm501, %v497
    %507 = vst.msk [vmem:[#allocation3 + $0x28] sm:$0xff] %vm501, %v498
    %508 = vst.msk [vmem:[#allocation3 + $0x30] sm:$0xff] %vm501, %v499
    %509 = vst.msk [vmem:[#allocation3 + $0x38] sm:$0xff] %vm501, %v500
    %v510 = vld [vmem:[#allocation4] sm:$0xff]
    %v511 = vld [vmem:[#allocation4 + $0x8] sm:$0xff]
    %v512 = vld [vmem:[#allocation4 + $0x10] sm:$0xff]
    %v513 = vld [vmem:[#allocation4 + $0x18] sm:$0xff]
    %v514 = vld [vmem:[#allocation4 + $0x20] sm:$0xff]
    %v515 = vld [vmem:[#allocation4 + $0x28] sm:$0xff]
    %v516 = vld [vmem:[#allocation4 + $0x30] sm:$0xff]
    %v517 = vld [vmem:[#allocation4 + $0x38] sm:$0xff]
    %519 = vset.pattern.permute.xlu0 0
    %520 = vperm.xlu0 %519, %v366
    %v521 = vpop.permute.xlu0 %520
    %524 = vset.pattern.permute.xlu0 0
    %525 = vperm.xlu0 %524, %v368
    %v526 = vpop.permute.xlu0 %525
    %529 = vset.pattern.permute.xlu0 0
    %530 = vperm.xlu0 %529, %v370
    %v531 = vpop.permute.xlu0 %530
    %534 = vset.pattern.permute.xlu0 0
    %535 = vperm.xlu0 %534, %v372
    %v536 = vpop.permute.xlu0 %535
    %539 = vset.pattern.permute.xlu0 0
    %540 = vperm.xlu0 %539, %v374
    %v541 = vpop.permute.xlu0 %540
    %544 = vset.pattern.permute.xlu0 0
    %545 = vperm.xlu0 %544, %v376
    %v546 = vpop.permute.xlu0 %545
    %549 = vset.pattern.permute.xlu0 0
    %550 = vperm.xlu0 %549, %v378
    %v551 = vpop.permute.xlu0 %550
    %554 = vset.pattern.permute.xlu0 0
    %555 = vperm.xlu0 %554, %v380
    %v556 = vpop.permute.xlu0 %555
    %v558 = vmul.f32 %v521, %v510
    %v559 = vmul.f32 %v526, %v511
    %v560 = vmul.f32 %v531, %v512
    %v561 = vmul.f32 %v536, %v513
    %v562 = vmul.f32 %v541, %v514
    %v563 = vmul.f32 %v546, %v515
    %v564 = vmul.f32 %v551, %v516
    %v565 = vmul.f32 %v556, %v517
    %v566 = vpack.c.bf16 %v446, %v445
    %v567 = vpack.c.bf16 %v448, %v447
    %v568 = vpack.c.bf16 %v450, %v449
    %v569 = vpack.c.bf16 %v452, %v451
    %v570 = vld [vmem:[%s2] sm:$0xff]
    %v571 = vld [vmem:[%s2 + $0x8] sm:$0xff]
    %v572 = vld [vmem:[%s2 + $0x10] sm:$0xff]
    %v573 = vld [vmem:[%s2 + $0x18] sm:$0xff]
    %v574 = vpack.c.bf16 %v570, %v570
    %v575 = vpack.c.bf16 %v571, %v571
    %v576 = vpack.c.bf16 %v572, %v572
    %v577 = vpack.c.bf16 %v573, %v573
    %v579 = vsel %vm308, %v566, 0
    %vm581 = vcmask 1043456
    %v583 = vsel %vm581, %v574, 0
    %585 = vmatprep.subr.bf16.mxu0 0
    %586 = vmatpush1.bf16.msra.mxu0 %v583
    %587 = vmatprep.subr.bf16.mxu0 0
    %588 = vmatpush1.bf16.msra.mxu0 0
    %589 = vmatprep.subr.bf16.mxu0 0
    %590 = vmatpush1.bf16.msra.mxu0 0
    %591 = vmatprep.subr.bf16.mxu0 0
    %592 = vmatpush1.bf16.msra.mxu0 0
    %593 = vmatprep.subr.bf16.mxu0 0
    %594 = vmatpush1.bf16.msra.mxu0 0
    %595 = vmatprep.subr.bf16.mxu0 0
    %596 = vmatpush1.bf16.msra.mxu0 0
    %597 = vmatprep.subr.bf16.mxu0 0
    %598 = vmatpush1.bf16.msra.mxu0 0
    %599 = vmatprep.subr.bf16.mxu0 0
    %600 = vmatpush1.bf16.msra.mxu0 0
    %601 = vmatprep.subr.bf16.mxu0 0
    %602 = vmatpush1.bf16.msra.mxu0 0
    %603 = vmatprep.subr.bf16.mxu0 0
    %604 = vmatpush1.bf16.msra.mxu0 0
    %605 = vmatprep.subr.bf16.mxu0 0
    %606 = vmatpush1.bf16.msra.mxu0 0
    %607 = vmatprep.subr.bf16.mxu0 0
    %608 = vmatpush1.bf16.msra.mxu0 0
    %609 = vmatprep.subr.bf16.mxu0 0
    %610 = vmatpush1.bf16.msra.mxu0 0
    %611 = vmatprep.subr.bf16.mxu0 0
    %612 = vmatpush1.bf16.msra.mxu0 0
    %613 = vmatprep.subr.bf16.mxu0 0
    %614 = vmatpush1.bf16.msra.mxu0 0
    %615 = vmatprep.subr.bf16.mxu0 0
    %616 = vmatpush1.bf16.msra.mxu0 0
    %617 = vmatprep.mubr.bf16.mxu0 0
    %618 = vmatmul.mubr.bf16.gmra.mrb[0].mxu0 %v579
    %v619 = vpop.f32.mrb[0].mxu0
    %v620 = vadd.f32 0.0, %v619
    %v621 = vpop.f32.mrb[0].mxu0
    %v622 = vpop.f32.mrb[0].mxu0
    %v623 = vadd.f32 0.0, %v622
    %v624 = vpop.f32.mrb[0].mxu0
    %625 = vdwg.mxu0
    %v627 = vsel %vm308, %v567, 0
    %v630 = vsel %vm581, %v575, 0
    %632 = vmatprep.subr.bf16.mxu0 0
    %633 = vmatpush1.bf16.msra.mxu0 %v630
    %634 = vmatprep.subr.bf16.mxu0 0
    %635 = vmatpush1.bf16.msra.mxu0 0
    %636 = vmatprep.subr.bf16.mxu0 0
    %637 = vmatpush1.bf16.msra.mxu0 0
    %638 = vmatprep.subr.bf16.mxu0 0
    %639 = vmatpush1.bf16.msra.mxu0 0
    %640 = vmatprep.subr.bf16.mxu0 0
    %641 = vmatpush1.bf16.msra.mxu0 0
    %642 = vmatprep.subr.bf16.mxu0 0
    %643 = vmatpush1.bf16.msra.mxu0 0
    %644 = vmatprep.subr.bf16.mxu0 0
    %645 = vmatpush1.bf16.msra.mxu0 0
    %646 = vmatprep.subr.bf16.mxu0 0
    %647 = vmatpush1.bf16.msra.mxu0 0
    %648 = vmatprep.subr.bf16.mxu0 0
    %649 = vmatpush1.bf16.msra.mxu0 0
    %650 = vmatprep.subr.bf16.mxu0 0
    %651 = vmatpush1.bf16.msra.mxu0 0
    %652 = vmatprep.subr.bf16.mxu0 0
    %653 = vmatpush1.bf16.msra.mxu0 0
    %654 = vmatprep.subr.bf16.mxu0 0
    %655 = vmatpush1.bf16.msra.mxu0 0
    %656 = vmatprep.subr.bf16.mxu0 0
    %657 = vmatpush1.bf16.msra.mxu0 0
    %658 = vmatprep.subr.bf16.mxu0 0
    %659 = vmatpush1.bf16.msra.mxu0 0
    %660 = vmatprep.subr.bf16.mxu0 0
    %661 = vmatpush1.bf16.msra.mxu0 0
    %662 = vmatprep.subr.bf16.mxu0 0
    %663 = vmatpush1.bf16.msra.mxu0 0
    %664 = vmatprep.mubr.bf16.mxu0 0
    %665 = vmatmul.mubr.bf16.gmra.mrb[0].mxu0 %v627
    %v666 = vpop.f32.mrb[0].mxu0
    %v667 = vadd.f32 0.0, %v666
    %v668 = vpop.f32.mrb[0].mxu0
    %v669 = vpop.f32.mrb[0].mxu0
    %v670 = vadd.f32 0.0, %v669
    %v671 = vpop.f32.mrb[0].mxu0
    %672 = vdwg.mxu0
    %v674 = vsel %vm308, %v568, 0
    %v677 = vsel %vm581, %v576, 0
    %679 = vmatprep.subr.bf16.mxu0 0
    %680 = vmatpush1.bf16.msra.mxu0 %v677
    %681 = vmatprep.subr.bf16.mxu0 0
    %682 = vmatpush1.bf16.msra.mxu0 0
    %683 = vmatprep.subr.bf16.mxu0 0
    %684 = vmatpush1.bf16.msra.mxu0 0
    %685 = vmatprep.subr.bf16.mxu0 0
    %686 = vmatpush1.bf16.msra.mxu0 0
    %687 = vmatprep.subr.bf16.mxu0 0
    %688 = vmatpush1.bf16.msra.mxu0 0
    %689 = vmatprep.subr.bf16.mxu0 0
    %690 = vmatpush1.bf16.msra.mxu0 0
    %691 = vmatprep.subr.bf16.mxu0 0
    %692 = vmatpush1.bf16.msra.mxu0 0
    %693 = vmatprep.subr.bf16.mxu0 0
    %694 = vmatpush1.bf16.msra.mxu0 0
    %695 = vmatprep.subr.bf16.mxu0 0
    %696 = vmatpush1.bf16.msra.mxu0 0
    %697 = vmatprep.subr.bf16.mxu0 0
    %698 = vmatpush1.bf16.msra.mxu0 0
    %699 = vmatprep.subr.bf16.mxu0 0
    %700 = vmatpush1.bf16.msra.mxu0 0
    %701 = vmatprep.subr.bf16.mxu0 0
    %702 = vmatpush1.bf16.msra.mxu0 0
    %703 = vmatprep.subr.bf16.mxu0 0
    %704 = vmatpush1.bf16.msra.mxu0 0
    %705 = vmatprep.subr.bf16.mxu0 0
    %706 = vmatpush1.bf16.msra.mxu0 0
    %707 = vmatprep.subr.bf16.mxu0 0
    %708 = vmatpush1.bf16.msra.mxu0 0
    %709 = vmatprep.subr.bf16.mxu0 0
    %710 = vmatpush1.bf16.msra.mxu0 0
    %711 = vmatprep.mubr.bf16.mxu0 0
    %712 = vmatmul.mubr.bf16.gmra.mrb[0].mxu0 %v674
    %v713 = vpop.f32.mrb[0].mxu0
    %v714 = vadd.f32 0.0, %v713
    %v715 = vpop.f32.mrb[0].mxu0
    %v716 = vpop.f32.mrb[0].mxu0
    %v717 = vadd.f32 0.0, %v716
    %v718 = vpop.f32.mrb[0].mxu0
    %719 = vdwg.mxu0
    %v721 = vsel %vm308, %v569, 0
    %v724 = vsel %vm581, %v577, 0
    %726 = vmatprep.subr.bf16.mxu0 0
    %727 = vmatpush1.bf16.msra.mxu0 %v724
    %728 = vmatprep.subr.bf16.mxu0 0
    %729 = vmatpush1.bf16.msra.mxu0 0
    %730 = vmatprep.subr.bf16.mxu0 0
    %731 = vmatpush1.bf16.msra.mxu0 0
    %732 = vmatprep.subr.bf16.mxu0 0
    %733 = vmatpush1.bf16.msra.mxu0 0
    %734 = vmatprep.subr.bf16.mxu0 0
    %735 = vmatpush1.bf16.msra.mxu0 0
    %736 = vmatprep.subr.bf16.mxu0 0
    %737 = vmatpush1.bf16.msra.mxu0 0
    %738 = vmatprep.subr.bf16.mxu0 0
    %739 = vmatpush1.bf16.msra.mxu0 0
    %740 = vmatprep.subr.bf16.mxu0 0
    %741 = vmatpush1.bf16.msra.mxu0 0
    %742 = vmatprep.subr.bf16.mxu0 0
    %743 = vmatpush1.bf16.msra.mxu0 0
    %744 = vmatprep.subr.bf16.mxu0 0
    %745 = vmatpush1.bf16.msra.mxu0 0
    %746 = vmatprep.subr.bf16.mxu0 0
    %747 = vmatpush1.bf16.msra.mxu0 0
    %748 = vmatprep.subr.bf16.mxu0 0
    %749 = vmatpush1.bf16.msra.mxu0 0
    %750 = vmatprep.subr.bf16.mxu0 0
    %751 = vmatpush1.bf16.msra.mxu0 0
    %752 = vmatprep.subr.bf16.mxu0 0
    %753 = vmatpush1.bf16.msra.mxu0 0
    %754 = vmatprep.subr.bf16.mxu0 0
    %755 = vmatpush1.bf16.msra.mxu0 0
    %756 = vmatprep.subr.bf16.mxu0 0
    %757 = vmatpush1.bf16.msra.mxu0 0
    %758 = vmatprep.mubr.bf16.mxu0 0
    %759 = vmatmul.mubr.bf16.gmra.mrb[0].mxu0 %v721
    %v760 = vpop.f32.mrb[0].mxu0
    %v761 = vadd.f32 0.0, %v760
    %v762 = vpop.f32.mrb[0].mxu0
    %v763 = vpop.f32.mrb[0].mxu0
    %v764 = vadd.f32 0.0, %v763
    %v765 = vpop.f32.mrb[0].mxu0
    %766 = vdwg.mxu0
    %v767 = vadd.f32 %v558, %v620
    %v768 = vadd.f32 %v559, %v623
    %v769 = vadd.f32 %v560, %v667
    %v770 = vadd.f32 %v561, %v670
    %v771 = vadd.f32 %v562, %v714
    %v772 = vadd.f32 %v563, %v717
    %v773 = vadd.f32 %v564, %v761
    %v774 = vadd.f32 %v565, %v764
    %775 = vst.msk [vmem:[#allocation4] sm:$0xff] %vm75, %v767
    %776 = vst.msk [vmem:[#allocation4 + $0x8] sm:$0xff] %vm75, %v768
    %777 = vst.msk [vmem:[#allocation4 + $0x10] sm:$0xff] %vm75, %v769
    %778 = vst.msk [vmem:[#allocation4 + $0x18] sm:$0xff] %vm75, %v770
    %779 = vst.msk [vmem:[#allocation4 + $0x20] sm:$0xff] %vm75, %v771
    %780 = vst.msk [vmem:[#allocation4 + $0x28] sm:$0xff] %vm75, %v772
    %781 = vst.msk [vmem:[#allocation4 + $0x30] sm:$0xff] %vm75, %v773
    %782 = vst.msk [vmem:[#allocation4 + $0x38] sm:$0xff] %vm75, %v774
    %783 = vst.msk [vmem:[#allocation2] sm:$0xff] %vm501, %v333
    %784 = vst.msk [vmem:[#allocation2 + $0x8] sm:$0xff] %vm501, %v334
    %785 = vst.msk [vmem:[#allocation2 + $0x10] sm:$0xff] %vm501, %v335
    %786 = vst.msk [vmem:[#allocation2 + $0x18] sm:$0xff] %vm501, %v336
    %787 = vst.msk [vmem:[#allocation2 + $0x20] sm:$0xff] %vm501, %v337
    %788 = vst.msk [vmem:[#allocation2 + $0x28] sm:$0xff] %vm501, %v338
    %789 = vst.msk [vmem:[#allocation2 + $0x30] sm:$0xff] %vm501, %v339
    %790 = vst.msk [vmem:[#allocation2 + $0x38] sm:$0xff] %vm501, %v340
  $region21: #{_lambda_.17} parent=0 // pred_fallthru
    _
  // Predicated region
  $region22: #{_lambda_.17} parent=0 // pred_check
    %p791 = pneg %p15
  $region23: #{_lambda_.17} parent=0 // pred_check_branch
    %793 = sbr.rel (%p791) target = $region25
  $region24: #{_lambda_.17} parent=0 // pred_region
    %v794 = vld [vmem:[#allocation3] sm:$0xff]
    %v795 = vld [vmem:[#allocation3 + $0x8] sm:$0xff]
    %v796 = vld [vmem:[#allocation3 + $0x10] sm:$0xff]
    %v797 = vld [vmem:[#allocation3 + $0x18] sm:$0xff]
    %v798 = vld [vmem:[#allocation3 + $0x20] sm:$0xff]
    %v799 = vld [vmem:[#allocation3 + $0x28] sm:$0xff]
    %v800 = vld [vmem:[#allocation3 + $0x30] sm:$0xff]
    %v801 = vld [vmem:[#allocation3 + $0x38] sm:$0xff]
    %vm802 = vcmp.gt.f32.partialorder %v794, 0.0
    %vm803 = vcmp.gt.f32.partialorder %v795, 0.0
    %vm804 = vcmp.gt.f32.partialorder %v796, 0.0
    %vm805 = vcmp.gt.f32.partialorder %v797, 0.0
    %vm806 = vcmp.gt.f32.partialorder %v798, 0.0
    %vm807 = vcmp.gt.f32.partialorder %v799, 0.0
    %vm808 = vcmp.gt.f32.partialorder %v800, 0.0
    %vm809 = vcmp.gt.f32.partialorder %v801, 0.0
    %v810 = vsel %vm802, %v794, 1.0
    %v811 = vsel %vm803, %v795, 1.0
    %v812 = vsel %vm804, %v796, 1.0
    %v813 = vsel %vm805, %v797, 1.0
    %v814 = vsel %vm806, %v798, 1.0
    %v815 = vsel %vm807, %v799, 1.0
    %v816 = vsel %vm808, %v800, 1.0
    %v817 = vsel %vm809, %v801, 1.0
    %v818 = vrcp.pop %v810
    %v819 = vrcp.pop %v811
    %v820 = vrcp.pop %v812
    %v821 = vrcp.pop %v813
    %v822 = vrcp.pop %v814
    %v823 = vrcp.pop %v815
    %v824 = vrcp.pop %v816
    %v825 = vrcp.pop %v817
    %v826 = vsel %vm802, %v818, 0.0
    %v827 = vsel %vm803, %v819, 0.0
    %v828 = vsel %vm804, %v820, 0.0
    %v829 = vsel %vm805, %v821, 0.0
    %v830 = vsel %vm806, %v822, 0.0
    %v831 = vsel %vm807, %v823, 0.0
    %v832 = vsel %vm808, %v824, 0.0
    %v833 = vsel %vm809, %v825, 0.0
    %v834 = vld [vmem:[#allocation4] sm:$0xff]
    %v835 = vld [vmem:[#allocation4 + $0x8] sm:$0xff]
    %v836 = vld [vmem:[#allocation4 + $0x10] sm:$0xff]
    %v837 = vld [vmem:[#allocation4 + $0x18] sm:$0xff]
    %v838 = vld [vmem:[#allocation4 + $0x20] sm:$0xff]
    %v839 = vld [vmem:[#allocation4 + $0x28] sm:$0xff]
    %v840 = vld [vmem:[#allocation4 + $0x30] sm:$0xff]
    %v841 = vld [vmem:[#allocation4 + $0x38] sm:$0xff]
    %843 = vset.pattern.permute.xlu0 0
    %844 = vperm.xlu0 %843, %v826
    %v845 = vpop.permute.xlu0 %844
    %848 = vset.pattern.permute.xlu0 0
    %849 = vperm.xlu0 %848, %v827
    %v850 = vpop.permute.xlu0 %849
    %853 = vset.pattern.permute.xlu0 0
    %854 = vperm.xlu0 %853, %v828
    %v855 = vpop.permute.xlu0 %854
    %858 = vset.pattern.permute.xlu0 0
    %859 = vperm.xlu0 %858, %v829
    %v860 = vpop.permute.xlu0 %859
    %863 = vset.pattern.permute.xlu0 0
    %864 = vperm.xlu0 %863, %v830
    %v865 = vpop.permute.xlu0 %864
    %868 = vset.pattern.permute.xlu0 0
    %869 = vperm.xlu0 %868, %v831
    %v870 = vpop.permute.xlu0 %869
    %873 = vset.pattern.permute.xlu0 0
    %874 = vperm.xlu0 %873, %v832
    %v875 = vpop.permute.xlu0 %874
    %878 = vset.pattern.permute.xlu0 0
    %879 = vperm.xlu0 %878, %v833
    %v880 = vpop.permute.xlu0 %879
    %v882 = vmul.f32 %v834, %v845
    %v883 = vmul.f32 %v835, %v850
    %v884 = vmul.f32 %v836, %v855
    %v885 = vmul.f32 %v837, %v860
    %v886 = vmul.f32 %v838, %v865
    %v887 = vmul.f32 %v839, %v870
    %v888 = vmul.f32 %v840, %v875
    %v889 = vmul.f32 %v841, %v880
    %vm890 = vcmask 130048
    %891 = vst.msk [vmem:[%s3] sm:$0xff] %vm890, %v882
    %892 = vst.msk [vmem:[%s3 + $0x8] sm:$0xff] %vm890, %v883
    %893 = vst.msk [vmem:[%s3 + $0x10] sm:$0xff] %vm890, %v884
    %894 = vst.msk [vmem:[%s3 + $0x18] sm:$0xff] %vm890, %v885
    %895 = vst.msk [vmem:[%s3 + $0x20] sm:$0xff] %vm890, %v886
    %896 = vst.msk [vmem:[%s3 + $0x28] sm:$0xff] %vm890, %v887
    %897 = vst.msk [vmem:[%s3 + $0x30] sm:$0xff] %vm890, %v888
    %898 = vst.msk [vmem:[%s3 + $0x38] sm:$0xff] %vm890, %v889
  $region25: #{_lambda_.17} parent=0 // pred_fallthru
    _
  // Predicated region
  $region26: #{_lambda_.17} parent=0 // pred_check
    _
  $region27: #{_lambda_.17} parent=0 // pred_check_branch
    %900 = sbr.rel (0) target = $region29
  $region28: #{_lambda_.17} parent=0 // pred_region
    _
  $region29: #{_lambda_.17} parent=0 // pred_fallthru
    _
  // Predicated region
  $region30: #{_lambda_.17} parent=0 // pred_check
    _
  $region31: #{_lambda_.17} parent=0 // pred_check_branch
    %902 = sbr.rel (0) target = $region33
  $region32: #{_lambda_.17} parent=0 // pred_region
    _
  $region33: #{_lambda_.17} parent=0 // pred_fallthru
    _

// kernel: _lambda_.14
$region0: #{_lambda_.14}
  #allocation0 [shape = 'u32[]', space=smem, size = 0x4, offset = 0x4, fixed_abs, tag = 'smem constant byte address 0x4 - core index']
  #allocation1 [shape = 'u32[144,128]{1,0:T(1,128)}', space=vmem, size = 0x12000, scoped, tag = 'internal scratch']
  %s0 = inlined_call_operand.vmem [shape: f32[16,8,16], index: 0, kind: input, shape index: {}]
  %s1 = inlined_call_operand.vmem [shape: f32[8,16], index: 1, kind: input, shape index: {}]
  %s2 = inlined_call_operand.vmem [shape: f32[8,32], index: 2, kind: input, shape index: {}]
  %s3 = inlined_call_operand.vmem [shape: f32[1,32], index: 3, kind: input, shape index: {}]
  %s4 = inlined_call_operand.vmem [shape: f32[1,8], index: 4, kind: input, shape index: {}]
  %s5 = inlined_call_operand.vmem [shape: f32[16,16], index: 5, kind: output, shape index: {}]
  %s6 = sld [smem:[#allocation0]]
  $region30: #{_lambda_.14} parent=0
    _
  %s8 = ssub.s32 1, %s6
  %s9 = scalar_select 0, %s8, %s6
  // Predicated region
  $region2: #{_lambda_.14} parent=0 // pred_check
    _
  $region3: #{_lambda_.14} parent=0 // pred_check_branch
    %11 = sbr.rel (0) target = $region5
  $region4: #{_lambda_.14} parent=0 // pred_region
    _
  $region5: #{_lambda_.14} parent=0 // pred_fallthru
    _
  // Predicated region
  $region6: #{_lambda_.14} parent=0 // pred_check
    _
  $region7: #{_lambda_.14} parent=0 // pred_check_branch
    %13 = sbr.rel (0) target = $region9
  $region8: #{_lambda_.14} parent=0 // pred_region
    _
  $region9: #{_lambda_.14} parent=0 // pred_fallthru
    _
  // Predicated region
  $region10: #{_lambda_.14} parent=0 // pred_check
    _
  $region11: #{_lambda_.14} parent=0 // pred_check_branch
    %15 = sbr.rel (0) target = $region13
  $region12: #{_lambda_.14} parent=0 // pred_region
    _
  $region13: #{_lambda_.14} parent=0 // pred_fallthru
    _
  // Predicated region
  $region14: #{_lambda_.14} parent=0 // pred_check
    _
  $region15: #{_lambda_.14} parent=0 // pred_check_branch
    %17 = sbr.rel (0) target = $region17
  $region16: #{_lambda_.14} parent=0 // pred_region
    _
  $region17: #{_lambda_.14} parent=0 // pred_fallthru
    _
  // Predicated region
  $region18: #{_lambda_.14} parent=0 // pred_check
    _
  $region19: #{_lambda_.14} parent=0 // pred_check_branch
    %19 = sbr.rel (0) target = $region21
  $region20: #{_lambda_.14} parent=0 // pred_region
    _
  $region21: #{_lambda_.14} parent=0 // pred_fallthru
    _
  %v20 = vld [vmem:[%s0] sm:$0xff]
  %v21 = vld [vmem:[%s0 + $0x8] sm:$0xff]
  %v22 = vld [vmem:[%s0 + $0x10] sm:$0xff]
  %v23 = vld [vmem:[%s0 + $0x18] sm:$0xff]
  %v24 = vld [vmem:[%s0 + $0x20] sm:$0xff]
  %v25 = vld [vmem:[%s0 + $0x28] sm:$0xff]
  %v26 = vld [vmem:[%s0 + $0x30] sm:$0xff]
  %v27 = vld [vmem:[%s0 + $0x38] sm:$0xff]
  %v28 = vld [vmem:[%s0 + $0x40] sm:$0xff]
  %v29 = vld [vmem:[%s0 + $0x48] sm:$0xff]
  %v30 = vld [vmem:[%s0 + $0x50] sm:$0xff]
  %v31 = vld [vmem:[%s0 + $0x58] sm:$0xff]
  %v32 = vld [vmem:[%s0 + $0x60] sm:$0xff]
  %v33 = vld [vmem:[%s0 + $0x68] sm:$0xff]
  %v34 = vld [vmem:[%s0 + $0x70] sm:$0xff]
  %v35 = vld [vmem:[%s0 + $0x78] sm:$0xff]
  %v36 = vld [vmem:[%s1] sm:$0xff]
  %v37 = vadd.f32 %v20, %v36
  %v38 = vadd.f32 %v21, %v36
  %v39 = vadd.f32 %v22, %v36
  %v40 = vadd.f32 %v23, %v36
  %v41 = vadd.f32 %v24, %v36
  %v42 = vadd.f32 %v25, %v36
  %v43 = vadd.f32 %v26, %v36
  %v44 = vadd.f32 %v27, %v36
  %v45 = vadd.f32 %v28, %v36
  %v46 = vadd.f32 %v29, %v36
  %v47 = vadd.f32 %v30, %v36
  %v48 = vadd.f32 %v31, %v36
  %v49 = vadd.f32 %v32, %v36
  %v50 = vadd.f32 %v33, %v36
  %v51 = vadd.f32 %v34, %v36
  %v52 = vadd.f32 %v35, %v36
  %v53 = vld [vmem:[%s2] sm:$0xff]
  %v54 = vlaneseq
  %v55 = vshrl.u32 %v54, 7
  %v56 = vsub.s32 0, %v55
  %v57 = vrot.slane %v53, %v56
  %59 = vbcast.lane.b32.xlu0 %v57, 256
  %v60 = vpop.permute.xlu0 %59
  %s62 = sor.u32 256, 8
  %63 = vbcast.lane.b32.xlu0 %v57, %s62
  %v64 = vpop.permute.xlu0 %63
  %s66 = sor.u32 256, 16
  %67 = vbcast.lane.b32.xlu0 %v57, %s66
  %v68 = vpop.permute.xlu0 %67
  %s70 = sor.u32 256, 24
  %71 = vbcast.lane.b32.xlu0 %v57, %s70
  %v72 = vpop.permute.xlu0 %71
  %v73 = vlaneseq
  %v74 = vshrl.u32 %v73, 7
  %v75 = vsub.s32 0, %v74
  %v76 = vrot.slane %v37, %v75
  %v77 = vlaneseq
  %v78 = vshrl.u32 %v77, 7
  %v79 = vsub.s32 0, %v78
  %v80 = vrot.slane %v38, %v79
  %v81 = vlaneseq
  %v82 = vshrl.u32 %v81, 7
  %v83 = vsub.s32 0, %v82
  %v84 = vrot.slane %v39, %v83
  %v85 = vlaneseq
  %v86 = vshrl.u32 %v85, 7
  %v87 = vsub.s32 0, %v86
  %v88 = vrot.slane %v40, %v87
  %v89 = vlaneseq
  %v90 = vshrl.u32 %v89, 7
  %v91 = vsub.s32 0, %v90
  %v92 = vrot.slane %v41, %v91
  %v93 = vlaneseq
  %v94 = vshrl.u32 %v93, 7
  %v95 = vsub.s32 0, %v94
  %v96 = vrot.slane %v42, %v95
  %v97 = vlaneseq
  %v98 = vshrl.u32 %v97, 7
  %v99 = vsub.s32 0, %v98
  %v100 = vrot.slane %v43, %v99
  %v101 = vlaneseq
  %v102 = vshrl.u32 %v101, 7
  %v103 = vsub.s32 0, %v102
  %v104 = vrot.slane %v44, %v103
  %v105 = vlaneseq
  %v106 = vshrl.u32 %v105, 7
  %v107 = vsub.s32 0, %v106
  %v108 = vrot.slane %v45, %v107
  %v109 = vlaneseq
  %v110 = vshrl.u32 %v109, 7
  %v111 = vsub.s32 0, %v110
  %v112 = vrot.slane %v46, %v111
  %v113 = vlaneseq
  %v114 = vshrl.u32 %v113, 7
  %v115 = vsub.s32 0, %v114
  %v116 = vrot.slane %v47, %v115
  %v117 = vlaneseq
  %v118 = vshrl.u32 %v117, 7
  %v119 = vsub.s32 0, %v118
  %v120 = vrot.slane %v48, %v119
  %v121 = vlaneseq
  %v122 = vshrl.u32 %v121, 7
  %v123 = vsub.s32 0, %v122
  %v124 = vrot.slane %v49, %v123
  %v125 = vlaneseq
  %v126 = vshrl.u32 %v125, 7
  %v127 = vsub.s32 0, %v126
  %v128 = vrot.slane %v50, %v127
  %v129 = vlaneseq
  %v130 = vshrl.u32 %v129, 7
  %v131 = vsub.s32 0, %v130
  %v132 = vrot.slane %v51, %v131
  %v133 = vlaneseq
  %v134 = vshrl.u32 %v133, 7
  %v135 = vsub.s32 0, %v134
  %v136 = vrot.slane %v52, %v135
  %v137 = vmul.f32 %v76, %v60
  %v138 = vmul.f32 %v76, %v64
  %v139 = vmul.f32 %v76, %v68
  %v140 = vmul.f32 %v76, %v72
  %v141 = vmul.f32 %v80, %v60
  %v142 = vmul.f32 %v80, %v64
  %v143 = vmul.f32 %v80, %v68
  %v144 = vmul.f32 %v80, %v72
  %v145 = vmul.f32 %v84, %v60
  %v146 = vmul.f32 %v84, %v64
  %v147 = vmul.f32 %v84, %v68
  %v148 = vmul.f32 %v84, %v72
  %v149 = vmul.f32 %v88, %v60
  %v150 = vmul.f32 %v88, %v64
  %v151 = vmul.f32 %v88, %v68
  %v152 = vmul.f32 %v88, %v72
  %v153 = vmul.f32 %v92, %v60
  %v154 = vmul.f32 %v92, %v64
  %v155 = vmul.f32 %v92, %v68
  %v156 = vmul.f32 %v92, %v72
  %v157 = vmul.f32 %v96, %v60
  %v158 = vmul.f32 %v96, %v64
  %v159 = vmul.f32 %v96, %v68
  %v160 = vmul.f32 %v96, %v72
  %v161 = vmul.f32 %v100, %v60
  %v162 = vmul.f32 %v100, %v64
  %v163 = vmul.f32 %v100, %v68
  %v164 = vmul.f32 %v100, %v72
  %v165 = vmul.f32 %v104, %v60
  %v166 = vmul.f32 %v104, %v64
  %v167 = vmul.f32 %v104, %v68
  %v168 = vmul.f32 %v104, %v72
  %v169 = vmul.f32 %v108, %v60
  %v170 = vmul.f32 %v108, %v64
  %v171 = vmul.f32 %v108, %v68
  %v172 = vmul.f32 %v108, %v72
  %v173 = vmul.f32 %v112, %v60
  %v174 = vmul.f32 %v112, %v64
  %v175 = vmul.f32 %v112, %v68
  %v176 = vmul.f32 %v112, %v72
  %v177 = vmul.f32 %v116, %v60
  %v178 = vmul.f32 %v116, %v64
  %v179 = vmul.f32 %v116, %v68
  %v180 = vmul.f32 %v116, %v72
  %v181 = vmul.f32 %v120, %v60
  %v182 = vmul.f32 %v120, %v64
  %v183 = vmul.f32 %v120, %v68
  %v184 = vmul.f32 %v120, %v72
  %v185 = vmul.f32 %v124, %v60
  %v186 = vmul.f32 %v124, %v64
  %v187 = vmul.f32 %v124, %v68
  %v188 = vmul.f32 %v124, %v72
  %v189 = vmul.f32 %v128, %v60
  %v190 = vmul.f32 %v128, %v64
  %v191 = vmul.f32 %v128, %v68
  %v192 = vmul.f32 %v128, %v72
  %v193 = vmul.f32 %v132, %v60
  %v194 = vmul.f32 %v132, %v64
  %v195 = vmul.f32 %v132, %v68
  %v196 = vmul.f32 %v132, %v72
  %v197 = vmul.f32 %v136, %v60
  %v198 = vmul.f32 %v136, %v64
  %v199 = vmul.f32 %v136, %v68
  %v200 = vmul.f32 %v136, %v72
  %v201 = vadd.f32 %v137, 0.0
  %v202 = vadd.f32 %v138, 0.0
  %v203 = vadd.f32 %v139, 0.0
  %v204 = vadd.f32 %v140, 0.0
  %v205 = vadd.f32 %v141, 0.0
  %v206 = vadd.f32 %v142, 0.0
  %v207 = vadd.f32 %v143, 0.0
  %v208 = vadd.f32 %v144, 0.0
  %v209 = vadd.f32 %v145, 0.0
  %v210 = vadd.f32 %v146, 0.0
  %v211 = vadd.f32 %v147, 0.0
  %v212 = vadd.f32 %v148, 0.0
  %v213 = vadd.f32 %v149, 0.0
  %v214 = vadd.f32 %v150, 0.0
  %v215 = vadd.f32 %v151, 0.0
  %v216 = vadd.f32 %v152, 0.0
  %v217 = vadd.f32 %v153, 0.0
  %v218 = vadd.f32 %v154, 0.0
  %v219 = vadd.f32 %v155, 0.0
  %v220 = vadd.f32 %v156, 0.0
  %v221 = vadd.f32 %v157, 0.0
  %v222 = vadd.f32 %v158, 0.0
  %v223 = vadd.f32 %v159, 0.0
  %v224 = vadd.f32 %v160, 0.0
  %v225 = vadd.f32 %v161, 0.0
  %v226 = vadd.f32 %v162, 0.0
  %v227 = vadd.f32 %v163, 0.0
  %v228 = vadd.f32 %v164, 0.0
  %v229 = vadd.f32 %v165, 0.0
  %v230 = vadd.f32 %v166, 0.0
  %v231 = vadd.f32 %v167, 0.0
  %v232 = vadd.f32 %v168, 0.0
  %v233 = vadd.f32 %v169, 0.0
  %v234 = vadd.f32 %v170, 0.0
  %v235 = vadd.f32 %v171, 0.0
  %v236 = vadd.f32 %v172, 0.0
  %v237 = vadd.f32 %v173, 0.0
  %v238 = vadd.f32 %v174, 0.0
  %v239 = vadd.f32 %v175, 0.0
  %v240 = vadd.f32 %v176, 0.0
  %v241 = vadd.f32 %v177, 0.0
  %v242 = vadd.f32 %v178, 0.0
  %v243 = vadd.f32 %v179, 0.0
  %v244 = vadd.f32 %v180, 0.0
  %v245 = vadd.f32 %v181, 0.0
  %v246 = vadd.f32 %v182, 0.0
  %v247 = vadd.f32 %v183, 0.0
  %v248 = vadd.f32 %v184, 0.0
  %v249 = vadd.f32 %v185, 0.0
  %v250 = vadd.f32 %v186, 0.0
  %v251 = vadd.f32 %v187, 0.0
  %v252 = vadd.f32 %v188, 0.0
  %v253 = vadd.f32 %v189, 0.0
  %v254 = vadd.f32 %v190, 0.0
  %v255 = vadd.f32 %v191, 0.0
  %v256 = vadd.f32 %v192, 0.0
  %v257 = vadd.f32 %v193, 0.0
  %v258 = vadd.f32 %v194, 0.0
  %v259 = vadd.f32 %v195, 0.0
  %v260 = vadd.f32 %v196, 0.0
  %v261 = vadd.f32 %v197, 0.0
  %v262 = vadd.f32 %v198, 0.0
  %v263 = vadd.f32 %v199, 0.0
  %v264 = vadd.f32 %v200, 0.0
  %v265 = vlaneseq
  %v266 = vshrl.u32 %v265, 7
  %v267 = vsub.s32 1, %v266
  %v268 = vrot.slane %v53, %v267
  %270 = vbcast.lane.b32.xlu0 %v268, 256
  %v271 = vpop.permute.xlu0 %270
  %s273 = sor.u32 256, 8
  %274 = vbcast.lane.b32.xlu0 %v268, %s273
  %v275 = vpop.permute.xlu0 %274
  %s277 = sor.u32 256, 16
  %278 = vbcast.lane.b32.xlu0 %v268, %s277
  %v279 = vpop.permute.xlu0 %278
  %s281 = sor.u32 256, 24
  %282 = vbcast.lane.b32.xlu0 %v268, %s281
  %v283 = vpop.permute.xlu0 %282
  %v284 = vlaneseq
  %v285 = vshrl.u32 %v284, 7
  %v286 = vsub.s32 1, %v285
  %v287 = vrot.slane %v37, %v286
  %v288 = vlaneseq
  %v289 = vshrl.u32 %v288, 7
  %v290 = vsub.s32 1, %v289
  %v291 = vrot.slane %v38, %v290
  %v292 = vlaneseq
  %v293 = vshrl.u32 %v292, 7
  %v294 = vsub.s32 1, %v293
  %v295 = vrot.slane %v39, %v294
  %v296 = vlaneseq
  %v297 = vshrl.u32 %v296, 7
  %v298 = vsub.s32 1, %v297
  %v299 = vrot.slane %v40, %v298
  %v300 = vlaneseq
  %v301 = vshrl.u32 %v300, 7
  %v302 = vsub.s32 1, %v301
  %v303 = vrot.slane %v41, %v302
  %v304 = vlaneseq
  %v305 = vshrl.u32 %v304, 7
  %v306 = vsub.s32 1, %v305
  %v307 = vrot.slane %v42, %v306
  %v308 = vlaneseq
  %v309 = vshrl.u32 %v308, 7
  %v310 = vsub.s32 1, %v309
  %v311 = vrot.slane %v43, %v310
  %v312 = vlaneseq
  %v313 = vshrl.u32 %v312, 7
  %v314 = vsub.s32 1, %v313
  %v315 = vrot.slane %v44, %v314
  %v316 = vlaneseq
  %v317 = vshrl.u32 %v316, 7
  %v318 = vsub.s32 1, %v317
  %v319 = vrot.slane %v45, %v318
  %v320 = vlaneseq
  %v321 = vshrl.u32 %v320, 7
  %v322 = vsub.s32 1, %v321
  %v323 = vrot.slane %v46, %v322
  %v324 = vlaneseq
  %v325 = vshrl.u32 %v324, 7
  %v326 = vsub.s32 1, %v325
  %v327 = vrot.slane %v47, %v326
  %v328 = vlaneseq
  %v329 = vshrl.u32 %v328, 7
  %v330 = vsub.s32 1, %v329
  %v331 = vrot.slane %v48, %v330
  %v332 = vlaneseq
  %v333 = vshrl.u32 %v332, 7
  %v334 = vsub.s32 1, %v333
  %v335 = vrot.slane %v49, %v334
  %v336 = vlaneseq
  %v337 = vshrl.u32 %v336, 7
  %v338 = vsub.s32 1, %v337
  %v339 = vrot.slane %v50, %v338
  %v340 = vlaneseq
  %v341 = vshrl.u32 %v340, 7
  %v342 = vsub.s32 1, %v341
  %v343 = vrot.slane %v51, %v342
  %v344 = vlaneseq
  %v345 = vshrl.u32 %v344, 7
  %v346 = vsub.s32 1, %v345
  %v347 = vrot.slane %v52, %v346
  %v348 = vmul.f32 %v287, %v271
  %v349 = vmul.f32 %v287, %v275
  %v350 = vmul.f32 %v287, %v279
  %v351 = vmul.f32 %v287, %v283
  %v352 = vmul.f32 %v291, %v271
  %v353 = vmul.f32 %v291, %v275
  %v354 = vmul.f32 %v291, %v279
  %v355 = vmul.f32 %v291, %v283
  %v356 = vmul.f32 %v295, %v271
  %v357 = vmul.f32 %v295, %v275
  %v358 = vmul.f32 %v295, %v279
  %v359 = vmul.f32 %v295, %v283
  %v360 = vmul.f32 %v299, %v271
  %v361 = vmul.f32 %v299, %v275
  %v362 = vmul.f32 %v299, %v279
  %v363 = vmul.f32 %v299, %v283
  %v364 = vmul.f32 %v303, %v271
  %v365 = vmul.f32 %v303, %v275
  %v366 = vmul.f32 %v303, %v279
  %v367 = vmul.f32 %v303, %v283
  %v368 = vmul.f32 %v307, %v271
  %v369 = vmul.f32 %v307, %v275
  %v370 = vmul.f32 %v307, %v279
  %v371 = vmul.f32 %v307, %v283
  %v372 = vmul.f32 %v311, %v271
  %v373 = vmul.f32 %v311, %v275
  %v374 = vmul.f32 %v311, %v279
  %v375 = vmul.f32 %v311, %v283
  %v376 = vmul.f32 %v315, %v271
  %v377 = vmul.f32 %v315, %v275
  %v378 = vmul.f32 %v315, %v279
  %v379 = vmul.f32 %v315, %v283
  %v380 = vmul.f32 %v319, %v271
  %v381 = vmul.f32 %v319, %v275
  %v382 = vmul.f32 %v319, %v279
  %v383 = vmul.f32 %v319, %v283
  %v384 = vmul.f32 %v323, %v271
  %v385 = vmul.f32 %v323, %v275
  %v386 = vmul.f32 %v323, %v279
  %v387 = vmul.f32 %v323, %v283
  %v388 = vmul.f32 %v327, %v271
  %v389 = vmul.f32 %v327, %v275
  %v390 = vmul.f32 %v327, %v279
  %v391 = vmul.f32 %v327, %v283
  %v392 = vmul.f32 %v331, %v271
  %v393 = vmul.f32 %v331, %v275
  %v394 = vmul.f32 %v331, %v279
  %v395 = vmul.f32 %v331, %v283
  %v396 = vmul.f32 %v335, %v271
  %v397 = vmul.f32 %v335, %v275
  %v398 = vmul.f32 %v335, %v279
  %v399 = vmul.f32 %v335, %v283
  %v400 = vmul.f32 %v339, %v271
  %v401 = vmul.f32 %v339, %v275
  %v402 = vmul.f32 %v339, %v279
  %v403 = vmul.f32 %v339, %v283
  %v404 = vmul.f32 %v343, %v271
  %v405 = vmul.f32 %v343, %v275
  %v406 = vmul.f32 %v343, %v279
  %v407 = vmul.f32 %v343, %v283
  %v408 = vmul.f32 %v347, %v271
  %v409 = vmul.f32 %v347, %v275
  %v410 = vmul.f32 %v347, %v279
  %v411 = vmul.f32 %v347, %v283
  %v412 = vadd.f32 %v201, %v348
  %v413 = vadd.f32 %v202, %v349
  %v414 = vadd.f32 %v203, %v350
  %v415 = vadd.f32 %v204, %v351
  %v416 = vadd.f32 %v205, %v352
  %v417 = vadd.f32 %v206, %v353
  %v418 = vadd.f32 %v207, %v354
  %v419 = vadd.f32 %v208, %v355
  %v420 = vadd.f32 %v209, %v356
  %v421 = vadd.f32 %v210, %v357
  %v422 = vadd.f32 %v211, %v358
  %v423 = vadd.f32 %v212, %v359
  %v424 = vadd.f32 %v213, %v360
  %v425 = vadd.f32 %v214, %v361
  %v426 = vadd.f32 %v215, %v362
  %v427 = vadd.f32 %v216, %v363
  %v428 = vadd.f32 %v217, %v364
  %v429 = vadd.f32 %v218, %v365
  %v430 = vadd.f32 %v219, %v366
  %v431 = vadd.f32 %v220, %v367
  %v432 = vadd.f32 %v221, %v368
  %v433 = vadd.f32 %v222, %v369
  %v434 = vadd.f32 %v223, %v370
  %v435 = vadd.f32 %v224, %v371
  %v436 = vadd.f32 %v225, %v372
  %v437 = vadd.f32 %v226, %v373
  %v438 = vadd.f32 %v227, %v374
  %v439 = vadd.f32 %v228, %v375
  %v440 = vadd.f32 %v229, %v376
  %v441 = vadd.f32 %v230, %v377
  %v442 = vadd.f32 %v231, %v378
  %v443 = vadd.f32 %v232, %v379
  %v444 = vadd.f32 %v233, %v380
  %v445 = vadd.f32 %v234, %v381
  %v446 = vadd.f32 %v235, %v382
  %v447 = vadd.f32 %v236, %v383
  %v448 = vadd.f32 %v237, %v384
  %v449 = vadd.f32 %v238, %v385
  %v450 = vadd.f32 %v239, %v386
  %v451 = vadd.f32 %v240, %v387
  %v452 = vadd.f32 %v241, %v388
  %v453 = vadd.f32 %v242, %v389
  %v454 = vadd.f32 %v243, %v390
  %v455 = vadd.f32 %v244, %v391
  %v456 = vadd.f32 %v245, %v392
  %v457 = vadd.f32 %v246, %v393
  %v458 = vadd.f32 %v247, %v394
  %v459 = vadd.f32 %v248, %v395
  %v460 = vadd.f32 %v249, %v396
  %v461 = vadd.f32 %v250, %v397
  %v462 = vadd.f32 %v251, %v398
  %v463 = vadd.f32 %v252, %v399
  %v464 = vadd.f32 %v253, %v400
  %v465 = vadd.f32 %v254, %v401
  %v466 = vadd.f32 %v255, %v402
  %v467 = vadd.f32 %v256, %v403
  %v468 = vadd.f32 %v257, %v404
  %v469 = vadd.f32 %v258, %v405
  %v470 = vadd.f32 %v259, %v406
  %v471 = vadd.f32 %v260, %v407
  %v472 = vadd.f32 %v261, %v408
  %v473 = vadd.f32 %v262, %v409
  %v474 = vadd.f32 %v263, %v410
  %v475 = vadd.f32 %v264, %v411
  %v476 = vlaneseq
  %v477 = vshrl.u32 %v476, 7
  %v478 = vsub.s32 2, %v477
  %v479 = vrot.slane %v53, %v478
  %481 = vbcast.lane.b32.xlu0 %v479, 256
  %v482 = vpop.permute.xlu0 %481
  %s484 = sor.u32 256, 8
  %485 = vbcast.lane.b32.xlu0 %v479, %s484
  %v486 = vpop.permute.xlu0 %485
  %s488 = sor.u32 256, 16
  %489 = vbcast.lane.b32.xlu0 %v479, %s488
  %v490 = vpop.permute.xlu0 %489
  %s492 = sor.u32 256, 24
  %493 = vbcast.lane.b32.xlu0 %v479, %s492
  %v494 = vpop.permute.xlu0 %493
  %v495 = vlaneseq
  %v496 = vshrl.u32 %v495, 7
  %v497 = vsub.s32 2, %v496
  %v498 = vrot.slane %v37, %v497
  %v499 = vlaneseq
  %v500 = vshrl.u32 %v499, 7
  %v501 = vsub.s32 2, %v500
  %v502 = vrot.slane %v38, %v501
  %v503 = vlaneseq
  %v504 = vshrl.u32 %v503, 7
  %v505 = vsub.s32 2, %v504
  %v506 = vrot.slane %v39, %v505
  %v507 = vlaneseq
  %v508 = vshrl.u32 %v507, 7
  %v509 = vsub.s32 2, %v508
  %v510 = vrot.slane %v40, %v509
  %v511 = vlaneseq
  %v512 = vshrl.u32 %v511, 7
  %v513 = vsub.s32 2, %v512
  %v514 = vrot.slane %v41, %v513
  %v515 = vlaneseq
  %v516 = vshrl.u32 %v515, 7
  %v517 = vsub.s32 2, %v516
  %v518 = vrot.slane %v42, %v517
  %v519 = vlaneseq
  %v520 = vshrl.u32 %v519, 7
  %v521 = vsub.s32 2, %v520
  %v522 = vrot.slane %v43, %v521
  %v523 = vlaneseq
  %v524 = vshrl.u32 %v523, 7
  %v525 = vsub.s32 2, %v524
  %v526 = vrot.slane %v44, %v525
  %v527 = vlaneseq
  %v528 = vshrl.u32 %v527, 7
  %v529 = vsub.s32 2, %v528
  %v530 = vrot.slane %v45, %v529
  %v531 = vlaneseq
  %v532 = vshrl.u32 %v531, 7
  %v533 = vsub.s32 2, %v532
  %v534 = vrot.slane %v46, %v533
  %v535 = vlaneseq
  %v536 = vshrl.u32 %v535, 7
  %v537 = vsub.s32 2, %v536
  %v538 = vrot.slane %v47, %v537
  %v539 = vlaneseq
  %v540 = vshrl.u32 %v539, 7
  %v541 = vsub.s32 2, %v540
  %v542 = vrot.slane %v48, %v541
  %v543 = vlaneseq
  %v544 = vshrl.u32 %v543, 7
  %v545 = vsub.s32 2, %v544
  %v546 = vrot.slane %v49, %v545
  %v547 = vlaneseq
  %v548 = vshrl.u32 %v547, 7
  %v549 = vsub.s32 2, %v548
  %v550 = vrot.slane %v50, %v549
  %v551 = vlaneseq
  %v552 = vshrl.u32 %v551, 7
  %v553 = vsub.s32 2, %v552
  %v554 = vrot.slane %v51, %v553
  %v555 = vlaneseq
  %v556 = vshrl.u32 %v555, 7
  %v557 = vsub.s32 2, %v556
  %v558 = vrot.slane %v52, %v557
  %v559 = vmul.f32 %v498, %v482
  %v560 = vmul.f32 %v498, %v486
  %v561 = vmul.f32 %v498, %v490
  %v562 = vmul.f32 %v498, %v494
  %v563 = vmul.f32 %v502, %v482
  %v564 = vmul.f32 %v502, %v486
  %v565 = vmul.f32 %v502, %v490
  %v566 = vmul.f32 %v502, %v494
  %v567 = vmul.f32 %v506, %v482
  %v568 = vmul.f32 %v506, %v486
  %v569 = vmul.f32 %v506, %v490
  %v570 = vmul.f32 %v506, %v494
  %v571 = vmul.f32 %v510, %v482
  %v572 = vmul.f32 %v510, %v486
  %v573 = vmul.f32 %v510, %v490
  %v574 = vmul.f32 %v510, %v494
  %v575 = vmul.f32 %v514, %v482
  %v576 = vmul.f32 %v514, %v486
  %v577 = vmul.f32 %v514, %v490
  %v578 = vmul.f32 %v514, %v494
  %v579 = vmul.f32 %v518, %v482
  %v580 = vmul.f32 %v518, %v486
  %v581 = vmul.f32 %v518, %v490
  %v582 = vmul.f32 %v518, %v494
  %v583 = vmul.f32 %v522, %v482
  %v584 = vmul.f32 %v522, %v486
  %v585 = vmul.f32 %v522, %v490
  %v586 = vmul.f32 %v522, %v494
  %v587 = vmul.f32 %v526, %v482
  %v588 = vmul.f32 %v526, %v486
  %v589 = vmul.f32 %v526, %v490
  %v590 = vmul.f32 %v526, %v494
  %v591 = vmul.f32 %v530, %v482
  %v592 = vmul.f32 %v530, %v486
  %v593 = vmul.f32 %v530, %v490
  %v594 = vmul.f32 %v530, %v494
  %v595 = vmul.f32 %v534, %v482
  %v596 = vmul.f32 %v534, %v486
  %v597 = vmul.f32 %v534, %v490
  %v598 = vmul.f32 %v534, %v494
  %v599 = vmul.f32 %v538, %v482
  %v600 = vmul.f32 %v538, %v486
  %v601 = vmul.f32 %v538, %v490
  %v602 = vmul.f32 %v538, %v494
  %v603 = vmul.f32 %v542, %v482
  %v604 = vmul.f32 %v542, %v486
  %v605 = vmul.f32 %v542, %v490
  %v606 = vmul.f32 %v542, %v494
  %v607 = vmul.f32 %v546, %v482
  %v608 = vmul.f32 %v546, %v486
  %v609 = vmul.f32 %v546, %v490
  %v610 = vmul.f32 %v546, %v494
  %v611 = vmul.f32 %v550, %v482
  %v612 = vmul.f32 %v550, %v486
  %v613 = vmul.f32 %v550, %v490
  %v614 = vmul.f32 %v550, %v494
  %v615 = vmul.f32 %v554, %v482
  %v616 = vmul.f32 %v554, %v486
  %v617 = vmul.f32 %v554, %v490
  %v618 = vmul.f32 %v554, %v494
  %v619 = vmul.f32 %v558, %v482
  %v620 = vmul.f32 %v558, %v486
  %v621 = vmul.f32 %v558, %v490
  %v622 = vmul.f32 %v558, %v494
  %v623 = vadd.f32 %v412, %v559
  %v624 = vadd.f32 %v413, %v560
  %v625 = vadd.f32 %v414, %v561
  %v626 = vadd.f32 %v415, %v562
  %v627 = vadd.f32 %v416, %v563
  %v628 = vadd.f32 %v417, %v564
  %v629 = vadd.f32 %v418, %v565
  %v630 = vadd.f32 %v419, %v566
  %v631 = vadd.f32 %v420, %v567
  %v632 = vadd.f32 %v421, %v568
  %v633 = vadd.f32 %v422, %v569
  %v634 = vadd.f32 %v423, %v570
  %v635 = vadd.f32 %v424, %v571
  %v636 = vadd.f32 %v425, %v572
  %v637 = vadd.f32 %v426, %v573
  %v638 = vadd.f32 %v427, %v574
  %v639 = vadd.f32 %v428, %v575
  %v640 = vadd.f32 %v429, %v576
  %v641 = vadd.f32 %v430, %v577
  %v642 = vadd.f32 %v431, %v578
  %v643 = vadd.f32 %v432, %v579
  %v644 = vadd.f32 %v433, %v580
  %v645 = vadd.f32 %v434, %v581
  %v646 = vadd.f32 %v435, %v582
  %v647 = vadd.f32 %v436, %v583
  %v648 = vadd.f32 %v437, %v584
  %v649 = vadd.f32 %v438, %v585
  %v650 = vadd.f32 %v439, %v586
  %v651 = vadd.f32 %v440, %v587
  %v652 = vadd.f32 %v441, %v588
  %v653 = vadd.f32 %v442, %v589
  %v654 = vadd.f32 %v443, %v590
  %v655 = vadd.f32 %v444, %v591
  %v656 = vadd.f32 %v445, %v592
  %v657 = vadd.f32 %v446, %v593
  %v658 = vadd.f32 %v447, %v594
  %v659 = vadd.f32 %v448, %v595
  %v660 = vadd.f32 %v449, %v596
  %v661 = vadd.f32 %v450, %v597
  %v662 = vadd.f32 %v451, %v598
  %v663 = vadd.f32 %v452, %v599
  %v664 = vadd.f32 %v453, %v600
  %v665 = vadd.f32 %v454, %v601
  %v666 = vadd.f32 %v455, %v602
  %v667 = vadd.f32 %v456, %v603
  %v668 = vadd.f32 %v457, %v604
  %v669 = vadd.f32 %v458, %v605
  %v670 = vadd.f32 %v459, %v606
  %v671 = vadd.f32 %v460, %v607
  %v672 = vadd.f32 %v461, %v608
  %v673 = vadd.f32 %v462, %v609
  %v674 = vadd.f32 %v463, %v610
  %v675 = vadd.f32 %v464, %v611
  %v676 = vadd.f32 %v465, %v612
  %v677 = vadd.f32 %v466, %v613
  %v678 = vadd.f32 %v467, %v614
  %v679 = vadd.f32 %v468, %v615
  %v680 = vadd.f32 %v469, %v616
  %v681 = vadd.f32 %v470, %v617
  %v682 = vadd.f32 %v471, %v618
  %v683 = vadd.f32 %v472, %v619
  %v684 = vadd.f32 %v473, %v620
  %v685 = vadd.f32 %v474, %v621
  %v686 = vadd.f32 %v475, %v622
  %v687 = vlaneseq
  %v688 = vshrl.u32 %v687, 7
  %v689 = vsub.s32 3, %v688
  %v690 = vrot.slane %v53, %v689
  %692 = vbcast.lane.b32.xlu0 %v690, 256
  %v693 = vpop.permute.xlu0 %692
  %s695 = sor.u32 256, 8
  %696 = vbcast.lane.b32.xlu0 %v690, %s695
  %v697 = vpop.permute.xlu0 %696
  %s699 = sor.u32 256, 16
  %700 = vbcast.lane.b32.xlu0 %v690, %s699
  %v701 = vpop.permute.xlu0 %700
  %s703 = sor.u32 256, 24
  %704 = vbcast.lane.b32.xlu0 %v690, %s703
  %v705 = vpop.permute.xlu0 %704
  %v706 = vlaneseq
  %v707 = vshrl.u32 %v706, 7
  %v708 = vsub.s32 3, %v707
  %v709 = vrot.slane %v37, %v708
  %v710 = vlaneseq
  %v711 = vshrl.u32 %v710, 7
  %v712 = vsub.s32 3, %v711
  %v713 = vrot.slane %v38, %v712
  %v714 = vlaneseq
  %v715 = vshrl.u32 %v714, 7
  %v716 = vsub.s32 3, %v715
  %v717 = vrot.slane %v39, %v716
  %v718 = vlaneseq
  %v719 = vshrl.u32 %v718, 7
  %v720 = vsub.s32 3, %v719
  %v721 = vrot.slane %v40, %v720
  %v722 = vlaneseq
  %v723 = vshrl.u32 %v722, 7
  %v724 = vsub.s32 3, %v723
  %v725 = vrot.slane %v41, %v724
  %v726 = vlaneseq
  %v727 = vshrl.u32 %v726, 7
  %v728 = vsub.s32 3, %v727
  %v729 = vrot.slane %v42, %v728
  %v730 = vlaneseq
  %v731 = vshrl.u32 %v730, 7
  %v732 = vsub.s32 3, %v731
  %v733 = vrot.slane %v43, %v732
  %v734 = vlaneseq
  %v735 = vshrl.u32 %v734, 7
  %v736 = vsub.s32 3, %v735
  %v737 = vrot.slane %v44, %v736
  %v738 = vlaneseq
  %v739 = vshrl.u32 %v738, 7
  %v740 = vsub.s32 3, %v739
  %v741 = vrot.slane %v45, %v740
  %v742 = vlaneseq
  %v743 = vshrl.u32 %v742, 7
  %v744 = vsub.s32 3, %v743
  %v745 = vrot.slane %v46, %v744
  %v746 = vlaneseq
  %v747 = vshrl.u32 %v746, 7
  %v748 = vsub.s32 3, %v747
  %v749 = vrot.slane %v47, %v748
  %v750 = vlaneseq
  %v751 = vshrl.u32 %v750, 7
  %v752 = vsub.s32 3, %v751
  %v753 = vrot.slane %v48, %v752
  %v754 = vlaneseq
  %v755 = vshrl.u32 %v754, 7
  %v756 = vsub.s32 3, %v755
  %v757 = vrot.slane %v49, %v756
  %v758 = vlaneseq
  %v759 = vshrl.u32 %v758, 7
  %v760 = vsub.s32 3, %v759
  %v761 = vrot.slane %v50, %v760
  %v762 = vlaneseq
  %v763 = vshrl.u32 %v762, 7
  %v764 = vsub.s32 3, %v763
  %v765 = vrot.slane %v51, %v764
  %v766 = vlaneseq
  %v767 = vshrl.u32 %v766, 7
  %v768 = vsub.s32 3, %v767
  %v769 = vrot.slane %v52, %v768
  %v770 = vmul.f32 %v709, %v693
  %v771 = vmul.f32 %v709, %v697
  %v772 = vmul.f32 %v709, %v701
  %v773 = vmul.f32 %v709, %v705
  %v774 = vmul.f32 %v713, %v693
  %v775 = vmul.f32 %v713, %v697
  %v776 = vmul.f32 %v713, %v701
  %v777 = vmul.f32 %v713, %v705
  %v778 = vmul.f32 %v717, %v693
  %v779 = vmul.f32 %v717, %v697
  %v780 = vmul.f32 %v717, %v701
  %v781 = vmul.f32 %v717, %v705
  %v782 = vmul.f32 %v721, %v693
  %v783 = vmul.f32 %v721, %v697
  %v784 = vmul.f32 %v721, %v701
  %v785 = vmul.f32 %v721, %v705
  %v786 = vmul.f32 %v725, %v693
  %v787 = vmul.f32 %v725, %v697
  %v788 = vmul.f32 %v725, %v701
  %v789 = vmul.f32 %v725, %v705
  %v790 = vmul.f32 %v729, %v693
  %v791 = vmul.f32 %v729, %v697
  %v792 = vmul.f32 %v729, %v701
  %v793 = vmul.f32 %v729, %v705
  %v794 = vmul.f32 %v733, %v693
  %v795 = vmul.f32 %v733, %v697
  %v796 = vmul.f32 %v733, %v701
  %v797 = vmul.f32 %v733, %v705
  %v798 = vmul.f32 %v737, %v693
  %v799 = vmul.f32 %v737, %v697
  %v800 = vmul.f32 %v737, %v701
  %v801 = vmul.f32 %v737, %v705
  %v802 = vmul.f32 %v741, %v693
  %v803 = vmul.f32 %v741, %v697
  %v804 = vmul.f32 %v741, %v701
  %v805 = vmul.f32 %v741, %v705
  %v806 = vmul.f32 %v745, %v693
  %v807 = vmul.f32 %v745, %v697
  %v808 = vmul.f32 %v745, %v701
  %v809 = vmul.f32 %v745, %v705
  %v810 = vmul.f32 %v749, %v693
  %v811 = vmul.f32 %v749, %v697
  %v812 = vmul.f32 %v749, %v701
  %v813 = vmul.f32 %v749, %v705
  %v814 = vmul.f32 %v753, %v693
  %v815 = vmul.f32 %v753, %v697
  %v816 = vmul.f32 %v753, %v701
  %v817 = vmul.f32 %v753, %v705
  %v818 = vmul.f32 %v757, %v693
  %v819 = vmul.f32 %v757, %v697
  %v820 = vmul.f32 %v757, %v701
  %v821 = vmul.f32 %v757, %v705
  %v822 = vmul.f32 %v761, %v693
  %v823 = vmul.f32 %v761, %v697
  %v824 = vmul.f32 %v761, %v701
  %v825 = vmul.f32 %v761, %v705
  %v826 = vmul.f32 %v765, %v693
  %v827 = vmul.f32 %v765, %v697
  %v828 = vmul.f32 %v765, %v701
  %v829 = vmul.f32 %v765, %v705
  %v830 = vmul.f32 %v769, %v693
  %v831 = vmul.f32 %v769, %v697
  %v832 = vmul.f32 %v769, %v701
  %v833 = vmul.f32 %v769, %v705
  %v834 = vadd.f32 %v623, %v770
  %v835 = vadd.f32 %v624, %v771
  %v836 = vadd.f32 %v625, %v772
  %v837 = vadd.f32 %v626, %v773
  %v838 = vadd.f32 %v627, %v774
  %v839 = vadd.f32 %v628, %v775
  %v840 = vadd.f32 %v629, %v776
  %v841 = vadd.f32 %v630, %v777
  %v842 = vadd.f32 %v631, %v778
  %v843 = vadd.f32 %v632, %v779
  %v844 = vadd.f32 %v633, %v780
  %v845 = vadd.f32 %v634, %v781
  %v846 = vadd.f32 %v635, %v782
  %v847 = vadd.f32 %v636, %v783
  %v848 = vadd.f32 %v637, %v784
  %v849 = vadd.f32 %v638, %v785
  %v850 = vadd.f32 %v639, %v786
  %v851 = vadd.f32 %v640, %v787
  %v852 = vadd.f32 %v641, %v788
  %v853 = vadd.f32 %v642, %v789
  %v854 = vadd.f32 %v643, %v790
  %v855 = vadd.f32 %v644, %v791
  %v856 = vadd.f32 %v645, %v792
  %v857 = vadd.f32 %v646, %v793
  %v858 = vadd.f32 %v647, %v794
  %v859 = vadd.f32 %v648, %v795
  %v860 = vadd.f32 %v649, %v796
  %v861 = vadd.f32 %v650, %v797
  %v862 = vadd.f32 %v651, %v798
  %v863 = vadd.f32 %v652, %v799
  %v864 = vadd.f32 %v653, %v800
  %v865 = vadd.f32 %v654, %v801
  %v866 = vadd.f32 %v655, %v802
  %v867 = vadd.f32 %v656, %v803
  %v868 = vadd.f32 %v657, %v804
  %v869 = vadd.f32 %v658, %v805
  %v870 = vadd.f32 %v659, %v806
  %v871 = vadd.f32 %v660, %v807
  %v872 = vadd.f32 %v661, %v808
  %v873 = vadd.f32 %v662, %v809
  %v874 = vadd.f32 %v663, %v810
  %v875 = vadd.f32 %v664, %v811
  %v876 = vadd.f32 %v665, %v812
  %v877 = vadd.f32 %v666, %v813
  %v878 = vadd.f32 %v667, %v814
  %v879 = vadd.f32 %v668, %v815
  %v880 = vadd.f32 %v669, %v816
  %v881 = vadd.f32 %v670, %v817
  %v882 = vadd.f32 %v671, %v818
  %v883 = vadd.f32 %v672, %v819
  %v884 = vadd.f32 %v673, %v820
  %v885 = vadd.f32 %v674, %v821
  %v886 = vadd.f32 %v675, %v822
  %v887 = vadd.f32 %v676, %v823
  %v888 = vadd.f32 %v677, %v824
  %v889 = vadd.f32 %v678, %v825
  %v890 = vadd.f32 %v679, %v826
  %v891 = vadd.f32 %v680, %v827
  %v892 = vadd.f32 %v681, %v828
  %v893 = vadd.f32 %v682, %v829
  %v894 = vadd.f32 %v683, %v830
  %v895 = vadd.f32 %v684, %v831
  %v896 = vadd.f32 %v685, %v832
  %v897 = vadd.f32 %v686, %v833
  %v898 = vlaneseq
  %v899 = vshrl.u32 %v898, 7
  %v900 = vsub.s32 4, %v899
  %v901 = vrot.slane %v53, %v900
  %903 = vbcast.lane.b32.xlu0 %v901, 256
  %v904 = vpop.permute.xlu0 %903
  %s906 = sor.u32 256, 8
  %907 = vbcast.lane.b32.xlu0 %v901, %s906
  %v908 = vpop.permute.xlu0 %907
  %s910 = sor.u32 256, 16
  %911 = vbcast.lane.b32.xlu0 %v901, %s910
  %v912 = vpop.permute.xlu0 %911
  %s914 = sor.u32 256, 24
  %915 = vbcast.lane.b32.xlu0 %v901, %s914
  %v916 = vpop.permute.xlu0 %915
  %v917 = vlaneseq
  %v918 = vshrl.u32 %v917, 7
  %v919 = vsub.s32 4, %v918
  %v920 = vrot.slane %v37, %v919
  %v921 = vlaneseq
  %v922 = vshrl.u32 %v921, 7
  %v923 = vsub.s32 4, %v922
  %v924 = vrot.slane %v38, %v923
  %v925 = vlaneseq
  %v926 = vshrl.u32 %v925, 7
  %v927 = vsub.s32 4, %v926
  %v928 = vrot.slane %v39, %v927
  %v929 = vlaneseq
  %v930 = vshrl.u32 %v929, 7
  %v931 = vsub.s32 4, %v930
  %v932 = vrot.slane %v40, %v931
  %v933 = vlaneseq
  %v934 = vshrl.u32 %v933, 7
  %v935 = vsub.s32 4, %v934
  %v936 = vrot.slane %v41, %v935
  %v937 = vlaneseq
  %v938 = vshrl.u32 %v937, 7
  %v939 = vsub.s32 4, %v938
  %v940 = vrot.slane %v42, %v939
  %v941 = vlaneseq
  %v942 = vshrl.u32 %v941, 7
  %v943 = vsub.s32 4, %v942
  %v944 = vrot.slane %v43, %v943
  %v945 = vlaneseq
  %v946 = vshrl.u32 %v945, 7
  %v947 = vsub.s32 4, %v946
  %v948 = vrot.slane %v44, %v947
  %v949 = vlaneseq
  %v950 = vshrl.u32 %v949, 7
  %v951 = vsub.s32 4, %v950
  %v952 = vrot.slane %v45, %v951
  %v953 = vlaneseq
  %v954 = vshrl.u32 %v953, 7
  %v955 = vsub.s32 4, %v954
  %v956 = vrot.slane %v46, %v955
  %v957 = vlaneseq
  %v958 = vshrl.u32 %v957, 7
  %v959 = vsub.s32 4, %v958
  %v960 = vrot.slane %v47, %v959
  %v961 = vlaneseq
  %v962 = vshrl.u32 %v961, 7
  %v963 = vsub.s32 4, %v962
  %v964 = vrot.slane %v48, %v963
  %v965 = vlaneseq
  %v966 = vshrl.u32 %v965, 7
  %v967 = vsub.s32 4, %v966
  %v968 = vrot.slane %v49, %v967
  %v969 = vlaneseq
  %v970 = vshrl.u32 %v969, 7
  %v971 = vsub.s32 4, %v970
  %v972 = vrot.slane %v50, %v971
  %v973 = vlaneseq
  %v974 = vshrl.u32 %v973, 7
  %v975 = vsub.s32 4, %v974
  %v976 = vrot.slane %v51, %v975
  %v977 = vlaneseq
  %v978 = vshrl.u32 %v977, 7
  %v979 = vsub.s32 4, %v978
  %v980 = vrot.slane %v52, %v979
  %v981 = vmul.f32 %v920, %v904
  %v982 = vmul.f32 %v920, %v908
  %v983 = vmul.f32 %v920, %v912
  %v984 = vmul.f32 %v920, %v916
  %v985 = vmul.f32 %v924, %v904
  %v986 = vmul.f32 %v924, %v908
  %v987 = vmul.f32 %v924, %v912
  %v988 = vmul.f32 %v924, %v916
  %v989 = vmul.f32 %v928, %v904
  %v990 = vmul.f32 %v928, %v908
  %v991 = vmul.f32 %v928, %v912
  %v992 = vmul.f32 %v928, %v916
  %v993 = vmul.f32 %v932, %v904
  %v994 = vmul.f32 %v932, %v908
  %v995 = vmul.f32 %v932, %v912
  %v996 = vmul.f32 %v932, %v916
  %v997 = vmul.f32 %v936, %v904
  %v998 = vmul.f32 %v936, %v908
  %v999 = vmul.f32 %v936, %v912
  %v1000 = vmul.f32 %v936, %v916
  %v1001 = vmul.f32 %v940, %v904
  %v1002 = vmul.f32 %v940, %v908
  %v1003 = vmul.f32 %v940, %v912
  %v1004 = vmul.f32 %v940, %v916
  %v1005 = vmul.f32 %v944, %v904
  %v1006 = vmul.f32 %v944, %v908
  %v1007 = vmul.f32 %v944, %v912
  %v1008 = vmul.f32 %v944, %v916
  %v1009 = vmul.f32 %v948, %v904
  %v1010 = vmul.f32 %v948, %v908
  %v1011 = vmul.f32 %v948, %v912
  %v1012 = vmul.f32 %v948, %v916
  %v1013 = vmul.f32 %v952, %v904
  %v1014 = vmul.f32 %v952, %v908
  %v1015 = vmul.f32 %v952, %v912
  %v1016 = vmul.f32 %v952, %v916
  %v1017 = vmul.f32 %v956, %v904
  %v1018 = vmul.f32 %v956, %v908
  %v1019 = vmul.f32 %v956, %v912
  %v1020 = vmul.f32 %v956, %v916
  %v1021 = vmul.f32 %v960, %v904
  %v1022 = vmul.f32 %v960, %v908
  %v1023 = vmul.f32 %v960, %v912
  %v1024 = vmul.f32 %v960, %v916
  %v1025 = vmul.f32 %v964, %v904
  %v1026 = vmul.f32 %v964, %v908
  %v1027 = vmul.f32 %v964, %v912
  %v1028 = vmul.f32 %v964, %v916
  %v1029 = vmul.f32 %v968, %v904
  %v1030 = vmul.f32 %v968, %v908
  %v1031 = vmul.f32 %v968, %v912
  %v1032 = vmul.f32 %v968, %v916
  %v1033 = vmul.f32 %v972, %v904
  %v1034 = vmul.f32 %v972, %v908
  %v1035 = vmul.f32 %v972, %v912
  %v1036 = vmul.f32 %v972, %v916
  %v1037 = vmul.f32 %v976, %v904
  %v1038 = vmul.f32 %v976, %v908
  %v1039 = vmul.f32 %v976, %v912
  %v1040 = vmul.f32 %v976, %v916
  %v1041 = vmul.f32 %v980, %v904
  %v1042 = vmul.f32 %v980, %v908
  %v1043 = vmul.f32 %v980, %v912
  %v1044 = vmul.f32 %v980, %v916
  %v1045 = vadd.f32 %v834, %v981
  %v1046 = vadd.f32 %v835, %v982
  %v1047 = vadd.f32 %v836, %v983
  %v1048 = vadd.f32 %v837, %v984
  %v1049 = vadd.f32 %v838, %v985
  %v1050 = vadd.f32 %v839, %v986
  %v1051 = vadd.f32 %v840, %v987
  %v1052 = vadd.f32 %v841, %v988
  %v1053 = vadd.f32 %v842, %v989
  %v1054 = vadd.f32 %v843, %v990
  %v1055 = vadd.f32 %v844, %v991
  %v1056 = vadd.f32 %v845, %v992
  %v1057 = vadd.f32 %v846, %v993
  %v1058 = vadd.f32 %v847, %v994
  %v1059 = vadd.f32 %v848, %v995
  %v1060 = vadd.f32 %v849, %v996
  %v1061 = vadd.f32 %v850, %v997
  %v1062 = vadd.f32 %v851, %v998
  %v1063 = vadd.f32 %v852, %v999
  %v1064 = vadd.f32 %v853, %v1000
  %v1065 = vadd.f32 %v854, %v1001
  %v1066 = vadd.f32 %v855, %v1002
  %v1067 = vadd.f32 %v856, %v1003
  %v1068 = vadd.f32 %v857, %v1004
  %v1069 = vadd.f32 %v858, %v1005
  %v1070 = vadd.f32 %v859, %v1006
  %v1071 = vadd.f32 %v860, %v1007
  %v1072 = vadd.f32 %v861, %v1008
  %v1073 = vadd.f32 %v862, %v1009
  %v1074 = vadd.f32 %v863, %v1010
  %v1075 = vadd.f32 %v864, %v1011
  %v1076 = vadd.f32 %v865, %v1012
  %v1077 = vadd.f32 %v866, %v1013
  %v1078 = vadd.f32 %v867, %v1014
  %v1079 = vadd.f32 %v868, %v1015
  %v1080 = vadd.f32 %v869, %v1016
  %v1081 = vadd.f32 %v870, %v1017
  %v1082 = vadd.f32 %v871, %v1018
  %v1083 = vadd.f32 %v872, %v1019
  %v1084 = vadd.f32 %v873, %v1020
  %v1085 = vadd.f32 %v874, %v1021
  %v1086 = vadd.f32 %v875, %v1022
  %v1087 = vadd.f32 %v876, %v1023
  %v1088 = vadd.f32 %v877, %v1024
  %v1089 = vadd.f32 %v878, %v1025
  %v1090 = vadd.f32 %v879, %v1026
  %v1091 = vadd.f32 %v880, %v1027
  %v1092 = vadd.f32 %v881, %v1028
  %v1093 = vadd.f32 %v882, %v1029
  %v1094 = vadd.f32 %v883, %v1030
  %v1095 = vadd.f32 %v884, %v1031
  %v1096 = vadd.f32 %v885, %v1032
  %v1097 = vadd.f32 %v886, %v1033
  %v1098 = vadd.f32 %v887, %v1034
  %v1099 = vadd.f32 %v888, %v1035
  %v1100 = vadd.f32 %v889, %v1036
  %v1101 = vadd.f32 %v890, %v1037
  %v1102 = vadd.f32 %v891, %v1038
  %v1103 = vadd.f32 %v892, %v1039
  %v1104 = vadd.f32 %v893, %v1040
  %v1105 = vadd.f32 %v894, %v1041
  %v1106 = vadd.f32 %v895, %v1042
  %v1107 = vadd.f32 %v896, %v1043
  %v1108 = vadd.f32 %v897, %v1044
  %v1109 = vlaneseq
  %v1110 = vshrl.u32 %v1109, 7
  %v1111 = vsub.s32 5, %v1110
  %v1112 = vrot.slane %v53, %v1111
  %1114 = vbcast.lane.b32.xlu0 %v1112, 256
  %v1115 = vpop.permute.xlu0 %1114
  %s1117 = sor.u32 256, 8
  %1118 = vbcast.lane.b32.xlu0 %v1112, %s1117
  %v1119 = vpop.permute.xlu0 %1118
  %s1121 = sor.u32 256, 16
  %1122 = vbcast.lane.b32.xlu0 %v1112, %s1121
  %v1123 = vpop.permute.xlu0 %1122
  %s1125 = sor.u32 256, 24
  %1126 = vbcast.lane.b32.xlu0 %v1112, %s1125
  %v1127 = vpop.permute.xlu0 %1126
  %v1128 = vlaneseq
  %v1129 = vshrl.u32 %v1128, 7
  %v1130 = vsub.s32 5, %v1129
  %v1131 = vrot.slane %v37, %v1130
  %v1132 = vlaneseq
  %v1133 = vshrl.u32 %v1132, 7
  %v1134 = vsub.s32 5, %v1133
  %v1135 = vrot.slane %v38, %v1134
  %v1136 = vlaneseq
  %v1137 = vshrl.u32 %v1136, 7
  %v1138 = vsub.s32 5, %v1137
  %v1139 = vrot.slane %v39, %v1138
  %v1140 = vlaneseq
  %v1141 = vshrl.u32 %v1140, 7
  %v1142 = vsub.s32 5, %v1141
  %v1143 = vrot.slane %v40, %v1142
  %v1144 = vlaneseq
  %v1145 = vshrl.u32 %v1144, 7
  %v1146 = vsub.s32 5, %v1145
  %v1147 = vrot.slane %v41, %v1146
  %v1148 = vlaneseq
  %v1149 = vshrl.u32 %v1148, 7
  %v1150 = vsub.s32 5, %v1149
  %v1151 = vrot.slane %v42, %v1150
  %v1152 = vlaneseq
  %v1153 = vshrl.u32 %v1152, 7
  %v1154 = vsub.s32 5, %v1153
  %v1155 = vrot.slane %v43, %v1154
  %v1156 = vlaneseq
  %v1157 = vshrl.u32 %v1156, 7
  %v1158 = vsub.s32 5, %v1157
  %v1159 = vrot.slane %v44, %v1158
  %v1160 = vlaneseq
  %v1161 = vshrl.u32 %v1160, 7
  %v1162 = vsub.s32 5, %v1161
  %v1163 = vrot.slane %v45, %v1162
  %v1164 = vlaneseq
  %v1165 = vshrl.u32 %v1164, 7
  %v1166 = vsub.s32 5, %v1165
  %v1167 = vrot.slane %v46, %v1166
  %v1168 = vlaneseq
  %v1169 = vshrl.u32 %v1168, 7
  %v1170 = vsub.s32 5, %v1169
  %v1171 = vrot.slane %v47, %v1170
  %v1172 = vlaneseq
  %v1173 = vshrl.u32 %v1172, 7
  %v1174 = vsub.s32 5, %v1173
  %v1175 = vrot.slane %v48, %v1174
  %v1176 = vlaneseq
  %v1177 = vshrl.u32 %v1176, 7
  %v1178 = vsub.s32 5, %v1177
  %v1179 = vrot.slane %v49, %v1178
  %v1180 = vlaneseq
  %v1181 = vshrl.u32 %v1180, 7
  %v1182 = vsub.s32 5, %v1181
  %v1183 = vrot.slane %v50, %v1182
  %v1184 = vlaneseq
  %v1185 = vshrl.u32 %v1184, 7
  %v1186 = vsub.s32 5, %v1185
  %v1187 = vrot.slane %v51, %v1186
  %v1188 = vlaneseq
  %v1189 = vshrl.u32 %v1188, 7
  %v1190 = vsub.s32 5, %v1189
  %v1191 = vrot.slane %v52, %v1190
  %v1192 = vmul.f32 %v1131, %v1115
  %v1193 = vmul.f32 %v1131, %v1119
  %v1194 = vmul.f32 %v1131, %v1123
  %v1195 = vmul.f32 %v1131, %v1127
  %v1196 = vmul.f32 %v1135, %v1115
  %v1197 = vmul.f32 %v1135, %v1119
  %v1198 = vmul.f32 %v1135, %v1123
  %v1199 = vmul.f32 %v1135, %v1127
  %v1200 = vmul.f32 %v1139, %v1115
  %v1201 = vmul.f32 %v1139, %v1119
  %v1202 = vmul.f32 %v1139, %v1123
  %v1203 = vmul.f32 %v1139, %v1127
  %v1204 = vmul.f32 %v1143, %v1115
  %v1205 = vmul.f32 %v1143, %v1119
  %v1206 = vmul.f32 %v1143, %v1123
  %v1207 = vmul.f32 %v1143, %v1127
  %v1208 = vmul.f32 %v1147, %v1115
  %v1209 = vmul.f32 %v1147, %v1119
  %v1210 = vmul.f32 %v1147, %v1123
  %v1211 = vmul.f32 %v1147, %v1127
  %v1212 = vmul.f32 %v1151, %v1115
  %v1213 = vmul.f32 %v1151, %v1119
  %v1214 = vmul.f32 %v1151, %v1123
  %v1215 = vmul.f32 %v1151, %v1127
  %v1216 = vmul.f32 %v1155, %v1115
  %v1217 = vmul.f32 %v1155, %v1119
  %v1218 = vmul.f32 %v1155, %v1123
  %v1219 = vmul.f32 %v1155, %v1127
  %v1220 = vmul.f32 %v1159, %v1115
  %v1221 = vmul.f32 %v1159, %v1119
  %v1222 = vmul.f32 %v1159, %v1123
  %v1223 = vmul.f32 %v1159, %v1127
  %v1224 = vmul.f32 %v1163, %v1115
  %v1225 = vmul.f32 %v1163, %v1119
  %v1226 = vmul.f32 %v1163, %v1123
  %v1227 = vmul.f32 %v1163, %v1127
  %v1228 = vmul.f32 %v1167, %v1115
  %v1229 = vmul.f32 %v1167, %v1119
  %v1230 = vmul.f32 %v1167, %v1123
  %v1231 = vmul.f32 %v1167, %v1127
  %v1232 = vmul.f32 %v1171, %v1115
  %v1233 = vmul.f32 %v1171, %v1119
  %v1234 = vmul.f32 %v1171, %v1123
  %v1235 = vmul.f32 %v1171, %v1127
  %v1236 = vmul.f32 %v1175, %v1115
  %v1237 = vmul.f32 %v1175, %v1119
  %v1238 = vmul.f32 %v1175, %v1123
  %v1239 = vmul.f32 %v1175, %v1127
  %v1240 = vmul.f32 %v1179, %v1115
  %v1241 = vmul.f32 %v1179, %v1119
  %v1242 = vmul.f32 %v1179, %v1123
  %v1243 = vmul.f32 %v1179, %v1127
  %v1244 = vmul.f32 %v1183, %v1115
  %v1245 = vmul.f32 %v1183, %v1119
  %v1246 = vmul.f32 %v1183, %v1123
  %v1247 = vmul.f32 %v1183, %v1127
  %v1248 = vmul.f32 %v1187, %v1115
  %v1249 = vmul.f32 %v1187, %v1119
  %v1250 = vmul.f32 %v1187, %v1123
  %v1251 = vmul.f32 %v1187, %v1127
  %v1252 = vmul.f32 %v1191, %v1115
  %v1253 = vmul.f32 %v1191, %v1119
  %v1254 = vmul.f32 %v1191, %v1123
  %v1255 = vmul.f32 %v1191, %v1127
  %v1256 = vadd.f32 %v1045, %v1192
  %v1257 = vadd.f32 %v1046, %v1193
  %v1258 = vadd.f32 %v1047, %v1194
  %v1259 = vadd.f32 %v1048, %v1195
  %v1260 = vadd.f32 %v1049, %v1196
  %v1261 = vadd.f32 %v1050, %v1197
  %v1262 = vadd.f32 %v1051, %v1198
  %v1263 = vadd.f32 %v1052, %v1199
  %v1264 = vadd.f32 %v1053, %v1200
  %v1265 = vadd.f32 %v1054, %v1201
  %v1266 = vadd.f32 %v1055, %v1202
  %v1267 = vadd.f32 %v1056, %v1203
  %v1268 = vadd.f32 %v1057, %v1204
  %v1269 = vadd.f32 %v1058, %v1205
  %v1270 = vadd.f32 %v1059, %v1206
  %v1271 = vadd.f32 %v1060, %v1207
  %v1272 = vadd.f32 %v1061, %v1208
  %v1273 = vadd.f32 %v1062, %v1209
  %v1274 = vadd.f32 %v1063, %v1210
  %v1275 = vadd.f32 %v1064, %v1211
  %v1276 = vadd.f32 %v1065, %v1212
  %v1277 = vadd.f32 %v1066, %v1213
  %v1278 = vadd.f32 %v1067, %v1214
  %v1279 = vadd.f32 %v1068, %v1215
  %v1280 = vadd.f32 %v1069, %v1216
  %v1281 = vadd.f32 %v1070, %v1217
  %v1282 = vadd.f32 %v1071, %v1218
  %v1283 = vadd.f32 %v1072, %v1219
  %v1284 = vadd.f32 %v1073, %v1220
  %v1285 = vadd.f32 %v1074, %v1221
  %v1286 = vadd.f32 %v1075, %v1222
  %v1287 = vadd.f32 %v1076, %v1223
  %v1288 = vadd.f32 %v1077, %v1224
  %v1289 = vadd.f32 %v1078, %v1225
  %v1290 = vadd.f32 %v1079, %v1226
  %v1291 = vadd.f32 %v1080, %v1227
  %v1292 = vadd.f32 %v1081, %v1228
  %v1293 = vadd.f32 %v1082, %v1229
  %v1294 = vadd.f32 %v1083, %v1230
  %v1295 = vadd.f32 %v1084, %v1231
  %v1296 = vadd.f32 %v1085, %v1232
  %v1297 = vadd.f32 %v1086, %v1233
  %v1298 = vadd.f32 %v1087, %v1234
  %v1299 = vadd.f32 %v1088, %v1235
  %v1300 = vadd.f32 %v1089, %v1236
  %v1301 = vadd.f32 %v1090, %v1237
  %v1302 = vadd.f32 %v1091, %v1238
  %v1303 = vadd.f32 %v1092, %v1239
  %v1304 = vadd.f32 %v1093, %v1240
  %v1305 = vadd.f32 %v1094, %v1241
  %v1306 = vadd.f32 %v1095, %v1242
  %v1307 = vadd.f32 %v1096, %v1243
  %v1308 = vadd.f32 %v1097, %v1244
  %v1309 = vadd.f32 %v1098, %v1245
  %v1310 = vadd.f32 %v1099, %v1246
  %v1311 = vadd.f32 %v1100, %v1247
  %v1312 = vadd.f32 %v1101, %v1248
  %v1313 = vadd.f32 %v1102, %v1249
  %v1314 = vadd.f32 %v1103, %v1250
  %v1315 = vadd.f32 %v1104, %v1251
  %v1316 = vadd.f32 %v1105, %v1252
  %v1317 = vadd.f32 %v1106, %v1253
  %v1318 = vadd.f32 %v1107, %v1254
  %v1319 = vadd.f32 %v1108, %v1255
  %v1320 = vlaneseq
  %v1321 = vshrl.u32 %v1320, 7
  %v1322 = vsub.s32 6, %v1321
  %v1323 = vrot.slane %v53, %v1322
  %1325 = vbcast.lane.b32.xlu0 %v1323, 256
  %v1326 = vpop.permute.xlu0 %1325
  %s1328 = sor.u32 256, 8
  %1329 = vbcast.lane.b32.xlu0 %v1323, %s1328
  %v1330 = vpop.permute.xlu0 %1329
  %s1332 = sor.u32 256, 16
  %1333 = vbcast.lane.b32.xlu0 %v1323, %s1332
  %v1334 = vpop.permute.xlu0 %1333
  %s1336 = sor.u32 256, 24
  %1337 = vbcast.lane.b32.xlu0 %v1323, %s1336
  %v1338 = vpop.permute.xlu0 %1337
  %v1339 = vlaneseq
  %v1340 = vshrl.u32 %v1339, 7
  %v1341 = vsub.s32 6, %v1340
  %v1342 = vrot.slane %v37, %v1341
  %v1343 = vlaneseq
  %v1344 = vshrl.u32 %v1343, 7
  %v1345 = vsub.s32 6, %v1344
  %v1346 = vrot.slane %v38, %v1345
  %v1347 = vlaneseq
  %v1348 = vshrl.u32 %v1347, 7
  %v1349 = vsub.s32 6, %v1348
  %v1350 = vrot.slane %v39, %v1349
  %v1351 = vlaneseq
  %v1352 = vshrl.u32 %v1351, 7
  %v1353 = vsub.s32 6, %v1352
  %v1354 = vrot.slane %v40, %v1353
  %v1355 = vlaneseq
  %v1356 = vshrl.u32 %v1355, 7
  %v1357 = vsub.s32 6, %v1356
  %v1358 = vrot.slane %v41, %v1357
  %v1359 = vlaneseq
  %v1360 = vshrl.u32 %v1359, 7
  %v1361 = vsub.s32 6, %v1360
  %v1362 = vrot.slane %v42, %v1361
  %v1363 = vlaneseq
  %v1364 = vshrl.u32 %v1363, 7
  %v1365 = vsub.s32 6, %v1364
  %v1366 = vrot.slane %v43, %v1365
  %v1367 = vlaneseq
  %v1368 = vshrl.u32 %v1367, 7
  %v1369 = vsub.s32 6, %v1368
  %v1370 = vrot.slane %v44, %v1369
  %v1371 = vlaneseq
  %v1372 = vshrl.u32 %v1371, 7
  %v1373 = vsub.s32 6, %v1372
  %v1374 = vrot.slane %v45, %v1373
  %v1375 = vlaneseq
  %v1376 = vshrl.u32 %v1375, 7
  %v1377 = vsub.s32 6, %v1376
  %v1378 = vrot.slane %v46, %v1377
  %v1379 = vlaneseq
  %v1380 = vshrl.u32 %v1379, 7
  %v1381 = vsub.s32 6, %v1380
  %v1382 = vrot.slane %v47, %v1381
  %v1383 = vlaneseq
  %v1384 = vshrl.u32 %v1383, 7
  %v1385 = vsub.s32 6, %v1384
  %v1386 = vrot.slane %v48, %v1385
  %v1387 = vlaneseq
  %v1388 = vshrl.u32 %v1387, 7
  %v1389 = vsub.s32 6, %v1388
  %v1390 = vrot.slane %v49, %v1389
  %v1391 = vlaneseq
  %v1392 = vshrl.u32 %v1391, 7
  %v1393 = vsub.s32 6, %v1392
  %v1394 = vrot.slane %v50, %v1393
  %v1395 = vlaneseq
  %v1396 = vshrl.u32 %v1395, 7
  %v1397 = vsub.s32 6, %v1396
  %v1398 = vrot.slane %v51, %v1397
  %v1399 = vlaneseq
  %v1400 = vshrl.u32 %v1399, 7
  %v1401 = vsub.s32 6, %v1400
  %v1402 = vrot.slane %v52, %v1401
  %v1403 = vmul.f32 %v1342, %v1326
  %v1404 = vmul.f32 %v1342, %v1330
  %v1405 = vmul.f32 %v1342, %v1334
  %v1406 = vmul.f32 %v1342, %v1338
  %v1407 = vmul.f32 %v1346, %v1326
  %v1408 = vmul.f32 %v1346, %v1330
  %v1409 = vmul.f32 %v1346, %v1334
  %v1410 = vmul.f32 %v1346, %v1338
  %v1411 = vmul.f32 %v1350, %v1326
  %v1412 = vmul.f32 %v1350, %v1330
  %v1413 = vmul.f32 %v1350, %v1334
  %v1414 = vmul.f32 %v1350, %v1338
  %v1415 = vmul.f32 %v1354, %v1326
  %v1416 = vmul.f32 %v1354, %v1330
  %v1417 = vmul.f32 %v1354, %v1334
  %v1418 = vmul.f32 %v1354, %v1338
  %v1419 = vmul.f32 %v1358, %v1326
  %v1420 = vmul.f32 %v1358, %v1330
  %v1421 = vmul.f32 %v1358, %v1334
  %v1422 = vmul.f32 %v1358, %v1338
  %v1423 = vmul.f32 %v1362, %v1326
  %v1424 = vmul.f32 %v1362, %v1330
  %v1425 = vmul.f32 %v1362, %v1334
  %v1426 = vmul.f32 %v1362, %v1338
  %v1427 = vmul.f32 %v1366, %v1326
  %v1428 = vmul.f32 %v1366, %v1330
  %v1429 = vmul.f32 %v1366, %v1334
  %v1430 = vmul.f32 %v1366, %v1338
  %v1431 = vmul.f32 %v1370, %v1326
  %v1432 = vmul.f32 %v1370, %v1330
  %v1433 = vmul.f32 %v1370, %v1334
  %v1434 = vmul.f32 %v1370, %v1338
  %v1435 = vmul.f32 %v1374, %v1326
  %v1436 = vmul.f32 %v1374, %v1330
  %v1437 = vmul.f32 %v1374, %v1334
  %v1438 = vmul.f32 %v1374, %v1338
  %v1439 = vmul.f32 %v1378, %v1326
  %v1440 = vmul.f32 %v1378, %v1330
  %v1441 = vmul.f32 %v1378, %v1334
  %v1442 = vmul.f32 %v1378, %v1338
  %v1443 = vmul.f32 %v1382, %v1326
  %v1444 = vmul.f32 %v1382, %v1330
  %v1445 = vmul.f32 %v1382, %v1334
  %v1446 = vmul.f32 %v1382, %v1338
  %v1447 = vmul.f32 %v1386, %v1326
  %v1448 = vmul.f32 %v1386, %v1330
  %v1449 = vmul.f32 %v1386, %v1334
  %v1450 = vmul.f32 %v1386, %v1338
  %v1451 = vmul.f32 %v1390, %v1326
  %v1452 = vmul.f32 %v1390, %v1330
  %v1453 = vmul.f32 %v1390, %v1334
  %v1454 = vmul.f32 %v1390, %v1338
  %v1455 = vmul.f32 %v1394, %v1326
  %v1456 = vmul.f32 %v1394, %v1330
  %v1457 = vmul.f32 %v1394, %v1334
  %v1458 = vmul.f32 %v1394, %v1338
  %v1459 = vmul.f32 %v1398, %v1326
  %v1460 = vmul.f32 %v1398, %v1330
  %v1461 = vmul.f32 %v1398, %v1334
  %v1462 = vmul.f32 %v1398, %v1338
  %v1463 = vmul.f32 %v1402, %v1326
  %v1464 = vmul.f32 %v1402, %v1330
  %v1465 = vmul.f32 %v1402, %v1334
  %v1466 = vmul.f32 %v1402, %v1338
  %v1467 = vadd.f32 %v1256, %v1403
  %v1468 = vadd.f32 %v1257, %v1404
  %v1469 = vadd.f32 %v1258, %v1405
  %v1470 = vadd.f32 %v1259, %v1406
  %v1471 = vadd.f32 %v1260, %v1407
  %v1472 = vadd.f32 %v1261, %v1408
  %v1473 = vadd.f32 %v1262, %v1409
  %v1474 = vadd.f32 %v1263, %v1410
  %v1475 = vadd.f32 %v1264, %v1411
  %v1476 = vadd.f32 %v1265, %v1412
  %v1477 = vadd.f32 %v1266, %v1413
  %v1478 = vadd.f32 %v1267, %v1414
  %v1479 = vadd.f32 %v1268, %v1415
  %v1480 = vadd.f32 %v1269, %v1416
  %v1481 = vadd.f32 %v1270, %v1417
  %v1482 = vadd.f32 %v1271, %v1418
  %v1483 = vadd.f32 %v1272, %v1419
  %v1484 = vadd.f32 %v1273, %v1420
  %v1485 = vadd.f32 %v1274, %v1421
  %v1486 = vadd.f32 %v1275, %v1422
  %v1487 = vadd.f32 %v1276, %v1423
  %v1488 = vadd.f32 %v1277, %v1424
  %v1489 = vadd.f32 %v1278, %v1425
  %v1490 = vadd.f32 %v1279, %v1426
  %v1491 = vadd.f32 %v1280, %v1427
  %v1492 = vadd.f32 %v1281, %v1428
  %v1493 = vadd.f32 %v1282, %v1429
  %v1494 = vadd.f32 %v1283, %v1430
  %v1495 = vadd.f32 %v1284, %v1431
  %v1496 = vadd.f32 %v1285, %v1432
  %v1497 = vadd.f32 %v1286, %v1433
  %v1498 = vadd.f32 %v1287, %v1434
  %v1499 = vadd.f32 %v1288, %v1435
  %v1500 = vadd.f32 %v1289, %v1436
  %v1501 = vadd.f32 %v1290, %v1437
  %v1502 = vadd.f32 %v1291, %v1438
  %v1503 = vadd.f32 %v1292, %v1439
  %v1504 = vadd.f32 %v1293, %v1440
  %v1505 = vadd.f32 %v1294, %v1441
  %v1506 = vadd.f32 %v1295, %v1442
  %v1507 = vadd.f32 %v1296, %v1443
  %v1508 = vadd.f32 %v1297, %v1444
  %v1509 = vadd.f32 %v1298, %v1445
  %v1510 = vadd.f32 %v1299, %v1446
  %v1511 = vadd.f32 %v1300, %v1447
  %v1512 = vadd.f32 %v1301, %v1448
  %v1513 = vadd.f32 %v1302, %v1449
  %v1514 = vadd.f32 %v1303, %v1450
  %v1515 = vadd.f32 %v1304, %v1451
  %v1516 = vadd.f32 %v1305, %v1452
  %v1517 = vadd.f32 %v1306, %v1453
  %v1518 = vadd.f32 %v1307, %v1454
  %v1519 = vadd.f32 %v1308, %v1455
  %v1520 = vadd.f32 %v1309, %v1456
  %v1521 = vadd.f32 %v1310, %v1457
  %v1522 = vadd.f32 %v1311, %v1458
  %v1523 = vadd.f32 %v1312, %v1459
  %v1524 = vadd.f32 %v1313, %v1460
  %v1525 = vadd.f32 %v1314, %v1461
  %v1526 = vadd.f32 %v1315, %v1462
  %v1527 = vadd.f32 %v1316, %v1463
  %v1528 = vadd.f32 %v1317, %v1464
  %v1529 = vadd.f32 %v1318, %v1465
  %v1530 = vadd.f32 %v1319, %v1466
  %v1531 = vlaneseq
  %v1532 = vshrl.u32 %v1531, 7
  %v1533 = vsub.s32 7, %v1532
  %v1534 = vrot.slane %v53, %v1533
  %1536 = vbcast.lane.b32.xlu0 %v1534, 256
  %v1537 = vpop.permute.xlu0 %1536
  %s1539 = sor.u32 256, 8
  %1540 = vbcast.lane.b32.xlu0 %v1534, %s1539
  %v1541 = vpop.permute.xlu0 %1540
  %s1543 = sor.u32 256, 16
  %1544 = vbcast.lane.b32.xlu0 %v1534, %s1543
  %v1545 = vpop.permute.xlu0 %1544
  %s1547 = sor.u32 256, 24
  %1548 = vbcast.lane.b32.xlu0 %v1534, %s1547
  %v1549 = vpop.permute.xlu0 %1548
  %v1550 = vlaneseq
  %v1551 = vshrl.u32 %v1550, 7
  %v1552 = vsub.s32 7, %v1551
  %v1553 = vrot.slane %v37, %v1552
  %v1554 = vlaneseq
  %v1555 = vshrl.u32 %v1554, 7
  %v1556 = vsub.s32 7, %v1555
  %v1557 = vrot.slane %v38, %v1556
  %v1558 = vlaneseq
  %v1559 = vshrl.u32 %v1558, 7
  %v1560 = vsub.s32 7, %v1559
  %v1561 = vrot.slane %v39, %v1560
  %v1562 = vlaneseq
  %v1563 = vshrl.u32 %v1562, 7
  %v1564 = vsub.s32 7, %v1563
  %v1565 = vrot.slane %v40, %v1564
  %v1566 = vlaneseq
  %v1567 = vshrl.u32 %v1566, 7
  %v1568 = vsub.s32 7, %v1567
  %v1569 = vrot.slane %v41, %v1568
  %v1570 = vlaneseq
  %v1571 = vshrl.u32 %v1570, 7
  %v1572 = vsub.s32 7, %v1571
  %v1573 = vrot.slane %v42, %v1572
  %v1574 = vlaneseq
  %v1575 = vshrl.u32 %v1574, 7
  %v1576 = vsub.s32 7, %v1575
  %v1577 = vrot.slane %v43, %v1576
  %v1578 = vlaneseq
  %v1579 = vshrl.u32 %v1578, 7
  %v1580 = vsub.s32 7, %v1579
  %v1581 = vrot.slane %v44, %v1580
  %v1582 = vlaneseq
  %v1583 = vshrl.u32 %v1582, 7
  %v1584 = vsub.s32 7, %v1583
  %v1585 = vrot.slane %v45, %v1584
  %v1586 = vlaneseq
  %v1587 = vshrl.u32 %v1586, 7
  %v1588 = vsub.s32 7, %v1587
  %v1589 = vrot.slane %v46, %v1588
  %v1590 = vlaneseq
  %v1591 = vshrl.u32 %v1590, 7
  %v1592 = vsub.s32 7, %v1591
  %v1593 = vrot.slane %v47, %v1592
  %v1594 = vlaneseq
  %v1595 = vshrl.u32 %v1594, 7
  %v1596 = vsub.s32 7, %v1595
  %v1597 = vrot.slane %v48, %v1596
  %v1598 = vlaneseq
  %v1599 = vshrl.u32 %v1598, 7
  %v1600 = vsub.s32 7, %v1599
  %v1601 = vrot.slane %v49, %v1600
  %v1602 = vlaneseq
  %v1603 = vshrl.u32 %v1602, 7
  %v1604 = vsub.s32 7, %v1603
  %v1605 = vrot.slane %v50, %v1604
  %v1606 = vlaneseq
  %v1607 = vshrl.u32 %v1606, 7
  %v1608 = vsub.s32 7, %v1607
  %v1609 = vrot.slane %v51, %v1608
  %v1610 = vlaneseq
  %v1611 = vshrl.u32 %v1610, 7
  %v1612 = vsub.s32 7, %v1611
  %v1613 = vrot.slane %v52, %v1612
  %v1614 = vmul.f32 %v1553, %v1537
  %v1615 = vmul.f32 %v1553, %v1541
  %v1616 = vmul.f32 %v1553, %v1545
  %v1617 = vmul.f32 %v1553, %v1549
  %v1618 = vmul.f32 %v1557, %v1537
  %v1619 = vmul.f32 %v1557, %v1541
  %v1620 = vmul.f32 %v1557, %v1545
  %v1621 = vmul.f32 %v1557, %v1549
  %v1622 = vmul.f32 %v1561, %v1537
  %v1623 = vmul.f32 %v1561, %v1541
  %v1624 = vmul.f32 %v1561, %v1545
  %v1625 = vmul.f32 %v1561, %v1549
  %v1626 = vmul.f32 %v1565, %v1537
  %v1627 = vmul.f32 %v1565, %v1541
  %v1628 = vmul.f32 %v1565, %v1545
  %v1629 = vmul.f32 %v1565, %v1549
  %v1630 = vmul.f32 %v1569, %v1537
  %v1631 = vmul.f32 %v1569, %v1541
  %v1632 = vmul.f32 %v1569, %v1545
  %v1633 = vmul.f32 %v1569, %v1549
  %v1634 = vmul.f32 %v1573, %v1537
  %v1635 = vmul.f32 %v1573, %v1541
  %v1636 = vmul.f32 %v1573, %v1545
  %v1637 = vmul.f32 %v1573, %v1549
  %v1638 = vmul.f32 %v1577, %v1537
  %v1639 = vmul.f32 %v1577, %v1541
  %v1640 = vmul.f32 %v1577, %v1545
  %v1641 = vmul.f32 %v1577, %v1549
  %v1642 = vmul.f32 %v1581, %v1537
  %v1643 = vmul.f32 %v1581, %v1541
  %v1644 = vmul.f32 %v1581, %v1545
  %v1645 = vmul.f32 %v1581, %v1549
  %v1646 = vmul.f32 %v1585, %v1537
  %v1647 = vmul.f32 %v1585, %v1541
  %v1648 = vmul.f32 %v1585, %v1545
  %v1649 = vmul.f32 %v1585, %v1549
  %v1650 = vmul.f32 %v1589, %v1537
  %v1651 = vmul.f32 %v1589, %v1541
  %v1652 = vmul.f32 %v1589, %v1545
  %v1653 = vmul.f32 %v1589, %v1549
  %v1654 = vmul.f32 %v1593, %v1537
  %v1655 = vmul.f32 %v1593, %v1541
  %v1656 = vmul.f32 %v1593, %v1545
  %v1657 = vmul.f32 %v1593, %v1549
  %v1658 = vmul.f32 %v1597, %v1537
  %v1659 = vmul.f32 %v1597, %v1541
  %v1660 = vmul.f32 %v1597, %v1545
  %v1661 = vmul.f32 %v1597, %v1549
  %v1662 = vmul.f32 %v1601, %v1537
  %v1663 = vmul.f32 %v1601, %v1541
  %v1664 = vmul.f32 %v1601, %v1545
  %v1665 = vmul.f32 %v1601, %v1549
  %v1666 = vmul.f32 %v1605, %v1537
  %v1667 = vmul.f32 %v1605, %v1541
  %v1668 = vmul.f32 %v1605, %v1545
  %v1669 = vmul.f32 %v1605, %v1549
  %v1670 = vmul.f32 %v1609, %v1537
  %v1671 = vmul.f32 %v1609, %v1541
  %v1672 = vmul.f32 %v1609, %v1545
  %v1673 = vmul.f32 %v1609, %v1549
  %v1674 = vmul.f32 %v1613, %v1537
  %v1675 = vmul.f32 %v1613, %v1541
  %v1676 = vmul.f32 %v1613, %v1545
  %v1677 = vmul.f32 %v1613, %v1549
  %v1678 = vadd.f32 %v1467, %v1614
  %v1679 = vadd.f32 %v1468, %v1615
  %v1680 = vadd.f32 %v1469, %v1616
  %v1681 = vadd.f32 %v1470, %v1617
  %v1682 = vadd.f32 %v1471, %v1618
  %v1683 = vadd.f32 %v1472, %v1619
  %v1684 = vadd.f32 %v1473, %v1620
  %v1685 = vadd.f32 %v1474, %v1621
  %v1686 = vadd.f32 %v1475, %v1622
  %v1687 = vadd.f32 %v1476, %v1623
  %v1688 = vadd.f32 %v1477, %v1624
  %v1689 = vadd.f32 %v1478, %v1625
  %v1690 = vadd.f32 %v1479, %v1626
  %v1691 = vadd.f32 %v1480, %v1627
  %v1692 = vadd.f32 %v1481, %v1628
  %v1693 = vadd.f32 %v1482, %v1629
  %v1694 = vadd.f32 %v1483, %v1630
  %v1695 = vadd.f32 %v1484, %v1631
  %v1696 = vadd.f32 %v1485, %v1632
  %v1697 = vadd.f32 %v1486, %v1633
  %v1698 = vadd.f32 %v1487, %v1634
  %v1699 = vadd.f32 %v1488, %v1635
  %v1700 = vadd.f32 %v1489, %v1636
  %v1701 = vadd.f32 %v1490, %v1637
  %v1702 = vadd.f32 %v1491, %v1638
  %v1703 = vadd.f32 %v1492, %v1639
  %v1704 = vadd.f32 %v1493, %v1640
  %v1705 = vadd.f32 %v1494, %v1641
  %v1706 = vadd.f32 %v1495, %v1642
  %v1707 = vadd.f32 %v1496, %v1643
  %v1708 = vadd.f32 %v1497, %v1644
  %v1709 = vadd.f32 %v1498, %v1645
  %v1710 = vadd.f32 %v1499, %v1646
  %v1711 = vadd.f32 %v1500, %v1647
  %v1712 = vadd.f32 %v1501, %v1648
  %v1713 = vadd.f32 %v1502, %v1649
  %v1714 = vadd.f32 %v1503, %v1650
  %v1715 = vadd.f32 %v1504, %v1651
  %v1716 = vadd.f32 %v1505, %v1652
  %v1717 = vadd.f32 %v1506, %v1653
  %v1718 = vadd.f32 %v1507, %v1654
  %v1719 = vadd.f32 %v1508, %v1655
  %v1720 = vadd.f32 %v1509, %v1656
  %v1721 = vadd.f32 %v1510, %v1657
  %v1722 = vadd.f32 %v1511, %v1658
  %v1723 = vadd.f32 %v1512, %v1659
  %v1724 = vadd.f32 %v1513, %v1660
  %v1725 = vadd.f32 %v1514, %v1661
  %v1726 = vadd.f32 %v1515, %v1662
  %v1727 = vadd.f32 %v1516, %v1663
  %v1728 = vadd.f32 %v1517, %v1664
  %v1729 = vadd.f32 %v1518, %v1665
  %v1730 = vadd.f32 %v1519, %v1666
  %v1731 = vadd.f32 %v1520, %v1667
  %v1732 = vadd.f32 %v1521, %v1668
  %v1733 = vadd.f32 %v1522, %v1669
  %v1734 = vadd.f32 %v1523, %v1670
  %v1735 = vadd.f32 %v1524, %v1671
  %v1736 = vadd.f32 %v1525, %v1672
  %v1737 = vadd.f32 %v1526, %v1673
  %v1738 = vadd.f32 %v1527, %v1674
  %v1739 = vadd.f32 %v1528, %v1675
  %v1740 = vadd.f32 %v1529, %v1676
  %v1741 = vadd.f32 %v1530, %v1677
  %v1742 = vmul.f32 %v1678, 0.5
  %v1743 = vmul.f32 %v1679, 0.5
  %v1744 = vmul.f32 %v1680, 0.5
  %v1745 = vmul.f32 %v1681, 0.5
  %v1746 = vmul.f32 %v1682, 0.5
  %v1747 = vmul.f32 %v1683, 0.5
  %v1748 = vmul.f32 %v1684, 0.5
  %v1749 = vmul.f32 %v1685, 0.5
  %v1750 = vmul.f32 %v1686, 0.5
  %v1751 = vmul.f32 %v1687, 0.5
  %v1752 = vmul.f32 %v1688, 0.5
  %v1753 = vmul.f32 %v1689, 0.5
  %v1754 = vmul.f32 %v1690, 0.5
  %v1755 = vmul.f32 %v1691, 0.5
  %v1756 = vmul.f32 %v1692, 0.5
  %v1757 = vmul.f32 %v1693, 0.5
  %v1758 = vmul.f32 %v1694, 0.5
  %v1759 = vmul.f32 %v1695, 0.5
  %v1760 = vmul.f32 %v1696, 0.5
  %v1761 = vmul.f32 %v1697, 0.5
  %v1762 = vmul.f32 %v1698, 0.5
  %v1763 = vmul.f32 %v1699, 0.5
  %v1764 = vmul.f32 %v1700, 0.5
  %v1765 = vmul.f32 %v1701, 0.5
  %v1766 = vmul.f32 %v1702, 0.5
  %v1767 = vmul.f32 %v1703, 0.5
  %v1768 = vmul.f32 %v1704, 0.5
  %v1769 = vmul.f32 %v1705, 0.5
  %v1770 = vmul.f32 %v1706, 0.5
  %v1771 = vmul.f32 %v1707, 0.5
  %v1772 = vmul.f32 %v1708, 0.5
  %v1773 = vmul.f32 %v1709, 0.5
  %v1774 = vmul.f32 %v1710, 0.5
  %v1775 = vmul.f32 %v1711, 0.5
  %v1776 = vmul.f32 %v1712, 0.5
  %v1777 = vmul.f32 %v1713, 0.5
  %v1778 = vmul.f32 %v1714, 0.5
  %v1779 = vmul.f32 %v1715, 0.5
  %v1780 = vmul.f32 %v1716, 0.5
  %v1781 = vmul.f32 %v1717, 0.5
  %v1782 = vmul.f32 %v1718, 0.5
  %v1783 = vmul.f32 %v1719, 0.5
  %v1784 = vmul.f32 %v1720, 0.5
  %v1785 = vmul.f32 %v1721, 0.5
  %v1786 = vmul.f32 %v1722, 0.5
  %v1787 = vmul.f32 %v1723, 0.5
  %v1788 = vmul.f32 %v1724, 0.5
  %v1789 = vmul.f32 %v1725, 0.5
  %v1790 = vmul.f32 %v1726, 0.5
  %v1791 = vmul.f32 %v1727, 0.5
  %v1792 = vmul.f32 %v1728, 0.5
  %v1793 = vmul.f32 %v1729, 0.5
  %v1794 = vmul.f32 %v1730, 0.5
  %v1795 = vmul.f32 %v1731, 0.5
  %v1796 = vmul.f32 %v1732, 0.5
  %v1797 = vmul.f32 %v1733, 0.5
  %v1798 = vmul.f32 %v1734, 0.5
  %v1799 = vmul.f32 %v1735, 0.5
  %v1800 = vmul.f32 %v1736, 0.5
  %v1801 = vmul.f32 %v1737, 0.5
  %v1802 = vmul.f32 %v1738, 0.5
  %v1803 = vmul.f32 %v1739, 0.5
  %v1804 = vmul.f32 %v1740, 0.5
  %v1805 = vmul.f32 %v1741, 0.5
  %v1806 = vrcp.pop 1.4142135
  %v1807 = vmul.f32 %v1678, %v1806
  %v1808 = vmul.f32 %v1679, %v1806
  %v1809 = vmul.f32 %v1680, %v1806
  %v1810 = vmul.f32 %v1681, %v1806
  %v1811 = vmul.f32 %v1682, %v1806
  %v1812 = vmul.f32 %v1683, %v1806
  %v1813 = vmul.f32 %v1684, %v1806
  %v1814 = vmul.f32 %v1685, %v1806
  %v1815 = vmul.f32 %v1686, %v1806
  %v1816 = vmul.f32 %v1687, %v1806
  %v1817 = vmul.f32 %v1688, %v1806
  %v1818 = vmul.f32 %v1689, %v1806
  %v1819 = vmul.f32 %v1690, %v1806
  %v1820 = vmul.f32 %v1691, %v1806
  %v1821 = vmul.f32 %v1692, %v1806
  %v1822 = vmul.f32 %v1693, %v1806
  %v1823 = vmul.f32 %v1694, %v1806
  %v1824 = vmul.f32 %v1695, %v1806
  %v1825 = vmul.f32 %v1696, %v1806
  %v1826 = vmul.f32 %v1697, %v1806
  %v1827 = vmul.f32 %v1698, %v1806
  %v1828 = vmul.f32 %v1699, %v1806
  %v1829 = vmul.f32 %v1700, %v1806
  %v1830 = vmul.f32 %v1701, %v1806
  %v1831 = vmul.f32 %v1702, %v1806
  %v1832 = vmul.f32 %v1703, %v1806
  %v1833 = vmul.f32 %v1704, %v1806
  %v1834 = vmul.f32 %v1705, %v1806
  %v1835 = vmul.f32 %v1706, %v1806
  %v1836 = vmul.f32 %v1707, %v1806
  %v1837 = vmul.f32 %v1708, %v1806
  %v1838 = vmul.f32 %v1709, %v1806
  %v1839 = vmul.f32 %v1710, %v1806
  %v1840 = vmul.f32 %v1711, %v1806
  %v1841 = vmul.f32 %v1712, %v1806
  %v1842 = vmul.f32 %v1713, %v1806
  %v1843 = vmul.f32 %v1714, %v1806
  %v1844 = vmul.f32 %v1715, %v1806
  %v1845 = vmul.f32 %v1716, %v1806
  %v1846 = vmul.f32 %v1717, %v1806
  %v1847 = vmul.f32 %v1718, %v1806
  %v1848 = vmul.f32 %v1719, %v1806
  %v1849 = vmul.f32 %v1720, %v1806
  %v1850 = vmul.f32 %v1721, %v1806
  %v1851 = vmul.f32 %v1722, %v1806
  %v1852 = vmul.f32 %v1723, %v1806
  %v1853 = vmul.f32 %v1724, %v1806
  %v1854 = vmul.f32 %v1725, %v1806
  %v1855 = vmul.f32 %v1726, %v1806
  %v1856 = vmul.f32 %v1727, %v1806
  %v1857 = vmul.f32 %v1728, %v1806
  %v1858 = vmul.f32 %v1729, %v1806
  %v1859 = vmul.f32 %v1730, %v1806
  %v1860 = vmul.f32 %v1731, %v1806
  %v1861 = vmul.f32 %v1732, %v1806
  %v1862 = vmul.f32 %v1733, %v1806
  %v1863 = vmul.f32 %v1734, %v1806
  %v1864 = vmul.f32 %v1735, %v1806
  %v1865 = vmul.f32 %v1736, %v1806
  %v1866 = vmul.f32 %v1737, %v1806
  %v1867 = vmul.f32 %v1738, %v1806
  %v1868 = vmul.f32 %v1739, %v1806
  %v1869 = vmul.f32 %v1740, %v1806
  %v1870 = vmul.f32 %v1741, %v1806
  %v1871 = verf.f32.pop %v1807
  %v1872 = verf.f32.pop %v1808
  %v1873 = verf.f32.pop %v1809
  %v1874 = verf.f32.pop %v1810
  %v1875 = verf.f32.pop %v1811
  %v1876 = verf.f32.pop %v1812
  %v1877 = verf.f32.pop %v1813
  %v1878 = verf.f32.pop %v1814
  %v1879 = verf.f32.pop %v1815
  %v1880 = verf.f32.pop %v1816
  %v1881 = verf.f32.pop %v1817
  %v1882 = verf.f32.pop %v1818
  %v1883 = verf.f32.pop %v1819
  %v1884 = verf.f32.pop %v1820
  %v1885 = verf.f32.pop %v1821
  %v1886 = verf.f32.pop %v1822
  %v1887 = verf.f32.pop %v1823
  %v1888 = verf.f32.pop %v1824
  %v1889 = verf.f32.pop %v1825
  %v1890 = verf.f32.pop %v1826
  %v1891 = verf.f32.pop %v1827
  %v1892 = verf.f32.pop %v1828
  %v1893 = verf.f32.pop %v1829
  %v1894 = verf.f32.pop %v1830
  %v1895 = verf.f32.pop %v1831
  %v1896 = verf.f32.pop %v1832
  %v1897 = verf.f32.pop %v1833
  %v1898 = verf.f32.pop %v1834
  %v1899 = verf.f32.pop %v1835
  %v1900 = verf.f32.pop %v1836
  %v1901 = verf.f32.pop %v1837
  %v1902 = verf.f32.pop %v1838
  %v1903 = verf.f32.pop %v1839
  %v1904 = verf.f32.pop %v1840
  %v1905 = verf.f32.pop %v1841
  %v1906 = verf.f32.pop %v1842
  %v1907 = verf.f32.pop %v1843
  %v1908 = verf.f32.pop %v1844
  %v1909 = verf.f32.pop %v1845
  %v1910 = verf.f32.pop %v1846
  %v1911 = verf.f32.pop %v1847
  %v1912 = verf.f32.pop %v1848
  %v1913 = verf.f32.pop %v1849
  %v1914 = verf.f32.pop %v1850
  %v1915 = verf.f32.pop %v1851
  %v1916 = verf.f32.pop %v1852
  %v1917 = verf.f32.pop %v1853
  %v1918 = verf.f32.pop %v1854
  %v1919 = verf.f32.pop %v1855
  %v1920 = verf.f32.pop %v1856
  %v1921 = verf.f32.pop %v1857
  %v1922 = verf.f32.pop %v1858
  %v1923 = verf.f32.pop %v1859
  %v1924 = verf.f32.pop %v1860
  %v1925 = verf.f32.pop %v1861
  %v1926 = verf.f32.pop %v1862
  %v1927 = verf.f32.pop %v1863
  %v1928 = verf.f32.pop %v1864
  %v1929 = verf.f32.pop %v1865
  %v1930 = verf.f32.pop %v1866
  %v1931 = verf.f32.pop %v1867
  %v1932 = verf.f32.pop %v1868
  %v1933 = verf.f32.pop %v1869
  %v1934 = verf.f32.pop %v1870
  %v1935 = vadd.f32 %v1871, 1.0
  %v1936 = vadd.f32 %v1872, 1.0
  %v1937 = vadd.f32 %v1873, 1.0
  %v1938 = vadd.f32 %v1874, 1.0
  %v1939 = vadd.f32 %v1875, 1.0
  %v1940 = vadd.f32 %v1876, 1.0
  %v1941 = vadd.f32 %v1877, 1.0
  %v1942 = vadd.f32 %v1878, 1.0
  %v1943 = vadd.f32 %v1879, 1.0
  %v1944 = vadd.f32 %v1880, 1.0
  %v1945 = vadd.f32 %v1881, 1.0
  %v1946 = vadd.f32 %v1882, 1.0
  %v1947 = vadd.f32 %v1883, 1.0
  %v1948 = vadd.f32 %v1884, 1.0
  %v1949 = vadd.f32 %v1885, 1.0
  %v1950 = vadd.f32 %v1886, 1.0
  %v1951 = vadd.f32 %v1887, 1.0
  %v1952 = vadd.f32 %v1888, 1.0
  %v1953 = vadd.f32 %v1889, 1.0
  %v1954 = vadd.f32 %v1890, 1.0
  %v1955 = vadd.f32 %v1891, 1.0
  %v1956 = vadd.f32 %v1892, 1.0
  %v1957 = vadd.f32 %v1893, 1.0
  %v1958 = vadd.f32 %v1894, 1.0
  %v1959 = vadd.f32 %v1895, 1.0
  %v1960 = vadd.f32 %v1896, 1.0
  %v1961 = vadd.f32 %v1897, 1.0
  %v1962 = vadd.f32 %v1898, 1.0
  %v1963 = vadd.f32 %v1899, 1.0
  %v1964 = vadd.f32 %v1900, 1.0
  %v1965 = vadd.f32 %v1901, 1.0
  %v1966 = vadd.f32 %v1902, 1.0
  %v1967 = vadd.f32 %v1903, 1.0
  %v1968 = vadd.f32 %v1904, 1.0
  %v1969 = vadd.f32 %v1905, 1.0
  %v1970 = vadd.f32 %v1906, 1.0
  %v1971 = vadd.f32 %v1907, 1.0
  %v1972 = vadd.f32 %v1908, 1.0
  %v1973 = vadd.f32 %v1909, 1.0
  %v1974 = vadd.f32 %v1910, 1.0
  %v1975 = vadd.f32 %v1911, 1.0
  %v1976 = vadd.f32 %v1912, 1.0
  %v1977 = vadd.f32 %v1913, 1.0
  %v1978 = vadd.f32 %v1914, 1.0
  %v1979 = vadd.f32 %v1915, 1.0
  %v1980 = vadd.f32 %v1916, 1.0
  %v1981 = vadd.f32 %v1917, 1.0
  %v1982 = vadd.f32 %v1918, 1.0
  %v1983 = vadd.f32 %v1919, 1.0
  %v1984 = vadd.f32 %v1920, 1.0
  %v1985 = vadd.f32 %v1921, 1.0
  %v1986 = vadd.f32 %v1922, 1.0
  %v1987 = vadd.f32 %v1923, 1.0
  %v1988 = vadd.f32 %v1924, 1.0
  %v1989 = vadd.f32 %v1925, 1.0
  %v1990 = vadd.f32 %v1926, 1.0
  %v1991 = vadd.f32 %v1927, 1.0
  %v1992 = vadd.f32 %v1928, 1.0
  %v1993 = vadd.f32 %v1929, 1.0
  %v1994 = vadd.f32 %v1930, 1.0
  %v1995 = vadd.f32 %v1931, 1.0
  %v1996 = vadd.f32 %v1932, 1.0
  %v1997 = vadd.f32 %v1933, 1.0
  %v1998 = vadd.f32 %v1934, 1.0
  %v1999 = vmul.f32 %v1742, %v1935
  %v2000 = vmul.f32 %v1743, %v1936
  %v2001 = vmul.f32 %v1744, %v1937
  %v2002 = vmul.f32 %v1745, %v1938
  %v2003 = vmul.f32 %v1746, %v1939
  %v2004 = vmul.f32 %v1747, %v1940
  %v2005 = vmul.f32 %v1748, %v1941
  %v2006 = vmul.f32 %v1749, %v1942
  %v2007 = vmul.f32 %v1750, %v1943
  %v2008 = vmul.f32 %v1751, %v1944
  %v2009 = vmul.f32 %v1752, %v1945
  %v2010 = vmul.f32 %v1753, %v1946
  %v2011 = vmul.f32 %v1754, %v1947
  %v2012 = vmul.f32 %v1755, %v1948
  %v2013 = vmul.f32 %v1756, %v1949
  %v2014 = vmul.f32 %v1757, %v1950
  %v2015 = vmul.f32 %v1758, %v1951
  %v2016 = vmul.f32 %v1759, %v1952
  %v2017 = vmul.f32 %v1760, %v1953
  %v2018 = vmul.f32 %v1761, %v1954
  %v2019 = vmul.f32 %v1762, %v1955
  %v2020 = vmul.f32 %v1763, %v1956
  %v2021 = vmul.f32 %v1764, %v1957
  %v2022 = vmul.f32 %v1765, %v1958
  %v2023 = vmul.f32 %v1766, %v1959
  %v2024 = vmul.f32 %v1767, %v1960
  %v2025 = vmul.f32 %v1768, %v1961
  %v2026 = vmul.f32 %v1769, %v1962
  %v2027 = vmul.f32 %v1770, %v1963
  %v2028 = vmul.f32 %v1771, %v1964
  %v2029 = vmul.f32 %v1772, %v1965
  %v2030 = vmul.f32 %v1773, %v1966
  %v2031 = vmul.f32 %v1774, %v1967
  %v2032 = vmul.f32 %v1775, %v1968
  %v2033 = vmul.f32 %v1776, %v1969
  %v2034 = vmul.f32 %v1777, %v1970
  %v2035 = vmul.f32 %v1778, %v1971
  %v2036 = vmul.f32 %v1779, %v1972
  %v2037 = vmul.f32 %v1780, %v1973
  %v2038 = vmul.f32 %v1781, %v1974
  %v2039 = vmul.f32 %v1782, %v1975
  %v2040 = vmul.f32 %v1783, %v1976
  %v2041 = vmul.f32 %v1784, %v1977
  %v2042 = vmul.f32 %v1785, %v1978
  %v2043 = vmul.f32 %v1786, %v1979
  %v2044 = vmul.f32 %v1787, %v1980
  %v2045 = vmul.f32 %v1788, %v1981
  %v2046 = vmul.f32 %v1789, %v1982
  %v2047 = vmul.f32 %v1790, %v1983
  %v2048 = vmul.f32 %v1791, %v1984
  %v2049 = vmul.f32 %v1792, %v1985
  %v2050 = vmul.f32 %v1793, %v1986
  %v2051 = vmul.f32 %v1794, %v1987
  %v2052 = vmul.f32 %v1795, %v1988
  %v2053 = vmul.f32 %v1796, %v1989
  %v2054 = vmul.f32 %v1797, %v1990
  %v2055 = vmul.f32 %v1798, %v1991
  %v2056 = vmul.f32 %v1799, %v1992
  %v2057 = vmul.f32 %v1800, %v1993
  %v2058 = vmul.f32 %v1801, %v1994
  %v2059 = vmul.f32 %v1802, %v1995
  %v2060 = vmul.f32 %v1803, %v1996
  %v2061 = vmul.f32 %v1804, %v1997
  %v2062 = vmul.f32 %v1805, %v1998
  %v2063 = vld [vmem:[%s3] sm:$0x1]
  %v2064 = vlaneseq
  %v2065 = vshrl.u32 %v2064, 7
  %v2066 = vsub.s32 0, %v2065
  %v2067 = vrot.slane %v2063, %v2066
  %2069 = vbcast.lane.b32.xlu0 %v2067, 256
  %v2070 = vpop.permute.xlu0 %2069
  %s2072 = sor.u32 256, 8
  %2073 = vbcast.lane.b32.xlu0 %v2067, %s2072
  %v2074 = vpop.permute.xlu0 %2073
  %s2076 = sor.u32 256, 16
  %2077 = vbcast.lane.b32.xlu0 %v2067, %s2076
  %v2078 = vpop.permute.xlu0 %2077
  %s2080 = sor.u32 256, 24
  %2081 = vbcast.lane.b32.xlu0 %v2067, %s2080
  %v2082 = vpop.permute.xlu0 %2081
  %v2083 = vmul.f32 %v1999, %v2070
  %v2084 = vmul.f32 %v2000, %v2074
  %v2085 = vmul.f32 %v2001, %v2078
  %v2086 = vmul.f32 %v2002, %v2082
  %v2087 = vmul.f32 %v2003, %v2070
  %v2088 = vmul.f32 %v2004, %v2074
  %v2089 = vmul.f32 %v2005, %v2078
  %v2090 = vmul.f32 %v2006, %v2082
  %v2091 = vmul.f32 %v2007, %v2070
  %v2092 = vmul.f32 %v2008, %v2074
  %v2093 = vmul.f32 %v2009, %v2078
  %v2094 = vmul.f32 %v2010, %v2082
  %v2095 = vmul.f32 %v2011, %v2070
  %v2096 = vmul.f32 %v2012, %v2074
  %v2097 = vmul.f32 %v2013, %v2078
  %v2098 = vmul.f32 %v2014, %v2082
  %v2099 = vmul.f32 %v2015, %v2070
  %v2100 = vmul.f32 %v2016, %v2074
  %v2101 = vmul.f32 %v2017, %v2078
  %v2102 = vmul.f32 %v2018, %v2082
  %v2103 = vmul.f32 %v2019, %v2070
  %v2104 = vmul.f32 %v2020, %v2074
  %v2105 = vmul.f32 %v2021, %v2078
  %v2106 = vmul.f32 %v2022, %v2082
  %v2107 = vmul.f32 %v2023, %v2070
  %v2108 = vmul.f32 %v2024, %v2074
  %v2109 = vmul.f32 %v2025, %v2078
  %v2110 = vmul.f32 %v2026, %v2082
  %v2111 = vmul.f32 %v2027, %v2070
  %v2112 = vmul.f32 %v2028, %v2074
  %v2113 = vmul.f32 %v2029, %v2078
  %v2114 = vmul.f32 %v2030, %v2082
  %v2115 = vmul.f32 %v2031, %v2070
  %v2116 = vmul.f32 %v2032, %v2074
  %v2117 = vmul.f32 %v2033, %v2078
  %v2118 = vmul.f32 %v2034, %v2082
  %v2119 = vmul.f32 %v2035, %v2070
  %v2120 = vmul.f32 %v2036, %v2074
  %v2121 = vmul.f32 %v2037, %v2078
  %v2122 = vmul.f32 %v2038, %v2082
  %v2123 = vmul.f32 %v2039, %v2070
  %v2124 = vmul.f32 %v2040, %v2074
  %v2125 = vmul.f32 %v2041, %v2078
  %v2126 = vmul.f32 %v2042, %v2082
  %v2127 = vmul.f32 %v2043, %v2070
  %v2128 = vmul.f32 %v2044, %v2074
  %v2129 = vmul.f32 %v2045, %v2078
  %v2130 = vmul.f32 %v2046, %v2082
  %v2131 = vmul.f32 %v2047, %v2070
  %v2132 = vmul.f32 %v2048, %v2074
  %v2133 = vmul.f32 %v2049, %v2078
  %v2134 = vmul.f32 %v2050, %v2082
  %v2135 = vmul.f32 %v2051, %v2070
  %v2136 = vmul.f32 %v2052, %v2074
  %v2137 = vmul.f32 %v2053, %v2078
  %v2138 = vmul.f32 %v2054, %v2082
  %v2139 = vmul.f32 %v2055, %v2070
  %v2140 = vmul.f32 %v2056, %v2074
  %v2141 = vmul.f32 %v2057, %v2078
  %v2142 = vmul.f32 %v2058, %v2082
  %v2143 = vmul.f32 %v2059, %v2070
  %v2144 = vmul.f32 %v2060, %v2074
  %v2145 = vmul.f32 %v2061, %v2078
  %v2146 = vmul.f32 %v2062, %v2082
  %vm2147 = vcmask 130048
  %v2148 = vsel %vm2147, %v2083, 0.0
  %v2149 = vsel %vm2147, %v2084, 0.0
  %v2150 = vadd.f32 %v2148, %v2149
  %v2151 = vsel %vm2147, %v2085, 0.0
  %v2152 = vadd.f32 %v2150, %v2151
  %v2153 = vsel %vm2147, %v2086, 0.0
  %v2154 = vadd.f32 %v2152, %v2153
  %v2155 = vrot.slane %v2154, 4
  %v2156 = vadd.f32 %v2154, %v2155
  %v2157 = vrot.slane %v2156, 2
  %v2158 = vadd.f32 %v2156, %v2157
  %v2159 = vrot.slane %v2158, 1
  %v2160 = vadd.f32 %v2158, %v2159
  %v2161 = vsel %vm2147, %v2087, 0.0
  %v2162 = vsel %vm2147, %v2088, 0.0
  %v2163 = vadd.f32 %v2161, %v2162
  %v2164 = vsel %vm2147, %v2089, 0.0
  %v2165 = vadd.f32 %v2163, %v2164
  %v2166 = vsel %vm2147, %v2090, 0.0
  %v2167 = vadd.f32 %v2165, %v2166
  %v2168 = vrot.slane %v2167, 4
  %v2169 = vadd.f32 %v2167, %v2168
  %v2170 = vrot.slane %v2169, 2
  %v2171 = vadd.f32 %v2169, %v2170
  %v2172 = vrot.slane %v2171, 1
  %v2173 = vadd.f32 %v2171, %v2172
  %v2174 = vsel %vm2147, %v2091, 0.0
  %v2175 = vsel %vm2147, %v2092, 0.0
  %v2176 = vadd.f32 %v2174, %v2175
  %v2177 = vsel %vm2147, %v2093, 0.0
  %v2178 = vadd.f32 %v2176, %v2177
  %v2179 = vsel %vm2147, %v2094, 0.0
  %v2180 = vadd.f32 %v2178, %v2179
  %v2181 = vrot.slane %v2180, 4
  %v2182 = vadd.f32 %v2180, %v2181
  %v2183 = vrot.slane %v2182, 2
  %v2184 = vadd.f32 %v2182, %v2183
  %v2185 = vrot.slane %v2184, 1
  %v2186 = vadd.f32 %v2184, %v2185
  %v2187 = vsel %vm2147, %v2095, 0.0
  %v2188 = vsel %vm2147, %v2096, 0.0
  %v2189 = vadd.f32 %v2187, %v2188
  %v2190 = vsel %vm2147, %v2097, 0.0
  %v2191 = vadd.f32 %v2189, %v2190
  %v2192 = vsel %vm2147, %v2098, 0.0
  %v2193 = vadd.f32 %v2191, %v2192
  %v2194 = vrot.slane %v2193, 4
  %v2195 = vadd.f32 %v2193, %v2194
  %v2196 = vrot.slane %v2195, 2
  %v2197 = vadd.f32 %v2195, %v2196
  %v2198 = vrot.slane %v2197, 1
  %v2199 = vadd.f32 %v2197, %v2198
  %v2200 = vsel %vm2147, %v2099, 0.0
  %v2201 = vsel %vm2147, %v2100, 0.0
  %v2202 = vadd.f32 %v2200, %v2201
  %v2203 = vsel %vm2147, %v2101, 0.0
  %v2204 = vadd.f32 %v2202, %v2203
  %v2205 = vsel %vm2147, %v2102, 0.0
  %v2206 = vadd.f32 %v2204, %v2205
  %v2207 = vrot.slane %v2206, 4
  %v2208 = vadd.f32 %v2206, %v2207
  %v2209 = vrot.slane %v2208, 2
  %v2210 = vadd.f32 %v2208, %v2209
  %v2211 = vrot.slane %v2210, 1
  %v2212 = vadd.f32 %v2210, %v2211
  %v2213 = vsel %vm2147, %v2103, 0.0
  %v2214 = vsel %vm2147, %v2104, 0.0
  %v2215 = vadd.f32 %v2213, %v2214
  %v2216 = vsel %vm2147, %v2105, 0.0
  %v2217 = vadd.f32 %v2215, %v2216
  %v2218 = vsel %vm2147, %v2106, 0.0
  %v2219 = vadd.f32 %v2217, %v2218
  %v2220 = vrot.slane %v2219, 4
  %v2221 = vadd.f32 %v2219, %v2220
  %v2222 = vrot.slane %v2221, 2
  %v2223 = vadd.f32 %v2221, %v2222
  %v2224 = vrot.slane %v2223, 1
  %v2225 = vadd.f32 %v2223, %v2224
  %v2226 = vsel %vm2147, %v2107, 0.0
  %v2227 = vsel %vm2147, %v2108, 0.0
  %v2228 = vadd.f32 %v2226, %v2227
  %v2229 = vsel %vm2147, %v2109, 0.0
  %v2230 = vadd.f32 %v2228, %v2229
  %v2231 = vsel %vm2147, %v2110, 0.0
  %v2232 = vadd.f32 %v2230, %v2231
  %v2233 = vrot.slane %v2232, 4
  %v2234 = vadd.f32 %v2232, %v2233
  %v2235 = vrot.slane %v2234, 2
  %v2236 = vadd.f32 %v2234, %v2235
  %v2237 = vrot.slane %v2236, 1
  %v2238 = vadd.f32 %v2236, %v2237
  %v2239 = vsel %vm2147, %v2111, 0.0
  %v2240 = vsel %vm2147, %v2112, 0.0
  %v2241 = vadd.f32 %v2239, %v2240
  %v2242 = vsel %vm2147, %v2113, 0.0
  %v2243 = vadd.f32 %v2241, %v2242
  %v2244 = vsel %vm2147, %v2114, 0.0
  %v2245 = vadd.f32 %v2243, %v2244
  %v2246 = vrot.slane %v2245, 4
  %v2247 = vadd.f32 %v2245, %v2246
  %v2248 = vrot.slane %v2247, 2
  %v2249 = vadd.f32 %v2247, %v2248
  %v2250 = vrot.slane %v2249, 1
  %v2251 = vadd.f32 %v2249, %v2250
  %v2252 = vsel %vm2147, %v2115, 0.0
  %v2253 = vsel %vm2147, %v2116, 0.0
  %v2254 = vadd.f32 %v2252, %v2253
  %v2255 = vsel %vm2147, %v2117, 0.0
  %v2256 = vadd.f32 %v2254, %v2255
  %v2257 = vsel %vm2147, %v2118, 0.0
  %v2258 = vadd.f32 %v2256, %v2257
  %v2259 = vrot.slane %v2258, 4
  %v2260 = vadd.f32 %v2258, %v2259
  %v2261 = vrot.slane %v2260, 2
  %v2262 = vadd.f32 %v2260, %v2261
  %v2263 = vrot.slane %v2262, 1
  %v2264 = vadd.f32 %v2262, %v2263
  %v2265 = vsel %vm2147, %v2119, 0.0
  %v2266 = vsel %vm2147, %v2120, 0.0
  %v2267 = vadd.f32 %v2265, %v2266
  %v2268 = vsel %vm2147, %v2121, 0.0
  %v2269 = vadd.f32 %v2267, %v2268
  %v2270 = vsel %vm2147, %v2122, 0.0
  %v2271 = vadd.f32 %v2269, %v2270
  %v2272 = vrot.slane %v2271, 4
  %v2273 = vadd.f32 %v2271, %v2272
  %v2274 = vrot.slane %v2273, 2
  %v2275 = vadd.f32 %v2273, %v2274
  %v2276 = vrot.slane %v2275, 1
  %v2277 = vadd.f32 %v2275, %v2276
  %v2278 = vsel %vm2147, %v2123, 0.0
  %v2279 = vsel %vm2147, %v2124, 0.0
  %v2280 = vadd.f32 %v2278, %v2279
  %v2281 = vsel %vm2147, %v2125, 0.0
  %v2282 = vadd.f32 %v2280, %v2281
  %v2283 = vsel %vm2147, %v2126, 0.0
  %v2284 = vadd.f32 %v2282, %v2283
  %v2285 = vrot.slane %v2284, 4
  %v2286 = vadd.f32 %v2284, %v2285
  %v2287 = vrot.slane %v2286, 2
  %v2288 = vadd.f32 %v2286, %v2287
  %v2289 = vrot.slane %v2288, 1
  %v2290 = vadd.f32 %v2288, %v2289
  %v2291 = vsel %vm2147, %v2127, 0.0
  %v2292 = vsel %vm2147, %v2128, 0.0
  %v2293 = vadd.f32 %v2291, %v2292
  %v2294 = vsel %vm2147, %v2129, 0.0
  %v2295 = vadd.f32 %v2293, %v2294
  %v2296 = vsel %vm2147, %v2130, 0.0
  %v2297 = vadd.f32 %v2295, %v2296
  %v2298 = vrot.slane %v2297, 4
  %v2299 = vadd.f32 %v2297, %v2298
  %v2300 = vrot.slane %v2299, 2
  %v2301 = vadd.f32 %v2299, %v2300
  %v2302 = vrot.slane %v2301, 1
  %v2303 = vadd.f32 %v2301, %v2302
  %v2304 = vsel %vm2147, %v2131, 0.0
  %v2305 = vsel %vm2147, %v2132, 0.0
  %v2306 = vadd.f32 %v2304, %v2305
  %v2307 = vsel %vm2147, %v2133, 0.0
  %v2308 = vadd.f32 %v2306, %v2307
  %v2309 = vsel %vm2147, %v2134, 0.0
  %v2310 = vadd.f32 %v2308, %v2309
  %v2311 = vrot.slane %v2310, 4
  %v2312 = vadd.f32 %v2310, %v2311
  %v2313 = vrot.slane %v2312, 2
  %v2314 = vadd.f32 %v2312, %v2313
  %v2315 = vrot.slane %v2314, 1
  %v2316 = vadd.f32 %v2314, %v2315
  %v2317 = vsel %vm2147, %v2135, 0.0
  %v2318 = vsel %vm2147, %v2136, 0.0
  %v2319 = vadd.f32 %v2317, %v2318
  %v2320 = vsel %vm2147, %v2137, 0.0
  %v2321 = vadd.f32 %v2319, %v2320
  %v2322 = vsel %vm2147, %v2138, 0.0
  %v2323 = vadd.f32 %v2321, %v2322
  %v2324 = vrot.slane %v2323, 4
  %v2325 = vadd.f32 %v2323, %v2324
  %v2326 = vrot.slane %v2325, 2
  %v2327 = vadd.f32 %v2325, %v2326
  %v2328 = vrot.slane %v2327, 1
  %v2329 = vadd.f32 %v2327, %v2328
  %v2330 = vsel %vm2147, %v2139, 0.0
  %v2331 = vsel %vm2147, %v2140, 0.0
  %v2332 = vadd.f32 %v2330, %v2331
  %v2333 = vsel %vm2147, %v2141, 0.0
  %v2334 = vadd.f32 %v2332, %v2333
  %v2335 = vsel %vm2147, %v2142, 0.0
  %v2336 = vadd.f32 %v2334, %v2335
  %v2337 = vrot.slane %v2336, 4
  %v2338 = vadd.f32 %v2336, %v2337
  %v2339 = vrot.slane %v2338, 2
  %v2340 = vadd.f32 %v2338, %v2339
  %v2341 = vrot.slane %v2340, 1
  %v2342 = vadd.f32 %v2340, %v2341
  %v2343 = vsel %vm2147, %v2143, 0.0
  %v2344 = vsel %vm2147, %v2144, 0.0
  %v2345 = vadd.f32 %v2343, %v2344
  %v2346 = vsel %vm2147, %v2145, 0.0
  %v2347 = vadd.f32 %v2345, %v2346
  %v2348 = vsel %vm2147, %v2146, 0.0
  %v2349 = vadd.f32 %v2347, %v2348
  %v2350 = vrot.slane %v2349, 4
  %v2351 = vadd.f32 %v2349, %v2350
  %v2352 = vrot.slane %v2351, 2
  %v2353 = vadd.f32 %v2351, %v2352
  %v2354 = vrot.slane %v2353, 1
  %v2355 = vadd.f32 %v2353, %v2354
  %v2356 = vld [vmem:[%s4] sm:$0x1]
  %v2357 = vlaneseq
  %v2358 = vshrl.u32 %v2357, 7
  %v2359 = vsub.s32 0, %v2358
  %v2360 = vrot.slane %v2356, %v2359
  %2362 = vbcast.lane.b32.xlu0 %v2360, 256
  %v2363 = vpop.permute.xlu0 %2362
  %v2364 = vmul.f32 %v20, %v2363
  %v2365 = vmul.f32 %v21, %v2363
  %v2366 = vmul.f32 %v22, %v2363
  %v2367 = vmul.f32 %v23, %v2363
  %v2368 = vmul.f32 %v24, %v2363
  %v2369 = vmul.f32 %v25, %v2363
  %v2370 = vmul.f32 %v26, %v2363
  %v2371 = vmul.f32 %v27, %v2363
  %v2372 = vmul.f32 %v28, %v2363
  %v2373 = vmul.f32 %v29, %v2363
  %v2374 = vmul.f32 %v30, %v2363
  %v2375 = vmul.f32 %v31, %v2363
  %v2376 = vmul.f32 %v32, %v2363
  %v2377 = vmul.f32 %v33, %v2363
  %v2378 = vmul.f32 %v34, %v2363
  %v2379 = vmul.f32 %v35, %v2363
  %v2380 = vsel %vm2147, %v2364, 0.0
  %v2381 = vrot.slane %v2380, 4
  %v2382 = vadd.f32 %v2380, %v2381
  %v2383 = vrot.slane %v2382, 2
  %v2384 = vadd.f32 %v2382, %v2383
  %v2385 = vrot.slane %v2384, 1
  %v2386 = vadd.f32 %v2384, %v2385
  %v2387 = vsel %vm2147, %v2365, 0.0
  %v2388 = vrot.slane %v2387, 4
  %v2389 = vadd.f32 %v2387, %v2388
  %v2390 = vrot.slane %v2389, 2
  %v2391 = vadd.f32 %v2389, %v2390
  %v2392 = vrot.slane %v2391, 1
  %v2393 = vadd.f32 %v2391, %v2392
  %v2394 = vsel %vm2147, %v2366, 0.0
  %v2395 = vrot.slane %v2394, 4
  %v2396 = vadd.f32 %v2394, %v2395
  %v2397 = vrot.slane %v2396, 2
  %v2398 = vadd.f32 %v2396, %v2397
  %v2399 = vrot.slane %v2398, 1
  %v2400 = vadd.f32 %v2398, %v2399
  %v2401 = vsel %vm2147, %v2367, 0.0
  %v2402 = vrot.slane %v2401, 4
  %v2403 = vadd.f32 %v2401, %v2402
  %v2404 = vrot.slane %v2403, 2
  %v2405 = vadd.f32 %v2403, %v2404
  %v2406 = vrot.slane %v2405, 1
  %v2407 = vadd.f32 %v2405, %v2406
  %v2408 = vsel %vm2147, %v2368, 0.0
  %v2409 = vrot.slane %v2408, 4
  %v2410 = vadd.f32 %v2408, %v2409
  %v2411 = vrot.slane %v2410, 2
  %v2412 = vadd.f32 %v2410, %v2411
  %v2413 = vrot.slane %v2412, 1
  %v2414 = vadd.f32 %v2412, %v2413
  %v2415 = vsel %vm2147, %v2369, 0.0
  %v2416 = vrot.slane %v2415, 4
  %v2417 = vadd.f32 %v2415, %v2416
  %v2418 = vrot.slane %v2417, 2
  %v2419 = vadd.f32 %v2417, %v2418
  %v2420 = vrot.slane %v2419, 1
  %v2421 = vadd.f32 %v2419, %v2420
  %v2422 = vsel %vm2147, %v2370, 0.0
  %v2423 = vrot.slane %v2422, 4
  %v2424 = vadd.f32 %v2422, %v2423
  %v2425 = vrot.slane %v2424, 2
  %v2426 = vadd.f32 %v2424, %v2425
  %v2427 = vrot.slane %v2426, 1
  %v2428 = vadd.f32 %v2426, %v2427
  %v2429 = vsel %vm2147, %v2371, 0.0
  %v2430 = vrot.slane %v2429, 4
  %v2431 = vadd.f32 %v2429, %v2430
  %v2432 = vrot.slane %v2431, 2
  %v2433 = vadd.f32 %v2431, %v2432
  %v2434 = vrot.slane %v2433, 1
  %v2435 = vadd.f32 %v2433, %v2434
  %v2436 = vsel %vm2147, %v2372, 0.0
  %v2437 = vrot.slane %v2436, 4
  %v2438 = vadd.f32 %v2436, %v2437
  %v2439 = vrot.slane %v2438, 2
  %v2440 = vadd.f32 %v2438, %v2439
  %v2441 = vrot.slane %v2440, 1
  %v2442 = vadd.f32 %v2440, %v2441
  %v2443 = vsel %vm2147, %v2373, 0.0
  %v2444 = vrot.slane %v2443, 4
  %v2445 = vadd.f32 %v2443, %v2444
  %v2446 = vrot.slane %v2445, 2
  %v2447 = vadd.f32 %v2445, %v2446
  %v2448 = vrot.slane %v2447, 1
  %v2449 = vadd.f32 %v2447, %v2448
  %v2450 = vsel %vm2147, %v2374, 0.0
  %v2451 = vrot.slane %v2450, 4
  %v2452 = vadd.f32 %v2450, %v2451
  %v2453 = vrot.slane %v2452, 2
  %v2454 = vadd.f32 %v2452, %v2453
  %v2455 = vrot.slane %v2454, 1
  %v2456 = vadd.f32 %v2454, %v2455
  %v2457 = vsel %vm2147, %v2375, 0.0
  %v2458 = vrot.slane %v2457, 4
  %v2459 = vadd.f32 %v2457, %v2458
  %v2460 = vrot.slane %v2459, 2
  %v2461 = vadd.f32 %v2459, %v2460
  %v2462 = vrot.slane %v2461, 1
  %v2463 = vadd.f32 %v2461, %v2462
  %v2464 = vsel %vm2147, %v2376, 0.0
  %v2465 = vrot.slane %v2464, 4
  %v2466 = vadd.f32 %v2464, %v2465
  %v2467 = vrot.slane %v2466, 2
  %v2468 = vadd.f32 %v2466, %v2467
  %v2469 = vrot.slane %v2468, 1
  %v2470 = vadd.f32 %v2468, %v2469
  %v2471 = vsel %vm2147, %v2377, 0.0
  %v2472 = vrot.slane %v2471, 4
  %v2473 = vadd.f32 %v2471, %v2472
  %v2474 = vrot.slane %v2473, 2
  %v2475 = vadd.f32 %v2473, %v2474
  %v2476 = vrot.slane %v2475, 1
  %v2477 = vadd.f32 %v2475, %v2476
  %v2478 = vsel %vm2147, %v2378, 0.0
  %v2479 = vrot.slane %v2478, 4
  %v2480 = vadd.f32 %v2478, %v2479
  %v2481 = vrot.slane %v2480, 2
  %v2482 = vadd.f32 %v2480, %v2481
  %v2483 = vrot.slane %v2482, 1
  %v2484 = vadd.f32 %v2482, %v2483
  %v2485 = vsel %vm2147, %v2379, 0.0
  %v2486 = vrot.slane %v2485, 4
  %v2487 = vadd.f32 %v2485, %v2486
  %v2488 = vrot.slane %v2487, 2
  %v2489 = vadd.f32 %v2487, %v2488
  %v2490 = vrot.slane %v2489, 1
  %v2491 = vadd.f32 %v2489, %v2490
  %v2492 = vadd.f32 %v2160, %v2386
  %v2493 = vadd.f32 %v2173, %v2393
  %v2494 = vadd.f32 %v2186, %v2400
  %v2495 = vadd.f32 %v2199, %v2407
  %v2496 = vadd.f32 %v2212, %v2414
  %v2497 = vadd.f32 %v2225, %v2421
  %v2498 = vadd.f32 %v2238, %v2428
  %v2499 = vadd.f32 %v2251, %v2435
  %v2500 = vadd.f32 %v2264, %v2442
  %v2501 = vadd.f32 %v2277, %v2449
  %v2502 = vadd.f32 %v2290, %v2456
  %v2503 = vadd.f32 %v2303, %v2463
  %v2504 = vadd.f32 %v2316, %v2470
  %v2505 = vadd.f32 %v2329, %v2477
  %v2506 = vadd.f32 %v2342, %v2484
  %v2507 = vadd.f32 %v2355, %v2491
  %v2508 = vmax.f32 %v2492, -3.0
  %v2509 = vmax.f32 %v2493, -3.0
  %v2510 = vmax.f32 %v2494, -3.0
  %v2511 = vmax.f32 %v2495, -3.0
  %v2512 = vmax.f32 %v2496, -3.0
  %v2513 = vmax.f32 %v2497, -3.0
  %v2514 = vmax.f32 %v2498, -3.0
  %v2515 = vmax.f32 %v2499, -3.0
  %v2516 = vmax.f32 %v2500, -3.0
  %v2517 = vmax.f32 %v2501, -3.0
  %v2518 = vmax.f32 %v2502, -3.0
  %v2519 = vmax.f32 %v2503, -3.0
  %v2520 = vmax.f32 %v2504, -3.0
  %v2521 = vmax.f32 %v2505, -3.0
  %v2522 = vmax.f32 %v2506, -3.0
  %v2523 = vmax.f32 %v2507, -3.0
  %v2524 = vmin.f32 %v2508, 3.0
  %v2525 = vmin.f32 %v2509, 3.0
  %v2526 = vmin.f32 %v2510, 3.0
  %v2527 = vmin.f32 %v2511, 3.0
  %v2528 = vmin.f32 %v2512, 3.0
  %v2529 = vmin.f32 %v2513, 3.0
  %v2530 = vmin.f32 %v2514, 3.0
  %v2531 = vmin.f32 %v2515, 3.0
  %v2532 = vmin.f32 %v2516, 3.0
  %v2533 = vmin.f32 %v2517, 3.0
  %v2534 = vmin.f32 %v2518, 3.0
  %v2535 = vmin.f32 %v2519, 3.0
  %v2536 = vmin.f32 %v2520, 3.0
  %v2537 = vmin.f32 %v2521, 3.0
  %v2538 = vmin.f32 %v2522, 3.0
  %v2539 = vmin.f32 %v2523, 3.0
  %vm2556 = vcmask 1041409
  %v2557 = vsel %vm2556, %v2525, %v2524
  %vm2558 = vcmask 1042434
  %v2559 = vsel %vm2558, %v2526, %v2557
  %vm2560 = vcmask 1043459
  %v2561 = vsel %vm2560, %v2527, %v2559
  %vm2562 = vcmask 1044484
  %v2563 = vsel %vm2562, %v2528, %v2561
  %vm2564 = vcmask 1045509
  %v2565 = vsel %vm2564, %v2529, %v2563
  %vm2566 = vcmask 1046534
  %v2567 = vsel %vm2566, %v2530, %v2565
  %vm2568 = vcmask 1047559
  %v2569 = vsel %vm2568, %v2531, %v2567
  %v2570 = vsel %vm2556, %v2533, %v2532
  %v2571 = vsel %vm2558, %v2534, %v2570
  %v2572 = vsel %vm2560, %v2535, %v2571
  %v2573 = vsel %vm2562, %v2536, %v2572
  %v2574 = vsel %vm2564, %v2537, %v2573
  %v2575 = vsel %vm2566, %v2538, %v2574
  %v2576 = vsel %vm2568, %v2539, %v2575
  %2579 = vst.msk [vmem:[%s5] sm:$0xff] %vm2147, %v2569
  %2580 = vst.msk [vmem:[%s5 + $0x8] sm:$0xff] %vm2147, %v2576
  // Predicated region
  $region22: #{_lambda_.14} parent=0 // pred_check
    _
  $region23: #{_lambda_.14} parent=0 // pred_check_branch
    %2582 = sbr.rel (0) target = $region25
  $region24: #{_lambda_.14} parent=0 // pred_region
    _
  $region25: #{_lambda_.14} parent=0 // pred_fallthru
    _
  // Predicated region
  $region26: #{_lambda_.14} parent=0 // pred_check
    _
  $region27: #{_lambda_.14} parent=0 // pred_check_branch
    %2584 = sbr.rel (0) target = $region29
  $region28: #{_lambda_.14} parent=0 // pred_region
    _
  $region29: #{_lambda_.14} parent=0 // pred_fallthru
    _

// kernel: _lambda_.19
$region0: #{_lambda_.19}
  #allocation0 [shape = 'u32[]', space=smem, size = 0x4, offset = 0x4, fixed_abs, tag = 'smem constant byte address 0x4 - core index']
  #allocation1 [shape = 'u32[144,128]{1,0:T(1,128)}', space=vmem, size = 0x12000, scoped, tag = 'internal scratch']
  #allocation2 [shape = 'f32[32,128]{1,0:T(8,128)}', space=vmem, size = 0x4000, scoped, tag = 'scratch operand']
  %s0 = inlined_call_operand.vmem [shape: f32[32,128], index: 0, kind: input, shape index: {}]
  %s1 = inlined_call_operand.vmem [shape: f32[128,128], index: 1, kind: input, shape index: {}]
  %s2 = inlined_call_operand.vmem [shape: f32[32,128], index: 2, kind: output, shape index: {}]
  %s3 = sld [smem:[#allocation0]]
  $region26: #{_lambda_.19} parent=0
    _
  %s5 = ssub.s32 1, %s3
  %s6 = scalar_select 0, %s5, %s3
  // Predicated region
  $region2: #{_lambda_.19} parent=0 // pred_check
    _
  $region3: #{_lambda_.19} parent=0 // pred_check_branch
    %8 = sbr.rel (0) target = $region5
  $region4: #{_lambda_.19} parent=0 // pred_region
    _
  $region5: #{_lambda_.19} parent=0 // pred_fallthru
    _
  // Predicated region
  $region6: #{_lambda_.19} parent=0 // pred_check
    _
  $region7: #{_lambda_.19} parent=0 // pred_check_branch
    %10 = sbr.rel (0) target = $region9
  $region8: #{_lambda_.19} parent=0 // pred_region
    _
  $region9: #{_lambda_.19} parent=0 // pred_fallthru
    _
  %p12 = scmp.eq.s32.totalorder 0, 0
  // Predicated region
  $region10: #{_lambda_.19} parent=0 // pred_check
    %p13 = pneg %p12
  $region11: #{_lambda_.19} parent=0 // pred_check_branch
    %15 = sbr.rel (%p13) target = $region13
  $region12: #{_lambda_.19} parent=0 // pred_region
    %16 = vst [vmem:[#allocation2] sm:$0xff] 0.0
    %17 = vst [vmem:[#allocation2 + $0x8] sm:$0xff] 0.0
    %18 = vst [vmem:[#allocation2 + $0x10] sm:$0xff] 0.0
    %19 = vst [vmem:[#allocation2 + $0x18] sm:$0xff] 0.0
  $region13: #{_lambda_.19} parent=0 // pred_fallthru
    _
  %v20 = vld [vmem:[#allocation2] sm:$0xff]
  %v21 = vld [vmem:[#allocation2 + $0x8] sm:$0xff]
  %v22 = vld [vmem:[#allocation2 + $0x10] sm:$0xff]
  %v23 = vld [vmem:[#allocation2 + $0x18] sm:$0xff]
  %v24 = vld [vmem:[%s0] sm:$0xff]
  %v25 = vld [vmem:[%s0 + $0x8] sm:$0xff]
  %v26 = vld [vmem:[%s0 + $0x10] sm:$0xff]
  %v27 = vld [vmem:[%s0 + $0x18] sm:$0xff]
  %v28 = vpack.c.bf16 %v25, %v24
  %v29 = vpack.c.bf16 %v27, %v26
  %v30 = vld [vmem:[%s1] sm:$0xff]
  %v31 = vld [vmem:[%s1 + $0x8] sm:$0xff]
  %v32 = vld [vmem:[%s1 + $0x10] sm:$0xff]
  %v33 = vld [vmem:[%s1 + $0x18] sm:$0xff]
  %v34 = vld [vmem:[%s1 + $0x20] sm:$0xff]
  %v35 = vld [vmem:[%s1 + $0x28] sm:$0xff]
  %v36 = vld [vmem:[%s1 + $0x30] sm:$0xff]
  %v37 = vld [vmem:[%s1 + $0x38] sm:$0xff]
  %v38 = vld [vmem:[%s1 + $0x40] sm:$0xff]
  %v39 = vld [vmem:[%s1 + $0x48] sm:$0xff]
  %v40 = vld [vmem:[%s1 + $0x50] sm:$0xff]
  %v41 = vld [vmem:[%s1 + $0x58] sm:$0xff]
  %v42 = vld [vmem:[%s1 + $0x60] sm:$0xff]
  %v43 = vld [vmem:[%s1 + $0x68] sm:$0xff]
  %v44 = vld [vmem:[%s1 + $0x70] sm:$0xff]
  %v45 = vld [vmem:[%s1 + $0x78] sm:$0xff]
  %v46 = vpack.c.bf16 %v31, %v30
  %v47 = vpack.c.bf16 %v33, %v32
  %v48 = vpack.c.bf16 %v35, %v34
  %v49 = vpack.c.bf16 %v37, %v36
  %v50 = vpack.c.bf16 %v39, %v38
  %v51 = vpack.c.bf16 %v41, %v40
  %v52 = vpack.c.bf16 %v43, %v42
  %v53 = vpack.c.bf16 %v45, %v44
  %54 = vmatprep.subr.bf16.mxu0 0
  %55 = vmatpush1.bf16.msra.mxu0 %v46
  %56 = vmatprep.subr.bf16.mxu0 0
  %57 = vmatpush1.bf16.msra.mxu0 %v47
  %58 = vmatprep.subr.bf16.mxu0 0
  %59 = vmatpush1.bf16.msra.mxu0 %v48
  %60 = vmatprep.subr.bf16.mxu0 0
  %61 = vmatpush1.bf16.msra.mxu0 %v49
  %62 = vmatprep.subr.bf16.mxu0 0
  %63 = vmatpush1.bf16.msra.mxu0 %v50
  %64 = vmatprep.subr.bf16.mxu0 0
  %65 = vmatpush1.bf16.msra.mxu0 %v51
  %66 = vmatprep.subr.bf16.mxu0 0
  %67 = vmatpush1.bf16.msra.mxu0 %v52
  %68 = vmatprep.subr.bf16.mxu0 0
  %69 = vmatpush1.bf16.msra.mxu0 %v53
  %70 = vmatprep.subr.bf16.mxu0 0
  %71 = vmatpush1.bf16.msra.mxu0 0
  %72 = vmatprep.subr.bf16.mxu0 0
  %73 = vmatpush1.bf16.msra.mxu0 0
  %74 = vmatprep.subr.bf16.mxu0 0
  %75 = vmatpush1.bf16.msra.mxu0 0
  %76 = vmatprep.subr.bf16.mxu0 0
  %77 = vmatpush1.bf16.msra.mxu0 0
  %78 = vmatprep.subr.bf16.mxu0 0
  %79 = vmatpush1.bf16.msra.mxu0 0
  %80 = vmatprep.subr.bf16.mxu0 0
  %81 = vmatpush1.bf16.msra.mxu0 0
  %82 = vmatprep.subr.bf16.mxu0 0
  %83 = vmatpush1.bf16.msra.mxu0 0
  %84 = vmatprep.subr.bf16.mxu0 0
  %85 = vmatpush1.bf16.msra.mxu0 0
  %86 = vmatprep.mubr.bf16.mxu0 0
  %87 = vmatmul.mubr.bf16.gmra.mrb[0].mxu0 %v28
  %v88 = vpop.f32.mrb[0].mxu0
  %v89 = vadd.f32 0.0, %v88
  %v90 = vpop.f32.mrb[0].mxu0
  %v91 = vpop.f32.mrb[0].mxu0
  %v92 = vadd.f32 0.0, %v91
  %v93 = vpop.f32.mrb[0].mxu0
  %94 = vmatprep.mubr.bf16.mxu0 0
  %95 = vmatmul.mubr.bf16.gmra.mrb[0].mxu0 %v29
  %v96 = vpop.f32.mrb[0].mxu0
  %v97 = vadd.f32 0.0, %v96
  %v98 = vpop.f32.mrb[0].mxu0
  %v99 = vpop.f32.mrb[0].mxu0
  %v100 = vadd.f32 0.0, %v99
  %v101 = vpop.f32.mrb[0].mxu0
  %102 = vdwg.mxu0
  %v103 = vadd.f32 %v20, %v89
  %v104 = vadd.f32 %v21, %v92
  %v105 = vadd.f32 %v22, %v97
  %v106 = vadd.f32 %v23, %v100
  %107 = vst [vmem:[#allocation2] sm:$0xff] %v103
  %108 = vst [vmem:[#allocation2 + $0x8] sm:$0xff] %v104
  %109 = vst [vmem:[#allocation2 + $0x10] sm:$0xff] %v105
  %110 = vst [vmem:[#allocation2 + $0x18] sm:$0xff] %v106
  // Predicated region
  $region14: #{_lambda_.19} parent=0 // pred_check
    %p111 = pneg %p12
  $region15: #{_lambda_.19} parent=0 // pred_check_branch
    %113 = sbr.rel (%p111) target = $region17
  $region16: #{_lambda_.19} parent=0 // pred_region
    %v114 = vld [vmem:[#allocation2] sm:$0xff]
    %v115 = vld [vmem:[#allocation2 + $0x8] sm:$0xff]
    %v116 = vld [vmem:[#allocation2 + $0x10] sm:$0xff]
    %v117 = vld [vmem:[#allocation2 + $0x18] sm:$0xff]
    %v118 = vxor.u32 %v114, 2147483648
    %v119 = vxor.u32 %v115, 2147483648
    %v120 = vxor.u32 %v116, 2147483648
    %v121 = vxor.u32 %v117, 2147483648
    %v122 = vmul.f32 %v118, 1.442695
    %v123 = vpow.pop %v122
    %v124 = vmul.f32 %v119, 1.442695
    %v125 = vpow.pop %v124
    %v126 = vmul.f32 %v120, 1.442695
    %v127 = vpow.pop %v126
    %v128 = vmul.f32 %v121, 1.442695
    %v129 = vpow.pop %v128
    %v130 = vadd.f32 %v123, 1.0
    %v131 = vadd.f32 %v125, 1.0
    %v132 = vadd.f32 %v127, 1.0
    %v133 = vadd.f32 %v129, 1.0
    %v134 = vrcp.pop %v130
    %v135 = vmul.f32 1.0, %v134
    %v136 = vrcp.pop %v131
    %v137 = vmul.f32 1.0, %v136
    %v138 = vrcp.pop %v132
    %v139 = vmul.f32 1.0, %v138
    %v140 = vrcp.pop %v133
    %v141 = vmul.f32 1.0, %v140
    %142 = vst [vmem:[%s2] sm:$0xff] %v135
    %143 = vst [vmem:[%s2 + $0x8] sm:$0xff] %v137
    %144 = vst [vmem:[%s2 + $0x10] sm:$0xff] %v139
    %145 = vst [vmem:[%s2 + $0x18] sm:$0xff] %v141
  $region17: #{_lambda_.19} parent=0 // pred_fallthru
    _
  // Predicated region
  $region18: #{_lambda_.19} parent=0 // pred_check
    _
  $region19: #{_lambda_.19} parent=0 // pred_check_branch
    %147 = sbr.rel (0) target = $region21
  $region20: #{_lambda_.19} parent=0 // pred_region
    _
  $region21: #{_lambda_.19} parent=0 // pred_fallthru
    _
  // Predicated region
  $region22: #{_lambda_.19} parent=0 // pred_check
    _
  $region23: #{_lambda_.19} parent=0 // pred_check_branch
    %149 = sbr.rel (0) target = $region25
  $region24: #{_lambda_.19} parent=0 // pred_region
    _
  $region25: #{_lambda_.19} parent=0 // pred_fallthru
    _

// kernel: _lambda_.16
$region0: #{_lambda_.16}
  #allocation0 [shape = 'u32[]', space=smem, size = 0x4, offset = 0x4, fixed_abs, tag = 'smem constant byte address 0x4 - core index']
  #allocation1 [shape = 'u32[144,128]{1,0:T(1,128)}', space=vmem, size = 0x12000, scoped, tag = 'internal scratch']
  #allocation2 [shape = 'f32[4,16,1]{2,1,0:T(8,128)}', space=vmem, size = 0x8000, scoped, tag = 'scratch operand']
  #allocation3 [shape = 'f32[4,16,1]{2,1,0:T(8,128)}', space=vmem, size = 0x8000, scoped, tag = 'scratch operand']
  #allocation4 [shape = 'f32[4,16,16]{2,1,0:T(8,128)}', space=vmem, size = 0x8000, scoped, tag = 'scratch operand']
  %s0 = inlined_call_operand.vmem [shape: f32[4,16,16], index: 0, kind: input, shape index: {}]
  %s1 = inlined_call_operand.vmem [shape: f32[4,16,16], index: 1, kind: input, shape index: {}]
  %s2 = inlined_call_operand.vmem [shape: f32[4,16,16], index: 2, kind: input, shape index: {}]
  %s3 = inlined_call_operand.vmem [shape: f32[4,16,16], index: 3, kind: output, shape index: {}]
  %s4 = sld [smem:[#allocation0]]
  $region34: #{_lambda_.16} parent=0
    _
  %s6 = ssub.s32 1, %s4
  %s7 = scalar_select 0, %s6, %s4
  // Predicated region
  $region2: #{_lambda_.16} parent=0 // pred_check
    _
  $region3: #{_lambda_.16} parent=0 // pred_check_branch
    %9 = sbr.rel (0) target = $region5
  $region4: #{_lambda_.16} parent=0 // pred_region
    _
  $region5: #{_lambda_.16} parent=0 // pred_fallthru
    _
  // Predicated region
  $region6: #{_lambda_.16} parent=0 // pred_check
    _
  $region7: #{_lambda_.16} parent=0 // pred_check_branch
    %11 = sbr.rel (0) target = $region9
  $region8: #{_lambda_.16} parent=0 // pred_region
    %s12 = sadd.s32 0, 0
    %p13 = scmp.gt.s32.totalorder %s12, 0
    %s14 = scalar_select %p13, %s12, 0
    %s15 = smul.u32 2, %s14
    %p16 = scmp.lt.s32.totalorder %s15, 1
    %s17 = scalar_select %p16, %s15, 1
    %s18 = smul.addr %s17, 8
    %s19 = scalar_lea.vmem %s1, %s18
    %s20 = sadd.s32 0, 0
    %p21 = scmp.gt.s32.totalorder %s20, 0
    %s22 = scalar_select %p21, %s20, 0
    %s23 = smul.u32 2, %s22
  $region9: #{_lambda_.16} parent=0 // pred_fallthru
    _
  // Predicated region
  $region10: #{_lambda_.16} parent=0 // pred_check
    _
  $region11: #{_lambda_.16} parent=0 // pred_check_branch
    %25 = sbr.rel (0) target = $region13
  $region12: #{_lambda_.16} parent=0 // pred_region
    %s26 = sadd.s32 0, 0
    %p27 = scmp.gt.s32.totalorder %s26, 0
    %s28 = scalar_select %p27, %s26, 0
    %s29 = smul.u32 2, %s28
    %p30 = scmp.lt.s32.totalorder %s29, 1
    %s31 = scalar_select %p30, %s29, 1
    %s32 = smul.addr %s31, 8
    %s33 = scalar_lea.vmem %s2, %s32
    %s34 = sadd.s32 0, 0
    %p35 = scmp.gt.s32.totalorder %s34, 0
    %s36 = scalar_select %p35, %s34, 0
    %s37 = smul.u32 2, %s36
  $region13: #{_lambda_.16} parent=0 // pred_fallthru
    _
  %s38 = sadd.s32 0, 0
  %p39 = scmp.gt.s32.totalorder %s38, 0
  %s40 = scalar_select %p39, %s38, 0
  %s41 = smul.u32 2, %s40
  %p42 = scmp.lt.s32.totalorder %s41, 1
  %s43 = scalar_select %p42, %s41, 1
  %s44 = smul.addr %s43, 8
  %s45 = scalar_lea.vmem %s1, %s44
  %s46 = sadd.s32 0, 0
  %p47 = scmp.gt.s32.totalorder %s46, 0
  %s48 = scalar_select %p47, %s46, 0
  %s49 = smul.u32 2, %s48
  %p50 = scmp.lt.s32.totalorder %s49, 1
  %s51 = scalar_select %p50, %s49, 1
  %s52 = smul.addr %s51, 8
  %s53 = scalar_lea.vmem %s2, %s52
  %s54 = sadd.s32 0, 0
  %p55 = scmp.gt.s32.totalorder %s54, 0
  %s56 = scalar_select %p55, %s54, 0
  %s57 = smul.u32 2, %s56
  %p58 = scmp.lt.s32.totalorder %s57, 1
  %s59 = scalar_select %p58, %s57, 1
  %s60 = smul.addr %s59, 8
  %s61 = scalar_lea.vmem %s1, %s60
  %s62 = sadd.s32 0, 0
  %p63 = scmp.gt.s32.totalorder %s62, 0
  %s64 = scalar_select %p63, %s62, 0
  %s65 = smul.u32 2, %s64
  %s66 = sadd.s32 0, 0
  %p67 = scmp.gt.s32.totalorder %s66, 0
  %s68 = scalar_select %p67, %s66, 0
  %s69 = smul.u32 2, %s68
  %p70 = scmp.lt.s32.totalorder %s69, 1
  %s71 = scalar_select %p70, %s69, 1
  %s72 = smul.addr %s71, 8
  %s73 = scalar_lea.vmem %s2, %s72
  %s74 = sadd.s32 0, 0
  %p75 = scmp.gt.s32.totalorder %s74, 0
  %s76 = scalar_select %p75, %s74, 0
  %s77 = smul.u32 2, %s76
  %p79 = scmp.eq.s32.totalorder 0, 0
  // Predicated region
  $region14: #{_lambda_.16} parent=0 // pred_check
    %p80 = pneg %p79
  $region15: #{_lambda_.16} parent=0 // pred_check_branch
    %82 = sbr.rel (%p80) target = $region17
  $region16: #{_lambda_.16} parent=0 // pred_region
    %vm83 = vcmask 7168
    %84 = vst.msk [vmem:[#allocation2] sm:$0xff] %vm83, -inf
    %85 = vst.msk [vmem:[#allocation2 + $0x8] sm:$0xff] %vm83, -inf
    %86 = vst.msk [vmem:[#allocation2 + $0x10] sm:$0xff] %vm83, -inf
    %87 = vst.msk [vmem:[#allocation2 + $0x18] sm:$0xff] %vm83, -inf
    %88 = vst.msk [vmem:[#allocation2 + $0x20] sm:$0xff] %vm83, -inf
    %89 = vst.msk [vmem:[#allocation2 + $0x28] sm:$0xff] %vm83, -inf
    %90 = vst.msk [vmem:[#allocation2 + $0x30] sm:$0xff] %vm83, -inf
    %91 = vst.msk [vmem:[#allocation2 + $0x38] sm:$0xff] %vm83, -inf
    %92 = vst.msk [vmem:[#allocation3] sm:$0xff] %vm83, 0.0
    %93 = vst.msk [vmem:[#allocation3 + $0x8] sm:$0xff] %vm83, 0.0
    %94 = vst.msk [vmem:[#allocation3 + $0x10] sm:$0xff] %vm83, 0.0
    %95 = vst.msk [vmem:[#allocation3 + $0x18] sm:$0xff] %vm83, 0.0
    %96 = vst.msk [vmem:[#allocation3 + $0x20] sm:$0xff] %vm83, 0.0
    %97 = vst.msk [vmem:[#allocation3 + $0x28] sm:$0xff] %vm83, 0.0
    %98 = vst.msk [vmem:[#allocation3 + $0x30] sm:$0xff] %vm83, 0.0
    %99 = vst.msk [vmem:[#allocation3 + $0x38] sm:$0xff] %vm83, 0.0
    %vm100 = vcmask 130048
    %101 = vst.msk [vmem:[#allocation4] sm:$0xff] %vm100, 0.0
    %102 = vst.msk [vmem:[#allocation4 + $0x8] sm:$0xff] %vm100, 0.0
    %103 = vst.msk [vmem:[#allocation4 + $0x10] sm:$0xff] %vm100, 0.0
    %104 = vst.msk [vmem:[#allocation4 + $0x18] sm:$0xff] %vm100, 0.0
    %105 = vst.msk [vmem:[#allocation4 + $0x20] sm:$0xff] %vm100, 0.0
    %106 = vst.msk [vmem:[#allocation4 + $0x28] sm:$0xff] %vm100, 0.0
    %107 = vst.msk [vmem:[#allocation4 + $0x30] sm:$0xff] %vm100, 0.0
    %108 = vst.msk [vmem:[#allocation4 + $0x38] sm:$0xff] %vm100, 0.0
  $region17: #{_lambda_.16} parent=0 // pred_fallthru
    _
  %s109 = sadd.s32 0, 0
  %p110 = scmp.ge.s32.totalorder %s109, 0
  // Predicated region
  $region18: #{_lambda_.16} parent=0 // pred_check
    %p111 = pneg %p110
  $region19: #{_lambda_.16} parent=0 // pred_check_branch
    %113 = sbr.rel (%p111) target = $region21
  $region20: #{_lambda_.16} parent=0 // pred_region
    %v114 = vld [vmem:[%s0] sm:$0xff]
    %v115 = vld [vmem:[%s0 + $0x8] sm:$0xff]
    %v116 = vld [vmem:[%s0 + $0x10] sm:$0xff]
    %v117 = vld [vmem:[%s0 + $0x18] sm:$0xff]
    %v118 = vld [vmem:[%s0 + $0x20] sm:$0xff]
    %v119 = vld [vmem:[%s0 + $0x28] sm:$0xff]
    %v120 = vld [vmem:[%s0 + $0x30] sm:$0xff]
    %v121 = vld [vmem:[%s0 + $0x38] sm:$0xff]
    %v122 = vpack.c.bf16 %v115, %v114
    %v123 = vpack.c.bf16 %v117, %v116
    %v124 = vpack.c.bf16 %v119, %v118
    %v125 = vpack.c.bf16 %v121, %v120
    %v126 = vld [vmem:[%s61] sm:$0xff]
    %v127 = vld [vmem:[%s61 + $0x8] sm:$0xff]
    %v128 = vld [vmem:[%s61 + $0x10] sm:$0xff]
    %v129 = vld [vmem:[%s61 + $0x18] sm:$0xff]
    %v130 = vld [vmem:[%s61 + $0x20] sm:$0xff]
    %v131 = vld [vmem:[%s61 + $0x28] sm:$0xff]
    %v132 = vld [vmem:[%s61 + $0x30] sm:$0xff]
    %v133 = vld [vmem:[%s61 + $0x38] sm:$0xff]
    %v134 = vpack.c.bf16 %v127, %v126
    %v135 = vpack.c.bf16 %v129, %v128
    %v136 = vpack.c.bf16 %v131, %v130
    %v137 = vpack.c.bf16 %v133, %v132
    %vm138 = vcmask 130048
    %v140 = vsel %vm138, %v122, 0
    %v143 = vsel %vm138, %v134, 0
    %145 = vmatprep.subr.bf16.mxu0 0
    %146 = vmatpush1.bf16.xpose.msra.mxu0 %v143
    %147 = vmatprep.subr.bf16.mxu0 0
    %148 = vmatpush1.bf16.xpose.msra.mxu0 0
    %149 = vmatprep.subr.bf16.mxu0 0
    %150 = vmatpush1.bf16.xpose.msra.mxu0 0
    %151 = vmatprep.subr.bf16.mxu0 0
    %152 = vmatpush1.bf16.xpose.msra.mxu0 0
    %153 = vmatprep.subr.bf16.mxu0 0
    %154 = vmatpush1.bf16.xpose.msra.mxu0 0
    %155 = vmatprep.subr.bf16.mxu0 0
    %156 = vmatpush1.bf16.xpose.msra.mxu0 0
    %157 = vmatprep.subr.bf16.mxu0 0
    %158 = vmatpush1.bf16.xpose.msra.mxu0 0
    %159 = vmatprep.subr.bf16.mxu0 0
    %160 = vmatpush1.bf16.xpose.msra.mxu0 0
    %161 = vmatprep.subr.bf16.mxu0 0
    %162 = vmatpush1.bf16.xpose.msra.mxu0 0
    %163 = vmatprep.subr.bf16.mxu0 0
    %164 = vmatpush1.bf16.xpose.msra.mxu0 0
    %165 = vmatprep.subr.bf16.mxu0 0
    %166 = vmatpush1.bf16.xpose.msra.mxu0 0
    %167 = vmatprep.subr.bf16.mxu0 0
    %168 = vmatpush1.bf16.xpose.msra.mxu0 0
    %169 = vmatprep.subr.bf16.mxu0 0
    %170 = vmatpush1.bf16.xpose.msra.mxu0 0
    %171 = vmatprep.subr.bf16.mxu0 0
    %172 = vmatpush1.bf16.xpose.msra.mxu0 0
    %173 = vmatprep.subr.bf16.mxu0 0
    %174 = vmatpush1.bf16.xpose.msra.mxu0 0
    %175 = vmatprep.subr.bf16.mxu0 0
    %176 = vmatpush1.bf16.xpose.msra.mxu0 0
    %177 = vmatprep.mubr.bf16.mxu0 0
    %178 = vmatmul.mubr.bf16.gmra.mrb[0].mxu0 %v140
    %v179 = vpop.f32.mrb[0].mxu0
    %v180 = vadd.f32 0.0, %v179
    %v181 = vpop.f32.mrb[0].mxu0
    %v182 = vpop.f32.mrb[0].mxu0
    %v183 = vadd.f32 0.0, %v182
    %v184 = vpop.f32.mrb[0].mxu0
    %185 = vdwg.mxu0
    %v187 = vsel %vm138, %v123, 0
    %v190 = vsel %vm138, %v135, 0
    %192 = vmatprep.subr.bf16.mxu0 0
    %193 = vmatpush1.bf16.xpose.msra.mxu0 %v190
    %194 = vmatprep.subr.bf16.mxu0 0
    %195 = vmatpush1.bf16.xpose.msra.mxu0 0
    %196 = vmatprep.subr.bf16.mxu0 0
    %197 = vmatpush1.bf16.xpose.msra.mxu0 0
    %198 = vmatprep.subr.bf16.mxu0 0
    %199 = vmatpush1.bf16.xpose.msra.mxu0 0
    %200 = vmatprep.subr.bf16.mxu0 0
    %201 = vmatpush1.bf16.xpose.msra.mxu0 0
    %202 = vmatprep.subr.bf16.mxu0 0
    %203 = vmatpush1.bf16.xpose.msra.mxu0 0
    %204 = vmatprep.subr.bf16.mxu0 0
    %205 = vmatpush1.bf16.xpose.msra.mxu0 0
    %206 = vmatprep.subr.bf16.mxu0 0
    %207 = vmatpush1.bf16.xpose.msra.mxu0 0
    %208 = vmatprep.subr.bf16.mxu0 0
    %209 = vmatpush1.bf16.xpose.msra.mxu0 0
    %210 = vmatprep.subr.bf16.mxu0 0
    %211 = vmatpush1.bf16.xpose.msra.mxu0 0
    %212 = vmatprep.subr.bf16.mxu0 0
    %213 = vmatpush1.bf16.xpose.msra.mxu0 0
    %214 = vmatprep.subr.bf16.mxu0 0
    %215 = vmatpush1.bf16.xpose.msra.mxu0 0
    %216 = vmatprep.subr.bf16.mxu0 0
    %217 = vmatpush1.bf16.xpose.msra.mxu0 0
    %218 = vmatprep.subr.bf16.mxu0 0
    %219 = vmatpush1.bf16.xpose.msra.mxu0 0
    %220 = vmatprep.subr.bf16.mxu0 0
    %221 = vmatpush1.bf16.xpose.msra.mxu0 0
    %222 = vmatprep.subr.bf16.mxu0 0
    %223 = vmatpush1.bf16.xpose.msra.mxu0 0
    %224 = vmatprep.mubr.bf16.mxu0 0
    %225 = vmatmul.mubr.bf16.gmra.mrb[0].mxu0 %v187
    %v226 = vpop.f32.mrb[0].mxu0
    %v227 = vadd.f32 0.0, %v226
    %v228 = vpop.f32.mrb[0].mxu0
    %v229 = vpop.f32.mrb[0].mxu0
    %v230 = vadd.f32 0.0, %v229
    %v231 = vpop.f32.mrb[0].mxu0
    %232 = vdwg.mxu0
    %v234 = vsel %vm138, %v124, 0
    %v237 = vsel %vm138, %v136, 0
    %239 = vmatprep.subr.bf16.mxu0 0
    %240 = vmatpush1.bf16.xpose.msra.mxu0 %v237
    %241 = vmatprep.subr.bf16.mxu0 0
    %242 = vmatpush1.bf16.xpose.msra.mxu0 0
    %243 = vmatprep.subr.bf16.mxu0 0
    %244 = vmatpush1.bf16.xpose.msra.mxu0 0
    %245 = vmatprep.subr.bf16.mxu0 0
    %246 = vmatpush1.bf16.xpose.msra.mxu0 0
    %247 = vmatprep.subr.bf16.mxu0 0
    %248 = vmatpush1.bf16.xpose.msra.mxu0 0
    %249 = vmatprep.subr.bf16.mxu0 0
    %250 = vmatpush1.bf16.xpose.msra.mxu0 0
    %251 = vmatprep.subr.bf16.mxu0 0
    %252 = vmatpush1.bf16.xpose.msra.mxu0 0
    %253 = vmatprep.subr.bf16.mxu0 0
    %254 = vmatpush1.bf16.xpose.msra.mxu0 0
    %255 = vmatprep.subr.bf16.mxu0 0
    %256 = vmatpush1.bf16.xpose.msra.mxu0 0
    %257 = vmatprep.subr.bf16.mxu0 0
    %258 = vmatpush1.bf16.xpose.msra.mxu0 0
    %259 = vmatprep.subr.bf16.mxu0 0
    %260 = vmatpush1.bf16.xpose.msra.mxu0 0
    %261 = vmatprep.subr.bf16.mxu0 0
    %262 = vmatpush1.bf16.xpose.msra.mxu0 0
    %263 = vmatprep.subr.bf16.mxu0 0
    %264 = vmatpush1.bf16.xpose.msra.mxu0 0
    %265 = vmatprep.subr.bf16.mxu0 0
    %266 = vmatpush1.bf16.xpose.msra.mxu0 0
    %267 = vmatprep.subr.bf16.mxu0 0
    %268 = vmatpush1.bf16.xpose.msra.mxu0 0
    %269 = vmatprep.subr.bf16.mxu0 0
    %270 = vmatpush1.bf16.xpose.msra.mxu0 0
    %271 = vmatprep.mubr.bf16.mxu0 0
    %272 = vmatmul.mubr.bf16.gmra.mrb[0].mxu0 %v234
    %v273 = vpop.f32.mrb[0].mxu0
    %v274 = vadd.f32 0.0, %v273
    %v275 = vpop.f32.mrb[0].mxu0
    %v276 = vpop.f32.mrb[0].mxu0
    %v277 = vadd.f32 0.0, %v276
    %v278 = vpop.f32.mrb[0].mxu0
    %279 = vdwg.mxu0
    %v281 = vsel %vm138, %v125, 0
    %v284 = vsel %vm138, %v137, 0
    %286 = vmatprep.subr.bf16.mxu0 0
    %287 = vmatpush1.bf16.xpose.msra.mxu0 %v284
    %288 = vmatprep.subr.bf16.mxu0 0
    %289 = vmatpush1.bf16.xpose.msra.mxu0 0
    %290 = vmatprep.subr.bf16.mxu0 0
    %291 = vmatpush1.bf16.xpose.msra.mxu0 0
    %292 = vmatprep.subr.bf16.mxu0 0
    %293 = vmatpush1.bf16.xpose.msra.mxu0 0
    %294 = vmatprep.subr.bf16.mxu0 0
    %295 = vmatpush1.bf16.xpose.msra.mxu0 0
    %296 = vmatprep.subr.bf16.mxu0 0
    %297 = vmatpush1.bf16.xpose.msra.mxu0 0
    %298 = vmatprep.subr.bf16.mxu0 0
    %299 = vmatpush1.bf16.xpose.msra.mxu0 0
    %300 = vmatprep.subr.bf16.mxu0 0
    %301 = vmatpush1.bf16.xpose.msra.mxu0 0
    %302 = vmatprep.subr.bf16.mxu0 0
    %303 = vmatpush1.bf16.xpose.msra.mxu0 0
    %304 = vmatprep.subr.bf16.mxu0 0
    %305 = vmatpush1.bf16.xpose.msra.mxu0 0
    %306 = vmatprep.subr.bf16.mxu0 0
    %307 = vmatpush1.bf16.xpose.msra.mxu0 0
    %308 = vmatprep.subr.bf16.mxu0 0
    %309 = vmatpush1.bf16.xpose.msra.mxu0 0
    %310 = vmatprep.subr.bf16.mxu0 0
    %311 = vmatpush1.bf16.xpose.msra.mxu0 0
    %312 = vmatprep.subr.bf16.mxu0 0
    %313 = vmatpush1.bf16.xpose.msra.mxu0 0
    %314 = vmatprep.subr.bf16.mxu0 0
    %315 = vmatpush1.bf16.xpose.msra.mxu0 0
    %316 = vmatprep.subr.bf16.mxu0 0
    %317 = vmatpush1.bf16.xpose.msra.mxu0 0
    %318 = vmatprep.mubr.bf16.mxu0 0
    %319 = vmatmul.mubr.bf16.gmra.mrb[0].mxu0 %v281
    %v320 = vpop.f32.mrb[0].mxu0
    %v321 = vadd.f32 0.0, %v320
    %v322 = vpop.f32.mrb[0].mxu0
    %v323 = vpop.f32.mrb[0].mxu0
    %v324 = vadd.f32 0.0, %v323
    %v325 = vpop.f32.mrb[0].mxu0
    %326 = vdwg.mxu0
    %v327 = vmul.f32 %v180, 0.25
    %v328 = vmul.f32 %v183, 0.25
    %v329 = vmul.f32 %v227, 0.25
    %v330 = vmul.f32 %v230, 0.25
    %v331 = vmul.f32 %v274, 0.25
    %v332 = vmul.f32 %v277, 0.25
    %v333 = vmul.f32 %v321, 0.25
    %v334 = vmul.f32 %v324, 0.25
    %s335 = smul.u32 0, 16
    %v336 = vlaneseq
    %v337 = vshrl.u32 %v336, 7
    %v338 = vadd.s32 %v337, 8
    %v339 = vstv %s335
    %v340 = vadd.s32 %v339, %v337
    %v341 = vadd.s32 %v339, %v338
    %s342 = smul.u32 %s109, 16
    %v343 = vlaneseq
    %v344 = vand.u32 %v343, 127
    %v345 = vstv %s342
    %v346 = vadd.s32 %v345, %v344
    %v347 = vsub.s32 %v340, 4
    %v348 = vsub.s32 %v341, 4
    %vm349 = vcmp.gt.s32.totalorder %v346, %v347
    %vm350 = vcmp.gt.s32.totalorder %v346, %v348
    %vm351 = vcmp.le.s32.totalorder %v346, %v340
    %vm352 = vcmp.le.s32.totalorder %v346, %v341
    %vm353 = vmand %vm349, %vm351
    %vm354 = vmand %vm350, %vm352
    %v355 = vsel %vm353, 1, 0
    %v356 = vsel %vm354, 1, 0
    %vm357 = vcmp.eq.s32.totalorder %v355, 1
    %vm358 = vcmp.eq.s32.totalorder %v356, 1
    %v359 = vsel %vm357, %v327, -inf
    %v360 = vsel %vm358, %v328, -inf
    %v361 = vsel %vm357, %v329, -inf
    %v362 = vsel %vm358, %v330, -inf
    %v363 = vsel %vm357, %v331, -inf
    %v364 = vsel %vm358, %v332, -inf
    %v365 = vsel %vm357, %v333, -inf
    %v366 = vsel %vm358, %v334, -inf
    %v367 = vld [vmem:[#allocation2] sm:$0xff]
    %v368 = vld [vmem:[#allocation2 + $0x8] sm:$0xff]
    %v369 = vld [vmem:[#allocation2 + $0x10] sm:$0xff]
    %v370 = vld [vmem:[#allocation2 + $0x18] sm:$0xff]
    %v371 = vld [vmem:[#allocation2 + $0x20] sm:$0xff]
    %v372 = vld [vmem:[#allocation2 + $0x28] sm:$0xff]
    %v373 = vld [vmem:[#allocation2 + $0x30] sm:$0xff]
    %v374 = vld [vmem:[#allocation2 + $0x38] sm:$0xff]
    %v375 = vsel %vm138, %v359, -inf
    %376 = vmax.xlane.f32.xlu0 %v375
    %v377 = vpop.xlane.xlu0 %376
    %v378 = vsel %vm138, %v360, -inf
    %379 = vmax.xlane.f32.xlu0 %v378
    %v380 = vpop.xlane.xlu0 %379
    %v381 = vsel %vm138, %v361, -inf
    %382 = vmax.xlane.f32.xlu0 %v381
    %v383 = vpop.xlane.xlu0 %382
    %v384 = vsel %vm138, %v362, -inf
    %385 = vmax.xlane.f32.xlu0 %v384
    %v386 = vpop.xlane.xlu0 %385
    %v387 = vsel %vm138, %v363, -inf
    %388 = vmax.xlane.f32.xlu0 %v387
    %v389 = vpop.xlane.xlu0 %388
    %v390 = vsel %vm138, %v364, -inf
    %391 = vmax.xlane.f32.xlu0 %v390
    %v392 = vpop.xlane.xlu0 %391
    %v393 = vsel %vm138, %v365, -inf
    %394 = vmax.xlane.f32.xlu0 %v393
    %v395 = vpop.xlane.xlu0 %394
    %v396 = vsel %vm138, %v366, -inf
    %397 = vmax.xlane.f32.xlu0 %v396
    %v398 = vpop.xlane.xlu0 %397
    %v399 = vmax.f32 %v367, %v377
    %v400 = vmax.f32 %v368, %v380
    %v401 = vmax.f32 %v369, %v383
    %v402 = vmax.f32 %v370, %v386
    %v403 = vmax.f32 %v371, %v389
    %v404 = vmax.f32 %v372, %v392
    %v405 = vmax.f32 %v373, %v395
    %v406 = vmax.f32 %v374, %v398
    %vm407 = vcmp.eq.f32.partialorder %v399, -inf
    %vm408 = vcmp.eq.f32.partialorder %v400, -inf
    %vm409 = vcmp.eq.f32.partialorder %v401, -inf
    %vm410 = vcmp.eq.f32.partialorder %v402, -inf
    %vm411 = vcmp.eq.f32.partialorder %v403, -inf
    %vm412 = vcmp.eq.f32.partialorder %v404, -inf
    %vm413 = vcmp.eq.f32.partialorder %v405, -inf
    %vm414 = vcmp.eq.f32.partialorder %v406, -inf
    %v415 = vsel %vm407, 0.0, %v399
    %v416 = vsel %vm408, 0.0, %v400
    %v417 = vsel %vm409, 0.0, %v401
    %v418 = vsel %vm410, 0.0, %v402
    %v419 = vsel %vm411, 0.0, %v403
    %v420 = vsel %vm412, 0.0, %v404
    %v421 = vsel %vm413, 0.0, %v405
    %v422 = vsel %vm414, 0.0, %v406
    %v423 = vsub.f32 %v367, %v415
    %v424 = vsub.f32 %v368, %v416
    %v425 = vsub.f32 %v369, %v417
    %v426 = vsub.f32 %v370, %v418
    %v427 = vsub.f32 %v371, %v419
    %v428 = vsub.f32 %v372, %v420
    %v429 = vsub.f32 %v373, %v421
    %v430 = vsub.f32 %v374, %v422
    %v431 = vmul.f32 %v423, 1.442695
    %v432 = vpow.pop %v431
    %v433 = vmul.f32 %v424, 1.442695
    %v434 = vpow.pop %v433
    %v435 = vmul.f32 %v425, 1.442695
    %v436 = vpow.pop %v435
    %v437 = vmul.f32 %v426, 1.442695
    %v438 = vpow.pop %v437
    %v439 = vmul.f32 %v427, 1.442695
    %v440 = vpow.pop %v439
    %v441 = vmul.f32 %v428, 1.442695
    %v442 = vpow.pop %v441
    %v443 = vmul.f32 %v429, 1.442695
    %v444 = vpow.pop %v443
    %v445 = vmul.f32 %v430, 1.442695
    %v446 = vpow.pop %v445
    %448 = vset.pattern.permute.xlu0 0
    %449 = vperm.xlu0 %448, %v415
    %v450 = vpop.permute.xlu0 %449
    %453 = vset.pattern.permute.xlu0 0
    %454 = vperm.xlu0 %453, %v416
    %v455 = vpop.permute.xlu0 %454
    %458 = vset.pattern.permute.xlu0 0
    %459 = vperm.xlu0 %458, %v417
    %v460 = vpop.permute.xlu0 %459
    %463 = vset.pattern.permute.xlu0 0
    %464 = vperm.xlu0 %463, %v418
    %v465 = vpop.permute.xlu0 %464
    %468 = vset.pattern.permute.xlu0 0
    %469 = vperm.xlu0 %468, %v419
    %v470 = vpop.permute.xlu0 %469
    %473 = vset.pattern.permute.xlu0 0
    %474 = vperm.xlu0 %473, %v420
    %v475 = vpop.permute.xlu0 %474
    %478 = vset.pattern.permute.xlu0 0
    %479 = vperm.xlu0 %478, %v421
    %v480 = vpop.permute.xlu0 %479
    %483 = vset.pattern.permute.xlu0 0
    %484 = vperm.xlu0 %483, %v422
    %v485 = vpop.permute.xlu0 %484
    %v487 = vsub.f32 %v359, %v450
    %v488 = vsub.f32 %v360, %v455
    %v489 = vsub.f32 %v361, %v460
    %v490 = vsub.f32 %v362, %v465
    %v491 = vsub.f32 %v363, %v470
    %v492 = vsub.f32 %v364, %v475
    %v493 = vsub.f32 %v365, %v480
    %v494 = vsub.f32 %v366, %v485
    %v495 = vmul.f32 %v487, 1.442695
    %v496 = vpow.pop %v495
    %v497 = vmul.f32 %v488, 1.442695
    %v498 = vpow.pop %v497
    %v499 = vmul.f32 %v489, 1.442695
    %v500 = vpow.pop %v499
    %v501 = vmul.f32 %v490, 1.442695
    %v502 = vpow.pop %v501
    %v503 = vmul.f32 %v491, 1.442695
    %v504 = vpow.pop %v503
    %v505 = vmul.f32 %v492, 1.442695
    %v506 = vpow.pop %v505
    %v507 = vmul.f32 %v493, 1.442695
    %v508 = vpow.pop %v507
    %v509 = vmul.f32 %v494, 1.442695
    %v510 = vpow.pop %v509
    %v511 = vsel %vm357, %v496, 0.0
    %v512 = vsel %vm358, %v498, 0.0
    %v513 = vsel %vm357, %v500, 0.0
    %v514 = vsel %vm358, %v502, 0.0
    %v515 = vsel %vm357, %v504, 0.0
    %v516 = vsel %vm358, %v506, 0.0
    %v517 = vsel %vm357, %v508, 0.0
    %v518 = vsel %vm358, %v510, 0.0
    %v519 = vld [vmem:[#allocation3] sm:$0xff]
    %v520 = vld [vmem:[#allocation3 + $0x8] sm:$0xff]
    %v521 = vld [vmem:[#allocation3 + $0x10] sm:$0xff]
    %v522 = vld [vmem:[#allocation3 + $0x18] sm:$0xff]
    %v523 = vld [vmem:[#allocation3 + $0x20] sm:$0xff]
    %v524 = vld [vmem:[#allocation3 + $0x28] sm:$0xff]
    %v525 = vld [vmem:[#allocation3 + $0x30] sm:$0xff]
    %v526 = vld [vmem:[#allocation3 + $0x38] sm:$0xff]
    %v527 = vmul.f32 %v432, %v519
    %v528 = vmul.f32 %v434, %v520
    %v529 = vmul.f32 %v436, %v521
    %v530 = vmul.f32 %v438, %v522
    %v531 = vmul.f32 %v440, %v523
    %v532 = vmul.f32 %v442, %v524
    %v533 = vmul.f32 %v444, %v525
    %v534 = vmul.f32 %v446, %v526
    %v535 = vsel %vm138, %v511, 0.0
    %536 = vadd.xlane.f32.xlu0 %v535
    %v537 = vpop.xlane.xlu0 %536
    %v538 = vsel %vm138, %v512, 0.0
    %539 = vadd.xlane.f32.xlu0 %v538
    %v540 = vpop.xlane.xlu0 %539
    %v541 = vsel %vm138, %v513, 0.0
    %542 = vadd.xlane.f32.xlu0 %v541
    %v543 = vpop.xlane.xlu0 %542
    %v544 = vsel %vm138, %v514, 0.0
    %545 = vadd.xlane.f32.xlu0 %v544
    %v546 = vpop.xlane.xlu0 %545
    %v547 = vsel %vm138, %v515, 0.0
    %548 = vadd.xlane.f32.xlu0 %v547
    %v549 = vpop.xlane.xlu0 %548
    %v550 = vsel %vm138, %v516, 0.0
    %551 = vadd.xlane.f32.xlu0 %v550
    %v552 = vpop.xlane.xlu0 %551
    %v553 = vsel %vm138, %v517, 0.0
    %554 = vadd.xlane.f32.xlu0 %v553
    %v555 = vpop.xlane.xlu0 %554
    %v556 = vsel %vm138, %v518, 0.0
    %557 = vadd.xlane.f32.xlu0 %v556
    %v558 = vpop.xlane.xlu0 %557
    %v559 = vadd.f32 %v527, %v537
    %v560 = vadd.f32 %v528, %v540
    %v561 = vadd.f32 %v529, %v543
    %v562 = vadd.f32 %v530, %v546
    %v563 = vadd.f32 %v531, %v549
    %v564 = vadd.f32 %v532, %v552
    %v565 = vadd.f32 %v533, %v555
    %v566 = vadd.f32 %v534, %v558
    %vm567 = vcmask 7168
    %568 = vst.msk [vmem:[#allocation3] sm:$0xff] %vm567, %v559
    %569 = vst.msk [vmem:[#allocation3 + $0x8] sm:$0xff] %vm567, %v560
    %570 = vst.msk [vmem:[#allocation3 + $0x10] sm:$0xff] %vm567, %v561
    %571 = vst.msk [vmem:[#allocation3 + $0x18] sm:$0xff] %vm567, %v562
    %572 = vst.msk [vmem:[#allocation3 + $0x20] sm:$0xff] %vm567, %v563
    %573 = vst.msk [vmem:[#allocation3 + $0x28] sm:$0xff] %vm567, %v564
    %574 = vst.msk [vmem:[#allocation3 + $0x30] sm:$0xff] %vm567, %v565
    %575 = vst.msk [vmem:[#allocation3 + $0x38] sm:$0xff] %vm567, %v566
    %v576 = vld [vmem:[#allocation4] sm:$0xff]
    %v577 = vld [vmem:[#allocation4 + $0x8] sm:$0xff]
    %v578 = vld [vmem:[#allocation4 + $0x10] sm:$0xff]
    %v579 = vld [vmem:[#allocation4 + $0x18] sm:$0xff]
    %v580 = vld [vmem:[#allocation4 + $0x20] sm:$0xff]
    %v581 = vld [vmem:[#allocation4 + $0x28] sm:$0xff]
    %v582 = vld [vmem:[#allocation4 + $0x30] sm:$0xff]
    %v583 = vld [vmem:[#allocation4 + $0x38] sm:$0xff]
    %585 = vset.pattern.permute.xlu0 0
    %586 = vperm.xlu0 %585, %v432
    %v587 = vpop.permute.xlu0 %586
    %590 = vset.pattern.permute.xlu0 0
    %591 = vperm.xlu0 %590, %v434
    %v592 = vpop.permute.xlu0 %591
    %595 = vset.pattern.permute.xlu0 0
    %596 = vperm.xlu0 %595, %v436
    %v597 = vpop.permute.xlu0 %596
    %600 = vset.pattern.permute.xlu0 0
    %601 = vperm.xlu0 %600, %v438
    %v602 = vpop.permute.xlu0 %601
    %605 = vset.pattern.permute.xlu0 0
    %606 = vperm.xlu0 %605, %v440
    %v607 = vpop.permute.xlu0 %606
    %610 = vset.pattern.permute.xlu0 0
    %611 = vperm.xlu0 %610, %v442
    %v612 = vpop.permute.xlu0 %611
    %615 = vset.pattern.permute.xlu0 0
    %616 = vperm.xlu0 %615, %v444
    %v617 = vpop.permute.xlu0 %616
    %620 = vset.pattern.permute.xlu0 0
    %621 = vperm.xlu0 %620, %v446
    %v622 = vpop.permute.xlu0 %621
    %v624 = vmul.f32 %v587, %v576
    %v625 = vmul.f32 %v592, %v577
    %v626 = vmul.f32 %v597, %v578
    %v627 = vmul.f32 %v602, %v579
    %v628 = vmul.f32 %v607, %v580
    %v629 = vmul.f32 %v612, %v581
    %v630 = vmul.f32 %v617, %v582
    %v631 = vmul.f32 %v622, %v583
    %v632 = vpack.c.bf16 %v512, %v511
    %v633 = vpack.c.bf16 %v514, %v513
    %v634 = vpack.c.bf16 %v516, %v515
    %v635 = vpack.c.bf16 %v518, %v517
    %v636 = vld [vmem:[%s73] sm:$0xff]
    %v637 = vld [vmem:[%s73 + $0x8] sm:$0xff]
    %v638 = vld [vmem:[%s73 + $0x10] sm:$0xff]
    %v639 = vld [vmem:[%s73 + $0x18] sm:$0xff]
    %v640 = vld [vmem:[%s73 + $0x20] sm:$0xff]
    %v641 = vld [vmem:[%s73 + $0x28] sm:$0xff]
    %v642 = vld [vmem:[%s73 + $0x30] sm:$0xff]
    %v643 = vld [vmem:[%s73 + $0x38] sm:$0xff]
    %v644 = vpack.c.bf16 %v637, %v636
    %v645 = vpack.c.bf16 %v639, %v638
    %v646 = vpack.c.bf16 %v641, %v640
    %v647 = vpack.c.bf16 %v643, %v642
    %v649 = vsel %vm138, %v632, 0
    %651 = vmatprep.subr.bf16.mxu0 0
    %652 = vmatpush1.bf16.msra.mxu0 %v644
    %653 = vmatprep.subr.bf16.mxu0 0
    %654 = vmatpush1.bf16.msra.mxu0 0
    %655 = vmatprep.subr.bf16.mxu0 0
    %656 = vmatpush1.bf16.msra.mxu0 0
    %657 = vmatprep.subr.bf16.mxu0 0
    %658 = vmatpush1.bf16.msra.mxu0 0
    %659 = vmatprep.subr.bf16.mxu0 0
    %660 = vmatpush1.bf16.msra.mxu0 0
    %661 = vmatprep.subr.bf16.mxu0 0
    %662 = vmatpush1.bf16.msra.mxu0 0
    %663 = vmatprep.subr.bf16.mxu0 0
    %664 = vmatpush1.bf16.msra.mxu0 0
    %665 = vmatprep.subr.bf16.mxu0 0
    %666 = vmatpush1.bf16.msra.mxu0 0
    %667 = vmatprep.subr.bf16.mxu0 0
    %668 = vmatpush1.bf16.msra.mxu0 0
    %669 = vmatprep.subr.bf16.mxu0 0
    %670 = vmatpush1.bf16.msra.mxu0 0
    %671 = vmatprep.subr.bf16.mxu0 0
    %672 = vmatpush1.bf16.msra.mxu0 0
    %673 = vmatprep.subr.bf16.mxu0 0
    %674 = vmatpush1.bf16.msra.mxu0 0
    %675 = vmatprep.subr.bf16.mxu0 0
    %676 = vmatpush1.bf16.msra.mxu0 0
    %677 = vmatprep.subr.bf16.mxu0 0
    %678 = vmatpush1.bf16.msra.mxu0 0
    %679 = vmatprep.subr.bf16.mxu0 0
    %680 = vmatpush1.bf16.msra.mxu0 0
    %681 = vmatprep.subr.bf16.mxu0 0
    %682 = vmatpush1.bf16.msra.mxu0 0
    %683 = vmatprep.mubr.bf16.mxu0 0
    %684 = vmatmul.mubr.bf16.gmra.mrb[0].mxu0 %v649
    %v685 = vpop.f32.mrb[0].mxu0
    %v686 = vadd.f32 0.0, %v685
    %v687 = vpop.f32.mrb[0].mxu0
    %v688 = vpop.f32.mrb[0].mxu0
    %v689 = vadd.f32 0.0, %v688
    %v690 = vpop.f32.mrb[0].mxu0
    %691 = vdwg.mxu0
    %v693 = vsel %vm138, %v633, 0
    %695 = vmatprep.subr.bf16.mxu0 0
    %696 = vmatpush1.bf16.msra.mxu0 %v645
    %697 = vmatprep.subr.bf16.mxu0 0
    %698 = vmatpush1.bf16.msra.mxu0 0
    %699 = vmatprep.subr.bf16.mxu0 0
    %700 = vmatpush1.bf16.msra.mxu0 0
    %701 = vmatprep.subr.bf16.mxu0 0
    %702 = vmatpush1.bf16.msra.mxu0 0
    %703 = vmatprep.subr.bf16.mxu0 0
    %704 = vmatpush1.bf16.msra.mxu0 0
    %705 = vmatprep.subr.bf16.mxu0 0
    %706 = vmatpush1.bf16.msra.mxu0 0
    %707 = vmatprep.subr.bf16.mxu0 0
    %708 = vmatpush1.bf16.msra.mxu0 0
    %709 = vmatprep.subr.bf16.mxu0 0
    %710 = vmatpush1.bf16.msra.mxu0 0
    %711 = vmatprep.subr.bf16.mxu0 0
    %712 = vmatpush1.bf16.msra.mxu0 0
    %713 = vmatprep.subr.bf16.mxu0 0
    %714 = vmatpush1.bf16.msra.mxu0 0
    %715 = vmatprep.subr.bf16.mxu0 0
    %716 = vmatpush1.bf16.msra.mxu0 0
    %717 = vmatprep.subr.bf16.mxu0 0
    %718 = vmatpush1.bf16.msra.mxu0 0
    %719 = vmatprep.subr.bf16.mxu0 0
    %720 = vmatpush1.bf16.msra.mxu0 0
    %721 = vmatprep.subr.bf16.mxu0 0
    %722 = vmatpush1.bf16.msra.mxu0 0
    %723 = vmatprep.subr.bf16.mxu0 0
    %724 = vmatpush1.bf16.msra.mxu0 0
    %725 = vmatprep.subr.bf16.mxu0 0
    %726 = vmatpush1.bf16.msra.mxu0 0
    %727 = vmatprep.mubr.bf16.mxu0 0
    %728 = vmatmul.mubr.bf16.gmra.mrb[0].mxu0 %v693
    %v729 = vpop.f32.mrb[0].mxu0
    %v730 = vadd.f32 0.0, %v729
    %v731 = vpop.f32.mrb[0].mxu0
    %v732 = vpop.f32.mrb[0].mxu0
    %v733 = vadd.f32 0.0, %v732
    %v734 = vpop.f32.mrb[0].mxu0
    %735 = vdwg.mxu0
    %v737 = vsel %vm138, %v634, 0
    %739 = vmatprep.subr.bf16.mxu0 0
    %740 = vmatpush1.bf16.msra.mxu0 %v646
    %741 = vmatprep.subr.bf16.mxu0 0
    %742 = vmatpush1.bf16.msra.mxu0 0
    %743 = vmatprep.subr.bf16.mxu0 0
    %744 = vmatpush1.bf16.msra.mxu0 0
    %745 = vmatprep.subr.bf16.mxu0 0
    %746 = vmatpush1.bf16.msra.mxu0 0
    %747 = vmatprep.subr.bf16.mxu0 0
    %748 = vmatpush1.bf16.msra.mxu0 0
    %749 = vmatprep.subr.bf16.mxu0 0
    %750 = vmatpush1.bf16.msra.mxu0 0
    %751 = vmatprep.subr.bf16.mxu0 0
    %752 = vmatpush1.bf16.msra.mxu0 0
    %753 = vmatprep.subr.bf16.mxu0 0
    %754 = vmatpush1.bf16.msra.mxu0 0
    %755 = vmatprep.subr.bf16.mxu0 0
    %756 = vmatpush1.bf16.msra.mxu0 0
    %757 = vmatprep.subr.bf16.mxu0 0
    %758 = vmatpush1.bf16.msra.mxu0 0
    %759 = vmatprep.subr.bf16.mxu0 0
    %760 = vmatpush1.bf16.msra.mxu0 0
    %761 = vmatprep.subr.bf16.mxu0 0
    %762 = vmatpush1.bf16.msra.mxu0 0
    %763 = vmatprep.subr.bf16.mxu0 0
    %764 = vmatpush1.bf16.msra.mxu0 0
    %765 = vmatprep.subr.bf16.mxu0 0
    %766 = vmatpush1.bf16.msra.mxu0 0
    %767 = vmatprep.subr.bf16.mxu0 0
    %768 = vmatpush1.bf16.msra.mxu0 0
    %769 = vmatprep.subr.bf16.mxu0 0
    %770 = vmatpush1.bf16.msra.mxu0 0
    %771 = vmatprep.mubr.bf16.mxu0 0
    %772 = vmatmul.mubr.bf16.gmra.mrb[0].mxu0 %v737
    %v773 = vpop.f32.mrb[0].mxu0
    %v774 = vadd.f32 0.0, %v773
    %v775 = vpop.f32.mrb[0].mxu0
    %v776 = vpop.f32.mrb[0].mxu0
    %v777 = vadd.f32 0.0, %v776
    %v778 = vpop.f32.mrb[0].mxu0
    %779 = vdwg.mxu0
    %v781 = vsel %vm138, %v635, 0
    %783 = vmatprep.subr.bf16.mxu0 0
    %784 = vmatpush1.bf16.msra.mxu0 %v647
    %785 = vmatprep.subr.bf16.mxu0 0
    %786 = vmatpush1.bf16.msra.mxu0 0
    %787 = vmatprep.subr.bf16.mxu0 0
    %788 = vmatpush1.bf16.msra.mxu0 0
    %789 = vmatprep.subr.bf16.mxu0 0
    %790 = vmatpush1.bf16.msra.mxu0 0
    %791 = vmatprep.subr.bf16.mxu0 0
    %792 = vmatpush1.bf16.msra.mxu0 0
    %793 = vmatprep.subr.bf16.mxu0 0
    %794 = vmatpush1.bf16.msra.mxu0 0
    %795 = vmatprep.subr.bf16.mxu0 0
    %796 = vmatpush1.bf16.msra.mxu0 0
    %797 = vmatprep.subr.bf16.mxu0 0
    %798 = vmatpush1.bf16.msra.mxu0 0
    %799 = vmatprep.subr.bf16.mxu0 0
    %800 = vmatpush1.bf16.msra.mxu0 0
    %801 = vmatprep.subr.bf16.mxu0 0
    %802 = vmatpush1.bf16.msra.mxu0 0
    %803 = vmatprep.subr.bf16.mxu0 0
    %804 = vmatpush1.bf16.msra.mxu0 0
    %805 = vmatprep.subr.bf16.mxu0 0
    %806 = vmatpush1.bf16.msra.mxu0 0
    %807 = vmatprep.subr.bf16.mxu0 0
    %808 = vmatpush1.bf16.msra.mxu0 0
    %809 = vmatprep.subr.bf16.mxu0 0
    %810 = vmatpush1.bf16.msra.mxu0 0
    %811 = vmatprep.subr.bf16.mxu0 0
    %812 = vmatpush1.bf16.msra.mxu0 0
    %813 = vmatprep.subr.bf16.mxu0 0
    %814 = vmatpush1.bf16.msra.mxu0 0
    %815 = vmatprep.mubr.bf16.mxu0 0
    %816 = vmatmul.mubr.bf16.gmra.mrb[0].mxu0 %v781
    %v817 = vpop.f32.mrb[0].mxu0
    %v818 = vadd.f32 0.0, %v817
    %v819 = vpop.f32.mrb[0].mxu0
    %v820 = vpop.f32.mrb[0].mxu0
    %v821 = vadd.f32 0.0, %v820
    %v822 = vpop.f32.mrb[0].mxu0
    %823 = vdwg.mxu0
    %v824 = vadd.f32 %v624, %v686
    %v825 = vadd.f32 %v625, %v689
    %v826 = vadd.f32 %v626, %v730
    %v827 = vadd.f32 %v627, %v733
    %v828 = vadd.f32 %v628, %v774
    %v829 = vadd.f32 %v629, %v777
    %v830 = vadd.f32 %v630, %v818
    %v831 = vadd.f32 %v631, %v821
    %832 = vst.msk [vmem:[#allocation4] sm:$0xff] %vm138, %v824
    %833 = vst.msk [vmem:[#allocation4 + $0x8] sm:$0xff] %vm138, %v825
    %834 = vst.msk [vmem:[#allocation4 + $0x10] sm:$0xff] %vm138, %v826
    %835 = vst.msk [vmem:[#allocation4 + $0x18] sm:$0xff] %vm138, %v827
    %836 = vst.msk [vmem:[#allocation4 + $0x20] sm:$0xff] %vm138, %v828
    %837 = vst.msk [vmem:[#allocation4 + $0x28] sm:$0xff] %vm138, %v829
    %838 = vst.msk [vmem:[#allocation4 + $0x30] sm:$0xff] %vm138, %v830
    %839 = vst.msk [vmem:[#allocation4 + $0x38] sm:$0xff] %vm138, %v831
    %840 = vst.msk [vmem:[#allocation2] sm:$0xff] %vm567, %v399
    %841 = vst.msk [vmem:[#allocation2 + $0x8] sm:$0xff] %vm567, %v400
    %842 = vst.msk [vmem:[#allocation2 + $0x10] sm:$0xff] %vm567, %v401
    %843 = vst.msk [vmem:[#allocation2 + $0x18] sm:$0xff] %vm567, %v402
    %844 = vst.msk [vmem:[#allocation2 + $0x20] sm:$0xff] %vm567, %v403
    %845 = vst.msk [vmem:[#allocation2 + $0x28] sm:$0xff] %vm567, %v404
    %846 = vst.msk [vmem:[#allocation2 + $0x30] sm:$0xff] %vm567, %v405
    %847 = vst.msk [vmem:[#allocation2 + $0x38] sm:$0xff] %vm567, %v406
  $region21: #{_lambda_.16} parent=0 // pred_fallthru
    _
  // Predicated region
  $region22: #{_lambda_.16} parent=0 // pred_check
    %p848 = pneg %p79
  $region23: #{_lambda_.16} parent=0 // pred_check_branch
    %850 = sbr.rel (%p848) target = $region25
  $region24: #{_lambda_.16} parent=0 // pred_region
    %v851 = vld [vmem:[#allocation3] sm:$0xff]
    %v852 = vld [vmem:[#allocation3 + $0x8] sm:$0xff]
    %v853 = vld [vmem:[#allocation3 + $0x10] sm:$0xff]
    %v854 = vld [vmem:[#allocation3 + $0x18] sm:$0xff]
    %v855 = vld [vmem:[#allocation3 + $0x20] sm:$0xff]
    %v856 = vld [vmem:[#allocation3 + $0x28] sm:$0xff]
    %v857 = vld [vmem:[#allocation3 + $0x30] sm:$0xff]
    %v858 = vld [vmem:[#allocation3 + $0x38] sm:$0xff]
    %vm859 = vcmp.gt.f32.partialorder %v851, 0.0
    %vm860 = vcmp.gt.f32.partialorder %v852, 0.0
    %vm861 = vcmp.gt.f32.partialorder %v853, 0.0
    %vm862 = vcmp.gt.f32.partialorder %v854, 0.0
    %vm863 = vcmp.gt.f32.partialorder %v855, 0.0
    %vm864 = vcmp.gt.f32.partialorder %v856, 0.0
    %vm865 = vcmp.gt.f32.partialorder %v857, 0.0
    %vm866 = vcmp.gt.f32.partialorder %v858, 0.0
    %v867 = vsel %vm859, %v851, 1.0
    %v868 = vsel %vm860, %v852, 1.0
    %v869 = vsel %vm861, %v853, 1.0
    %v870 = vsel %vm862, %v854, 1.0
    %v871 = vsel %vm863, %v855, 1.0
    %v872 = vsel %vm864, %v856, 1.0
    %v873 = vsel %vm865, %v857, 1.0
    %v874 = vsel %vm866, %v858, 1.0
    %v875 = vrcp.pop %v867
    %v876 = vrcp.pop %v868
    %v877 = vrcp.pop %v869
    %v878 = vrcp.pop %v870
    %v879 = vrcp.pop %v871
    %v880 = vrcp.pop %v872
    %v881 = vrcp.pop %v873
    %v882 = vrcp.pop %v874
    %v883 = vsel %vm859, %v875, 0.0
    %v884 = vsel %vm860, %v876, 0.0
    %v885 = vsel %vm861, %v877, 0.0
    %v886 = vsel %vm862, %v878, 0.0
    %v887 = vsel %vm863, %v879, 0.0
    %v888 = vsel %vm864, %v880, 0.0
    %v889 = vsel %vm865, %v881, 0.0
    %v890 = vsel %vm866, %v882, 0.0
    %v891 = vld [vmem:[#allocation4] sm:$0xff]
    %v892 = vld [vmem:[#allocation4 + $0x8] sm:$0xff]
    %v893 = vld [vmem:[#allocation4 + $0x10] sm:$0xff]
    %v894 = vld [vmem:[#allocation4 + $0x18] sm:$0xff]
    %v895 = vld [vmem:[#allocation4 + $0x20] sm:$0xff]
    %v896 = vld [vmem:[#allocation4 + $0x28] sm:$0xff]
    %v897 = vld [vmem:[#allocation4 + $0x30] sm:$0xff]
    %v898 = vld [vmem:[#allocation4 + $0x38] sm:$0xff]
    %900 = vset.pattern.permute.xlu0 0
    %901 = vperm.xlu0 %900, %v883
    %v902 = vpop.permute.xlu0 %901
    %905 = vset.pattern.permute.xlu0 0
    %906 = vperm.xlu0 %905, %v884
    %v907 = vpop.permute.xlu0 %906
    %910 = vset.pattern.permute.xlu0 0
    %911 = vperm.xlu0 %910, %v885
    %v912 = vpop.permute.xlu0 %911
    %915 = vset.pattern.permute.xlu0 0
    %916 = vperm.xlu0 %915, %v886
    %v917 = vpop.permute.xlu0 %916
    %920 = vset.pattern.permute.xlu0 0
    %921 = vperm.xlu0 %920, %v887
    %v922 = vpop.permute.xlu0 %921
    %925 = vset.pattern.permute.xlu0 0
    %926 = vperm.xlu0 %925, %v888
    %v927 = vpop.permute.xlu0 %926
    %930 = vset.pattern.permute.xlu0 0
    %931 = vperm.xlu0 %930, %v889
    %v932 = vpop.permute.xlu0 %931
    %935 = vset.pattern.permute.xlu0 0
    %936 = vperm.xlu0 %935, %v890
    %v937 = vpop.permute.xlu0 %936
    %v939 = vmul.f32 %v891, %v902
    %v940 = vmul.f32 %v892, %v907
    %v941 = vmul.f32 %v893, %v912
    %v942 = vmul.f32 %v894, %v917
    %v943 = vmul.f32 %v895, %v922
    %v944 = vmul.f32 %v896, %v927
    %v945 = vmul.f32 %v897, %v932
    %v946 = vmul.f32 %v898, %v937
    %vm947 = vcmask 130048
    %948 = vst.msk [vmem:[%s3] sm:$0xff] %vm947, %v939
    %949 = vst.msk [vmem:[%s3 + $0x8] sm:$0xff] %vm947, %v940
    %950 = vst.msk [vmem:[%s3 + $0x10] sm:$0xff] %vm947, %v941
    %951 = vst.msk [vmem:[%s3 + $0x18] sm:$0xff] %vm947, %v942
    %952 = vst.msk [vmem:[%s3 + $0x20] sm:$0xff] %vm947, %v943
    %953 = vst.msk [vmem:[%s3 + $0x28] sm:$0xff] %vm947, %v944
    %954 = vst.msk [vmem:[%s3 + $0x30] sm:$0xff] %vm947, %v945
    %955 = vst.msk [vmem:[%s3 + $0x38] sm:$0xff] %vm947, %v946
  $region25: #{_lambda_.16} parent=0 // pred_fallthru
    _
  // Predicated region
  $region26: #{_lambda_.16} parent=0 // pred_check
    _
  $region27: #{_lambda_.16} parent=0 // pred_check_branch
    %957 = sbr.rel (0) target = $region29
  $region28: #{_lambda_.16} parent=0 // pred_region
    _
  $region29: #{_lambda_.16} parent=0 // pred_fallthru
    _
  // Predicated region
  $region30: #{_lambda_.16} parent=0 // pred_check
    _
  $region31: #{_lambda_.16} parent=0 // pred_check_branch
    %959 = sbr.rel (0) target = $region33
  $region32: #{_lambda_.16} parent=0 // pred_region
    _
  $region33: #{_lambda_.16} parent=0 // pred_fallthru
    _

// kernel: _lambda_.23
$region0: #{_lambda_.23}
  #allocation0 [shape = 'u32[]', space=smem, size = 0x4, offset = 0x4, fixed_abs, tag = 'smem constant byte address 0x4 - core index']
  #allocation1 [shape = 'u32[144,128]{1,0:T(1,128)}', space=vmem, size = 0x12000, scoped, tag = 'internal scratch']
  #allocation2 [shape = 'f32[32,128]{1,0:T(8,128)}', space=vmem, size = 0x4000, scoped, tag = 'scratch operand']
  %s0 = inlined_call_operand.vmem [shape: f32[32,128], index: 0, kind: input, shape index: {}]
  %s1 = inlined_call_operand.vmem [shape: f32[128,128], index: 1, kind: input, shape index: {}]
  %s2 = inlined_call_operand.vmem [shape: f32[32,128], index: 2, kind: input, shape index: {}]
  %s3 = inlined_call_operand.hbm [shape: f32[32,128], index: 3, kind: output, shape index: {}]
  %s4 = sld [smem:[#allocation0]]
  $region30: #{_lambda_.23} parent=0
    _
  %s6 = ssub.s32 1, %s4
  %s7 = scalar_select 0, %s6, %s4
  $region1: #{_lambda_.23} parent=0
    #allocation3 [shape = 'u8[16384]{0}', space=vmem, size = 0x4000, scoped, tag = 'output window, operand 0, single buffered']
    #allocation4 [shape = 's32[1]{0}', space=sflag, size = 0x4, scoped, tag = 'scoped memory for _lambda_.23']
    %8 = vsyncpa [#allocation4], 0
    // Predicated region
    $region2: #{_lambda_.23} parent=1 // pred_check
      _
    $region3: #{_lambda_.23} parent=1 // pred_check_branch
      %10 = sbr.rel (0) target = $region5
    $region4: #{_lambda_.23} parent=1 // pred_region
      _
    $region5: #{_lambda_.23} parent=1 // pred_fallthru
      _
    // Predicated region
    $region6: #{_lambda_.23} parent=1 // pred_check
      _
    $region7: #{_lambda_.23} parent=1 // pred_check_branch
      %12 = sbr.rel (0) target = $region9
    $region8: #{_lambda_.23} parent=1 // pred_region
      _
    $region9: #{_lambda_.23} parent=1 // pred_fallthru
      _
    // Predicated region
    $region10: #{_lambda_.23} parent=1 // pred_check
      _
    $region11: #{_lambda_.23} parent=1 // pred_check_branch
      %14 = sbr.rel (0) target = $region13
    $region12: #{_lambda_.23} parent=1 // pred_region
      _
    $region13: #{_lambda_.23} parent=1 // pred_fallthru
      _
    %p16 = scmp.eq.s32.totalorder 0, 0
    // Predicated region
    $region14: #{_lambda_.23} parent=1 // pred_check
      %p17 = pneg %p16
    $region15: #{_lambda_.23} parent=1 // pred_check_branch
      %19 = sbr.rel (%p17) target = $region17
    $region16: #{_lambda_.23} parent=1 // pred_region
      %20 = vst [vmem:[#allocation2] sm:$0xff] 0.0
      %21 = vst [vmem:[#allocation2 + $0x8] sm:$0xff] 0.0
      %22 = vst [vmem:[#allocation2 + $0x10] sm:$0xff] 0.0
      %23 = vst [vmem:[#allocation2 + $0x18] sm:$0xff] 0.0
    $region17: #{_lambda_.23} parent=1 // pred_fallthru
      _
    %v24 = vld [vmem:[#allocation2] sm:$0xff]
    %v25 = vld [vmem:[#allocation2 + $0x8] sm:$0xff]
    %v26 = vld [vmem:[#allocation2 + $0x10] sm:$0xff]
    %v27 = vld [vmem:[#allocation2 + $0x18] sm:$0xff]
    %v28 = vld [vmem:[%s0] sm:$0xff]
    %v29 = vld [vmem:[%s0 + $0x8] sm:$0xff]
    %v30 = vld [vmem:[%s0 + $0x10] sm:$0xff]
    %v31 = vld [vmem:[%s0 + $0x18] sm:$0xff]
    %v32 = vpack.c.bf16 %v29, %v28
    %v33 = vpack.c.bf16 %v31, %v30
    %v34 = vld [vmem:[%s1] sm:$0xff]
    %v35 = vld [vmem:[%s1 + $0x8] sm:$0xff]
    %v36 = vld [vmem:[%s1 + $0x10] sm:$0xff]
    %v37 = vld [vmem:[%s1 + $0x18] sm:$0xff]
    %v38 = vld [vmem:[%s1 + $0x20] sm:$0xff]
    %v39 = vld [vmem:[%s1 + $0x28] sm:$0xff]
    %v40 = vld [vmem:[%s1 + $0x30] sm:$0xff]
    %v41 = vld [vmem:[%s1 + $0x38] sm:$0xff]
    %v42 = vld [vmem:[%s1 + $0x40] sm:$0xff]
    %v43 = vld [vmem:[%s1 + $0x48] sm:$0xff]
    %v44 = vld [vmem:[%s1 + $0x50] sm:$0xff]
    %v45 = vld [vmem:[%s1 + $0x58] sm:$0xff]
    %v46 = vld [vmem:[%s1 + $0x60] sm:$0xff]
    %v47 = vld [vmem:[%s1 + $0x68] sm:$0xff]
    %v48 = vld [vmem:[%s1 + $0x70] sm:$0xff]
    %v49 = vld [vmem:[%s1 + $0x78] sm:$0xff]
    %v50 = vpack.c.bf16 %v35, %v34
    %v51 = vpack.c.bf16 %v37, %v36
    %v52 = vpack.c.bf16 %v39, %v38
    %v53 = vpack.c.bf16 %v41, %v40
    %v54 = vpack.c.bf16 %v43, %v42
    %v55 = vpack.c.bf16 %v45, %v44
    %v56 = vpack.c.bf16 %v47, %v46
    %v57 = vpack.c.bf16 %v49, %v48
    %58 = vmatprep.subr.bf16.mxu0 0
    %59 = vmatpush1.bf16.msra.mxu0 %v50
    %60 = vmatprep.subr.bf16.mxu0 0
    %61 = vmatpush1.bf16.msra.mxu0 %v51
    %62 = vmatprep.subr.bf16.mxu0 0
    %63 = vmatpush1.bf16.msra.mxu0 %v52
    %64 = vmatprep.subr.bf16.mxu0 0
    %65 = vmatpush1.bf16.msra.mxu0 %v53
    %66 = vmatprep.subr.bf16.mxu0 0
    %67 = vmatpush1.bf16.msra.mxu0 %v54
    %68 = vmatprep.subr.bf16.mxu0 0
    %69 = vmatpush1.bf16.msra.mxu0 %v55
    %70 = vmatprep.subr.bf16.mxu0 0
    %71 = vmatpush1.bf16.msra.mxu0 %v56
    %72 = vmatprep.subr.bf16.mxu0 0
    %73 = vmatpush1.bf16.msra.mxu0 %v57
    %74 = vmatprep.subr.bf16.mxu0 0
    %75 = vmatpush1.bf16.msra.mxu0 0
    %76 = vmatprep.subr.bf16.mxu0 0
    %77 = vmatpush1.bf16.msra.mxu0 0
    %78 = vmatprep.subr.bf16.mxu0 0
    %79 = vmatpush1.bf16.msra.mxu0 0
    %80 = vmatprep.subr.bf16.mxu0 0
    %81 = vmatpush1.bf16.msra.mxu0 0
    %82 = vmatprep.subr.bf16.mxu0 0
    %83 = vmatpush1.bf16.msra.mxu0 0
    %84 = vmatprep.subr.bf16.mxu0 0
    %85 = vmatpush1.bf16.msra.mxu0 0
    %86 = vmatprep.subr.bf16.mxu0 0
    %87 = vmatpush1.bf16.msra.mxu0 0
    %88 = vmatprep.subr.bf16.mxu0 0
    %89 = vmatpush1.bf16.msra.mxu0 0
    %90 = vmatprep.mubr.bf16.mxu0 0
    %91 = vmatmul.mubr.bf16.gmra.mrb[0].mxu0 %v32
    %v92 = vpop.f32.mrb[0].mxu0
    %v93 = vadd.f32 0.0, %v92
    %v94 = vpop.f32.mrb[0].mxu0
    %v95 = vpop.f32.mrb[0].mxu0
    %v96 = vadd.f32 0.0, %v95
    %v97 = vpop.f32.mrb[0].mxu0
    %98 = vmatprep.mubr.bf16.mxu0 0
    %99 = vmatmul.mubr.bf16.gmra.mrb[0].mxu0 %v33
    %v100 = vpop.f32.mrb[0].mxu0
    %v101 = vadd.f32 0.0, %v100
    %v102 = vpop.f32.mrb[0].mxu0
    %v103 = vpop.f32.mrb[0].mxu0
    %v104 = vadd.f32 0.0, %v103
    %v105 = vpop.f32.mrb[0].mxu0
    %106 = vdwg.mxu0
    %v107 = vadd.f32 %v24, %v93
    %v108 = vadd.f32 %v25, %v96
    %v109 = vadd.f32 %v26, %v101
    %v110 = vadd.f32 %v27, %v104
    %111 = vst [vmem:[#allocation2] sm:$0xff] %v107
    %112 = vst [vmem:[#allocation2 + $0x8] sm:$0xff] %v108
    %113 = vst [vmem:[#allocation2 + $0x10] sm:$0xff] %v109
    %114 = vst [vmem:[#allocation2 + $0x18] sm:$0xff] %v110
    // Predicated region
    $region18: #{_lambda_.23} parent=1 // pred_check
      %p115 = pneg %p16
    $region19: #{_lambda_.23} parent=1 // pred_check_branch
      %117 = sbr.rel (%p115) target = $region21
    $region20: #{_lambda_.23} parent=1 // pred_region
      %v118 = vld [vmem:[#allocation2] sm:$0xff]
      %v119 = vld [vmem:[#allocation2 + $0x8] sm:$0xff]
      %v120 = vld [vmem:[#allocation2 + $0x10] sm:$0xff]
      %v121 = vld [vmem:[#allocation2 + $0x18] sm:$0xff]
      %v122 = vld [vmem:[%s2] sm:$0xff]
      %v123 = vld [vmem:[%s2 + $0x8] sm:$0xff]
      %v124 = vld [vmem:[%s2 + $0x10] sm:$0xff]
      %v125 = vld [vmem:[%s2 + $0x18] sm:$0xff]
      %v126 = vadd.f32 %v118, %v122
      %v127 = vadd.f32 %v119, %v123
      %v128 = vadd.f32 %v120, %v124
      %v129 = vadd.f32 %v121, %v125
      %130 = vst [vmem:[#allocation3] sm:$0xff] %v126
      %131 = vst [vmem:[#allocation3 + $0x8] sm:$0xff] %v127
      %132 = vst [vmem:[#allocation3 + $0x10] sm:$0xff] %v128
      %133 = vst [vmem:[#allocation3 + $0x18] sm:$0xff] %v129
    $region21: #{_lambda_.23} parent=1 // pred_fallthru
      _
    // Predicated region
    $region22: #{_lambda_.23} parent=1 // pred_check
      _
    $region23: #{_lambda_.23} parent=1 // pred_check_branch
      %135 = sbr.rel (0) target = $region25
    $region24: #{_lambda_.23} parent=1 // pred_region
      %s137 = ssub.s32 512, 512
      %138 = vsyncadd [#allocation4], %s137
      %s139 = sshll.u32 [#allocation3], 4
      %s140 = int_to_ptr.vmem [resolvable:$true] %s139
      %145 = dma.vmem_to_hbm [thread:$0]  %s140, 512, %s3, [#allocation4], 128, 128, 8
    $region25: #{_lambda_.23} parent=1 // pred_fallthru
      _
    // Predicated region
    $region26: #{_lambda_.23} parent=1 // pred_check
      _
    $region27: #{_lambda_.23} parent=1 // pred_check_branch
      %147 = sbr.rel (0) target = $region29
    $region28: #{_lambda_.23} parent=1 // pred_region
      %148 = dma.done [#allocation4], 512
    $region29: #{_lambda_.23} parent=1 // pred_fallthru
      _
    %149 = vsyncpa [#allocation4], 1

// kernel: _lambda_.20
$region0: #{_lambda_.20}
  #allocation0 [shape = 'u32[]', space=smem, size = 0x4, offset = 0x4, fixed_abs, tag = 'smem constant byte address 0x4 - core index']
  #allocation1 [shape = 'u32[144,128]{1,0:T(1,128)}', space=vmem, size = 0x12000, scoped, tag = 'internal scratch']
  #allocation2 [shape = 'f32[32,128]{1,0:T(8,128)}', space=vmem, size = 0x4000, scoped, tag = 'scratch operand']
  %s0 = inlined_call_operand.vmem [shape: f32[32,128], index: 0, kind: input, shape index: {}]
  %s1 = inlined_call_operand.vmem [shape: f32[32,128], index: 1, kind: input, shape index: {}]
  %s2 = inlined_call_operand.vmem [shape: f32[32,128], index: 2, kind: input, shape index: {}]
  %s3 = inlined_call_operand.vmem [shape: f32[128,128], index: 3, kind: input, shape index: {}]
  %s4 = inlined_call_operand.vmem [shape: f32[32,128], index: 4, kind: input, shape index: {}]
  %s5 = inlined_call_operand.vmem [shape: f32[32,128], index: 5, kind: output, shape index: {}]
  %s6 = sld [smem:[#allocation0]]
  $region38: #{_lambda_.20} parent=0
    _
  %s8 = ssub.s32 1, %s6
  %s9 = scalar_select 0, %s8, %s6
  // Predicated region
  $region2: #{_lambda_.20} parent=0 // pred_check
    _
  $region3: #{_lambda_.20} parent=0 // pred_check_branch
    %11 = sbr.rel (0) target = $region5
  $region4: #{_lambda_.20} parent=0 // pred_region
    _
  $region5: #{_lambda_.20} parent=0 // pred_fallthru
    _
  // Predicated region
  $region6: #{_lambda_.20} parent=0 // pred_check
    _
  $region7: #{_lambda_.20} parent=0 // pred_check_branch
    %13 = sbr.rel (0) target = $region9
  $region8: #{_lambda_.20} parent=0 // pred_region
    _
  $region9: #{_lambda_.20} parent=0 // pred_fallthru
    _
  // Predicated region
  $region10: #{_lambda_.20} parent=0 // pred_check
    _
  $region11: #{_lambda_.20} parent=0 // pred_check_branch
    %15 = sbr.rel (0) target = $region13
  $region12: #{_lambda_.20} parent=0 // pred_region
    _
  $region13: #{_lambda_.20} parent=0 // pred_fallthru
    _
  // Predicated region
  $region14: #{_lambda_.20} parent=0 // pred_check
    _
  $region15: #{_lambda_.20} parent=0 // pred_check_branch
    %17 = sbr.rel (0) target = $region17
  $region16: #{_lambda_.20} parent=0 // pred_region
    _
  $region17: #{_lambda_.20} parent=0 // pred_fallthru
    _
  // Predicated region
  $region18: #{_lambda_.20} parent=0 // pred_check
    _
  $region19: #{_lambda_.20} parent=0 // pred_check_branch
    %19 = sbr.rel (0) target = $region21
  $region20: #{_lambda_.20} parent=0 // pred_region
    _
  $region21: #{_lambda_.20} parent=0 // pred_fallthru
    _
  %p21 = scmp.eq.s32.totalorder 0, 0
  // Predicated region
  $region22: #{_lambda_.20} parent=0 // pred_check
    %p22 = pneg %p21
  $region23: #{_lambda_.20} parent=0 // pred_check_branch
    %24 = sbr.rel (%p22) target = $region25
  $region24: #{_lambda_.20} parent=0 // pred_region
    %25 = vst [vmem:[#allocation2] sm:$0xff] 0.0
    %26 = vst [vmem:[#allocation2 + $0x8] sm:$0xff] 0.0
    %27 = vst [vmem:[#allocation2 + $0x10] sm:$0xff] 0.0
    %28 = vst [vmem:[#allocation2 + $0x18] sm:$0xff] 0.0
  $region25: #{_lambda_.20} parent=0 // pred_fallthru
    _
  %v29 = vld [vmem:[%s0] sm:$0xff]
  %v30 = vld [vmem:[%s0 + $0x8] sm:$0xff]
  %v31 = vld [vmem:[%s0 + $0x10] sm:$0xff]
  %v32 = vld [vmem:[%s0 + $0x18] sm:$0xff]
  %v33 = vld [vmem:[%s1] sm:$0xff]
  %v34 = vld [vmem:[%s1 + $0x8] sm:$0xff]
  %v35 = vld [vmem:[%s1 + $0x10] sm:$0xff]
  %v36 = vld [vmem:[%s1 + $0x18] sm:$0xff]
  %v37 = vmul.f32 %v29, %v33
  %v38 = vmul.f32 %v30, %v34
  %v39 = vmul.f32 %v31, %v35
  %v40 = vmul.f32 %v32, %v36
  %v41 = vsub.f32 1.0, %v29
  %v42 = vsub.f32 1.0, %v30
  %v43 = vsub.f32 1.0, %v31
  %v44 = vsub.f32 1.0, %v32
  %v45 = vld [vmem:[%s2] sm:$0xff]
  %v46 = vld [vmem:[%s2 + $0x8] sm:$0xff]
  %v47 = vld [vmem:[%s2 + $0x10] sm:$0xff]
  %v48 = vld [vmem:[%s2 + $0x18] sm:$0xff]
  %v49 = vmul.f32 %v41, %v45
  %v50 = vmul.f32 %v42, %v46
  %v51 = vmul.f32 %v43, %v47
  %v52 = vmul.f32 %v44, %v48
  %v53 = vadd.f32 %v37, %v49
  %v54 = vadd.f32 %v38, %v50
  %v55 = vadd.f32 %v39, %v51
  %v56 = vadd.f32 %v40, %v52
  %v57 = vld [vmem:[#allocation2] sm:$0xff]
  %v58 = vld [vmem:[#allocation2 + $0x8] sm:$0xff]
  %v59 = vld [vmem:[#allocation2 + $0x10] sm:$0xff]
  %v60 = vld [vmem:[#allocation2 + $0x18] sm:$0xff]
  %v61 = vpack.c.bf16 %v54, %v53
  %v62 = vpack.c.bf16 %v56, %v55
  %v63 = vld [vmem:[%s3] sm:$0xff]
  %v64 = vld [vmem:[%s3 + $0x8] sm:$0xff]
  %v65 = vld [vmem:[%s3 + $0x10] sm:$0xff]
  %v66 = vld [vmem:[%s3 + $0x18] sm:$0xff]
  %v67 = vld [vmem:[%s3 + $0x20] sm:$0xff]
  %v68 = vld [vmem:[%s3 + $0x28] sm:$0xff]
  %v69 = vld [vmem:[%s3 + $0x30] sm:$0xff]
  %v70 = vld [vmem:[%s3 + $0x38] sm:$0xff]
  %v71 = vld [vmem:[%s3 + $0x40] sm:$0xff]
  %v72 = vld [vmem:[%s3 + $0x48] sm:$0xff]
  %v73 = vld [vmem:[%s3 + $0x50] sm:$0xff]
  %v74 = vld [vmem:[%s3 + $0x58] sm:$0xff]
  %v75 = vld [vmem:[%s3 + $0x60] sm:$0xff]
  %v76 = vld [vmem:[%s3 + $0x68] sm:$0xff]
  %v77 = vld [vmem:[%s3 + $0x70] sm:$0xff]
  %v78 = vld [vmem:[%s3 + $0x78] sm:$0xff]
  %v79 = vpack.c.bf16 %v64, %v63
  %v80 = vpack.c.bf16 %v66, %v65
  %v81 = vpack.c.bf16 %v68, %v67
  %v82 = vpack.c.bf16 %v70, %v69
  %v83 = vpack.c.bf16 %v72, %v71
  %v84 = vpack.c.bf16 %v74, %v73
  %v85 = vpack.c.bf16 %v76, %v75
  %v86 = vpack.c.bf16 %v78, %v77
  %87 = vmatprep.subr.bf16.mxu0 0
  %88 = vmatpush1.bf16.msra.mxu0 %v79
  %89 = vmatprep.subr.bf16.mxu0 0
  %90 = vmatpush1.bf16.msra.mxu0 %v80
  %91 = vmatprep.subr.bf16.mxu0 0
  %92 = vmatpush1.bf16.msra.mxu0 %v81
  %93 = vmatprep.subr.bf16.mxu0 0
  %94 = vmatpush1.bf16.msra.mxu0 %v82
  %95 = vmatprep.subr.bf16.mxu0 0
  %96 = vmatpush1.bf16.msra.mxu0 %v83
  %97 = vmatprep.subr.bf16.mxu0 0
  %98 = vmatpush1.bf16.msra.mxu0 %v84
  %99 = vmatprep.subr.bf16.mxu0 0
  %100 = vmatpush1.bf16.msra.mxu0 %v85
  %101 = vmatprep.subr.bf16.mxu0 0
  %102 = vmatpush1.bf16.msra.mxu0 %v86
  %103 = vmatprep.subr.bf16.mxu0 0
  %104 = vmatpush1.bf16.msra.mxu0 0
  %105 = vmatprep.subr.bf16.mxu0 0
  %106 = vmatpush1.bf16.msra.mxu0 0
  %107 = vmatprep.subr.bf16.mxu0 0
  %108 = vmatpush1.bf16.msra.mxu0 0
  %109 = vmatprep.subr.bf16.mxu0 0
  %110 = vmatpush1.bf16.msra.mxu0 0
  %111 = vmatprep.subr.bf16.mxu0 0
  %112 = vmatpush1.bf16.msra.mxu0 0
  %113 = vmatprep.subr.bf16.mxu0 0
  %114 = vmatpush1.bf16.msra.mxu0 0
  %115 = vmatprep.subr.bf16.mxu0 0
  %116 = vmatpush1.bf16.msra.mxu0 0
  %117 = vmatprep.subr.bf16.mxu0 0
  %118 = vmatpush1.bf16.msra.mxu0 0
  %119 = vmatprep.mubr.bf16.mxu0 0
  %120 = vmatmul.mubr.bf16.gmra.mrb[0].mxu0 %v61
  %v121 = vpop.f32.mrb[0].mxu0
  %v122 = vadd.f32 0.0, %v121
  %v123 = vpop.f32.mrb[0].mxu0
  %v124 = vpop.f32.mrb[0].mxu0
  %v125 = vadd.f32 0.0, %v124
  %v126 = vpop.f32.mrb[0].mxu0
  %127 = vmatprep.mubr.bf16.mxu0 0
  %128 = vmatmul.mubr.bf16.gmra.mrb[0].mxu0 %v62
  %v129 = vpop.f32.mrb[0].mxu0
  %v130 = vadd.f32 0.0, %v129
  %v131 = vpop.f32.mrb[0].mxu0
  %v132 = vpop.f32.mrb[0].mxu0
  %v133 = vadd.f32 0.0, %v132
  %v134 = vpop.f32.mrb[0].mxu0
  %135 = vdwg.mxu0
  %v136 = vadd.f32 %v57, %v122
  %v137 = vadd.f32 %v58, %v125
  %v138 = vadd.f32 %v59, %v130
  %v139 = vadd.f32 %v60, %v133
  %140 = vst [vmem:[#allocation2] sm:$0xff] %v136
  %141 = vst [vmem:[#allocation2 + $0x8] sm:$0xff] %v137
  %142 = vst [vmem:[#allocation2 + $0x10] sm:$0xff] %v138
  %143 = vst [vmem:[#allocation2 + $0x18] sm:$0xff] %v139
  // Predicated region
  $region26: #{_lambda_.20} parent=0 // pred_check
    %p144 = pneg %p21
  $region27: #{_lambda_.20} parent=0 // pred_check_branch
    %146 = sbr.rel (%p144) target = $region29
  $region28: #{_lambda_.20} parent=0 // pred_region
    %v147 = vld [vmem:[#allocation2] sm:$0xff]
    %v148 = vld [vmem:[#allocation2 + $0x8] sm:$0xff]
    %v149 = vld [vmem:[#allocation2 + $0x10] sm:$0xff]
    %v150 = vld [vmem:[#allocation2 + $0x18] sm:$0xff]
    %v151 = vld [vmem:[%s4] sm:$0xff]
    %v152 = vld [vmem:[%s4 + $0x8] sm:$0xff]
    %v153 = vld [vmem:[%s4 + $0x10] sm:$0xff]
    %v154 = vld [vmem:[%s4 + $0x18] sm:$0xff]
    %v155 = vadd.f32 %v147, %v151
    %v156 = vadd.f32 %v148, %v152
    %v157 = vadd.f32 %v149, %v153
    %v158 = vadd.f32 %v150, %v154
    %159 = vst [vmem:[%s5] sm:$0xff] %v155
    %160 = vst [vmem:[%s5 + $0x8] sm:$0xff] %v156
    %161 = vst [vmem:[%s5 + $0x10] sm:$0xff] %v157
    %162 = vst [vmem:[%s5 + $0x18] sm:$0xff] %v158
  $region29: #{_lambda_.20} parent=0 // pred_fallthru
    _
  // Predicated region
  $region30: #{_lambda_.20} parent=0 // pred_check
    _
  $region31: #{_lambda_.20} parent=0 // pred_check_branch
    %164 = sbr.rel (0) target = $region33
  $region32: #{_lambda_.20} parent=0 // pred_region
    _
  $region33: #{_lambda_.20} parent=0 // pred_fallthru
    _
  // Predicated region
  $region34: #{_lambda_.20} parent=0 // pred_check
    _
  $region35: #{_lambda_.20} parent=0 // pred_check_branch
    %166 = sbr.rel (0) target = $region37
  $region36: #{_lambda_.20} parent=0 // pred_region
    _
  $region37: #{_lambda_.20} parent=0 // pred_fallthru
    _

</llo_original>
